<compile_context>
chip_gen: v7x
topology: tpu7x:2x2x1
jax: 0.10.0
libtpu: 0.0.40
codegen_flags: <defaults>
</compile_context>

<pallas_src>
import jax
import jax.numpy as jnp
from jax.experimental import pallas as pl
from jax.experimental.pallas import tpu as pltpu


# ---------------------------------------------------------------------------
# Kernel
# ---------------------------------------------------------------------------

def _make_encoder_kernel(n_layers, tb, T, E, H, in_mm_dtype=jnp.float32):
    """Builds the kernel for one batch block of size tb.

    ref layout:
      refs[0]    x      (tb, T, E)            f32
      refs[1]    mask   (tb, T)               f32
      refs[2:-1] fused GRU weights (see _fuse_gru_dir_weights)
      refs[-1]   out    (n_layers, tb, T, 2H) f32
    """
    H3 = 3 * H
    f32 = jnp.float32
    BT = tb * T

    def kernel(*refs):
        x_ref, mask_ref = refs[0], refs[1]
        w_refs = refs[2:-1]
        out_ref = refs[-1]

        mask2 = mask_ref[...]                                       # (tb, T)
        # Hoisted per-timestep masks (broadcasts are not CSE'd by JAX: do them once,
        # reuse across all layers and both directions).
        m_bc = [jnp.broadcast_to(mask2[:, t:t + 1], (tb, H)) for t in range(T)]

        def gru_step(h, gi_t, whh, bhn_bc, m_t):
            # Single fused hidden-side matmul per step (gates r|z|n in the lane dim).
            gh = jnp.dot(h, whh, preferred_element_type=f32)        # (tb, 3H)
            r = jax.nn.sigmoid(gi_t[:, :H] + gh[:, :H])
            z = jax.nn.sigmoid(gi_t[:, H:2 * H] + gh[:, H:2 * H])
            ng = jnp.tanh(gi_t[:, 2 * H:] + r * (gh[:, 2 * H:] + bhn_bc))
            cand = (1.0 - z) * ng + z * h
            # Packed-sequence semantics: freeze carry / zero output when padded.
            h_new = h + m_t * (cand - h)
            return h_new, m_t * h_new

        prev_f = None   # previous layer's masked outputs, kept as (BT, H) values
        prev_b = None
        wi = 0
        for l in range(n_layers):
            # --- hoisted fused input-to-hidden matmuls (biases folded in) ---
            if l == 0:
                wf_ih, wf_hh, bias_f, bhn_f = w_refs[wi:wi + 4]; wi += 4
                wb_ih, wb_hh, bias_b, bhn_b = w_refs[wi:wi + 4]; wi += 4
                x2d = x_ref[...].reshape(BT, E).astype(in_mm_dtype)
                gi_f = jnp.dot(x2d, wf_ih[...].astype(in_mm_dtype),
                               preferred_element_type=f32) + bias_f[...]
                gi_b = jnp.dot(x2d, wb_ih[...].astype(in_mm_dtype),
                               preferred_element_type=f32) + bias_b[...]
            else:
                wf_ih_f, wf_ih_b, wf_hh, bias_f, bhn_f = w_refs[wi:wi + 5]; wi += 5
                wb_ih_f, wb_ih_b, wb_hh, bias_b, bhn_b = w_refs[wi:wi + 5]; wi += 5
                xf = prev_f.astype(in_mm_dtype)
                xb = prev_b.astype(in_mm_dtype)
                # (2H -> 3H) input weight pre-split into fwd/bwd halves in the wrapper:
                # two matmuls instead of a lane-dim concat of the direction outputs.
                gi_f = (jnp.dot(xf, wf_ih_f[...].astype(in_mm_dtype), preferred_element_type=f32)
                        + jnp.dot(xb, wf_ih_b[...].astype(in_mm_dtype), preferred_element_type=f32)
                        + bias_f[...])
                gi_b = (jnp.dot(xf, wb_ih_f[...].astype(in_mm_dtype), preferred_element_type=f32)
                        + jnp.dot(xb, wb_ih_b[...].astype(in_mm_dtype), preferred_element_type=f32)
                        + bias_b[...])

            gi_f = gi_f.reshape(tb, T, H3)
            gi_b = gi_b.reshape(tb, T, H3)

            whh_f = wf_hh[...]                                      # (H, 3H), fused r|z|n
            whh_b = wb_hh[...]
            bhn_f_bc = jnp.broadcast_to(bhn_f[...], (tb, H))        # hoisted broadcasts
            bhn_b_bc = jnp.broadcast_to(bhn_b[...], (tb, H))

            # --- recurrence: fwd & bwd chains interleaved in ONE time loop (ILP between
            # the two independent serial chains). T small & static -> unrolled.
            # TODO(synk): for large T switch to lax.fori_loop(unroll=4/8) with gi held
            # in a VMEM scratch to bound live ranges.
            h_f = jnp.zeros((tb, H), f32)
            h_b = jnp.zeros((tb, H), f32)
            outs_f = [None] * T
            outs_b = [None] * T
            for t in range(T):
                tr = T - 1 - t
                h_f, o_f = gru_step(h_f, gi_f[:, t, :], whh_f, bhn_f_bc, m_bc[t])
                h_b, o_b = gru_step(h_b, gi_b[:, tr, :], whh_b, bhn_b_bc, m_bc[tr])
                outs_f[t] = o_f
                outs_b[tr] = o_b

            # --- one stacked store per direction per layer, written straight into the
            # module's final layout (fwd half first). Lane-aligned when H % 128 == 0.
            of = jnp.stack(outs_f, axis=1)                          # (tb, T, H)
            ob = jnp.stack(outs_b, axis=1)
            out_ref[l, :, :, 0:H] = of
            out_ref[l, :, :, H:2 * H] = ob

            if l + 1 < n_layers:
                prev_f = of.reshape(BT, H)
                prev_b = ob.reshape(BT, H)

    return kernel


# ---------------------------------------------------------------------------
# Wrapper-side plumbing
# ---------------------------------------------------------------------------

def _embed(tokens, emb_w, max_norm=1.0):
    """nn.Embedding(max_norm=1) forward value: looked-up rows renormed to L2 <= max_norm.
    (scale_grad_by_freq only affects gradients, so it has no forward effect.)"""
    norms = jnp.linalg.norm(emb_w, axis=1, keepdims=True)
    scale = jnp.minimum(1.0, max_norm / jnp.maximum(norms, 1e-7))
    return (emb_w * scale)[tokens]


def _fuse_gru_dir_weights(w_ih, w_hh, b_ih, b_hh, H, split_input):
    """PyTorch GRU direction weights (gate order r, z, n) -> fused kernel layout.

    Returns (D, 3H) fused input weight (split into fwd/bwd row halves for stacked
    layers), (H, 3H) fused hidden weight, (1, 3H) bias with b_ir+b_hr / b_iz+b_hz / b_in
    folded, and (1, H) b_hn kept separate (it sits inside the r * (.) term).
    """
    w_ih = jnp.asarray(w_ih, jnp.float32)
    w_hh = jnp.asarray(w_hh, jnp.float32)
    b_ih = jnp.asarray(b_ih, jnp.float32)
    b_hh = jnp.asarray(b_hh, jnp.float32)
    w_ih_t = w_ih.T                                   # (D, 3H), columns already r|z|n
    w_hh_t = w_hh.T                                   # (H, 3H)
    bias = jnp.concatenate([b_ih[:2 * H] + b_hh[:2 * H], b_ih[2 * H:]]).reshape(1, 3 * H)
    b_hn = b_hh[2 * H:].reshape(1, H)
    if split_input:
        return (w_ih_t[:H], w_ih_t[H:], w_hh_t, bias, b_hn)
    return (w_ih_t, w_hh_t, bias, b_hn)


def _padded_bytes(shape, dtype_bytes=4):
    s = list(shape)
    s[-1] = -(-s[-1] // 128) * 128
    if len(s) >= 2:
        s[-2] = -(-s[-2] // 8) * 8
    n = 1
    for d in s:
        n *= d
    return n * dtype_bytes


def _vmem_estimate_bytes(tb, T, E, H, n_layers):
    BT = tb * T
    est = 0
    est += 2 * _padded_bytes((tb, T, E))                  # x block (double-buffered)
    est += 2 * _padded_bytes((tb, T))                     # mask block
    est += 2 * _padded_bytes((n_layers, tb, T, 2 * H))    # out block
    est += 2 * _padded_bytes((BT, 3 * H))                 # gi fwd + bwd slabs
    est += 4 * _padded_bytes((BT, H))                     # prev-layer acts + stacked outs
    for l in range(n_layers):
        D = E if l == 0 else 2 * H
        per_dir = (_padded_bytes((D, 3 * H)) + _padded_bytes((H, 3 * H))
                   + _padded_bytes((1, 3 * H)) + _padded_bytes((1, H)))
        est += 2 * 2 * per_dir                            # 2 dirs, double-buffered
    return est + (4 << 20)                                # compiler scratch headroom


_VMEM_SOFT_BUDGET = 44 << 20   # fits v7x's 64 MiB with headroom; v5e/v6e have 128 MiB


def _pick_batch_tile(B, T, E, H, n_layers):
    if B <= 8 or B % 8 != 0:
        return B
    cands = [tb for tb in range(B, 7, -8) if B % tb == 0]        # large -> small
    fitting = [tb for tb in cands
               if _vmem_estimate_bytes(tb, T, E, H, n_layers) <= _VMEM_SOFT_BUDGET]
    if not fitting:
        return 8
    # Prefer >= 2 grid blocks so ("parallel",) can shard the batch axis over v7x's two
    # TensorCores; each block is still the largest tile that fits the VMEM budget.
    multi = [tb for tb in fitting if B // tb >= 2]
    return multi[0] if multi else fitting[0]


def encoder_forward_pallas(tokens, params, n_layers, H, input_matmul_dtype=jnp.float32):
    """EncoderND.forward (eval-mode dropout) for int token ids (B, T) -> (n, B, T, 2H)."""
    B, T = tokens.shape
    E = params['embedding'].shape[1]

    # --- JAX glue: embedding gather (+ max_norm renorm) and packed-length mask ---
    x_emb = _embed(tokens, params['embedding']).astype(jnp.float32)      # (B, T, E)
    # NOTE: assumes pad id 0 with contiguous trailing padding (pack_padded_sequence lens).
    lens = (tokens != 0).sum(axis=1)
    mask = (jnp.arange(T)[None, :] < lens[:, None]).astype(jnp.float32)  # (B, T)

    # --- fused / pre-split weights: one-time wrapper plumbing ---
    weight_args = []
    for l in range(n_layers):
        for suffix in ('', '_reverse'):
            weight_args.extend(_fuse_gru_dir_weights(
                params[f'weight_ih_l{l}{suffix}'], params[f'weight_hh_l{l}{suffix}'],
                params[f'bias_ih_l{l}{suffix}'], params[f'bias_hh_l{l}{suffix}'],
                H, split_input=(l > 0)))

    tb = _pick_batch_tile(B, T, E, H, n_layers)
    grid = (B // tb,)
    est = _vmem_estimate_bytes(tb, T, E, H, n_layers)
    vmem_limit = int(min(max(est, 32 << 20), 96 << 20))

    in_specs = [
        pl.BlockSpec((tb, T, E), lambda b: (b, 0, 0)),
        pl.BlockSpec((tb, T), lambda b: (b, 0)),
    ]
    for w in weight_args:   # grid-invariant full 2-D blocks
        in_specs.append(pl.BlockSpec(w.shape, lambda b: (0, 0)))
    out_spec = pl.BlockSpec((n_layers, tb, T, 2 * H), lambda b: (0, b, 0, 0))

    kernel = _make_encoder_kernel(n_layers, tb, T, E, H, in_mm_dtype=input_matmul_dtype)
    out = pl.pallas_call(
        kernel,
        out_shape=jax.ShapeDtypeStruct((n_layers, B, T, 2 * H), jnp.float32),
        grid=grid,
        in_specs=in_specs,
        out_specs=out_spec,
        compiler_params=pltpu.CompilerParams(
            dimension_semantics=("parallel",),        # batch blocks are independent
            vmem_limit_bytes=vmem_limit),
    )(x_emb, mask, *weight_args)
    # Already the module's (n, B, T, 2H) layout: no wrapper transpose / reshape needed.
    return out


# ---------------------------------------------------------------------------
# Pure-JAX reference (mirrors the PyTorch forward: eval dropout, packed bi-GRUs)
# ---------------------------------------------------------------------------

def encoder_forward_ref(tokens, params, n_layers, H):
    B, T = tokens.shape
    lens = (tokens != 0).sum(axis=1)
    x = _embed(tokens, params['embedding']).astype(jnp.float32)
    valid = (jnp.arange(T)[None, :] < lens[:, None]).astype(jnp.float32)     # (B, T)

    def cell(x_t, h, w_ih, w_hh, b_ih, b_hh):
        gi = x_t @ w_ih.T + b_ih
        gh = h @ w_hh.T + b_hh
        r = jax.nn.sigmoid(gi[:, :H] + gh[:, :H])
        z = jax.nn.sigmoid(gi[:, H:2 * H] + gh[:, H:2 * H])
        ng = jnp.tanh(gi[:, 2 * H:] + r * gh[:, 2 * H:])
        return (1.0 - z) * ng + z * h

    def run_dir(xin, w_ih, w_hh, b_ih, b_hh, reverse):
        h = jnp.zeros((B, H), jnp.float32)
        outs = [None] * T
        order = range(T - 1, -1, -1) if reverse else range(T)
        for t in order:
            m = valid[:, t][:, None]
            cand = cell(xin[:, t], h, w_ih, w_hh, b_ih, b_hh)
            h = m * cand + (1.0 - m) * h
            outs[t] = m * h
        return jnp.stack(outs, axis=1)                                       # (B, T, H)

    layer_outs = []
    cur = x
    for l in range(n_layers):
        f = run_dir(cur, params[f'weight_ih_l{l}'], params[f'weight_hh_l{l}'],
                    params[f'bias_ih_l{l}'], params[f'bias_hh_l{l}'], False)
        b = run_dir(cur, params[f'weight_ih_l{l}_reverse'], params[f'weight_hh_l{l}_reverse'],
                    params[f'bias_ih_l{l}_reverse'], params[f'bias_hh_l{l}_reverse'], True)
        cur = jnp.concatenate([f, b], axis=-1)                               # (B, T, 2H)
        layer_outs.append(cur)
    return jnp.stack(layer_outs, axis=0)                                     # (n, B, T, 2H)


def make_params(key, V, E, H, n_layers):
    keys = jax.random.split(key, 1 + 8 * n_layers)
    params = {'embedding': jax.random.normal(keys[0], (V, E), jnp.float32) * 0.5}
    k = 1.0 / (H ** 0.5)
    idx = 1
    for l in range(n_layers):
        D = E if l == 0 else 2 * H
        for suffix in ('', '_reverse'):
            params[f'weight_ih_l{l}{suffix}'] = jax.random.uniform(
                keys[idx], (3 * H, D), jnp.float32, -k, k); idx += 1
            params[f'weight_hh_l{l}{suffix}'] = jax.random.uniform(
                keys[idx], (3 * H, H), jnp.float32, -k, k); idx += 1
            params[f'bias_ih_l{l}{suffix}'] = jax.random.uniform(
                keys[idx], (3 * H,), jnp.float32, -k, k); idx += 1
            params[f'bias_hh_l{l}{suffix}'] = jax.random.uniform(
                keys[idx], (3 * H,), jnp.float32, -k, k); idx += 1
    return params


if __name__ == "__main__":
    V, E, H = 50, 32, 32
    n_layers = 2          # module arg n (base_gru + n-1 layer_grus)
    B, T = 2, 8
    # dropout_ratio: identity in eval mode

    key = jax.random.PRNGKey(0)
    k_p, k_x = jax.random.split(key)
    params = make_params(k_p, V, E, H, n_layers)

    # Token ids with trailing 0-padding; row 0 is full length so max(len) == T,
    # matching the assumption baked into the PyTorch module's all_nh assignment.
    x = jax.random.randint(k_x, (B, T), 1, V, dtype=jnp.int32)
    x = x.at[1, 5:].set(0)

    out = encoder_forward_pallas(x, params, n_layers, H)
    out = jax.block_until_ready(out)

    ref = encoder_forward_ref(x, params, n_layers, H)
    assert out.shape == (n_layers, B, T, 2 * H), out.shape
    assert jnp.allclose(out, ref, rtol=1e-3, atol=1e-3), \
        float(jnp.max(jnp.abs(out - ref)))

    print("KERNEL_OK")
</pallas_src>

<mosaic_0001>
module attributes {stable_mosaic.version = 11 : i64} {
  func.func @kernel(%arg0: i32, %arg1: memref<2x8x32xf32, #tpu.memory_space<vmem>>, %arg2: memref<2x8xf32, #tpu.memory_space<vmem>>, %arg3: memref<32x96xf32, #tpu.memory_space<vmem>>, %arg4: memref<32x96xf32, #tpu.memory_space<vmem>>, %arg5: memref<1x96xf32, #tpu.memory_space<vmem>>, %arg6: memref<1x32xf32, #tpu.memory_space<vmem>>, %arg7: memref<32x96xf32, #tpu.memory_space<vmem>>, %arg8: memref<32x96xf32, #tpu.memory_space<vmem>>, %arg9: memref<1x96xf32, #tpu.memory_space<vmem>>, %arg10: memref<1x32xf32, #tpu.memory_space<vmem>>, %arg11: memref<32x96xf32, #tpu.memory_space<vmem>>, %arg12: memref<32x96xf32, #tpu.memory_space<vmem>>, %arg13: memref<32x96xf32, #tpu.memory_space<vmem>>, %arg14: memref<1x96xf32, #tpu.memory_space<vmem>>, %arg15: memref<1x32xf32, #tpu.memory_space<vmem>>, %arg16: memref<32x96xf32, #tpu.memory_space<vmem>>, %arg17: memref<32x96xf32, #tpu.memory_space<vmem>>, %arg18: memref<32x96xf32, #tpu.memory_space<vmem>>, %arg19: memref<1x96xf32, #tpu.memory_space<vmem>>, %arg20: memref<1x32xf32, #tpu.memory_space<vmem>>, %arg21: memref<2x2x8x64xf32, #tpu.memory_space<vmem>>) attributes {dimension_semantics = [#tpu.dimension_semantics<parallel>], iteration_bounds = array<i64: 1>, scalar_prefetch = 0 : i64, scratch_operands = 0 : i64, tpu.core_type = #tpu.core_type<tc>, window_params = [{transform_indices = @transform_0, window_bounds = array<i64: 2, 8, 32>}, {transform_indices = @transform_1, window_bounds = array<i64: 2, 8>}, {pipeline_mode = #tpu.pipeline_mode<synchronous>, transform_indices = @transform_2, window_bounds = array<i64: 32, 96>}, {pipeline_mode = #tpu.pipeline_mode<synchronous>, transform_indices = @transform_3, window_bounds = array<i64: 32, 96>}, {pipeline_mode = #tpu.pipeline_mode<synchronous>, transform_indices = @transform_4, window_bounds = array<i64: 1, 96>}, {pipeline_mode = #tpu.pipeline_mode<synchronous>, transform_indices = @transform_5, window_bounds = array<i64: 1, 32>}, {pipeline_mode = #tpu.pipeline_mode<synchronous>, transform_indices = @transform_6, window_bounds = array<i64: 32, 96>}, {pipeline_mode = #tpu.pipeline_mode<synchronous>, transform_indices = @transform_7, window_bounds = array<i64: 32, 96>}, {pipeline_mode = #tpu.pipeline_mode<synchronous>, transform_indices = @transform_8, window_bounds = array<i64: 1, 96>}, {pipeline_mode = #tpu.pipeline_mode<synchronous>, transform_indices = @transform_9, window_bounds = array<i64: 1, 32>}, {pipeline_mode = #tpu.pipeline_mode<synchronous>, transform_indices = @transform_10, window_bounds = array<i64: 32, 96>}, {pipeline_mode = #tpu.pipeline_mode<synchronous>, transform_indices = @transform_11, window_bounds = array<i64: 32, 96>}, {pipeline_mode = #tpu.pipeline_mode<synchronous>, transform_indices = @transform_12, window_bounds = array<i64: 32, 96>}, {pipeline_mode = #tpu.pipeline_mode<synchronous>, transform_indices = @transform_13, window_bounds = array<i64: 1, 96>}, {pipeline_mode = #tpu.pipeline_mode<synchronous>, transform_indices = @transform_14, window_bounds = array<i64: 1, 32>}, {pipeline_mode = #tpu.pipeline_mode<synchronous>, transform_indices = @transform_15, window_bounds = array<i64: 32, 96>}, {pipeline_mode = #tpu.pipeline_mode<synchronous>, transform_indices = @transform_16, window_bounds = array<i64: 32, 96>}, {pipeline_mode = #tpu.pipeline_mode<synchronous>, transform_indices = @transform_17, window_bounds = array<i64: 32, 96>}, {pipeline_mode = #tpu.pipeline_mode<synchronous>, transform_indices = @transform_18, window_bounds = array<i64: 1, 96>}, {pipeline_mode = #tpu.pipeline_mode<synchronous>, transform_indices = @transform_19, window_bounds = array<i64: 1, 32>}, {transform_indices = @transform_20, window_bounds = array<i64: 2, 2, 8, 64>}]} {
    %c0 = arith.constant 0 : index
    %c0_0 = arith.constant 0 : index
    %0 = vector.load %arg2[%c0, %c0_0] : memref<2x8xf32, #tpu.memory_space<vmem>>, vector<2x8xf32>
    %1 = vector.extract_strided_slice %0 {offsets = [0, 0], sizes = [2, 1], strides = [1, 1]} : vector<2x8xf32> to vector<2x1xf32>
    %2 = vector.shape_cast %1 : vector<2x1xf32> to vector<2x1xf32>
    %3 = vector.broadcast %2 : vector<2x1xf32> to vector<2x32xf32>
    %4 = vector.extract_strided_slice %0 {offsets = [0, 1], sizes = [2, 1], strides = [1, 1]} : vector<2x8xf32> to vector<2x1xf32>
    %5 = vector.shape_cast %4 : vector<2x1xf32> to vector<2x1xf32>
    %6 = vector.broadcast %5 : vector<2x1xf32> to vector<2x32xf32>
    %7 = vector.extract_strided_slice %0 {offsets = [0, 2], sizes = [2, 1], strides = [1, 1]} : vector<2x8xf32> to vector<2x1xf32>
    %8 = vector.shape_cast %7 : vector<2x1xf32> to vector<2x1xf32>
    %9 = vector.broadcast %8 : vector<2x1xf32> to vector<2x32xf32>
    %10 = vector.extract_strided_slice %0 {offsets = [0, 3], sizes = [2, 1], strides = [1, 1]} : vector<2x8xf32> to vector<2x1xf32>
    %11 = vector.shape_cast %10 : vector<2x1xf32> to vector<2x1xf32>
    %12 = vector.broadcast %11 : vector<2x1xf32> to vector<2x32xf32>
    %13 = vector.extract_strided_slice %0 {offsets = [0, 4], sizes = [2, 1], strides = [1, 1]} : vector<2x8xf32> to vector<2x1xf32>
    %14 = vector.shape_cast %13 : vector<2x1xf32> to vector<2x1xf32>
    %15 = vector.broadcast %14 : vector<2x1xf32> to vector<2x32xf32>
    %16 = vector.extract_strided_slice %0 {offsets = [0, 5], sizes = [2, 1], strides = [1, 1]} : vector<2x8xf32> to vector<2x1xf32>
    %17 = vector.shape_cast %16 : vector<2x1xf32> to vector<2x1xf32>
    %18 = vector.broadcast %17 : vector<2x1xf32> to vector<2x32xf32>
    %19 = vector.extract_strided_slice %0 {offsets = [0, 6], sizes = [2, 1], strides = [1, 1]} : vector<2x8xf32> to vector<2x1xf32>
    %20 = vector.shape_cast %19 : vector<2x1xf32> to vector<2x1xf32>
    %21 = vector.broadcast %20 : vector<2x1xf32> to vector<2x32xf32>
    %22 = vector.extract_strided_slice %0 {offsets = [0, 7], sizes = [2, 1], strides = [1, 1]} : vector<2x8xf32> to vector<2x1xf32>
    %23 = vector.shape_cast %22 : vector<2x1xf32> to vector<2x1xf32>
    %24 = vector.broadcast %23 : vector<2x1xf32> to vector<2x32xf32>
    %c0_1 = arith.constant 0 : index
    %c0_2 = arith.constant 0 : index
    %c0_3 = arith.constant 0 : index
    %25 = vector.load %arg1[%c0_1, %c0_2, %c0_3] : memref<2x8x32xf32, #tpu.memory_space<vmem>>, vector<2x8x32xf32>
    %26 = vector.shape_cast %25 : vector<2x8x32xf32> to vector<16x32xf32>
    %c0_4 = arith.constant 0 : index
    %c0_5 = arith.constant 0 : index
    %27 = vector.load %arg3[%c0_4, %c0_5] : memref<32x96xf32, #tpu.memory_space<vmem>>, vector<32x96xf32>
    %cst = arith.constant dense<0.000000e+00> : vector<16x96xf32>
    %28 = tpu.matmul %26, %27, %cst {dimension_numbers = #tpu.dot_dimension_numbers<[1], [0], [0], [1], [0, 0, 1, 1], [], []>} : vector<16x32xf32>, vector<32x96xf32>, vector<16x96xf32> -> vector<16x96xf32>
    %c0_6 = arith.constant 0 : index
    %c0_7 = arith.constant 0 : index
    %29 = vector.load %arg5[%c0_6, %c0_7] : memref<1x96xf32, #tpu.memory_space<vmem>>, vector<1x96xf32>
    %30 = vector.broadcast %29 : vector<1x96xf32> to vector<16x96xf32>
    %31 = arith.addf %28, %30 : vector<16x96xf32>
    %c0_8 = arith.constant 0 : index
    %c0_9 = arith.constant 0 : index
    %32 = vector.load %arg7[%c0_8, %c0_9] : memref<32x96xf32, #tpu.memory_space<vmem>>, vector<32x96xf32>
    %cst_10 = arith.constant dense<0.000000e+00> : vector<16x96xf32>
    %33 = tpu.matmul %26, %32, %cst_10 {dimension_numbers = #tpu.dot_dimension_numbers<[1], [0], [0], [1], [0, 0, 1, 1], [], []>} : vector<16x32xf32>, vector<32x96xf32>, vector<16x96xf32> -> vector<16x96xf32>
    %c0_11 = arith.constant 0 : index
    %c0_12 = arith.constant 0 : index
    %34 = vector.load %arg9[%c0_11, %c0_12] : memref<1x96xf32, #tpu.memory_space<vmem>>, vector<1x96xf32>
    %35 = vector.broadcast %34 : vector<1x96xf32> to vector<16x96xf32>
    %36 = arith.addf %33, %35 : vector<16x96xf32>
    %37 = vector.shape_cast %31 : vector<16x96xf32> to vector<2x8x96xf32>
    %38 = vector.shape_cast %36 : vector<16x96xf32> to vector<2x8x96xf32>
    %c0_13 = arith.constant 0 : index
    %c0_14 = arith.constant 0 : index
    %39 = vector.load %arg4[%c0_13, %c0_14] : memref<32x96xf32, #tpu.memory_space<vmem>>, vector<32x96xf32>
    %c0_15 = arith.constant 0 : index
    %c0_16 = arith.constant 0 : index
    %40 = vector.load %arg8[%c0_15, %c0_16] : memref<32x96xf32, #tpu.memory_space<vmem>>, vector<32x96xf32>
    %c0_17 = arith.constant 0 : index
    %c0_18 = arith.constant 0 : index
    %41 = vector.load %arg6[%c0_17, %c0_18] : memref<1x32xf32, #tpu.memory_space<vmem>>, vector<1x32xf32>
    %42 = vector.shape_cast %41 : vector<1x32xf32> to vector<1x32xf32>
    %43 = vector.broadcast %42 : vector<1x32xf32> to vector<2x32xf32>
    %c0_19 = arith.constant 0 : index
    %c0_20 = arith.constant 0 : index
    %44 = vector.load %arg10[%c0_19, %c0_20] : memref<1x32xf32, #tpu.memory_space<vmem>>, vector<1x32xf32>
    %45 = vector.shape_cast %44 : vector<1x32xf32> to vector<1x32xf32>
    %46 = vector.broadcast %45 : vector<1x32xf32> to vector<2x32xf32>
    %cst_21 = arith.constant 0.000000e+00 : f32
    %47 = vector.broadcast %cst_21 : f32 to vector<2x32xf32>
    %cst_22 = arith.constant 0.000000e+00 : f32
    %48 = vector.broadcast %cst_22 : f32 to vector<2x32xf32>
    %49 = vector.extract_strided_slice %37 {offsets = [0, 0, 0], sizes = [2, 1, 96], strides = [1, 1, 1]} : vector<2x8x96xf32> to vector<2x1x96xf32>
    %50 = vector.shape_cast %49 : vector<2x1x96xf32> to vector<2x96xf32>
    %cst_23 = arith.constant dense<0.000000e+00> : vector<2x96xf32>
    %51 = tpu.matmul %47, %39, %cst_23 {dimension_numbers = #tpu.dot_dimension_numbers<[1], [0], [0], [1], [0, 0, 1, 1], [], []>} : vector<2x32xf32>, vector<32x96xf32>, vector<2x96xf32> -> vector<2x96xf32>
    %52 = vector.extract_strided_slice %50 {offsets = [0, 0], sizes = [2, 32], strides = [1, 1]} : vector<2x96xf32> to vector<2x32xf32>
    %53 = vector.extract_strided_slice %51 {offsets = [0, 0], sizes = [2, 32], strides = [1, 1]} : vector<2x96xf32> to vector<2x32xf32>
    %54 = arith.addf %52, %53 : vector<2x32xf32>
    %55 = arith.negf %54 : vector<2x32xf32>
    %56 = math.exp %55 : vector<2x32xf32>
    %cst_24 = arith.constant 1.000000e+00 : f32
    %57 = vector.broadcast %cst_24 : f32 to vector<2x32xf32>
    %58 = arith.addf %57, %56 : vector<2x32xf32>
    %59 = arith.divf %57, %58 : vector<2x32xf32>
    %60 = vector.extract_strided_slice %50 {offsets = [0, 32], sizes = [2, 32], strides = [1, 1]} : vector<2x96xf32> to vector<2x32xf32>
    %61 = vector.extract_strided_slice %51 {offsets = [0, 32], sizes = [2, 32], strides = [1, 1]} : vector<2x96xf32> to vector<2x32xf32>
    %62 = arith.addf %60, %61 : vector<2x32xf32>
    %63 = arith.negf %62 : vector<2x32xf32>
    %64 = math.exp %63 : vector<2x32xf32>
    %cst_25 = arith.constant 1.000000e+00 : f32
    %65 = vector.broadcast %cst_25 : f32 to vector<2x32xf32>
    %66 = arith.addf %65, %64 : vector<2x32xf32>
    %67 = arith.divf %65, %66 : vector<2x32xf32>
    %68 = vector.extract_strided_slice %50 {offsets = [0, 64], sizes = [2, 32], strides = [1, 1]} : vector<2x96xf32> to vector<2x32xf32>
    %69 = vector.extract_strided_slice %51 {offsets = [0, 64], sizes = [2, 32], strides = [1, 1]} : vector<2x96xf32> to vector<2x32xf32>
    %70 = arith.addf %69, %43 : vector<2x32xf32>
    %71 = arith.mulf %59, %70 : vector<2x32xf32>
    %72 = arith.addf %68, %71 : vector<2x32xf32>
    %73 = math.tanh %72 : vector<2x32xf32>
    %cst_26 = arith.constant 1.000000e+00 : f32
    %74 = vector.broadcast %cst_26 : f32 to vector<2x32xf32>
    %75 = arith.subf %74, %67 : vector<2x32xf32>
    %76 = arith.mulf %75, %73 : vector<2x32xf32>
    %77 = arith.mulf %67, %47 : vector<2x32xf32>
    %78 = arith.addf %76, %77 : vector<2x32xf32>
    %79 = arith.subf %78, %47 : vector<2x32xf32>
    %80 = arith.mulf %3, %79 : vector<2x32xf32>
    %81 = arith.addf %47, %80 : vector<2x32xf32>
    %82 = arith.mulf %3, %81 : vector<2x32xf32>
    %83 = vector.extract_strided_slice %38 {offsets = [0, 7, 0], sizes = [2, 1, 96], strides = [1, 1, 1]} : vector<2x8x96xf32> to vector<2x1x96xf32>
    %84 = vector.shape_cast %83 : vector<2x1x96xf32> to vector<2x96xf32>
    %cst_27 = arith.constant dense<0.000000e+00> : vector<2x96xf32>
    %85 = tpu.matmul %48, %40, %cst_27 {dimension_numbers = #tpu.dot_dimension_numbers<[1], [0], [0], [1], [0, 0, 1, 1], [], []>} : vector<2x32xf32>, vector<32x96xf32>, vector<2x96xf32> -> vector<2x96xf32>
    %86 = vector.extract_strided_slice %84 {offsets = [0, 0], sizes = [2, 32], strides = [1, 1]} : vector<2x96xf32> to vector<2x32xf32>
    %87 = vector.extract_strided_slice %85 {offsets = [0, 0], sizes = [2, 32], strides = [1, 1]} : vector<2x96xf32> to vector<2x32xf32>
    %88 = arith.addf %86, %87 : vector<2x32xf32>
    %89 = arith.negf %88 : vector<2x32xf32>
    %90 = math.exp %89 : vector<2x32xf32>
    %cst_28 = arith.constant 1.000000e+00 : f32
    %91 = vector.broadcast %cst_28 : f32 to vector<2x32xf32>
    %92 = arith.addf %91, %90 : vector<2x32xf32>
    %93 = arith.divf %91, %92 : vector<2x32xf32>
    %94 = vector.extract_strided_slice %84 {offsets = [0, 32], sizes = [2, 32], strides = [1, 1]} : vector<2x96xf32> to vector<2x32xf32>
    %95 = vector.extract_strided_slice %85 {offsets = [0, 32], sizes = [2, 32], strides = [1, 1]} : vector<2x96xf32> to vector<2x32xf32>
    %96 = arith.addf %94, %95 : vector<2x32xf32>
    %97 = arith.negf %96 : vector<2x32xf32>
    %98 = math.exp %97 : vector<2x32xf32>
    %cst_29 = arith.constant 1.000000e+00 : f32
    %99 = vector.broadcast %cst_29 : f32 to vector<2x32xf32>
    %100 = arith.addf %99, %98 : vector<2x32xf32>
    %101 = arith.divf %99, %100 : vector<2x32xf32>
    %102 = vector.extract_strided_slice %84 {offsets = [0, 64], sizes = [2, 32], strides = [1, 1]} : vector<2x96xf32> to vector<2x32xf32>
    %103 = vector.extract_strided_slice %85 {offsets = [0, 64], sizes = [2, 32], strides = [1, 1]} : vector<2x96xf32> to vector<2x32xf32>
    %104 = arith.addf %103, %46 : vector<2x32xf32>
    %105 = arith.mulf %93, %104 : vector<2x32xf32>
    %106 = arith.addf %102, %105 : vector<2x32xf32>
    %107 = math.tanh %106 : vector<2x32xf32>
    %cst_30 = arith.constant 1.000000e+00 : f32
    %108 = vector.broadcast %cst_30 : f32 to vector<2x32xf32>
    %109 = arith.subf %108, %101 : vector<2x32xf32>
    %110 = arith.mulf %109, %107 : vector<2x32xf32>
    %111 = arith.mulf %101, %48 : vector<2x32xf32>
    %112 = arith.addf %110, %111 : vector<2x32xf32>
    %113 = arith.subf %112, %48 : vector<2x32xf32>
    %114 = arith.mulf %24, %113 : vector<2x32xf32>
    %115 = arith.addf %48, %114 : vector<2x32xf32>
    %116 = arith.mulf %24, %115 : vector<2x32xf32>
    %117 = vector.extract_strided_slice %37 {offsets = [0, 1, 0], sizes = [2, 1, 96], strides = [1, 1, 1]} : vector<2x8x96xf32> to vector<2x1x96xf32>
    %118 = vector.shape_cast %117 : vector<2x1x96xf32> to vector<2x96xf32>
    %cst_31 = arith.constant dense<0.000000e+00> : vector<2x96xf32>
    %119 = tpu.matmul %81, %39, %cst_31 {dimension_numbers = #tpu.dot_dimension_numbers<[1], [0], [0], [1], [0, 0, 1, 1], [], []>} : vector<2x32xf32>, vector<32x96xf32>, vector<2x96xf32> -> vector<2x96xf32>
    %120 = vector.extract_strided_slice %118 {offsets = [0, 0], sizes = [2, 32], strides = [1, 1]} : vector<2x96xf32> to vector<2x32xf32>
    %121 = vector.extract_strided_slice %119 {offsets = [0, 0], sizes = [2, 32], strides = [1, 1]} : vector<2x96xf32> to vector<2x32xf32>
    %122 = arith.addf %120, %121 : vector<2x32xf32>
    %123 = arith.negf %122 : vector<2x32xf32>
    %124 = math.exp %123 : vector<2x32xf32>
    %cst_32 = arith.constant 1.000000e+00 : f32
    %125 = vector.broadcast %cst_32 : f32 to vector<2x32xf32>
    %126 = arith.addf %125, %124 : vector<2x32xf32>
    %127 = arith.divf %125, %126 : vector<2x32xf32>
    %128 = vector.extract_strided_slice %118 {offsets = [0, 32], sizes = [2, 32], strides = [1, 1]} : vector<2x96xf32> to vector<2x32xf32>
    %129 = vector.extract_strided_slice %119 {offsets = [0, 32], sizes = [2, 32], strides = [1, 1]} : vector<2x96xf32> to vector<2x32xf32>
    %130 = arith.addf %128, %129 : vector<2x32xf32>
    %131 = arith.negf %130 : vector<2x32xf32>
    %132 = math.exp %131 : vector<2x32xf32>
    %cst_33 = arith.constant 1.000000e+00 : f32
    %133 = vector.broadcast %cst_33 : f32 to vector<2x32xf32>
    %134 = arith.addf %133, %132 : vector<2x32xf32>
    %135 = arith.divf %133, %134 : vector<2x32xf32>
    %136 = vector.extract_strided_slice %118 {offsets = [0, 64], sizes = [2, 32], strides = [1, 1]} : vector<2x96xf32> to vector<2x32xf32>
    %137 = vector.extract_strided_slice %119 {offsets = [0, 64], sizes = [2, 32], strides = [1, 1]} : vector<2x96xf32> to vector<2x32xf32>
    %138 = arith.addf %137, %43 : vector<2x32xf32>
    %139 = arith.mulf %127, %138 : vector<2x32xf32>
    %140 = arith.addf %136, %139 : vector<2x32xf32>
    %141 = math.tanh %140 : vector<2x32xf32>
    %cst_34 = arith.constant 1.000000e+00 : f32
    %142 = vector.broadcast %cst_34 : f32 to vector<2x32xf32>
    %143 = arith.subf %142, %135 : vector<2x32xf32>
    %144 = arith.mulf %143, %141 : vector<2x32xf32>
    %145 = arith.mulf %135, %81 : vector<2x32xf32>
    %146 = arith.addf %144, %145 : vector<2x32xf32>
    %147 = arith.subf %146, %81 : vector<2x32xf32>
    %148 = arith.mulf %6, %147 : vector<2x32xf32>
    %149 = arith.addf %81, %148 : vector<2x32xf32>
    %150 = arith.mulf %6, %149 : vector<2x32xf32>
    %151 = vector.extract_strided_slice %38 {offsets = [0, 6, 0], sizes = [2, 1, 96], strides = [1, 1, 1]} : vector<2x8x96xf32> to vector<2x1x96xf32>
    %152 = vector.shape_cast %151 : vector<2x1x96xf32> to vector<2x96xf32>
    %cst_35 = arith.constant dense<0.000000e+00> : vector<2x96xf32>
    %153 = tpu.matmul %115, %40, %cst_35 {dimension_numbers = #tpu.dot_dimension_numbers<[1], [0], [0], [1], [0, 0, 1, 1], [], []>} : vector<2x32xf32>, vector<32x96xf32>, vector<2x96xf32> -> vector<2x96xf32>
    %154 = vector.extract_strided_slice %152 {offsets = [0, 0], sizes = [2, 32], strides = [1, 1]} : vector<2x96xf32> to vector<2x32xf32>
    %155 = vector.extract_strided_slice %153 {offsets = [0, 0], sizes = [2, 32], strides = [1, 1]} : vector<2x96xf32> to vector<2x32xf32>
    %156 = arith.addf %154, %155 : vector<2x32xf32>
    %157 = arith.negf %156 : vector<2x32xf32>
    %158 = math.exp %157 : vector<2x32xf32>
    %cst_36 = arith.constant 1.000000e+00 : f32
    %159 = vector.broadcast %cst_36 : f32 to vector<2x32xf32>
    %160 = arith.addf %159, %158 : vector<2x32xf32>
    %161 = arith.divf %159, %160 : vector<2x32xf32>
    %162 = vector.extract_strided_slice %152 {offsets = [0, 32], sizes = [2, 32], strides = [1, 1]} : vector<2x96xf32> to vector<2x32xf32>
    %163 = vector.extract_strided_slice %153 {offsets = [0, 32], sizes = [2, 32], strides = [1, 1]} : vector<2x96xf32> to vector<2x32xf32>
    %164 = arith.addf %162, %163 : vector<2x32xf32>
    %165 = arith.negf %164 : vector<2x32xf32>
    %166 = math.exp %165 : vector<2x32xf32>
    %cst_37 = arith.constant 1.000000e+00 : f32
    %167 = vector.broadcast %cst_37 : f32 to vector<2x32xf32>
    %168 = arith.addf %167, %166 : vector<2x32xf32>
    %169 = arith.divf %167, %168 : vector<2x32xf32>
    %170 = vector.extract_strided_slice %152 {offsets = [0, 64], sizes = [2, 32], strides = [1, 1]} : vector<2x96xf32> to vector<2x32xf32>
    %171 = vector.extract_strided_slice %153 {offsets = [0, 64], sizes = [2, 32], strides = [1, 1]} : vector<2x96xf32> to vector<2x32xf32>
    %172 = arith.addf %171, %46 : vector<2x32xf32>
    %173 = arith.mulf %161, %172 : vector<2x32xf32>
    %174 = arith.addf %170, %173 : vector<2x32xf32>
    %175 = math.tanh %174 : vector<2x32xf32>
    %cst_38 = arith.constant 1.000000e+00 : f32
    %176 = vector.broadcast %cst_38 : f32 to vector<2x32xf32>
    %177 = arith.subf %176, %169 : vector<2x32xf32>
    %178 = arith.mulf %177, %175 : vector<2x32xf32>
    %179 = arith.mulf %169, %115 : vector<2x32xf32>
    %180 = arith.addf %178, %179 : vector<2x32xf32>
    %181 = arith.subf %180, %115 : vector<2x32xf32>
    %182 = arith.mulf %21, %181 : vector<2x32xf32>
    %183 = arith.addf %115, %182 : vector<2x32xf32>
    %184 = arith.mulf %21, %183 : vector<2x32xf32>
    %185 = vector.extract_strided_slice %37 {offsets = [0, 2, 0], sizes = [2, 1, 96], strides = [1, 1, 1]} : vector<2x8x96xf32> to vector<2x1x96xf32>
    %186 = vector.shape_cast %185 : vector<2x1x96xf32> to vector<2x96xf32>
    %cst_39 = arith.constant dense<0.000000e+00> : vector<2x96xf32>
    %187 = tpu.matmul %149, %39, %cst_39 {dimension_numbers = #tpu.dot_dimension_numbers<[1], [0], [0], [1], [0, 0, 1, 1], [], []>} : vector<2x32xf32>, vector<32x96xf32>, vector<2x96xf32> -> vector<2x96xf32>
    %188 = vector.extract_strided_slice %186 {offsets = [0, 0], sizes = [2, 32], strides = [1, 1]} : vector<2x96xf32> to vector<2x32xf32>
    %189 = vector.extract_strided_slice %187 {offsets = [0, 0], sizes = [2, 32], strides = [1, 1]} : vector<2x96xf32> to vector<2x32xf32>
    %190 = arith.addf %188, %189 : vector<2x32xf32>
    %191 = arith.negf %190 : vector<2x32xf32>
    %192 = math.exp %191 : vector<2x32xf32>
    %cst_40 = arith.constant 1.000000e+00 : f32
    %193 = vector.broadcast %cst_40 : f32 to vector<2x32xf32>
    %194 = arith.addf %193, %192 : vector<2x32xf32>
    %195 = arith.divf %193, %194 : vector<2x32xf32>
    %196 = vector.extract_strided_slice %186 {offsets = [0, 32], sizes = [2, 32], strides = [1, 1]} : vector<2x96xf32> to vector<2x32xf32>
    %197 = vector.extract_strided_slice %187 {offsets = [0, 32], sizes = [2, 32], strides = [1, 1]} : vector<2x96xf32> to vector<2x32xf32>
    %198 = arith.addf %196, %197 : vector<2x32xf32>
    %199 = arith.negf %198 : vector<2x32xf32>
    %200 = math.exp %199 : vector<2x32xf32>
    %cst_41 = arith.constant 1.000000e+00 : f32
    %201 = vector.broadcast %cst_41 : f32 to vector<2x32xf32>
    %202 = arith.addf %201, %200 : vector<2x32xf32>
    %203 = arith.divf %201, %202 : vector<2x32xf32>
    %204 = vector.extract_strided_slice %186 {offsets = [0, 64], sizes = [2, 32], strides = [1, 1]} : vector<2x96xf32> to vector<2x32xf32>
    %205 = vector.extract_strided_slice %187 {offsets = [0, 64], sizes = [2, 32], strides = [1, 1]} : vector<2x96xf32> to vector<2x32xf32>
    %206 = arith.addf %205, %43 : vector<2x32xf32>
    %207 = arith.mulf %195, %206 : vector<2x32xf32>
    %208 = arith.addf %204, %207 : vector<2x32xf32>
    %209 = math.tanh %208 : vector<2x32xf32>
    %cst_42 = arith.constant 1.000000e+00 : f32
    %210 = vector.broadcast %cst_42 : f32 to vector<2x32xf32>
    %211 = arith.subf %210, %203 : vector<2x32xf32>
    %212 = arith.mulf %211, %209 : vector<2x32xf32>
    %213 = arith.mulf %203, %149 : vector<2x32xf32>
    %214 = arith.addf %212, %213 : vector<2x32xf32>
    %215 = arith.subf %214, %149 : vector<2x32xf32>
    %216 = arith.mulf %9, %215 : vector<2x32xf32>
    %217 = arith.addf %149, %216 : vector<2x32xf32>
    %218 = arith.mulf %9, %217 : vector<2x32xf32>
    %219 = vector.extract_strided_slice %38 {offsets = [0, 5, 0], sizes = [2, 1, 96], strides = [1, 1, 1]} : vector<2x8x96xf32> to vector<2x1x96xf32>
    %220 = vector.shape_cast %219 : vector<2x1x96xf32> to vector<2x96xf32>
    %cst_43 = arith.constant dense<0.000000e+00> : vector<2x96xf32>
    %221 = tpu.matmul %183, %40, %cst_43 {dimension_numbers = #tpu.dot_dimension_numbers<[1], [0], [0], [1], [0, 0, 1, 1], [], []>} : vector<2x32xf32>, vector<32x96xf32>, vector<2x96xf32> -> vector<2x96xf32>
    %222 = vector.extract_strided_slice %220 {offsets = [0, 0], sizes = [2, 32], strides = [1, 1]} : vector<2x96xf32> to vector<2x32xf32>
    %223 = vector.extract_strided_slice %221 {offsets = [0, 0], sizes = [2, 32], strides = [1, 1]} : vector<2x96xf32> to vector<2x32xf32>
    %224 = arith.addf %222, %223 : vector<2x32xf32>
    %225 = arith.negf %224 : vector<2x32xf32>
    %226 = math.exp %225 : vector<2x32xf32>
    %cst_44 = arith.constant 1.000000e+00 : f32
    %227 = vector.broadcast %cst_44 : f32 to vector<2x32xf32>
    %228 = arith.addf %227, %226 : vector<2x32xf32>
    %229 = arith.divf %227, %228 : vector<2x32xf32>
    %230 = vector.extract_strided_slice %220 {offsets = [0, 32], sizes = [2, 32], strides = [1, 1]} : vector<2x96xf32> to vector<2x32xf32>
    %231 = vector.extract_strided_slice %221 {offsets = [0, 32], sizes = [2, 32], strides = [1, 1]} : vector<2x96xf32> to vector<2x32xf32>
    %232 = arith.addf %230, %231 : vector<2x32xf32>
    %233 = arith.negf %232 : vector<2x32xf32>
    %234 = math.exp %233 : vector<2x32xf32>
    %cst_45 = arith.constant 1.000000e+00 : f32
    %235 = vector.broadcast %cst_45 : f32 to vector<2x32xf32>
    %236 = arith.addf %235, %234 : vector<2x32xf32>
    %237 = arith.divf %235, %236 : vector<2x32xf32>
    %238 = vector.extract_strided_slice %220 {offsets = [0, 64], sizes = [2, 32], strides = [1, 1]} : vector<2x96xf32> to vector<2x32xf32>
    %239 = vector.extract_strided_slice %221 {offsets = [0, 64], sizes = [2, 32], strides = [1, 1]} : vector<2x96xf32> to vector<2x32xf32>
    %240 = arith.addf %239, %46 : vector<2x32xf32>
    %241 = arith.mulf %229, %240 : vector<2x32xf32>
    %242 = arith.addf %238, %241 : vector<2x32xf32>
    %243 = math.tanh %242 : vector<2x32xf32>
    %cst_46 = arith.constant 1.000000e+00 : f32
    %244 = vector.broadcast %cst_46 : f32 to vector<2x32xf32>
    %245 = arith.subf %244, %237 : vector<2x32xf32>
    %246 = arith.mulf %245, %243 : vector<2x32xf32>
    %247 = arith.mulf %237, %183 : vector<2x32xf32>
    %248 = arith.addf %246, %247 : vector<2x32xf32>
    %249 = arith.subf %248, %183 : vector<2x32xf32>
    %250 = arith.mulf %18, %249 : vector<2x32xf32>
    %251 = arith.addf %183, %250 : vector<2x32xf32>
    %252 = arith.mulf %18, %251 : vector<2x32xf32>
    %253 = vector.extract_strided_slice %37 {offsets = [0, 3, 0], sizes = [2, 1, 96], strides = [1, 1, 1]} : vector<2x8x96xf32> to vector<2x1x96xf32>
    %254 = vector.shape_cast %253 : vector<2x1x96xf32> to vector<2x96xf32>
    %cst_47 = arith.constant dense<0.000000e+00> : vector<2x96xf32>
    %255 = tpu.matmul %217, %39, %cst_47 {dimension_numbers = #tpu.dot_dimension_numbers<[1], [0], [0], [1], [0, 0, 1, 1], [], []>} : vector<2x32xf32>, vector<32x96xf32>, vector<2x96xf32> -> vector<2x96xf32>
    %256 = vector.extract_strided_slice %254 {offsets = [0, 0], sizes = [2, 32], strides = [1, 1]} : vector<2x96xf32> to vector<2x32xf32>
    %257 = vector.extract_strided_slice %255 {offsets = [0, 0], sizes = [2, 32], strides = [1, 1]} : vector<2x96xf32> to vector<2x32xf32>
    %258 = arith.addf %256, %257 : vector<2x32xf32>
    %259 = arith.negf %258 : vector<2x32xf32>
    %260 = math.exp %259 : vector<2x32xf32>
    %cst_48 = arith.constant 1.000000e+00 : f32
    %261 = vector.broadcast %cst_48 : f32 to vector<2x32xf32>
    %262 = arith.addf %261, %260 : vector<2x32xf32>
    %263 = arith.divf %261, %262 : vector<2x32xf32>
    %264 = vector.extract_strided_slice %254 {offsets = [0, 32], sizes = [2, 32], strides = [1, 1]} : vector<2x96xf32> to vector<2x32xf32>
    %265 = vector.extract_strided_slice %255 {offsets = [0, 32], sizes = [2, 32], strides = [1, 1]} : vector<2x96xf32> to vector<2x32xf32>
    %266 = arith.addf %264, %265 : vector<2x32xf32>
    %267 = arith.negf %266 : vector<2x32xf32>
    %268 = math.exp %267 : vector<2x32xf32>
    %cst_49 = arith.constant 1.000000e+00 : f32
    %269 = vector.broadcast %cst_49 : f32 to vector<2x32xf32>
    %270 = arith.addf %269, %268 : vector<2x32xf32>
    %271 = arith.divf %269, %270 : vector<2x32xf32>
    %272 = vector.extract_strided_slice %254 {offsets = [0, 64], sizes = [2, 32], strides = [1, 1]} : vector<2x96xf32> to vector<2x32xf32>
    %273 = vector.extract_strided_slice %255 {offsets = [0, 64], sizes = [2, 32], strides = [1, 1]} : vector<2x96xf32> to vector<2x32xf32>
    %274 = arith.addf %273, %43 : vector<2x32xf32>
    %275 = arith.mulf %263, %274 : vector<2x32xf32>
    %276 = arith.addf %272, %275 : vector<2x32xf32>
    %277 = math.tanh %276 : vector<2x32xf32>
    %cst_50 = arith.constant 1.000000e+00 : f32
    %278 = vector.broadcast %cst_50 : f32 to vector<2x32xf32>
    %279 = arith.subf %278, %271 : vector<2x32xf32>
    %280 = arith.mulf %279, %277 : vector<2x32xf32>
    %281 = arith.mulf %271, %217 : vector<2x32xf32>
    %282 = arith.addf %280, %281 : vector<2x32xf32>
    %283 = arith.subf %282, %217 : vector<2x32xf32>
    %284 = arith.mulf %12, %283 : vector<2x32xf32>
    %285 = arith.addf %217, %284 : vector<2x32xf32>
    %286 = arith.mulf %12, %285 : vector<2x32xf32>
    %287 = vector.extract_strided_slice %38 {offsets = [0, 4, 0], sizes = [2, 1, 96], strides = [1, 1, 1]} : vector<2x8x96xf32> to vector<2x1x96xf32>
    %288 = vector.shape_cast %287 : vector<2x1x96xf32> to vector<2x96xf32>
    %cst_51 = arith.constant dense<0.000000e+00> : vector<2x96xf32>
    %289 = tpu.matmul %251, %40, %cst_51 {dimension_numbers = #tpu.dot_dimension_numbers<[1], [0], [0], [1], [0, 0, 1, 1], [], []>} : vector<2x32xf32>, vector<32x96xf32>, vector<2x96xf32> -> vector<2x96xf32>
    %290 = vector.extract_strided_slice %288 {offsets = [0, 0], sizes = [2, 32], strides = [1, 1]} : vector<2x96xf32> to vector<2x32xf32>
    %291 = vector.extract_strided_slice %289 {offsets = [0, 0], sizes = [2, 32], strides = [1, 1]} : vector<2x96xf32> to vector<2x32xf32>
    %292 = arith.addf %290, %291 : vector<2x32xf32>
    %293 = arith.negf %292 : vector<2x32xf32>
    %294 = math.exp %293 : vector<2x32xf32>
    %cst_52 = arith.constant 1.000000e+00 : f32
    %295 = vector.broadcast %cst_52 : f32 to vector<2x32xf32>
    %296 = arith.addf %295, %294 : vector<2x32xf32>
    %297 = arith.divf %295, %296 : vector<2x32xf32>
    %298 = vector.extract_strided_slice %288 {offsets = [0, 32], sizes = [2, 32], strides = [1, 1]} : vector<2x96xf32> to vector<2x32xf32>
    %299 = vector.extract_strided_slice %289 {offsets = [0, 32], sizes = [2, 32], strides = [1, 1]} : vector<2x96xf32> to vector<2x32xf32>
    %300 = arith.addf %298, %299 : vector<2x32xf32>
    %301 = arith.negf %300 : vector<2x32xf32>
    %302 = math.exp %301 : vector<2x32xf32>
    %cst_53 = arith.constant 1.000000e+00 : f32
    %303 = vector.broadcast %cst_53 : f32 to vector<2x32xf32>
    %304 = arith.addf %303, %302 : vector<2x32xf32>
    %305 = arith.divf %303, %304 : vector<2x32xf32>
    %306 = vector.extract_strided_slice %288 {offsets = [0, 64], sizes = [2, 32], strides = [1, 1]} : vector<2x96xf32> to vector<2x32xf32>
    %307 = vector.extract_strided_slice %289 {offsets = [0, 64], sizes = [2, 32], strides = [1, 1]} : vector<2x96xf32> to vector<2x32xf32>
    %308 = arith.addf %307, %46 : vector<2x32xf32>
    %309 = arith.mulf %297, %308 : vector<2x32xf32>
    %310 = arith.addf %306, %309 : vector<2x32xf32>
    %311 = math.tanh %310 : vector<2x32xf32>
    %cst_54 = arith.constant 1.000000e+00 : f32
    %312 = vector.broadcast %cst_54 : f32 to vector<2x32xf32>
    %313 = arith.subf %312, %305 : vector<2x32xf32>
    %314 = arith.mulf %313, %311 : vector<2x32xf32>
    %315 = arith.mulf %305, %251 : vector<2x32xf32>
    %316 = arith.addf %314, %315 : vector<2x32xf32>
    %317 = arith.subf %316, %251 : vector<2x32xf32>
    %318 = arith.mulf %15, %317 : vector<2x32xf32>
    %319 = arith.addf %251, %318 : vector<2x32xf32>
    %320 = arith.mulf %15, %319 : vector<2x32xf32>
    %321 = vector.extract_strided_slice %37 {offsets = [0, 4, 0], sizes = [2, 1, 96], strides = [1, 1, 1]} : vector<2x8x96xf32> to vector<2x1x96xf32>
    %322 = vector.shape_cast %321 : vector<2x1x96xf32> to vector<2x96xf32>
    %cst_55 = arith.constant dense<0.000000e+00> : vector<2x96xf32>
    %323 = tpu.matmul %285, %39, %cst_55 {dimension_numbers = #tpu.dot_dimension_numbers<[1], [0], [0], [1], [0, 0, 1, 1], [], []>} : vector<2x32xf32>, vector<32x96xf32>, vector<2x96xf32> -> vector<2x96xf32>
    %324 = vector.extract_strided_slice %322 {offsets = [0, 0], sizes = [2, 32], strides = [1, 1]} : vector<2x96xf32> to vector<2x32xf32>
    %325 = vector.extract_strided_slice %323 {offsets = [0, 0], sizes = [2, 32], strides = [1, 1]} : vector<2x96xf32> to vector<2x32xf32>
    %326 = arith.addf %324, %325 : vector<2x32xf32>
    %327 = arith.negf %326 : vector<2x32xf32>
    %328 = math.exp %327 : vector<2x32xf32>
    %cst_56 = arith.constant 1.000000e+00 : f32
    %329 = vector.broadcast %cst_56 : f32 to vector<2x32xf32>
    %330 = arith.addf %329, %328 : vector<2x32xf32>
    %331 = arith.divf %329, %330 : vector<2x32xf32>
    %332 = vector.extract_strided_slice %322 {offsets = [0, 32], sizes = [2, 32], strides = [1, 1]} : vector<2x96xf32> to vector<2x32xf32>
    %333 = vector.extract_strided_slice %323 {offsets = [0, 32], sizes = [2, 32], strides = [1, 1]} : vector<2x96xf32> to vector<2x32xf32>
    %334 = arith.addf %332, %333 : vector<2x32xf32>
    %335 = arith.negf %334 : vector<2x32xf32>
    %336 = math.exp %335 : vector<2x32xf32>
    %cst_57 = arith.constant 1.000000e+00 : f32
    %337 = vector.broadcast %cst_57 : f32 to vector<2x32xf32>
    %338 = arith.addf %337, %336 : vector<2x32xf32>
    %339 = arith.divf %337, %338 : vector<2x32xf32>
    %340 = vector.extract_strided_slice %322 {offsets = [0, 64], sizes = [2, 32], strides = [1, 1]} : vector<2x96xf32> to vector<2x32xf32>
    %341 = vector.extract_strided_slice %323 {offsets = [0, 64], sizes = [2, 32], strides = [1, 1]} : vector<2x96xf32> to vector<2x32xf32>
    %342 = arith.addf %341, %43 : vector<2x32xf32>
    %343 = arith.mulf %331, %342 : vector<2x32xf32>
    %344 = arith.addf %340, %343 : vector<2x32xf32>
    %345 = math.tanh %344 : vector<2x32xf32>
    %cst_58 = arith.constant 1.000000e+00 : f32
    %346 = vector.broadcast %cst_58 : f32 to vector<2x32xf32>
    %347 = arith.subf %346, %339 : vector<2x32xf32>
    %348 = arith.mulf %347, %345 : vector<2x32xf32>
    %349 = arith.mulf %339, %285 : vector<2x32xf32>
    %350 = arith.addf %348, %349 : vector<2x32xf32>
    %351 = arith.subf %350, %285 : vector<2x32xf32>
    %352 = arith.mulf %15, %351 : vector<2x32xf32>
    %353 = arith.addf %285, %352 : vector<2x32xf32>
    %354 = arith.mulf %15, %353 : vector<2x32xf32>
    %355 = vector.extract_strided_slice %38 {offsets = [0, 3, 0], sizes = [2, 1, 96], strides = [1, 1, 1]} : vector<2x8x96xf32> to vector<2x1x96xf32>
    %356 = vector.shape_cast %355 : vector<2x1x96xf32> to vector<2x96xf32>
    %cst_59 = arith.constant dense<0.000000e+00> : vector<2x96xf32>
    %357 = tpu.matmul %319, %40, %cst_59 {dimension_numbers = #tpu.dot_dimension_numbers<[1], [0], [0], [1], [0, 0, 1, 1], [], []>} : vector<2x32xf32>, vector<32x96xf32>, vector<2x96xf32> -> vector<2x96xf32>
    %358 = vector.extract_strided_slice %356 {offsets = [0, 0], sizes = [2, 32], strides = [1, 1]} : vector<2x96xf32> to vector<2x32xf32>
    %359 = vector.extract_strided_slice %357 {offsets = [0, 0], sizes = [2, 32], strides = [1, 1]} : vector<2x96xf32> to vector<2x32xf32>
    %360 = arith.addf %358, %359 : vector<2x32xf32>
    %361 = arith.negf %360 : vector<2x32xf32>
    %362 = math.exp %361 : vector<2x32xf32>
    %cst_60 = arith.constant 1.000000e+00 : f32
    %363 = vector.broadcast %cst_60 : f32 to vector<2x32xf32>
    %364 = arith.addf %363, %362 : vector<2x32xf32>
    %365 = arith.divf %363, %364 : vector<2x32xf32>
    %366 = vector.extract_strided_slice %356 {offsets = [0, 32], sizes = [2, 32], strides = [1, 1]} : vector<2x96xf32> to vector<2x32xf32>
    %367 = vector.extract_strided_slice %357 {offsets = [0, 32], sizes = [2, 32], strides = [1, 1]} : vector<2x96xf32> to vector<2x32xf32>
    %368 = arith.addf %366, %367 : vector<2x32xf32>
    %369 = arith.negf %368 : vector<2x32xf32>
    %370 = math.exp %369 : vector<2x32xf32>
    %cst_61 = arith.constant 1.000000e+00 : f32
    %371 = vector.broadcast %cst_61 : f32 to vector<2x32xf32>
    %372 = arith.addf %371, %370 : vector<2x32xf32>
    %373 = arith.divf %371, %372 : vector<2x32xf32>
    %374 = vector.extract_strided_slice %356 {offsets = [0, 64], sizes = [2, 32], strides = [1, 1]} : vector<2x96xf32> to vector<2x32xf32>
    %375 = vector.extract_strided_slice %357 {offsets = [0, 64], sizes = [2, 32], strides = [1, 1]} : vector<2x96xf32> to vector<2x32xf32>
    %376 = arith.addf %375, %46 : vector<2x32xf32>
    %377 = arith.mulf %365, %376 : vector<2x32xf32>
    %378 = arith.addf %374, %377 : vector<2x32xf32>
    %379 = math.tanh %378 : vector<2x32xf32>
    %cst_62 = arith.constant 1.000000e+00 : f32
    %380 = vector.broadcast %cst_62 : f32 to vector<2x32xf32>
    %381 = arith.subf %380, %373 : vector<2x32xf32>
    %382 = arith.mulf %381, %379 : vector<2x32xf32>
    %383 = arith.mulf %373, %319 : vector<2x32xf32>
    %384 = arith.addf %382, %383 : vector<2x32xf32>
    %385 = arith.subf %384, %319 : vector<2x32xf32>
    %386 = arith.mulf %12, %385 : vector<2x32xf32>
    %387 = arith.addf %319, %386 : vector<2x32xf32>
    %388 = arith.mulf %12, %387 : vector<2x32xf32>
    %389 = vector.extract_strided_slice %37 {offsets = [0, 5, 0], sizes = [2, 1, 96], strides = [1, 1, 1]} : vector<2x8x96xf32> to vector<2x1x96xf32>
    %390 = vector.shape_cast %389 : vector<2x1x96xf32> to vector<2x96xf32>
    %cst_63 = arith.constant dense<0.000000e+00> : vector<2x96xf32>
    %391 = tpu.matmul %353, %39, %cst_63 {dimension_numbers = #tpu.dot_dimension_numbers<[1], [0], [0], [1], [0, 0, 1, 1], [], []>} : vector<2x32xf32>, vector<32x96xf32>, vector<2x96xf32> -> vector<2x96xf32>
    %392 = vector.extract_strided_slice %390 {offsets = [0, 0], sizes = [2, 32], strides = [1, 1]} : vector<2x96xf32> to vector<2x32xf32>
    %393 = vector.extract_strided_slice %391 {offsets = [0, 0], sizes = [2, 32], strides = [1, 1]} : vector<2x96xf32> to vector<2x32xf32>
    %394 = arith.addf %392, %393 : vector<2x32xf32>
    %395 = arith.negf %394 : vector<2x32xf32>
    %396 = math.exp %395 : vector<2x32xf32>
    %cst_64 = arith.constant 1.000000e+00 : f32
    %397 = vector.broadcast %cst_64 : f32 to vector<2x32xf32>
    %398 = arith.addf %397, %396 : vector<2x32xf32>
    %399 = arith.divf %397, %398 : vector<2x32xf32>
    %400 = vector.extract_strided_slice %390 {offsets = [0, 32], sizes = [2, 32], strides = [1, 1]} : vector<2x96xf32> to vector<2x32xf32>
    %401 = vector.extract_strided_slice %391 {offsets = [0, 32], sizes = [2, 32], strides = [1, 1]} : vector<2x96xf32> to vector<2x32xf32>
    %402 = arith.addf %400, %401 : vector<2x32xf32>
    %403 = arith.negf %402 : vector<2x32xf32>
    %404 = math.exp %403 : vector<2x32xf32>
    %cst_65 = arith.constant 1.000000e+00 : f32
    %405 = vector.broadcast %cst_65 : f32 to vector<2x32xf32>
    %406 = arith.addf %405, %404 : vector<2x32xf32>
    %407 = arith.divf %405, %406 : vector<2x32xf32>
    %408 = vector.extract_strided_slice %390 {offsets = [0, 64], sizes = [2, 32], strides = [1, 1]} : vector<2x96xf32> to vector<2x32xf32>
    %409 = vector.extract_strided_slice %391 {offsets = [0, 64], sizes = [2, 32], strides = [1, 1]} : vector<2x96xf32> to vector<2x32xf32>
    %410 = arith.addf %409, %43 : vector<2x32xf32>
    %411 = arith.mulf %399, %410 : vector<2x32xf32>
    %412 = arith.addf %408, %411 : vector<2x32xf32>
    %413 = math.tanh %412 : vector<2x32xf32>
    %cst_66 = arith.constant 1.000000e+00 : f32
    %414 = vector.broadcast %cst_66 : f32 to vector<2x32xf32>
    %415 = arith.subf %414, %407 : vector<2x32xf32>
    %416 = arith.mulf %415, %413 : vector<2x32xf32>
    %417 = arith.mulf %407, %353 : vector<2x32xf32>
    %418 = arith.addf %416, %417 : vector<2x32xf32>
    %419 = arith.subf %418, %353 : vector<2x32xf32>
    %420 = arith.mulf %18, %419 : vector<2x32xf32>
    %421 = arith.addf %353, %420 : vector<2x32xf32>
    %422 = arith.mulf %18, %421 : vector<2x32xf32>
    %423 = vector.extract_strided_slice %38 {offsets = [0, 2, 0], sizes = [2, 1, 96], strides = [1, 1, 1]} : vector<2x8x96xf32> to vector<2x1x96xf32>
    %424 = vector.shape_cast %423 : vector<2x1x96xf32> to vector<2x96xf32>
    %cst_67 = arith.constant dense<0.000000e+00> : vector<2x96xf32>
    %425 = tpu.matmul %387, %40, %cst_67 {dimension_numbers = #tpu.dot_dimension_numbers<[1], [0], [0], [1], [0, 0, 1, 1], [], []>} : vector<2x32xf32>, vector<32x96xf32>, vector<2x96xf32> -> vector<2x96xf32>
    %426 = vector.extract_strided_slice %424 {offsets = [0, 0], sizes = [2, 32], strides = [1, 1]} : vector<2x96xf32> to vector<2x32xf32>
    %427 = vector.extract_strided_slice %425 {offsets = [0, 0], sizes = [2, 32], strides = [1, 1]} : vector<2x96xf32> to vector<2x32xf32>
    %428 = arith.addf %426, %427 : vector<2x32xf32>
    %429 = arith.negf %428 : vector<2x32xf32>
    %430 = math.exp %429 : vector<2x32xf32>
    %cst_68 = arith.constant 1.000000e+00 : f32
    %431 = vector.broadcast %cst_68 : f32 to vector<2x32xf32>
    %432 = arith.addf %431, %430 : vector<2x32xf32>
    %433 = arith.divf %431, %432 : vector<2x32xf32>
    %434 = vector.extract_strided_slice %424 {offsets = [0, 32], sizes = [2, 32], strides = [1, 1]} : vector<2x96xf32> to vector<2x32xf32>
    %435 = vector.extract_strided_slice %425 {offsets = [0, 32], sizes = [2, 32], strides = [1, 1]} : vector<2x96xf32> to vector<2x32xf32>
    %436 = arith.addf %434, %435 : vector<2x32xf32>
    %437 = arith.negf %436 : vector<2x32xf32>
    %438 = math.exp %437 : vector<2x32xf32>
    %cst_69 = arith.constant 1.000000e+00 : f32
    %439 = vector.broadcast %cst_69 : f32 to vector<2x32xf32>
    %440 = arith.addf %439, %438 : vector<2x32xf32>
    %441 = arith.divf %439, %440 : vector<2x32xf32>
    %442 = vector.extract_strided_slice %424 {offsets = [0, 64], sizes = [2, 32], strides = [1, 1]} : vector<2x96xf32> to vector<2x32xf32>
    %443 = vector.extract_strided_slice %425 {offsets = [0, 64], sizes = [2, 32], strides = [1, 1]} : vector<2x96xf32> to vector<2x32xf32>
    %444 = arith.addf %443, %46 : vector<2x32xf32>
    %445 = arith.mulf %433, %444 : vector<2x32xf32>
    %446 = arith.addf %442, %445 : vector<2x32xf32>
    %447 = math.tanh %446 : vector<2x32xf32>
    %cst_70 = arith.constant 1.000000e+00 : f32
    %448 = vector.broadcast %cst_70 : f32 to vector<2x32xf32>
    %449 = arith.subf %448, %441 : vector<2x32xf32>
    %450 = arith.mulf %449, %447 : vector<2x32xf32>
    %451 = arith.mulf %441, %387 : vector<2x32xf32>
    %452 = arith.addf %450, %451 : vector<2x32xf32>
    %453 = arith.subf %452, %387 : vector<2x32xf32>
    %454 = arith.mulf %9, %453 : vector<2x32xf32>
    %455 = arith.addf %387, %454 : vector<2x32xf32>
    %456 = arith.mulf %9, %455 : vector<2x32xf32>
    %457 = vector.extract_strided_slice %37 {offsets = [0, 6, 0], sizes = [2, 1, 96], strides = [1, 1, 1]} : vector<2x8x96xf32> to vector<2x1x96xf32>
    %458 = vector.shape_cast %457 : vector<2x1x96xf32> to vector<2x96xf32>
    %cst_71 = arith.constant dense<0.000000e+00> : vector<2x96xf32>
    %459 = tpu.matmul %421, %39, %cst_71 {dimension_numbers = #tpu.dot_dimension_numbers<[1], [0], [0], [1], [0, 0, 1, 1], [], []>} : vector<2x32xf32>, vector<32x96xf32>, vector<2x96xf32> -> vector<2x96xf32>
    %460 = vector.extract_strided_slice %458 {offsets = [0, 0], sizes = [2, 32], strides = [1, 1]} : vector<2x96xf32> to vector<2x32xf32>
    %461 = vector.extract_strided_slice %459 {offsets = [0, 0], sizes = [2, 32], strides = [1, 1]} : vector<2x96xf32> to vector<2x32xf32>
    %462 = arith.addf %460, %461 : vector<2x32xf32>
    %463 = arith.negf %462 : vector<2x32xf32>
    %464 = math.exp %463 : vector<2x32xf32>
    %cst_72 = arith.constant 1.000000e+00 : f32
    %465 = vector.broadcast %cst_72 : f32 to vector<2x32xf32>
    %466 = arith.addf %465, %464 : vector<2x32xf32>
    %467 = arith.divf %465, %466 : vector<2x32xf32>
    %468 = vector.extract_strided_slice %458 {offsets = [0, 32], sizes = [2, 32], strides = [1, 1]} : vector<2x96xf32> to vector<2x32xf32>
    %469 = vector.extract_strided_slice %459 {offsets = [0, 32], sizes = [2, 32], strides = [1, 1]} : vector<2x96xf32> to vector<2x32xf32>
    %470 = arith.addf %468, %469 : vector<2x32xf32>
    %471 = arith.negf %470 : vector<2x32xf32>
    %472 = math.exp %471 : vector<2x32xf32>
    %cst_73 = arith.constant 1.000000e+00 : f32
    %473 = vector.broadcast %cst_73 : f32 to vector<2x32xf32>
    %474 = arith.addf %473, %472 : vector<2x32xf32>
    %475 = arith.divf %473, %474 : vector<2x32xf32>
    %476 = vector.extract_strided_slice %458 {offsets = [0, 64], sizes = [2, 32], strides = [1, 1]} : vector<2x96xf32> to vector<2x32xf32>
    %477 = vector.extract_strided_slice %459 {offsets = [0, 64], sizes = [2, 32], strides = [1, 1]} : vector<2x96xf32> to vector<2x32xf32>
    %478 = arith.addf %477, %43 : vector<2x32xf32>
    %479 = arith.mulf %467, %478 : vector<2x32xf32>
    %480 = arith.addf %476, %479 : vector<2x32xf32>
    %481 = math.tanh %480 : vector<2x32xf32>
    %cst_74 = arith.constant 1.000000e+00 : f32
    %482 = vector.broadcast %cst_74 : f32 to vector<2x32xf32>
    %483 = arith.subf %482, %475 : vector<2x32xf32>
    %484 = arith.mulf %483, %481 : vector<2x32xf32>
    %485 = arith.mulf %475, %421 : vector<2x32xf32>
    %486 = arith.addf %484, %485 : vector<2x32xf32>
    %487 = arith.subf %486, %421 : vector<2x32xf32>
    %488 = arith.mulf %21, %487 : vector<2x32xf32>
    %489 = arith.addf %421, %488 : vector<2x32xf32>
    %490 = arith.mulf %21, %489 : vector<2x32xf32>
    %491 = vector.extract_strided_slice %38 {offsets = [0, 1, 0], sizes = [2, 1, 96], strides = [1, 1, 1]} : vector<2x8x96xf32> to vector<2x1x96xf32>
    %492 = vector.shape_cast %491 : vector<2x1x96xf32> to vector<2x96xf32>
    %cst_75 = arith.constant dense<0.000000e+00> : vector<2x96xf32>
    %493 = tpu.matmul %455, %40, %cst_75 {dimension_numbers = #tpu.dot_dimension_numbers<[1], [0], [0], [1], [0, 0, 1, 1], [], []>} : vector<2x32xf32>, vector<32x96xf32>, vector<2x96xf32> -> vector<2x96xf32>
    %494 = vector.extract_strided_slice %492 {offsets = [0, 0], sizes = [2, 32], strides = [1, 1]} : vector<2x96xf32> to vector<2x32xf32>
    %495 = vector.extract_strided_slice %493 {offsets = [0, 0], sizes = [2, 32], strides = [1, 1]} : vector<2x96xf32> to vector<2x32xf32>
    %496 = arith.addf %494, %495 : vector<2x32xf32>
    %497 = arith.negf %496 : vector<2x32xf32>
    %498 = math.exp %497 : vector<2x32xf32>
    %cst_76 = arith.constant 1.000000e+00 : f32
    %499 = vector.broadcast %cst_76 : f32 to vector<2x32xf32>
    %500 = arith.addf %499, %498 : vector<2x32xf32>
    %501 = arith.divf %499, %500 : vector<2x32xf32>
    %502 = vector.extract_strided_slice %492 {offsets = [0, 32], sizes = [2, 32], strides = [1, 1]} : vector<2x96xf32> to vector<2x32xf32>
    %503 = vector.extract_strided_slice %493 {offsets = [0, 32], sizes = [2, 32], strides = [1, 1]} : vector<2x96xf32> to vector<2x32xf32>
    %504 = arith.addf %502, %503 : vector<2x32xf32>
    %505 = arith.negf %504 : vector<2x32xf32>
    %506 = math.exp %505 : vector<2x32xf32>
    %cst_77 = arith.constant 1.000000e+00 : f32
    %507 = vector.broadcast %cst_77 : f32 to vector<2x32xf32>
    %508 = arith.addf %507, %506 : vector<2x32xf32>
    %509 = arith.divf %507, %508 : vector<2x32xf32>
    %510 = vector.extract_strided_slice %492 {offsets = [0, 64], sizes = [2, 32], strides = [1, 1]} : vector<2x96xf32> to vector<2x32xf32>
    %511 = vector.extract_strided_slice %493 {offsets = [0, 64], sizes = [2, 32], strides = [1, 1]} : vector<2x96xf32> to vector<2x32xf32>
    %512 = arith.addf %511, %46 : vector<2x32xf32>
    %513 = arith.mulf %501, %512 : vector<2x32xf32>
    %514 = arith.addf %510, %513 : vector<2x32xf32>
    %515 = math.tanh %514 : vector<2x32xf32>
    %cst_78 = arith.constant 1.000000e+00 : f32
    %516 = vector.broadcast %cst_78 : f32 to vector<2x32xf32>
    %517 = arith.subf %516, %509 : vector<2x32xf32>
    %518 = arith.mulf %517, %515 : vector<2x32xf32>
    %519 = arith.mulf %509, %455 : vector<2x32xf32>
    %520 = arith.addf %518, %519 : vector<2x32xf32>
    %521 = arith.subf %520, %455 : vector<2x32xf32>
    %522 = arith.mulf %6, %521 : vector<2x32xf32>
    %523 = arith.addf %455, %522 : vector<2x32xf32>
    %524 = arith.mulf %6, %523 : vector<2x32xf32>
    %525 = vector.extract_strided_slice %37 {offsets = [0, 7, 0], sizes = [2, 1, 96], strides = [1, 1, 1]} : vector<2x8x96xf32> to vector<2x1x96xf32>
    %526 = vector.shape_cast %525 : vector<2x1x96xf32> to vector<2x96xf32>
    %cst_79 = arith.constant dense<0.000000e+00> : vector<2x96xf32>
    %527 = tpu.matmul %489, %39, %cst_79 {dimension_numbers = #tpu.dot_dimension_numbers<[1], [0], [0], [1], [0, 0, 1, 1], [], []>} : vector<2x32xf32>, vector<32x96xf32>, vector<2x96xf32> -> vector<2x96xf32>
    %528 = vector.extract_strided_slice %526 {offsets = [0, 0], sizes = [2, 32], strides = [1, 1]} : vector<2x96xf32> to vector<2x32xf32>
    %529 = vector.extract_strided_slice %527 {offsets = [0, 0], sizes = [2, 32], strides = [1, 1]} : vector<2x96xf32> to vector<2x32xf32>
    %530 = arith.addf %528, %529 : vector<2x32xf32>
    %531 = arith.negf %530 : vector<2x32xf32>
    %532 = math.exp %531 : vector<2x32xf32>
    %cst_80 = arith.constant 1.000000e+00 : f32
    %533 = vector.broadcast %cst_80 : f32 to vector<2x32xf32>
    %534 = arith.addf %533, %532 : vector<2x32xf32>
    %535 = arith.divf %533, %534 : vector<2x32xf32>
    %536 = vector.extract_strided_slice %526 {offsets = [0, 32], sizes = [2, 32], strides = [1, 1]} : vector<2x96xf32> to vector<2x32xf32>
    %537 = vector.extract_strided_slice %527 {offsets = [0, 32], sizes = [2, 32], strides = [1, 1]} : vector<2x96xf32> to vector<2x32xf32>
    %538 = arith.addf %536, %537 : vector<2x32xf32>
    %539 = arith.negf %538 : vector<2x32xf32>
    %540 = math.exp %539 : vector<2x32xf32>
    %cst_81 = arith.constant 1.000000e+00 : f32
    %541 = vector.broadcast %cst_81 : f32 to vector<2x32xf32>
    %542 = arith.addf %541, %540 : vector<2x32xf32>
    %543 = arith.divf %541, %542 : vector<2x32xf32>
    %544 = vector.extract_strided_slice %526 {offsets = [0, 64], sizes = [2, 32], strides = [1, 1]} : vector<2x96xf32> to vector<2x32xf32>
    %545 = vector.extract_strided_slice %527 {offsets = [0, 64], sizes = [2, 32], strides = [1, 1]} : vector<2x96xf32> to vector<2x32xf32>
    %546 = arith.addf %545, %43 : vector<2x32xf32>
    %547 = arith.mulf %535, %546 : vector<2x32xf32>
    %548 = arith.addf %544, %547 : vector<2x32xf32>
    %549 = math.tanh %548 : vector<2x32xf32>
    %cst_82 = arith.constant 1.000000e+00 : f32
    %550 = vector.broadcast %cst_82 : f32 to vector<2x32xf32>
    %551 = arith.subf %550, %543 : vector<2x32xf32>
    %552 = arith.mulf %551, %549 : vector<2x32xf32>
    %553 = arith.mulf %543, %489 : vector<2x32xf32>
    %554 = arith.addf %552, %553 : vector<2x32xf32>
    %555 = arith.subf %554, %489 : vector<2x32xf32>
    %556 = arith.mulf %24, %555 : vector<2x32xf32>
    %557 = arith.addf %489, %556 : vector<2x32xf32>
    %558 = arith.mulf %24, %557 : vector<2x32xf32>
    %559 = vector.extract_strided_slice %38 {offsets = [0, 0, 0], sizes = [2, 1, 96], strides = [1, 1, 1]} : vector<2x8x96xf32> to vector<2x1x96xf32>
    %560 = vector.shape_cast %559 : vector<2x1x96xf32> to vector<2x96xf32>
    %cst_83 = arith.constant dense<0.000000e+00> : vector<2x96xf32>
    %561 = tpu.matmul %523, %40, %cst_83 {dimension_numbers = #tpu.dot_dimension_numbers<[1], [0], [0], [1], [0, 0, 1, 1], [], []>} : vector<2x32xf32>, vector<32x96xf32>, vector<2x96xf32> -> vector<2x96xf32>
    %562 = vector.extract_strided_slice %560 {offsets = [0, 0], sizes = [2, 32], strides = [1, 1]} : vector<2x96xf32> to vector<2x32xf32>
    %563 = vector.extract_strided_slice %561 {offsets = [0, 0], sizes = [2, 32], strides = [1, 1]} : vector<2x96xf32> to vector<2x32xf32>
    %564 = arith.addf %562, %563 : vector<2x32xf32>
    %565 = arith.negf %564 : vector<2x32xf32>
    %566 = math.exp %565 : vector<2x32xf32>
    %cst_84 = arith.constant 1.000000e+00 : f32
    %567 = vector.broadcast %cst_84 : f32 to vector<2x32xf32>
    %568 = arith.addf %567, %566 : vector<2x32xf32>
    %569 = arith.divf %567, %568 : vector<2x32xf32>
    %570 = vector.extract_strided_slice %560 {offsets = [0, 32], sizes = [2, 32], strides = [1, 1]} : vector<2x96xf32> to vector<2x32xf32>
    %571 = vector.extract_strided_slice %561 {offsets = [0, 32], sizes = [2, 32], strides = [1, 1]} : vector<2x96xf32> to vector<2x32xf32>
    %572 = arith.addf %570, %571 : vector<2x32xf32>
    %573 = arith.negf %572 : vector<2x32xf32>
    %574 = math.exp %573 : vector<2x32xf32>
    %cst_85 = arith.constant 1.000000e+00 : f32
    %575 = vector.broadcast %cst_85 : f32 to vector<2x32xf32>
    %576 = arith.addf %575, %574 : vector<2x32xf32>
    %577 = arith.divf %575, %576 : vector<2x32xf32>
    %578 = vector.extract_strided_slice %560 {offsets = [0, 64], sizes = [2, 32], strides = [1, 1]} : vector<2x96xf32> to vector<2x32xf32>
    %579 = vector.extract_strided_slice %561 {offsets = [0, 64], sizes = [2, 32], strides = [1, 1]} : vector<2x96xf32> to vector<2x32xf32>
    %580 = arith.addf %579, %46 : vector<2x32xf32>
    %581 = arith.mulf %569, %580 : vector<2x32xf32>
    %582 = arith.addf %578, %581 : vector<2x32xf32>
    %583 = math.tanh %582 : vector<2x32xf32>
    %cst_86 = arith.constant 1.000000e+00 : f32
    %584 = vector.broadcast %cst_86 : f32 to vector<2x32xf32>
    %585 = arith.subf %584, %577 : vector<2x32xf32>
    %586 = arith.mulf %585, %583 : vector<2x32xf32>
    %587 = arith.mulf %577, %523 : vector<2x32xf32>
    %588 = arith.addf %586, %587 : vector<2x32xf32>
    %589 = arith.subf %588, %523 : vector<2x32xf32>
    %590 = arith.mulf %3, %589 : vector<2x32xf32>
    %591 = arith.addf %523, %590 : vector<2x32xf32>
    %592 = arith.mulf %3, %591 : vector<2x32xf32>
    %593 = vector.shape_cast %82 : vector<2x32xf32> to vector<2x1x32xf32>
    %594 = vector.shape_cast %150 : vector<2x32xf32> to vector<2x1x32xf32>
    %595 = vector.shape_cast %218 : vector<2x32xf32> to vector<2x1x32xf32>
    %596 = vector.shape_cast %286 : vector<2x32xf32> to vector<2x1x32xf32>
    %597 = vector.shape_cast %354 : vector<2x32xf32> to vector<2x1x32xf32>
    %598 = vector.shape_cast %422 : vector<2x32xf32> to vector<2x1x32xf32>
    %599 = vector.shape_cast %490 : vector<2x32xf32> to vector<2x1x32xf32>
    %600 = vector.shape_cast %558 : vector<2x32xf32> to vector<2x1x32xf32>
    %601 = tpu.concatenate %593, %594, %595, %596, %597, %598, %599, %600 in 1 : vector<2x1x32xf32>, vector<2x1x32xf32>, vector<2x1x32xf32>, vector<2x1x32xf32>, vector<2x1x32xf32>, vector<2x1x32xf32>, vector<2x1x32xf32>, vector<2x1x32xf32> -> vector<2x8x32xf32>
    %602 = vector.shape_cast %592 : vector<2x32xf32> to vector<2x1x32xf32>
    %603 = vector.shape_cast %524 : vector<2x32xf32> to vector<2x1x32xf32>
    %604 = vector.shape_cast %456 : vector<2x32xf32> to vector<2x1x32xf32>
    %605 = vector.shape_cast %388 : vector<2x32xf32> to vector<2x1x32xf32>
    %606 = vector.shape_cast %320 : vector<2x32xf32> to vector<2x1x32xf32>
    %607 = vector.shape_cast %252 : vector<2x32xf32> to vector<2x1x32xf32>
    %608 = vector.shape_cast %184 : vector<2x32xf32> to vector<2x1x32xf32>
    %609 = vector.shape_cast %116 : vector<2x32xf32> to vector<2x1x32xf32>
    %610 = tpu.concatenate %602, %603, %604, %605, %606, %607, %608, %609 in 1 : vector<2x1x32xf32>, vector<2x1x32xf32>, vector<2x1x32xf32>, vector<2x1x32xf32>, vector<2x1x32xf32>, vector<2x1x32xf32>, vector<2x1x32xf32>, vector<2x1x32xf32> -> vector<2x8x32xf32>
    %c0_87 = arith.constant 0 : index
    %c0_88 = arith.constant 0 : index
    %c0_89 = arith.constant 0 : index
    %c0_90 = arith.constant 0 : index
    %611 = vector.load %arg21[%c0_87, %c0_88, %c0_89, %c0_90] : memref<2x2x8x64xf32, #tpu.memory_space<vmem>>, vector<1x2x8x32xf32>
    %612 = vector.shape_cast %611 : vector<1x2x8x32xf32> to vector<2x8x32xf32>
    %613 = vector.shape_cast %601 : vector<2x8x32xf32> to vector<1x2x8x32xf32>
    tpu.vector_store %arg21[%c0_87, %c0_88, %c0_89, %c0_90], %613 {strides = array<i32>} : memref<2x2x8x64xf32, #tpu.memory_space<vmem>>, vector<1x2x8x32xf32>,
    %c0_91 = arith.constant 0 : index
    %c0_92 = arith.constant 0 : index
    %c0_93 = arith.constant 0 : index
    %c32 = arith.constant 32 : index
    %614 = vector.load %arg21[%c0_91, %c0_92, %c0_93, %c32] : memref<2x2x8x64xf32, #tpu.memory_space<vmem>>, vector<1x2x8x32xf32>
    %615 = vector.shape_cast %614 : vector<1x2x8x32xf32> to vector<2x8x32xf32>
    %616 = vector.shape_cast %610 : vector<2x8x32xf32> to vector<1x2x8x32xf32>
    tpu.vector_store %arg21[%c0_91, %c0_92, %c0_93, %c32], %616 {strides = array<i32>} : memref<2x2x8x64xf32, #tpu.memory_space<vmem>>, vector<1x2x8x32xf32>,
    %617 = vector.shape_cast %601 : vector<2x8x32xf32> to vector<16x32xf32>
    %618 = vector.shape_cast %610 : vector<2x8x32xf32> to vector<16x32xf32>
    %c0_94 = arith.constant 0 : index
    %c0_95 = arith.constant 0 : index
    %619 = vector.load %arg11[%c0_94, %c0_95] : memref<32x96xf32, #tpu.memory_space<vmem>>, vector<32x96xf32>
    %cst_96 = arith.constant dense<0.000000e+00> : vector<16x96xf32>
    %620 = tpu.matmul %617, %619, %cst_96 {dimension_numbers = #tpu.dot_dimension_numbers<[1], [0], [0], [1], [0, 0, 1, 1], [], []>} : vector<16x32xf32>, vector<32x96xf32>, vector<16x96xf32> -> vector<16x96xf32>
    %c0_97 = arith.constant 0 : index
    %c0_98 = arith.constant 0 : index
    %621 = vector.load %arg12[%c0_97, %c0_98] : memref<32x96xf32, #tpu.memory_space<vmem>>, vector<32x96xf32>
    %cst_99 = arith.constant dense<0.000000e+00> : vector<16x96xf32>
    %622 = tpu.matmul %618, %621, %cst_99 {dimension_numbers = #tpu.dot_dimension_numbers<[1], [0], [0], [1], [0, 0, 1, 1], [], []>} : vector<16x32xf32>, vector<32x96xf32>, vector<16x96xf32> -> vector<16x96xf32>
    %623 = arith.addf %620, %622 : vector<16x96xf32>
    %c0_100 = arith.constant 0 : index
    %c0_101 = arith.constant 0 : index
    %624 = vector.load %arg14[%c0_100, %c0_101] : memref<1x96xf32, #tpu.memory_space<vmem>>, vector<1x96xf32>
    %625 = vector.broadcast %624 : vector<1x96xf32> to vector<16x96xf32>
    %626 = arith.addf %623, %625 : vector<16x96xf32>
    %c0_102 = arith.constant 0 : index
    %c0_103 = arith.constant 0 : index
    %627 = vector.load %arg16[%c0_102, %c0_103] : memref<32x96xf32, #tpu.memory_space<vmem>>, vector<32x96xf32>
    %cst_104 = arith.constant dense<0.000000e+00> : vector<16x96xf32>
    %628 = tpu.matmul %617, %627, %cst_104 {dimension_numbers = #tpu.dot_dimension_numbers<[1], [0], [0], [1], [0, 0, 1, 1], [], []>} : vector<16x32xf32>, vector<32x96xf32>, vector<16x96xf32> -> vector<16x96xf32>
    %c0_105 = arith.constant 0 : index
    %c0_106 = arith.constant 0 : index
    %629 = vector.load %arg17[%c0_105, %c0_106] : memref<32x96xf32, #tpu.memory_space<vmem>>, vector<32x96xf32>
    %cst_107 = arith.constant dense<0.000000e+00> : vector<16x96xf32>
    %630 = tpu.matmul %618, %629, %cst_107 {dimension_numbers = #tpu.dot_dimension_numbers<[1], [0], [0], [1], [0, 0, 1, 1], [], []>} : vector<16x32xf32>, vector<32x96xf32>, vector<16x96xf32> -> vector<16x96xf32>
    %631 = arith.addf %628, %630 : vector<16x96xf32>
    %c0_108 = arith.constant 0 : index
    %c0_109 = arith.constant 0 : index
    %632 = vector.load %arg19[%c0_108, %c0_109] : memref<1x96xf32, #tpu.memory_space<vmem>>, vector<1x96xf32>
    %633 = vector.broadcast %632 : vector<1x96xf32> to vector<16x96xf32>
    %634 = arith.addf %631, %633 : vector<16x96xf32>
    %635 = vector.shape_cast %626 : vector<16x96xf32> to vector<2x8x96xf32>
    %636 = vector.shape_cast %634 : vector<16x96xf32> to vector<2x8x96xf32>
    %c0_110 = arith.constant 0 : index
    %c0_111 = arith.constant 0 : index
    %637 = vector.load %arg13[%c0_110, %c0_111] : memref<32x96xf32, #tpu.memory_space<vmem>>, vector<32x96xf32>
    %c0_112 = arith.constant 0 : index
    %c0_113 = arith.constant 0 : index
    %638 = vector.load %arg18[%c0_112, %c0_113] : memref<32x96xf32, #tpu.memory_space<vmem>>, vector<32x96xf32>
    %c0_114 = arith.constant 0 : index
    %c0_115 = arith.constant 0 : index
    %639 = vector.load %arg15[%c0_114, %c0_115] : memref<1x32xf32, #tpu.memory_space<vmem>>, vector<1x32xf32>
    %640 = vector.shape_cast %639 : vector<1x32xf32> to vector<1x32xf32>
    %641 = vector.broadcast %640 : vector<1x32xf32> to vector<2x32xf32>
    %c0_116 = arith.constant 0 : index
    %c0_117 = arith.constant 0 : index
    %642 = vector.load %arg20[%c0_116, %c0_117] : memref<1x32xf32, #tpu.memory_space<vmem>>, vector<1x32xf32>
    %643 = vector.shape_cast %642 : vector<1x32xf32> to vector<1x32xf32>
    %644 = vector.broadcast %643 : vector<1x32xf32> to vector<2x32xf32>
    %cst_118 = arith.constant 0.000000e+00 : f32
    %645 = vector.broadcast %cst_118 : f32 to vector<2x32xf32>
    %cst_119 = arith.constant 0.000000e+00 : f32
    %646 = vector.broadcast %cst_119 : f32 to vector<2x32xf32>
    %647 = vector.extract_strided_slice %635 {offsets = [0, 0, 0], sizes = [2, 1, 96], strides = [1, 1, 1]} : vector<2x8x96xf32> to vector<2x1x96xf32>
    %648 = vector.shape_cast %647 : vector<2x1x96xf32> to vector<2x96xf32>
    %cst_120 = arith.constant dense<0.000000e+00> : vector<2x96xf32>
    %649 = tpu.matmul %645, %637, %cst_120 {dimension_numbers = #tpu.dot_dimension_numbers<[1], [0], [0], [1], [0, 0, 1, 1], [], []>} : vector<2x32xf32>, vector<32x96xf32>, vector<2x96xf32> -> vector<2x96xf32>
    %650 = vector.extract_strided_slice %648 {offsets = [0, 0], sizes = [2, 32], strides = [1, 1]} : vector<2x96xf32> to vector<2x32xf32>
    %651 = vector.extract_strided_slice %649 {offsets = [0, 0], sizes = [2, 32], strides = [1, 1]} : vector<2x96xf32> to vector<2x32xf32>
    %652 = arith.addf %650, %651 : vector<2x32xf32>
    %653 = arith.negf %652 : vector<2x32xf32>
    %654 = math.exp %653 : vector<2x32xf32>
    %cst_121 = arith.constant 1.000000e+00 : f32
    %655 = vector.broadcast %cst_121 : f32 to vector<2x32xf32>
    %656 = arith.addf %655, %654 : vector<2x32xf32>
    %657 = arith.divf %655, %656 : vector<2x32xf32>
    %658 = vector.extract_strided_slice %648 {offsets = [0, 32], sizes = [2, 32], strides = [1, 1]} : vector<2x96xf32> to vector<2x32xf32>
    %659 = vector.extract_strided_slice %649 {offsets = [0, 32], sizes = [2, 32], strides = [1, 1]} : vector<2x96xf32> to vector<2x32xf32>
    %660 = arith.addf %658, %659 : vector<2x32xf32>
    %661 = arith.negf %660 : vector<2x32xf32>
    %662 = math.exp %661 : vector<2x32xf32>
    %cst_122 = arith.constant 1.000000e+00 : f32
    %663 = vector.broadcast %cst_122 : f32 to vector<2x32xf32>
    %664 = arith.addf %663, %662 : vector<2x32xf32>
    %665 = arith.divf %663, %664 : vector<2x32xf32>
    %666 = vector.extract_strided_slice %648 {offsets = [0, 64], sizes = [2, 32], strides = [1, 1]} : vector<2x96xf32> to vector<2x32xf32>
    %667 = vector.extract_strided_slice %649 {offsets = [0, 64], sizes = [2, 32], strides = [1, 1]} : vector<2x96xf32> to vector<2x32xf32>
    %668 = arith.addf %667, %641 : vector<2x32xf32>
    %669 = arith.mulf %657, %668 : vector<2x32xf32>
    %670 = arith.addf %666, %669 : vector<2x32xf32>
    %671 = math.tanh %670 : vector<2x32xf32>
    %cst_123 = arith.constant 1.000000e+00 : f32
    %672 = vector.broadcast %cst_123 : f32 to vector<2x32xf32>
    %673 = arith.subf %672, %665 : vector<2x32xf32>
    %674 = arith.mulf %673, %671 : vector<2x32xf32>
    %675 = arith.mulf %665, %645 : vector<2x32xf32>
    %676 = arith.addf %674, %675 : vector<2x32xf32>
    %677 = arith.subf %676, %645 : vector<2x32xf32>
    %678 = arith.mulf %3, %677 : vector<2x32xf32>
    %679 = arith.addf %645, %678 : vector<2x32xf32>
    %680 = arith.mulf %3, %679 : vector<2x32xf32>
    %681 = vector.extract_strided_slice %636 {offsets = [0, 7, 0], sizes = [2, 1, 96], strides = [1, 1, 1]} : vector<2x8x96xf32> to vector<2x1x96xf32>
    %682 = vector.shape_cast %681 : vector<2x1x96xf32> to vector<2x96xf32>
    %cst_124 = arith.constant dense<0.000000e+00> : vector<2x96xf32>
    %683 = tpu.matmul %646, %638, %cst_124 {dimension_numbers = #tpu.dot_dimension_numbers<[1], [0], [0], [1], [0, 0, 1, 1], [], []>} : vector<2x32xf32>, vector<32x96xf32>, vector<2x96xf32> -> vector<2x96xf32>
    %684 = vector.extract_strided_slice %682 {offsets = [0, 0], sizes = [2, 32], strides = [1, 1]} : vector<2x96xf32> to vector<2x32xf32>
    %685 = vector.extract_strided_slice %683 {offsets = [0, 0], sizes = [2, 32], strides = [1, 1]} : vector<2x96xf32> to vector<2x32xf32>
    %686 = arith.addf %684, %685 : vector<2x32xf32>
    %687 = arith.negf %686 : vector<2x32xf32>
    %688 = math.exp %687 : vector<2x32xf32>
    %cst_125 = arith.constant 1.000000e+00 : f32
    %689 = vector.broadcast %cst_125 : f32 to vector<2x32xf32>
    %690 = arith.addf %689, %688 : vector<2x32xf32>
    %691 = arith.divf %689, %690 : vector<2x32xf32>
    %692 = vector.extract_strided_slice %682 {offsets = [0, 32], sizes = [2, 32], strides = [1, 1]} : vector<2x96xf32> to vector<2x32xf32>
    %693 = vector.extract_strided_slice %683 {offsets = [0, 32], sizes = [2, 32], strides = [1, 1]} : vector<2x96xf32> to vector<2x32xf32>
    %694 = arith.addf %692, %693 : vector<2x32xf32>
    %695 = arith.negf %694 : vector<2x32xf32>
    %696 = math.exp %695 : vector<2x32xf32>
    %cst_126 = arith.constant 1.000000e+00 : f32
    %697 = vector.broadcast %cst_126 : f32 to vector<2x32xf32>
    %698 = arith.addf %697, %696 : vector<2x32xf32>
    %699 = arith.divf %697, %698 : vector<2x32xf32>
    %700 = vector.extract_strided_slice %682 {offsets = [0, 64], sizes = [2, 32], strides = [1, 1]} : vector<2x96xf32> to vector<2x32xf32>
    %701 = vector.extract_strided_slice %683 {offsets = [0, 64], sizes = [2, 32], strides = [1, 1]} : vector<2x96xf32> to vector<2x32xf32>
    %702 = arith.addf %701, %644 : vector<2x32xf32>
    %703 = arith.mulf %691, %702 : vector<2x32xf32>
    %704 = arith.addf %700, %703 : vector<2x32xf32>
    %705 = math.tanh %704 : vector<2x32xf32>
    %cst_127 = arith.constant 1.000000e+00 : f32
    %706 = vector.broadcast %cst_127 : f32 to vector<2x32xf32>
    %707 = arith.subf %706, %699 : vector<2x32xf32>
    %708 = arith.mulf %707, %705 : vector<2x32xf32>
    %709 = arith.mulf %699, %646 : vector<2x32xf32>
    %710 = arith.addf %708, %709 : vector<2x32xf32>
    %711 = arith.subf %710, %646 : vector<2x32xf32>
    %712 = arith.mulf %24, %711 : vector<2x32xf32>
    %713 = arith.addf %646, %712 : vector<2x32xf32>
    %714 = arith.mulf %24, %713 : vector<2x32xf32>
    %715 = vector.extract_strided_slice %635 {offsets = [0, 1, 0], sizes = [2, 1, 96], strides = [1, 1, 1]} : vector<2x8x96xf32> to vector<2x1x96xf32>
    %716 = vector.shape_cast %715 : vector<2x1x96xf32> to vector<2x96xf32>
    %cst_128 = arith.constant dense<0.000000e+00> : vector<2x96xf32>
    %717 = tpu.matmul %679, %637, %cst_128 {dimension_numbers = #tpu.dot_dimension_numbers<[1], [0], [0], [1], [0, 0, 1, 1], [], []>} : vector<2x32xf32>, vector<32x96xf32>, vector<2x96xf32> -> vector<2x96xf32>
    %718 = vector.extract_strided_slice %716 {offsets = [0, 0], sizes = [2, 32], strides = [1, 1]} : vector<2x96xf32> to vector<2x32xf32>
    %719 = vector.extract_strided_slice %717 {offsets = [0, 0], sizes = [2, 32], strides = [1, 1]} : vector<2x96xf32> to vector<2x32xf32>
    %720 = arith.addf %718, %719 : vector<2x32xf32>
    %721 = arith.negf %720 : vector<2x32xf32>
    %722 = math.exp %721 : vector<2x32xf32>
    %cst_129 = arith.constant 1.000000e+00 : f32
    %723 = vector.broadcast %cst_129 : f32 to vector<2x32xf32>
    %724 = arith.addf %723, %722 : vector<2x32xf32>
    %725 = arith.divf %723, %724 : vector<2x32xf32>
    %726 = vector.extract_strided_slice %716 {offsets = [0, 32], sizes = [2, 32], strides = [1, 1]} : vector<2x96xf32> to vector<2x32xf32>
    %727 = vector.extract_strided_slice %717 {offsets = [0, 32], sizes = [2, 32], strides = [1, 1]} : vector<2x96xf32> to vector<2x32xf32>
    %728 = arith.addf %726, %727 : vector<2x32xf32>
    %729 = arith.negf %728 : vector<2x32xf32>
    %730 = math.exp %729 : vector<2x32xf32>
    %cst_130 = arith.constant 1.000000e+00 : f32
    %731 = vector.broadcast %cst_130 : f32 to vector<2x32xf32>
    %732 = arith.addf %731, %730 : vector<2x32xf32>
    %733 = arith.divf %731, %732 : vector<2x32xf32>
    %734 = vector.extract_strided_slice %716 {offsets = [0, 64], sizes = [2, 32], strides = [1, 1]} : vector<2x96xf32> to vector<2x32xf32>
    %735 = vector.extract_strided_slice %717 {offsets = [0, 64], sizes = [2, 32], strides = [1, 1]} : vector<2x96xf32> to vector<2x32xf32>
    %736 = arith.addf %735, %641 : vector<2x32xf32>
    %737 = arith.mulf %725, %736 : vector<2x32xf32>
    %738 = arith.addf %734, %737 : vector<2x32xf32>
    %739 = math.tanh %738 : vector<2x32xf32>
    %cst_131 = arith.constant 1.000000e+00 : f32
    %740 = vector.broadcast %cst_131 : f32 to vector<2x32xf32>
    %741 = arith.subf %740, %733 : vector<2x32xf32>
    %742 = arith.mulf %741, %739 : vector<2x32xf32>
    %743 = arith.mulf %733, %679 : vector<2x32xf32>
    %744 = arith.addf %742, %743 : vector<2x32xf32>
    %745 = arith.subf %744, %679 : vector<2x32xf32>
    %746 = arith.mulf %6, %745 : vector<2x32xf32>
    %747 = arith.addf %679, %746 : vector<2x32xf32>
    %748 = arith.mulf %6, %747 : vector<2x32xf32>
    %749 = vector.extract_strided_slice %636 {offsets = [0, 6, 0], sizes = [2, 1, 96], strides = [1, 1, 1]} : vector<2x8x96xf32> to vector<2x1x96xf32>
    %750 = vector.shape_cast %749 : vector<2x1x96xf32> to vector<2x96xf32>
    %cst_132 = arith.constant dense<0.000000e+00> : vector<2x96xf32>
    %751 = tpu.matmul %713, %638, %cst_132 {dimension_numbers = #tpu.dot_dimension_numbers<[1], [0], [0], [1], [0, 0, 1, 1], [], []>} : vector<2x32xf32>, vector<32x96xf32>, vector<2x96xf32> -> vector<2x96xf32>
    %752 = vector.extract_strided_slice %750 {offsets = [0, 0], sizes = [2, 32], strides = [1, 1]} : vector<2x96xf32> to vector<2x32xf32>
    %753 = vector.extract_strided_slice %751 {offsets = [0, 0], sizes = [2, 32], strides = [1, 1]} : vector<2x96xf32> to vector<2x32xf32>
    %754 = arith.addf %752, %753 : vector<2x32xf32>
    %755 = arith.negf %754 : vector<2x32xf32>
    %756 = math.exp %755 : vector<2x32xf32>
    %cst_133 = arith.constant 1.000000e+00 : f32
    %757 = vector.broadcast %cst_133 : f32 to vector<2x32xf32>
    %758 = arith.addf %757, %756 : vector<2x32xf32>
    %759 = arith.divf %757, %758 : vector<2x32xf32>
    %760 = vector.extract_strided_slice %750 {offsets = [0, 32], sizes = [2, 32], strides = [1, 1]} : vector<2x96xf32> to vector<2x32xf32>
    %761 = vector.extract_strided_slice %751 {offsets = [0, 32], sizes = [2, 32], strides = [1, 1]} : vector<2x96xf32> to vector<2x32xf32>
    %762 = arith.addf %760, %761 : vector<2x32xf32>
    %763 = arith.negf %762 : vector<2x32xf32>
    %764 = math.exp %763 : vector<2x32xf32>
    %cst_134 = arith.constant 1.000000e+00 : f32
    %765 = vector.broadcast %cst_134 : f32 to vector<2x32xf32>
    %766 = arith.addf %765, %764 : vector<2x32xf32>
    %767 = arith.divf %765, %766 : vector<2x32xf32>
    %768 = vector.extract_strided_slice %750 {offsets = [0, 64], sizes = [2, 32], strides = [1, 1]} : vector<2x96xf32> to vector<2x32xf32>
    %769 = vector.extract_strided_slice %751 {offsets = [0, 64], sizes = [2, 32], strides = [1, 1]} : vector<2x96xf32> to vector<2x32xf32>
    %770 = arith.addf %769, %644 : vector<2x32xf32>
    %771 = arith.mulf %759, %770 : vector<2x32xf32>
    %772 = arith.addf %768, %771 : vector<2x32xf32>
    %773 = math.tanh %772 : vector<2x32xf32>
    %cst_135 = arith.constant 1.000000e+00 : f32
    %774 = vector.broadcast %cst_135 : f32 to vector<2x32xf32>
    %775 = arith.subf %774, %767 : vector<2x32xf32>
    %776 = arith.mulf %775, %773 : vector<2x32xf32>
    %777 = arith.mulf %767, %713 : vector<2x32xf32>
    %778 = arith.addf %776, %777 : vector<2x32xf32>
    %779 = arith.subf %778, %713 : vector<2x32xf32>
    %780 = arith.mulf %21, %779 : vector<2x32xf32>
    %781 = arith.addf %713, %780 : vector<2x32xf32>
    %782 = arith.mulf %21, %781 : vector<2x32xf32>
    %783 = vector.extract_strided_slice %635 {offsets = [0, 2, 0], sizes = [2, 1, 96], strides = [1, 1, 1]} : vector<2x8x96xf32> to vector<2x1x96xf32>
    %784 = vector.shape_cast %783 : vector<2x1x96xf32> to vector<2x96xf32>
    %cst_136 = arith.constant dense<0.000000e+00> : vector<2x96xf32>
    %785 = tpu.matmul %747, %637, %cst_136 {dimension_numbers = #tpu.dot_dimension_numbers<[1], [0], [0], [1], [0, 0, 1, 1], [], []>} : vector<2x32xf32>, vector<32x96xf32>, vector<2x96xf32> -> vector<2x96xf32>
    %786 = vector.extract_strided_slice %784 {offsets = [0, 0], sizes = [2, 32], strides = [1, 1]} : vector<2x96xf32> to vector<2x32xf32>
    %787 = vector.extract_strided_slice %785 {offsets = [0, 0], sizes = [2, 32], strides = [1, 1]} : vector<2x96xf32> to vector<2x32xf32>
    %788 = arith.addf %786, %787 : vector<2x32xf32>
    %789 = arith.negf %788 : vector<2x32xf32>
    %790 = math.exp %789 : vector<2x32xf32>
    %cst_137 = arith.constant 1.000000e+00 : f32
    %791 = vector.broadcast %cst_137 : f32 to vector<2x32xf32>
    %792 = arith.addf %791, %790 : vector<2x32xf32>
    %793 = arith.divf %791, %792 : vector<2x32xf32>
    %794 = vector.extract_strided_slice %784 {offsets = [0, 32], sizes = [2, 32], strides = [1, 1]} : vector<2x96xf32> to vector<2x32xf32>
    %795 = vector.extract_strided_slice %785 {offsets = [0, 32], sizes = [2, 32], strides = [1, 1]} : vector<2x96xf32> to vector<2x32xf32>
    %796 = arith.addf %794, %795 : vector<2x32xf32>
    %797 = arith.negf %796 : vector<2x32xf32>
    %798 = math.exp %797 : vector<2x32xf32>
    %cst_138 = arith.constant 1.000000e+00 : f32
    %799 = vector.broadcast %cst_138 : f32 to vector<2x32xf32>
    %800 = arith.addf %799, %798 : vector<2x32xf32>
    %801 = arith.divf %799, %800 : vector<2x32xf32>
    %802 = vector.extract_strided_slice %784 {offsets = [0, 64], sizes = [2, 32], strides = [1, 1]} : vector<2x96xf32> to vector<2x32xf32>
    %803 = vector.extract_strided_slice %785 {offsets = [0, 64], sizes = [2, 32], strides = [1, 1]} : vector<2x96xf32> to vector<2x32xf32>
    %804 = arith.addf %803, %641 : vector<2x32xf32>
    %805 = arith.mulf %793, %804 : vector<2x32xf32>
    %806 = arith.addf %802, %805 : vector<2x32xf32>
    %807 = math.tanh %806 : vector<2x32xf32>
    %cst_139 = arith.constant 1.000000e+00 : f32
    %808 = vector.broadcast %cst_139 : f32 to vector<2x32xf32>
    %809 = arith.subf %808, %801 : vector<2x32xf32>
    %810 = arith.mulf %809, %807 : vector<2x32xf32>
    %811 = arith.mulf %801, %747 : vector<2x32xf32>
    %812 = arith.addf %810, %811 : vector<2x32xf32>
    %813 = arith.subf %812, %747 : vector<2x32xf32>
    %814 = arith.mulf %9, %813 : vector<2x32xf32>
    %815 = arith.addf %747, %814 : vector<2x32xf32>
    %816 = arith.mulf %9, %815 : vector<2x32xf32>
    %817 = vector.extract_strided_slice %636 {offsets = [0, 5, 0], sizes = [2, 1, 96], strides = [1, 1, 1]} : vector<2x8x96xf32> to vector<2x1x96xf32>
    %818 = vector.shape_cast %817 : vector<2x1x96xf32> to vector<2x96xf32>
    %cst_140 = arith.constant dense<0.000000e+00> : vector<2x96xf32>
    %819 = tpu.matmul %781, %638, %cst_140 {dimension_numbers = #tpu.dot_dimension_numbers<[1], [0], [0], [1], [0, 0, 1, 1], [], []>} : vector<2x32xf32>, vector<32x96xf32>, vector<2x96xf32> -> vector<2x96xf32>
    %820 = vector.extract_strided_slice %818 {offsets = [0, 0], sizes = [2, 32], strides = [1, 1]} : vector<2x96xf32> to vector<2x32xf32>
    %821 = vector.extract_strided_slice %819 {offsets = [0, 0], sizes = [2, 32], strides = [1, 1]} : vector<2x96xf32> to vector<2x32xf32>
    %822 = arith.addf %820, %821 : vector<2x32xf32>
    %823 = arith.negf %822 : vector<2x32xf32>
    %824 = math.exp %823 : vector<2x32xf32>
    %cst_141 = arith.constant 1.000000e+00 : f32
    %825 = vector.broadcast %cst_141 : f32 to vector<2x32xf32>
    %826 = arith.addf %825, %824 : vector<2x32xf32>
    %827 = arith.divf %825, %826 : vector<2x32xf32>
    %828 = vector.extract_strided_slice %818 {offsets = [0, 32], sizes = [2, 32], strides = [1, 1]} : vector<2x96xf32> to vector<2x32xf32>
    %829 = vector.extract_strided_slice %819 {offsets = [0, 32], sizes = [2, 32], strides = [1, 1]} : vector<2x96xf32> to vector<2x32xf32>
    %830 = arith.addf %828, %829 : vector<2x32xf32>
    %831 = arith.negf %830 : vector<2x32xf32>
    %832 = math.exp %831 : vector<2x32xf32>
    %cst_142 = arith.constant 1.000000e+00 : f32
    %833 = vector.broadcast %cst_142 : f32 to vector<2x32xf32>
    %834 = arith.addf %833, %832 : vector<2x32xf32>
    %835 = arith.divf %833, %834 : vector<2x32xf32>
    %836 = vector.extract_strided_slice %818 {offsets = [0, 64], sizes = [2, 32], strides = [1, 1]} : vector<2x96xf32> to vector<2x32xf32>
    %837 = vector.extract_strided_slice %819 {offsets = [0, 64], sizes = [2, 32], strides = [1, 1]} : vector<2x96xf32> to vector<2x32xf32>
    %838 = arith.addf %837, %644 : vector<2x32xf32>
    %839 = arith.mulf %827, %838 : vector<2x32xf32>
    %840 = arith.addf %836, %839 : vector<2x32xf32>
    %841 = math.tanh %840 : vector<2x32xf32>
    %cst_143 = arith.constant 1.000000e+00 : f32
    %842 = vector.broadcast %cst_143 : f32 to vector<2x32xf32>
    %843 = arith.subf %842, %835 : vector<2x32xf32>
    %844 = arith.mulf %843, %841 : vector<2x32xf32>
    %845 = arith.mulf %835, %781 : vector<2x32xf32>
    %846 = arith.addf %844, %845 : vector<2x32xf32>
    %847 = arith.subf %846, %781 : vector<2x32xf32>
    %848 = arith.mulf %18, %847 : vector<2x32xf32>
    %849 = arith.addf %781, %848 : vector<2x32xf32>
    %850 = arith.mulf %18, %849 : vector<2x32xf32>
    %851 = vector.extract_strided_slice %635 {offsets = [0, 3, 0], sizes = [2, 1, 96], strides = [1, 1, 1]} : vector<2x8x96xf32> to vector<2x1x96xf32>
    %852 = vector.shape_cast %851 : vector<2x1x96xf32> to vector<2x96xf32>
    %cst_144 = arith.constant dense<0.000000e+00> : vector<2x96xf32>
    %853 = tpu.matmul %815, %637, %cst_144 {dimension_numbers = #tpu.dot_dimension_numbers<[1], [0], [0], [1], [0, 0, 1, 1], [], []>} : vector<2x32xf32>, vector<32x96xf32>, vector<2x96xf32> -> vector<2x96xf32>
    %854 = vector.extract_strided_slice %852 {offsets = [0, 0], sizes = [2, 32], strides = [1, 1]} : vector<2x96xf32> to vector<2x32xf32>
    %855 = vector.extract_strided_slice %853 {offsets = [0, 0], sizes = [2, 32], strides = [1, 1]} : vector<2x96xf32> to vector<2x32xf32>
    %856 = arith.addf %854, %855 : vector<2x32xf32>
    %857 = arith.negf %856 : vector<2x32xf32>
    %858 = math.exp %857 : vector<2x32xf32>
    %cst_145 = arith.constant 1.000000e+00 : f32
    %859 = vector.broadcast %cst_145 : f32 to vector<2x32xf32>
    %860 = arith.addf %859, %858 : vector<2x32xf32>
    %861 = arith.divf %859, %860 : vector<2x32xf32>
    %862 = vector.extract_strided_slice %852 {offsets = [0, 32], sizes = [2, 32], strides = [1, 1]} : vector<2x96xf32> to vector<2x32xf32>
    %863 = vector.extract_strided_slice %853 {offsets = [0, 32], sizes = [2, 32], strides = [1, 1]} : vector<2x96xf32> to vector<2x32xf32>
    %864 = arith.addf %862, %863 : vector<2x32xf32>
    %865 = arith.negf %864 : vector<2x32xf32>
    %866 = math.exp %865 : vector<2x32xf32>
    %cst_146 = arith.constant 1.000000e+00 : f32
    %867 = vector.broadcast %cst_146 : f32 to vector<2x32xf32>
    %868 = arith.addf %867, %866 : vector<2x32xf32>
    %869 = arith.divf %867, %868 : vector<2x32xf32>
    %870 = vector.extract_strided_slice %852 {offsets = [0, 64], sizes = [2, 32], strides = [1, 1]} : vector<2x96xf32> to vector<2x32xf32>
    %871 = vector.extract_strided_slice %853 {offsets = [0, 64], sizes = [2, 32], strides = [1, 1]} : vector<2x96xf32> to vector<2x32xf32>
    %872 = arith.addf %871, %641 : vector<2x32xf32>
    %873 = arith.mulf %861, %872 : vector<2x32xf32>
    %874 = arith.addf %870, %873 : vector<2x32xf32>
    %875 = math.tanh %874 : vector<2x32xf32>
    %cst_147 = arith.constant 1.000000e+00 : f32
    %876 = vector.broadcast %cst_147 : f32 to vector<2x32xf32>
    %877 = arith.subf %876, %869 : vector<2x32xf32>
    %878 = arith.mulf %877, %875 : vector<2x32xf32>
    %879 = arith.mulf %869, %815 : vector<2x32xf32>
    %880 = arith.addf %878, %879 : vector<2x32xf32>
    %881 = arith.subf %880, %815 : vector<2x32xf32>
    %882 = arith.mulf %12, %881 : vector<2x32xf32>
    %883 = arith.addf %815, %882 : vector<2x32xf32>
    %884 = arith.mulf %12, %883 : vector<2x32xf32>
    %885 = vector.extract_strided_slice %636 {offsets = [0, 4, 0], sizes = [2, 1, 96], strides = [1, 1, 1]} : vector<2x8x96xf32> to vector<2x1x96xf32>
    %886 = vector.shape_cast %885 : vector<2x1x96xf32> to vector<2x96xf32>
    %cst_148 = arith.constant dense<0.000000e+00> : vector<2x96xf32>
    %887 = tpu.matmul %849, %638, %cst_148 {dimension_numbers = #tpu.dot_dimension_numbers<[1], [0], [0], [1], [0, 0, 1, 1], [], []>} : vector<2x32xf32>, vector<32x96xf32>, vector<2x96xf32> -> vector<2x96xf32>
    %888 = vector.extract_strided_slice %886 {offsets = [0, 0], sizes = [2, 32], strides = [1, 1]} : vector<2x96xf32> to vector<2x32xf32>
    %889 = vector.extract_strided_slice %887 {offsets = [0, 0], sizes = [2, 32], strides = [1, 1]} : vector<2x96xf32> to vector<2x32xf32>
    %890 = arith.addf %888, %889 : vector<2x32xf32>
    %891 = arith.negf %890 : vector<2x32xf32>
    %892 = math.exp %891 : vector<2x32xf32>
    %cst_149 = arith.constant 1.000000e+00 : f32
    %893 = vector.broadcast %cst_149 : f32 to vector<2x32xf32>
    %894 = arith.addf %893, %892 : vector<2x32xf32>
    %895 = arith.divf %893, %894 : vector<2x32xf32>
    %896 = vector.extract_strided_slice %886 {offsets = [0, 32], sizes = [2, 32], strides = [1, 1]} : vector<2x96xf32> to vector<2x32xf32>
    %897 = vector.extract_strided_slice %887 {offsets = [0, 32], sizes = [2, 32], strides = [1, 1]} : vector<2x96xf32> to vector<2x32xf32>
    %898 = arith.addf %896, %897 : vector<2x32xf32>
    %899 = arith.negf %898 : vector<2x32xf32>
    %900 = math.exp %899 : vector<2x32xf32>
    %cst_150 = arith.constant 1.000000e+00 : f32
    %901 = vector.broadcast %cst_150 : f32 to vector<2x32xf32>
    %902 = arith.addf %901, %900 : vector<2x32xf32>
    %903 = arith.divf %901, %902 : vector<2x32xf32>
    %904 = vector.extract_strided_slice %886 {offsets = [0, 64], sizes = [2, 32], strides = [1, 1]} : vector<2x96xf32> to vector<2x32xf32>
    %905 = vector.extract_strided_slice %887 {offsets = [0, 64], sizes = [2, 32], strides = [1, 1]} : vector<2x96xf32> to vector<2x32xf32>
    %906 = arith.addf %905, %644 : vector<2x32xf32>
    %907 = arith.mulf %895, %906 : vector<2x32xf32>
    %908 = arith.addf %904, %907 : vector<2x32xf32>
    %909 = math.tanh %908 : vector<2x32xf32>
    %cst_151 = arith.constant 1.000000e+00 : f32
    %910 = vector.broadcast %cst_151 : f32 to vector<2x32xf32>
    %911 = arith.subf %910, %903 : vector<2x32xf32>
    %912 = arith.mulf %911, %909 : vector<2x32xf32>
    %913 = arith.mulf %903, %849 : vector<2x32xf32>
    %914 = arith.addf %912, %913 : vector<2x32xf32>
    %915 = arith.subf %914, %849 : vector<2x32xf32>
    %916 = arith.mulf %15, %915 : vector<2x32xf32>
    %917 = arith.addf %849, %916 : vector<2x32xf32>
    %918 = arith.mulf %15, %917 : vector<2x32xf32>
    %919 = vector.extract_strided_slice %635 {offsets = [0, 4, 0], sizes = [2, 1, 96], strides = [1, 1, 1]} : vector<2x8x96xf32> to vector<2x1x96xf32>
    %920 = vector.shape_cast %919 : vector<2x1x96xf32> to vector<2x96xf32>
    %cst_152 = arith.constant dense<0.000000e+00> : vector<2x96xf32>
    %921 = tpu.matmul %883, %637, %cst_152 {dimension_numbers = #tpu.dot_dimension_numbers<[1], [0], [0], [1], [0, 0, 1, 1], [], []>} : vector<2x32xf32>, vector<32x96xf32>, vector<2x96xf32> -> vector<2x96xf32>
    %922 = vector.extract_strided_slice %920 {offsets = [0, 0], sizes = [2, 32], strides = [1, 1]} : vector<2x96xf32> to vector<2x32xf32>
    %923 = vector.extract_strided_slice %921 {offsets = [0, 0], sizes = [2, 32], strides = [1, 1]} : vector<2x96xf32> to vector<2x32xf32>
    %924 = arith.addf %922, %923 : vector<2x32xf32>
    %925 = arith.negf %924 : vector<2x32xf32>
    %926 = math.exp %925 : vector<2x32xf32>
    %cst_153 = arith.constant 1.000000e+00 : f32
    %927 = vector.broadcast %cst_153 : f32 to vector<2x32xf32>
    %928 = arith.addf %927, %926 : vector<2x32xf32>
    %929 = arith.divf %927, %928 : vector<2x32xf32>
    %930 = vector.extract_strided_slice %920 {offsets = [0, 32], sizes = [2, 32], strides = [1, 1]} : vector<2x96xf32> to vector<2x32xf32>
    %931 = vector.extract_strided_slice %921 {offsets = [0, 32], sizes = [2, 32], strides = [1, 1]} : vector<2x96xf32> to vector<2x32xf32>
    %932 = arith.addf %930, %931 : vector<2x32xf32>
    %933 = arith.negf %932 : vector<2x32xf32>
    %934 = math.exp %933 : vector<2x32xf32>
    %cst_154 = arith.constant 1.000000e+00 : f32
    %935 = vector.broadcast %cst_154 : f32 to vector<2x32xf32>
    %936 = arith.addf %935, %934 : vector<2x32xf32>
    %937 = arith.divf %935, %936 : vector<2x32xf32>
    %938 = vector.extract_strided_slice %920 {offsets = [0, 64], sizes = [2, 32], strides = [1, 1]} : vector<2x96xf32> to vector<2x32xf32>
    %939 = vector.extract_strided_slice %921 {offsets = [0, 64], sizes = [2, 32], strides = [1, 1]} : vector<2x96xf32> to vector<2x32xf32>
    %940 = arith.addf %939, %641 : vector<2x32xf32>
    %941 = arith.mulf %929, %940 : vector<2x32xf32>
    %942 = arith.addf %938, %941 : vector<2x32xf32>
    %943 = math.tanh %942 : vector<2x32xf32>
    %cst_155 = arith.constant 1.000000e+00 : f32
    %944 = vector.broadcast %cst_155 : f32 to vector<2x32xf32>
    %945 = arith.subf %944, %937 : vector<2x32xf32>
    %946 = arith.mulf %945, %943 : vector<2x32xf32>
    %947 = arith.mulf %937, %883 : vector<2x32xf32>
    %948 = arith.addf %946, %947 : vector<2x32xf32>
    %949 = arith.subf %948, %883 : vector<2x32xf32>
    %950 = arith.mulf %15, %949 : vector<2x32xf32>
    %951 = arith.addf %883, %950 : vector<2x32xf32>
    %952 = arith.mulf %15, %951 : vector<2x32xf32>
    %953 = vector.extract_strided_slice %636 {offsets = [0, 3, 0], sizes = [2, 1, 96], strides = [1, 1, 1]} : vector<2x8x96xf32> to vector<2x1x96xf32>
    %954 = vector.shape_cast %953 : vector<2x1x96xf32> to vector<2x96xf32>
    %cst_156 = arith.constant dense<0.000000e+00> : vector<2x96xf32>
    %955 = tpu.matmul %917, %638, %cst_156 {dimension_numbers = #tpu.dot_dimension_numbers<[1], [0], [0], [1], [0, 0, 1, 1], [], []>} : vector<2x32xf32>, vector<32x96xf32>, vector<2x96xf32> -> vector<2x96xf32>
    %956 = vector.extract_strided_slice %954 {offsets = [0, 0], sizes = [2, 32], strides = [1, 1]} : vector<2x96xf32> to vector<2x32xf32>
    %957 = vector.extract_strided_slice %955 {offsets = [0, 0], sizes = [2, 32], strides = [1, 1]} : vector<2x96xf32> to vector<2x32xf32>
    %958 = arith.addf %956, %957 : vector<2x32xf32>
    %959 = arith.negf %958 : vector<2x32xf32>
    %960 = math.exp %959 : vector<2x32xf32>
    %cst_157 = arith.constant 1.000000e+00 : f32
    %961 = vector.broadcast %cst_157 : f32 to vector<2x32xf32>
    %962 = arith.addf %961, %960 : vector<2x32xf32>
    %963 = arith.divf %961, %962 : vector<2x32xf32>
    %964 = vector.extract_strided_slice %954 {offsets = [0, 32], sizes = [2, 32], strides = [1, 1]} : vector<2x96xf32> to vector<2x32xf32>
    %965 = vector.extract_strided_slice %955 {offsets = [0, 32], sizes = [2, 32], strides = [1, 1]} : vector<2x96xf32> to vector<2x32xf32>
    %966 = arith.addf %964, %965 : vector<2x32xf32>
    %967 = arith.negf %966 : vector<2x32xf32>
    %968 = math.exp %967 : vector<2x32xf32>
    %cst_158 = arith.constant 1.000000e+00 : f32
    %969 = vector.broadcast %cst_158 : f32 to vector<2x32xf32>
    %970 = arith.addf %969, %968 : vector<2x32xf32>
    %971 = arith.divf %969, %970 : vector<2x32xf32>
    %972 = vector.extract_strided_slice %954 {offsets = [0, 64], sizes = [2, 32], strides = [1, 1]} : vector<2x96xf32> to vector<2x32xf32>
    %973 = vector.extract_strided_slice %955 {offsets = [0, 64], sizes = [2, 32], strides = [1, 1]} : vector<2x96xf32> to vector<2x32xf32>
    %974 = arith.addf %973, %644 : vector<2x32xf32>
    %975 = arith.mulf %963, %974 : vector<2x32xf32>
    %976 = arith.addf %972, %975 : vector<2x32xf32>
    %977 = math.tanh %976 : vector<2x32xf32>
    %cst_159 = arith.constant 1.000000e+00 : f32
    %978 = vector.broadcast %cst_159 : f32 to vector<2x32xf32>
    %979 = arith.subf %978, %971 : vector<2x32xf32>
    %980 = arith.mulf %979, %977 : vector<2x32xf32>
    %981 = arith.mulf %971, %917 : vector<2x32xf32>
    %982 = arith.addf %980, %981 : vector<2x32xf32>
    %983 = arith.subf %982, %917 : vector<2x32xf32>
    %984 = arith.mulf %12, %983 : vector<2x32xf32>
    %985 = arith.addf %917, %984 : vector<2x32xf32>
    %986 = arith.mulf %12, %985 : vector<2x32xf32>
    %987 = vector.extract_strided_slice %635 {offsets = [0, 5, 0], sizes = [2, 1, 96], strides = [1, 1, 1]} : vector<2x8x96xf32> to vector<2x1x96xf32>
    %988 = vector.shape_cast %987 : vector<2x1x96xf32> to vector<2x96xf32>
    %cst_160 = arith.constant dense<0.000000e+00> : vector<2x96xf32>
    %989 = tpu.matmul %951, %637, %cst_160 {dimension_numbers = #tpu.dot_dimension_numbers<[1], [0], [0], [1], [0, 0, 1, 1], [], []>} : vector<2x32xf32>, vector<32x96xf32>, vector<2x96xf32> -> vector<2x96xf32>
    %990 = vector.extract_strided_slice %988 {offsets = [0, 0], sizes = [2, 32], strides = [1, 1]} : vector<2x96xf32> to vector<2x32xf32>
    %991 = vector.extract_strided_slice %989 {offsets = [0, 0], sizes = [2, 32], strides = [1, 1]} : vector<2x96xf32> to vector<2x32xf32>
    %992 = arith.addf %990, %991 : vector<2x32xf32>
    %993 = arith.negf %992 : vector<2x32xf32>
    %994 = math.exp %993 : vector<2x32xf32>
    %cst_161 = arith.constant 1.000000e+00 : f32
    %995 = vector.broadcast %cst_161 : f32 to vector<2x32xf32>
    %996 = arith.addf %995, %994 : vector<2x32xf32>
    %997 = arith.divf %995, %996 : vector<2x32xf32>
    %998 = vector.extract_strided_slice %988 {offsets = [0, 32], sizes = [2, 32], strides = [1, 1]} : vector<2x96xf32> to vector<2x32xf32>
    %999 = vector.extract_strided_slice %989 {offsets = [0, 32], sizes = [2, 32], strides = [1, 1]} : vector<2x96xf32> to vector<2x32xf32>
    %1000 = arith.addf %998, %999 : vector<2x32xf32>
    %1001 = arith.negf %1000 : vector<2x32xf32>
    %1002 = math.exp %1001 : vector<2x32xf32>
    %cst_162 = arith.constant 1.000000e+00 : f32
    %1003 = vector.broadcast %cst_162 : f32 to vector<2x32xf32>
    %1004 = arith.addf %1003, %1002 : vector<2x32xf32>
    %1005 = arith.divf %1003, %1004 : vector<2x32xf32>
    %1006 = vector.extract_strided_slice %988 {offsets = [0, 64], sizes = [2, 32], strides = [1, 1]} : vector<2x96xf32> to vector<2x32xf32>
    %1007 = vector.extract_strided_slice %989 {offsets = [0, 64], sizes = [2, 32], strides = [1, 1]} : vector<2x96xf32> to vector<2x32xf32>
    %1008 = arith.addf %1007, %641 : vector<2x32xf32>
    %1009 = arith.mulf %997, %1008 : vector<2x32xf32>
    %1010 = arith.addf %1006, %1009 : vector<2x32xf32>
    %1011 = math.tanh %1010 : vector<2x32xf32>
    %cst_163 = arith.constant 1.000000e+00 : f32
    %1012 = vector.broadcast %cst_163 : f32 to vector<2x32xf32>
    %1013 = arith.subf %1012, %1005 : vector<2x32xf32>
    %1014 = arith.mulf %1013, %1011 : vector<2x32xf32>
    %1015 = arith.mulf %1005, %951 : vector<2x32xf32>
    %1016 = arith.addf %1014, %1015 : vector<2x32xf32>
    %1017 = arith.subf %1016, %951 : vector<2x32xf32>
    %1018 = arith.mulf %18, %1017 : vector<2x32xf32>
    %1019 = arith.addf %951, %1018 : vector<2x32xf32>
    %1020 = arith.mulf %18, %1019 : vector<2x32xf32>
    %1021 = vector.extract_strided_slice %636 {offsets = [0, 2, 0], sizes = [2, 1, 96], strides = [1, 1, 1]} : vector<2x8x96xf32> to vector<2x1x96xf32>
    %1022 = vector.shape_cast %1021 : vector<2x1x96xf32> to vector<2x96xf32>
    %cst_164 = arith.constant dense<0.000000e+00> : vector<2x96xf32>
    %1023 = tpu.matmul %985, %638, %cst_164 {dimension_numbers = #tpu.dot_dimension_numbers<[1], [0], [0], [1], [0, 0, 1, 1], [], []>} : vector<2x32xf32>, vector<32x96xf32>, vector<2x96xf32> -> vector<2x96xf32>
    %1024 = vector.extract_strided_slice %1022 {offsets = [0, 0], sizes = [2, 32], strides = [1, 1]} : vector<2x96xf32> to vector<2x32xf32>
    %1025 = vector.extract_strided_slice %1023 {offsets = [0, 0], sizes = [2, 32], strides = [1, 1]} : vector<2x96xf32> to vector<2x32xf32>
    %1026 = arith.addf %1024, %1025 : vector<2x32xf32>
    %1027 = arith.negf %1026 : vector<2x32xf32>
    %1028 = math.exp %1027 : vector<2x32xf32>
    %cst_165 = arith.constant 1.000000e+00 : f32
    %1029 = vector.broadcast %cst_165 : f32 to vector<2x32xf32>
    %1030 = arith.addf %1029, %1028 : vector<2x32xf32>
    %1031 = arith.divf %1029, %1030 : vector<2x32xf32>
    %1032 = vector.extract_strided_slice %1022 {offsets = [0, 32], sizes = [2, 32], strides = [1, 1]} : vector<2x96xf32> to vector<2x32xf32>
    %1033 = vector.extract_strided_slice %1023 {offsets = [0, 32], sizes = [2, 32], strides = [1, 1]} : vector<2x96xf32> to vector<2x32xf32>
    %1034 = arith.addf %1032, %1033 : vector<2x32xf32>
    %1035 = arith.negf %1034 : vector<2x32xf32>
    %1036 = math.exp %1035 : vector<2x32xf32>
    %cst_166 = arith.constant 1.000000e+00 : f32
    %1037 = vector.broadcast %cst_166 : f32 to vector<2x32xf32>
    %1038 = arith.addf %1037, %1036 : vector<2x32xf32>
    %1039 = arith.divf %1037, %1038 : vector<2x32xf32>
    %1040 = vector.extract_strided_slice %1022 {offsets = [0, 64], sizes = [2, 32], strides = [1, 1]} : vector<2x96xf32> to vector<2x32xf32>
    %1041 = vector.extract_strided_slice %1023 {offsets = [0, 64], sizes = [2, 32], strides = [1, 1]} : vector<2x96xf32> to vector<2x32xf32>
    %1042 = arith.addf %1041, %644 : vector<2x32xf32>
    %1043 = arith.mulf %1031, %1042 : vector<2x32xf32>
    %1044 = arith.addf %1040, %1043 : vector<2x32xf32>
    %1045 = math.tanh %1044 : vector<2x32xf32>
    %cst_167 = arith.constant 1.000000e+00 : f32
    %1046 = vector.broadcast %cst_167 : f32 to vector<2x32xf32>
    %1047 = arith.subf %1046, %1039 : vector<2x32xf32>
    %1048 = arith.mulf %1047, %1045 : vector<2x32xf32>
    %1049 = arith.mulf %1039, %985 : vector<2x32xf32>
    %1050 = arith.addf %1048, %1049 : vector<2x32xf32>
    %1051 = arith.subf %1050, %985 : vector<2x32xf32>
    %1052 = arith.mulf %9, %1051 : vector<2x32xf32>
    %1053 = arith.addf %985, %1052 : vector<2x32xf32>
    %1054 = arith.mulf %9, %1053 : vector<2x32xf32>
    %1055 = vector.extract_strided_slice %635 {offsets = [0, 6, 0], sizes = [2, 1, 96], strides = [1, 1, 1]} : vector<2x8x96xf32> to vector<2x1x96xf32>
    %1056 = vector.shape_cast %1055 : vector<2x1x96xf32> to vector<2x96xf32>
    %cst_168 = arith.constant dense<0.000000e+00> : vector<2x96xf32>
    %1057 = tpu.matmul %1019, %637, %cst_168 {dimension_numbers = #tpu.dot_dimension_numbers<[1], [0], [0], [1], [0, 0, 1, 1], [], []>} : vector<2x32xf32>, vector<32x96xf32>, vector<2x96xf32> -> vector<2x96xf32>
    %1058 = vector.extract_strided_slice %1056 {offsets = [0, 0], sizes = [2, 32], strides = [1, 1]} : vector<2x96xf32> to vector<2x32xf32>
    %1059 = vector.extract_strided_slice %1057 {offsets = [0, 0], sizes = [2, 32], strides = [1, 1]} : vector<2x96xf32> to vector<2x32xf32>
    %1060 = arith.addf %1058, %1059 : vector<2x32xf32>
    %1061 = arith.negf %1060 : vector<2x32xf32>
    %1062 = math.exp %1061 : vector<2x32xf32>
    %cst_169 = arith.constant 1.000000e+00 : f32
    %1063 = vector.broadcast %cst_169 : f32 to vector<2x32xf32>
    %1064 = arith.addf %1063, %1062 : vector<2x32xf32>
    %1065 = arith.divf %1063, %1064 : vector<2x32xf32>
    %1066 = vector.extract_strided_slice %1056 {offsets = [0, 32], sizes = [2, 32], strides = [1, 1]} : vector<2x96xf32> to vector<2x32xf32>
    %1067 = vector.extract_strided_slice %1057 {offsets = [0, 32], sizes = [2, 32], strides = [1, 1]} : vector<2x96xf32> to vector<2x32xf32>
    %1068 = arith.addf %1066, %1067 : vector<2x32xf32>
    %1069 = arith.negf %1068 : vector<2x32xf32>
    %1070 = math.exp %1069 : vector<2x32xf32>
    %cst_170 = arith.constant 1.000000e+00 : f32
    %1071 = vector.broadcast %cst_170 : f32 to vector<2x32xf32>
    %1072 = arith.addf %1071, %1070 : vector<2x32xf32>
    %1073 = arith.divf %1071, %1072 : vector<2x32xf32>
    %1074 = vector.extract_strided_slice %1056 {offsets = [0, 64], sizes = [2, 32], strides = [1, 1]} : vector<2x96xf32> to vector<2x32xf32>
    %1075 = vector.extract_strided_slice %1057 {offsets = [0, 64], sizes = [2, 32], strides = [1, 1]} : vector<2x96xf32> to vector<2x32xf32>
    %1076 = arith.addf %1075, %641 : vector<2x32xf32>
    %1077 = arith.mulf %1065, %1076 : vector<2x32xf32>
    %1078 = arith.addf %1074, %1077 : vector<2x32xf32>
    %1079 = math.tanh %1078 : vector<2x32xf32>
    %cst_171 = arith.constant 1.000000e+00 : f32
    %1080 = vector.broadcast %cst_171 : f32 to vector<2x32xf32>
    %1081 = arith.subf %1080, %1073 : vector<2x32xf32>
    %1082 = arith.mulf %1081, %1079 : vector<2x32xf32>
    %1083 = arith.mulf %1073, %1019 : vector<2x32xf32>
    %1084 = arith.addf %1082, %1083 : vector<2x32xf32>
    %1085 = arith.subf %1084, %1019 : vector<2x32xf32>
    %1086 = arith.mulf %21, %1085 : vector<2x32xf32>
    %1087 = arith.addf %1019, %1086 : vector<2x32xf32>
    %1088 = arith.mulf %21, %1087 : vector<2x32xf32>
    %1089 = vector.extract_strided_slice %636 {offsets = [0, 1, 0], sizes = [2, 1, 96], strides = [1, 1, 1]} : vector<2x8x96xf32> to vector<2x1x96xf32>
    %1090 = vector.shape_cast %1089 : vector<2x1x96xf32> to vector<2x96xf32>
    %cst_172 = arith.constant dense<0.000000e+00> : vector<2x96xf32>
    %1091 = tpu.matmul %1053, %638, %cst_172 {dimension_numbers = #tpu.dot_dimension_numbers<[1], [0], [0], [1], [0, 0, 1, 1], [], []>} : vector<2x32xf32>, vector<32x96xf32>, vector<2x96xf32> -> vector<2x96xf32>
    %1092 = vector.extract_strided_slice %1090 {offsets = [0, 0], sizes = [2, 32], strides = [1, 1]} : vector<2x96xf32> to vector<2x32xf32>
    %1093 = vector.extract_strided_slice %1091 {offsets = [0, 0], sizes = [2, 32], strides = [1, 1]} : vector<2x96xf32> to vector<2x32xf32>
    %1094 = arith.addf %1092, %1093 : vector<2x32xf32>
    %1095 = arith.negf %1094 : vector<2x32xf32>
    %1096 = math.exp %1095 : vector<2x32xf32>
    %cst_173 = arith.constant 1.000000e+00 : f32
    %1097 = vector.broadcast %cst_173 : f32 to vector<2x32xf32>
    %1098 = arith.addf %1097, %1096 : vector<2x32xf32>
    %1099 = arith.divf %1097, %1098 : vector<2x32xf32>
    %1100 = vector.extract_strided_slice %1090 {offsets = [0, 32], sizes = [2, 32], strides = [1, 1]} : vector<2x96xf32> to vector<2x32xf32>
    %1101 = vector.extract_strided_slice %1091 {offsets = [0, 32], sizes = [2, 32], strides = [1, 1]} : vector<2x96xf32> to vector<2x32xf32>
    %1102 = arith.addf %1100, %1101 : vector<2x32xf32>
    %1103 = arith.negf %1102 : vector<2x32xf32>
    %1104 = math.exp %1103 : vector<2x32xf32>
    %cst_174 = arith.constant 1.000000e+00 : f32
    %1105 = vector.broadcast %cst_174 : f32 to vector<2x32xf32>
    %1106 = arith.addf %1105, %1104 : vector<2x32xf32>
    %1107 = arith.divf %1105, %1106 : vector<2x32xf32>
    %1108 = vector.extract_strided_slice %1090 {offsets = [0, 64], sizes = [2, 32], strides = [1, 1]} : vector<2x96xf32> to vector<2x32xf32>
    %1109 = vector.extract_strided_slice %1091 {offsets = [0, 64], sizes = [2, 32], strides = [1, 1]} : vector<2x96xf32> to vector<2x32xf32>
    %1110 = arith.addf %1109, %644 : vector<2x32xf32>
    %1111 = arith.mulf %1099, %1110 : vector<2x32xf32>
    %1112 = arith.addf %1108, %1111 : vector<2x32xf32>
    %1113 = math.tanh %1112 : vector<2x32xf32>
    %cst_175 = arith.constant 1.000000e+00 : f32
    %1114 = vector.broadcast %cst_175 : f32 to vector<2x32xf32>
    %1115 = arith.subf %1114, %1107 : vector<2x32xf32>
    %1116 = arith.mulf %1115, %1113 : vector<2x32xf32>
    %1117 = arith.mulf %1107, %1053 : vector<2x32xf32>
    %1118 = arith.addf %1116, %1117 : vector<2x32xf32>
    %1119 = arith.subf %1118, %1053 : vector<2x32xf32>
    %1120 = arith.mulf %6, %1119 : vector<2x32xf32>
    %1121 = arith.addf %1053, %1120 : vector<2x32xf32>
    %1122 = arith.mulf %6, %1121 : vector<2x32xf32>
    %1123 = vector.extract_strided_slice %635 {offsets = [0, 7, 0], sizes = [2, 1, 96], strides = [1, 1, 1]} : vector<2x8x96xf32> to vector<2x1x96xf32>
    %1124 = vector.shape_cast %1123 : vector<2x1x96xf32> to vector<2x96xf32>
    %cst_176 = arith.constant dense<0.000000e+00> : vector<2x96xf32>
    %1125 = tpu.matmul %1087, %637, %cst_176 {dimension_numbers = #tpu.dot_dimension_numbers<[1], [0], [0], [1], [0, 0, 1, 1], [], []>} : vector<2x32xf32>, vector<32x96xf32>, vector<2x96xf32> -> vector<2x96xf32>
    %1126 = vector.extract_strided_slice %1124 {offsets = [0, 0], sizes = [2, 32], strides = [1, 1]} : vector<2x96xf32> to vector<2x32xf32>
    %1127 = vector.extract_strided_slice %1125 {offsets = [0, 0], sizes = [2, 32], strides = [1, 1]} : vector<2x96xf32> to vector<2x32xf32>
    %1128 = arith.addf %1126, %1127 : vector<2x32xf32>
    %1129 = arith.negf %1128 : vector<2x32xf32>
    %1130 = math.exp %1129 : vector<2x32xf32>
    %cst_177 = arith.constant 1.000000e+00 : f32
    %1131 = vector.broadcast %cst_177 : f32 to vector<2x32xf32>
    %1132 = arith.addf %1131, %1130 : vector<2x32xf32>
    %1133 = arith.divf %1131, %1132 : vector<2x32xf32>
    %1134 = vector.extract_strided_slice %1124 {offsets = [0, 32], sizes = [2, 32], strides = [1, 1]} : vector<2x96xf32> to vector<2x32xf32>
    %1135 = vector.extract_strided_slice %1125 {offsets = [0, 32], sizes = [2, 32], strides = [1, 1]} : vector<2x96xf32> to vector<2x32xf32>
    %1136 = arith.addf %1134, %1135 : vector<2x32xf32>
    %1137 = arith.negf %1136 : vector<2x32xf32>
    %1138 = math.exp %1137 : vector<2x32xf32>
    %cst_178 = arith.constant 1.000000e+00 : f32
    %1139 = vector.broadcast %cst_178 : f32 to vector<2x32xf32>
    %1140 = arith.addf %1139, %1138 : vector<2x32xf32>
    %1141 = arith.divf %1139, %1140 : vector<2x32xf32>
    %1142 = vector.extract_strided_slice %1124 {offsets = [0, 64], sizes = [2, 32], strides = [1, 1]} : vector<2x96xf32> to vector<2x32xf32>
    %1143 = vector.extract_strided_slice %1125 {offsets = [0, 64], sizes = [2, 32], strides = [1, 1]} : vector<2x96xf32> to vector<2x32xf32>
    %1144 = arith.addf %1143, %641 : vector<2x32xf32>
    %1145 = arith.mulf %1133, %1144 : vector<2x32xf32>
    %1146 = arith.addf %1142, %1145 : vector<2x32xf32>
    %1147 = math.tanh %1146 : vector<2x32xf32>
    %cst_179 = arith.constant 1.000000e+00 : f32
    %1148 = vector.broadcast %cst_179 : f32 to vector<2x32xf32>
    %1149 = arith.subf %1148, %1141 : vector<2x32xf32>
    %1150 = arith.mulf %1149, %1147 : vector<2x32xf32>
    %1151 = arith.mulf %1141, %1087 : vector<2x32xf32>
    %1152 = arith.addf %1150, %1151 : vector<2x32xf32>
    %1153 = arith.subf %1152, %1087 : vector<2x32xf32>
    %1154 = arith.mulf %24, %1153 : vector<2x32xf32>
    %1155 = arith.addf %1087, %1154 : vector<2x32xf32>
    %1156 = arith.mulf %24, %1155 : vector<2x32xf32>
    %1157 = vector.extract_strided_slice %636 {offsets = [0, 0, 0], sizes = [2, 1, 96], strides = [1, 1, 1]} : vector<2x8x96xf32> to vector<2x1x96xf32>
    %1158 = vector.shape_cast %1157 : vector<2x1x96xf32> to vector<2x96xf32>
    %cst_180 = arith.constant dense<0.000000e+00> : vector<2x96xf32>
    %1159 = tpu.matmul %1121, %638, %cst_180 {dimension_numbers = #tpu.dot_dimension_numbers<[1], [0], [0], [1], [0, 0, 1, 1], [], []>} : vector<2x32xf32>, vector<32x96xf32>, vector<2x96xf32> -> vector<2x96xf32>
    %1160 = vector.extract_strided_slice %1158 {offsets = [0, 0], sizes = [2, 32], strides = [1, 1]} : vector<2x96xf32> to vector<2x32xf32>
    %1161 = vector.extract_strided_slice %1159 {offsets = [0, 0], sizes = [2, 32], strides = [1, 1]} : vector<2x96xf32> to vector<2x32xf32>
    %1162 = arith.addf %1160, %1161 : vector<2x32xf32>
    %1163 = arith.negf %1162 : vector<2x32xf32>
    %1164 = math.exp %1163 : vector<2x32xf32>
    %cst_181 = arith.constant 1.000000e+00 : f32
    %1165 = vector.broadcast %cst_181 : f32 to vector<2x32xf32>
    %1166 = arith.addf %1165, %1164 : vector<2x32xf32>
    %1167 = arith.divf %1165, %1166 : vector<2x32xf32>
    %1168 = vector.extract_strided_slice %1158 {offsets = [0, 32], sizes = [2, 32], strides = [1, 1]} : vector<2x96xf32> to vector<2x32xf32>
    %1169 = vector.extract_strided_slice %1159 {offsets = [0, 32], sizes = [2, 32], strides = [1, 1]} : vector<2x96xf32> to vector<2x32xf32>
    %1170 = arith.addf %1168, %1169 : vector<2x32xf32>
    %1171 = arith.negf %1170 : vector<2x32xf32>
    %1172 = math.exp %1171 : vector<2x32xf32>
    %cst_182 = arith.constant 1.000000e+00 : f32
    %1173 = vector.broadcast %cst_182 : f32 to vector<2x32xf32>
    %1174 = arith.addf %1173, %1172 : vector<2x32xf32>
    %1175 = arith.divf %1173, %1174 : vector<2x32xf32>
    %1176 = vector.extract_strided_slice %1158 {offsets = [0, 64], sizes = [2, 32], strides = [1, 1]} : vector<2x96xf32> to vector<2x32xf32>
    %1177 = vector.extract_strided_slice %1159 {offsets = [0, 64], sizes = [2, 32], strides = [1, 1]} : vector<2x96xf32> to vector<2x32xf32>
    %1178 = arith.addf %1177, %644 : vector<2x32xf32>
    %1179 = arith.mulf %1167, %1178 : vector<2x32xf32>
    %1180 = arith.addf %1176, %1179 : vector<2x32xf32>
    %1181 = math.tanh %1180 : vector<2x32xf32>
    %cst_183 = arith.constant 1.000000e+00 : f32
    %1182 = vector.broadcast %cst_183 : f32 to vector<2x32xf32>
    %1183 = arith.subf %1182, %1175 : vector<2x32xf32>
    %1184 = arith.mulf %1183, %1181 : vector<2x32xf32>
    %1185 = arith.mulf %1175, %1121 : vector<2x32xf32>
    %1186 = arith.addf %1184, %1185 : vector<2x32xf32>
    %1187 = arith.subf %1186, %1121 : vector<2x32xf32>
    %1188 = arith.mulf %3, %1187 : vector<2x32xf32>
    %1189 = arith.addf %1121, %1188 : vector<2x32xf32>
    %1190 = arith.mulf %3, %1189 : vector<2x32xf32>
    %1191 = vector.shape_cast %680 : vector<2x32xf32> to vector<2x1x32xf32>
    %1192 = vector.shape_cast %748 : vector<2x32xf32> to vector<2x1x32xf32>
    %1193 = vector.shape_cast %816 : vector<2x32xf32> to vector<2x1x32xf32>
    %1194 = vector.shape_cast %884 : vector<2x32xf32> to vector<2x1x32xf32>
    %1195 = vector.shape_cast %952 : vector<2x32xf32> to vector<2x1x32xf32>
    %1196 = vector.shape_cast %1020 : vector<2x32xf32> to vector<2x1x32xf32>
    %1197 = vector.shape_cast %1088 : vector<2x32xf32> to vector<2x1x32xf32>
    %1198 = vector.shape_cast %1156 : vector<2x32xf32> to vector<2x1x32xf32>
    %1199 = tpu.concatenate %1191, %1192, %1193, %1194, %1195, %1196, %1197, %1198 in 1 : vector<2x1x32xf32>, vector<2x1x32xf32>, vector<2x1x32xf32>, vector<2x1x32xf32>, vector<2x1x32xf32>, vector<2x1x32xf32>, vector<2x1x32xf32>, vector<2x1x32xf32> -> vector<2x8x32xf32>
    %1200 = vector.shape_cast %1190 : vector<2x32xf32> to vector<2x1x32xf32>
    %1201 = vector.shape_cast %1122 : vector<2x32xf32> to vector<2x1x32xf32>
    %1202 = vector.shape_cast %1054 : vector<2x32xf32> to vector<2x1x32xf32>
    %1203 = vector.shape_cast %986 : vector<2x32xf32> to vector<2x1x32xf32>
    %1204 = vector.shape_cast %918 : vector<2x32xf32> to vector<2x1x32xf32>
    %1205 = vector.shape_cast %850 : vector<2x32xf32> to vector<2x1x32xf32>
    %1206 = vector.shape_cast %782 : vector<2x32xf32> to vector<2x1x32xf32>
    %1207 = vector.shape_cast %714 : vector<2x32xf32> to vector<2x1x32xf32>
    %1208 = tpu.concatenate %1200, %1201, %1202, %1203, %1204, %1205, %1206, %1207 in 1 : vector<2x1x32xf32>, vector<2x1x32xf32>, vector<2x1x32xf32>, vector<2x1x32xf32>, vector<2x1x32xf32>, vector<2x1x32xf32>, vector<2x1x32xf32>, vector<2x1x32xf32> -> vector<2x8x32xf32>
    %c1 = arith.constant 1 : index
    %c0_184 = arith.constant 0 : index
    %c0_185 = arith.constant 0 : index
    %c0_186 = arith.constant 0 : index
    %1209 = vector.load %arg21[%c1, %c0_184, %c0_185, %c0_186] : memref<2x2x8x64xf32, #tpu.memory_space<vmem>>, vector<1x2x8x32xf32>
    %1210 = vector.shape_cast %1209 : vector<1x2x8x32xf32> to vector<2x8x32xf32>
    %1211 = vector.shape_cast %1199 : vector<2x8x32xf32> to vector<1x2x8x32xf32>
    tpu.vector_store %arg21[%c1, %c0_184, %c0_185, %c0_186], %1211 {strides = array<i32>} : memref<2x2x8x64xf32, #tpu.memory_space<vmem>>, vector<1x2x8x32xf32>,
    %c1_187 = arith.constant 1 : index
    %c0_188 = arith.constant 0 : index
    %c0_189 = arith.constant 0 : index
    %c32_190 = arith.constant 32 : index
    %1212 = vector.load %arg21[%c1_187, %c0_188, %c0_189, %c32_190] : memref<2x2x8x64xf32, #tpu.memory_space<vmem>>, vector<1x2x8x32xf32>
    %1213 = vector.shape_cast %1212 : vector<1x2x8x32xf32> to vector<2x8x32xf32>
    %1214 = vector.shape_cast %1208 : vector<2x8x32xf32> to vector<1x2x8x32xf32>
    tpu.vector_store %arg21[%c1_187, %c0_188, %c0_189, %c32_190], %1214 {strides = array<i32>} : memref<2x2x8x64xf32, #tpu.memory_space<vmem>>, vector<1x2x8x32xf32>,
    return
  }
  func.func @transform_0(%arg0: i32) -> (i32, i32, i32) {
    %c0_i32 = arith.constant 0 : i32
    %c0_i32_0 = arith.constant 0 : i32
    %c0_i32_1 = arith.constant 0 : i32
    return %arg0, %c0_i32, %c0_i32_0 : i32, i32, i32
  }
  func.func @transform_1(%arg0: i32) -> (i32, i32) {
    %c0_i32 = arith.constant 0 : i32
    %c0_i32_0 = arith.constant 0 : i32
    return %arg0, %c0_i32 : i32, i32
  }
  func.func @transform_2(%arg0: i32) -> (i32, i32) {
    %c0_i32 = arith.constant 0 : i32
    %c0_i32_0 = arith.constant 0 : i32
    %c0_i32_1 = arith.constant 0 : i32
    return %c0_i32, %c0_i32_0 : i32, i32
  }
  func.func @transform_3(%arg0: i32) -> (i32, i32) {
    %c0_i32 = arith.constant 0 : i32
    %c0_i32_0 = arith.constant 0 : i32
    %c0_i32_1 = arith.constant 0 : i32
    return %c0_i32, %c0_i32_0 : i32, i32
  }
  func.func @transform_4(%arg0: i32) -> (i32, i32) {
    %c0_i32 = arith.constant 0 : i32
    %c0_i32_0 = arith.constant 0 : i32
    %c0_i32_1 = arith.constant 0 : i32
    return %c0_i32, %c0_i32_0 : i32, i32
  }
  func.func @transform_5(%arg0: i32) -> (i32, i32) {
    %c0_i32 = arith.constant 0 : i32
    %c0_i32_0 = arith.constant 0 : i32
    %c0_i32_1 = arith.constant 0 : i32
    return %c0_i32, %c0_i32_0 : i32, i32
  }
  func.func @transform_6(%arg0: i32) -> (i32, i32) {
    %c0_i32 = arith.constant 0 : i32
    %c0_i32_0 = arith.constant 0 : i32
    %c0_i32_1 = arith.constant 0 : i32
    return %c0_i32, %c0_i32_0 : i32, i32
  }
  func.func @transform_7(%arg0: i32) -> (i32, i32) {
    %c0_i32 = arith.constant 0 : i32
    %c0_i32_0 = arith.constant 0 : i32
    %c0_i32_1 = arith.constant 0 : i32
    return %c0_i32, %c0_i32_0 : i32, i32
  }
  func.func @transform_8(%arg0: i32) -> (i32, i32) {
    %c0_i32 = arith.constant 0 : i32
    %c0_i32_0 = arith.constant 0 : i32
    %c0_i32_1 = arith.constant 0 : i32
    return %c0_i32, %c0_i32_0 : i32, i32
  }
  func.func @transform_9(%arg0: i32) -> (i32, i32) {
    %c0_i32 = arith.constant 0 : i32
    %c0_i32_0 = arith.constant 0 : i32
    %c0_i32_1 = arith.constant 0 : i32
    return %c0_i32, %c0_i32_0 : i32, i32
  }
  func.func @transform_10(%arg0: i32) -> (i32, i32) {
    %c0_i32 = arith.constant 0 : i32
    %c0_i32_0 = arith.constant 0 : i32
    %c0_i32_1 = arith.constant 0 : i32
    return %c0_i32, %c0_i32_0 : i32, i32
  }
  func.func @transform_11(%arg0: i32) -> (i32, i32) {
    %c0_i32 = arith.constant 0 : i32
    %c0_i32_0 = arith.constant 0 : i32
    %c0_i32_1 = arith.constant 0 : i32
    return %c0_i32, %c0_i32_0 : i32, i32
  }
  func.func @transform_12(%arg0: i32) -> (i32, i32) {
    %c0_i32 = arith.constant 0 : i32
    %c0_i32_0 = arith.constant 0 : i32
    %c0_i32_1 = arith.constant 0 : i32
    return %c0_i32, %c0_i32_0 : i32, i32
  }
  func.func @transform_13(%arg0: i32) -> (i32, i32) {
    %c0_i32 = arith.constant 0 : i32
    %c0_i32_0 = arith.constant 0 : i32
    %c0_i32_1 = arith.constant 0 : i32
    return %c0_i32, %c0_i32_0 : i32, i32
  }
  func.func @transform_14(%arg0: i32) -> (i32, i32) {
    %c0_i32 = arith.constant 0 : i32
    %c0_i32_0 = arith.constant 0 : i32
    %c0_i32_1 = arith.constant 0 : i32
    return %c0_i32, %c0_i32_0 : i32, i32
  }
  func.func @transform_15(%arg0: i32) -> (i32, i32) {
    %c0_i32 = arith.constant 0 : i32
    %c0_i32_0 = arith.constant 0 : i32
    %c0_i32_1 = arith.constant 0 : i32
    return %c0_i32, %c0_i32_0 : i32, i32
  }
  func.func @transform_16(%arg0: i32) -> (i32, i32) {
    %c0_i32 = arith.constant 0 : i32
    %c0_i32_0 = arith.constant 0 : i32
    %c0_i32_1 = arith.constant 0 : i32
    return %c0_i32, %c0_i32_0 : i32, i32
  }
  func.func @transform_17(%arg0: i32) -> (i32, i32) {
    %c0_i32 = arith.constant 0 : i32
    %c0_i32_0 = arith.constant 0 : i32
    %c0_i32_1 = arith.constant 0 : i32
    return %c0_i32, %c0_i32_0 : i32, i32
  }
  func.func @transform_18(%arg0: i32) -> (i32, i32) {
    %c0_i32 = arith.constant 0 : i32
    %c0_i32_0 = arith.constant 0 : i32
    %c0_i32_1 = arith.constant 0 : i32
    return %c0_i32, %c0_i32_0 : i32, i32
  }
  func.func @transform_19(%arg0: i32) -> (i32, i32) {
    %c0_i32 = arith.constant 0 : i32
    %c0_i32_0 = arith.constant 0 : i32
    %c0_i32_1 = arith.constant 0 : i32
    return %c0_i32, %c0_i32_0 : i32, i32
  }
  func.func @transform_20(%arg0: i32) -> (i32, i32, i32, i32) {
    %c0_i32 = arith.constant 0 : i32
    %c0_i32_0 = arith.constant 0 : i32
    %c0_i32_1 = arith.constant 0 : i32
    %c0_i32_2 = arith.constant 0 : i32
    return %c0_i32, %arg0, %c0_i32_0, %c0_i32_1 : i32, i32, i32, i32
  }
}

</mosaic_0001>

<llo_original>
// kernel: tpu_custom_call.1
$region0: #{tpu_custom_call.1}
  #allocation0 [shape = 'u32[]', space=smem, size = 0x4, offset = 0x4, fixed_abs, tag = 'smem constant byte address 0x4 - core index']
  #allocation1 [shape = 'u32[144,128]{1,0:T(1,128)}', space=vmem, size = 0x12000, scoped, tag = 'internal scratch']
  %s0 = inlined_call_operand.hbm [shape: f32[2,8,32], index: 0, kind: input, shape index: {}]
  %s1 = inlined_call_operand.hbm [shape: f32[2,8], index: 1, kind: input, shape index: {}]
  %s2 = inlined_call_operand.hbm [shape: f32[32,96], index: 2, kind: input, shape index: {}]
  %s3 = inlined_call_operand.hbm [shape: f32[32,96], index: 3, kind: input, shape index: {}]
  %s4 = inlined_call_operand.hbm [shape: f32[1,96], index: 4, kind: input, shape index: {}]
  %s5 = inlined_call_operand.hbm [shape: f32[1,32], index: 5, kind: input, shape index: {}]
  %s6 = inlined_call_operand.hbm [shape: f32[32,96], index: 6, kind: input, shape index: {}]
  %s7 = inlined_call_operand.hbm [shape: f32[32,96], index: 7, kind: input, shape index: {}]
  %s8 = inlined_call_operand.hbm [shape: f32[1,96], index: 8, kind: input, shape index: {}]
  %s9 = inlined_call_operand.hbm [shape: f32[1,32], index: 9, kind: input, shape index: {}]
  %s10 = inlined_call_operand.vmem [shape: f32[32,96], index: 10, kind: input, shape index: {}]
  %s11 = inlined_call_operand.hbm [shape: f32[32,96], index: 11, kind: input, shape index: {}]
  %s12 = inlined_call_operand.hbm [shape: f32[32,96], index: 12, kind: input, shape index: {}]
  %s13 = inlined_call_operand.hbm [shape: f32[1,96], index: 13, kind: input, shape index: {}]
  %s14 = inlined_call_operand.hbm [shape: f32[1,32], index: 14, kind: input, shape index: {}]
  %s15 = inlined_call_operand.hbm [shape: f32[32,96], index: 15, kind: input, shape index: {}]
  %s16 = inlined_call_operand.hbm [shape: f32[32,96], index: 16, kind: input, shape index: {}]
  %s17 = inlined_call_operand.vmem [shape: f32[32,96], index: 17, kind: input, shape index: {}]
  %s18 = inlined_call_operand.vmem [shape: f32[1,96], index: 18, kind: input, shape index: {}]
  %s19 = inlined_call_operand.vmem [shape: f32[1,32], index: 19, kind: input, shape index: {}]
  %s20 = inlined_call_operand.hbm [shape: f32[2,2,8,64], index: 20, kind: output, shape index: {}]
  %s21 = sld [smem:[#allocation0]]
  $region154: #{tpu_custom_call.1} parent=0
    _
  %s23 = ssub.s32 1, %s21
  %s24 = scalar_select 0, %s23, %s21
  $region1: #{tpu_custom_call.1} parent=0
    #allocation2 [shape = 'u8[8192]{0}', space=vmem, size = 0x2000, scoped, tag = 'input window, operand 0, single buffered']
    #allocation3 [shape = 's32[1]{0}', space=sflag, size = 0x4, scoped, tag = 'scoped memory for tpu_custom_call.1']
    #allocation4 [shape = 's32[1]{0}', space=sflag, size = 0x4, scoped, tag = 'scoped memory for tpu_custom_call.1']
    #allocation5 [shape = 'u8[1024]{0}', space=vmem, size = 0x400, scoped, tag = 'input window, operand 1, single buffered']
    #allocation6 [shape = 's32[1]{0}', space=sflag, size = 0x4, scoped, tag = 'scoped memory for tpu_custom_call.1']
    #allocation7 [shape = 'u8[16384]{0}', space=vmem, size = 0x4000, scoped, tag = 'input window, operand 2, single buffered']
    #allocation8 [shape = 'u8[16384]{0}', space=vmem, size = 0x4000, scoped, tag = 'input window, operand 3, single buffered']
    #allocation9 [shape = 's32[1]{0}', space=sflag, size = 0x4, scoped, tag = 'scoped memory for tpu_custom_call.1']
    #allocation10 [shape = 'u8[512]{0}', space=vmem, size = 0x400, scoped, tag = 'input window, operand 4, single buffered']
    #allocation11 [shape = 'u8[512]{0}', space=vmem, size = 0x400, scoped, tag = 'input window, operand 5, single buffered']
    #allocation12 [shape = 's32[1]{0}', space=sflag, size = 0x4, scoped, tag = 'scoped memory for tpu_custom_call.1']
    #allocation13 [shape = 'u8[16384]{0}', space=vmem, size = 0x4000, scoped, tag = 'input window, operand 6, single buffered']
    #allocation14 [shape = 'u8[16384]{0}', space=vmem, size = 0x4000, scoped, tag = 'input window, operand 7, single buffered']
    #allocation15 [shape = 's32[1]{0}', space=sflag, size = 0x4, scoped, tag = 'scoped memory for tpu_custom_call.1']
    #allocation16 [shape = 'u8[512]{0}', space=vmem, size = 0x400, scoped, tag = 'input window, operand 8, single buffered']
    #allocation17 [shape = 'u8[512]{0}', space=vmem, size = 0x400, scoped, tag = 'input window, operand 9, single buffered']
    #allocation18 [shape = 's32[1]{0}', space=sflag, size = 0x4, scoped, tag = 'scoped memory for tpu_custom_call.1']
    #allocation19 [shape = 'u8[16384]{0}', space=vmem, size = 0x4000, scoped, tag = 'input window, operand 11, single buffered']
    #allocation20 [shape = 'u8[16384]{0}', space=vmem, size = 0x4000, scoped, tag = 'input window, operand 12, single buffered']
    #allocation21 [shape = 's32[1]{0}', space=sflag, size = 0x4, scoped, tag = 'scoped memory for tpu_custom_call.1']
    #allocation22 [shape = 'u8[512]{0}', space=vmem, size = 0x400, scoped, tag = 'input window, operand 13, single buffered']
    #allocation23 [shape = 'u8[512]{0}', space=vmem, size = 0x400, scoped, tag = 'input window, operand 14, single buffered']
    #allocation24 [shape = 's32[1]{0}', space=sflag, size = 0x4, scoped, tag = 'scoped memory for tpu_custom_call.1']
    #allocation25 [shape = 'u8[16384]{0}', space=vmem, size = 0x4000, scoped, tag = 'input window, operand 15, single buffered']
    #allocation26 [shape = 'u8[16384]{0}', space=vmem, size = 0x4000, scoped, tag = 'input window, operand 16, single buffered']
    #allocation27 [shape = 's32[1]{0}', space=sflag, size = 0x4, scoped, tag = 'scoped memory for tpu_custom_call.1']
    #allocation28 [shape = 'u8[16384]{0}', space=vmem, size = 0x4000, scoped, tag = 'output window, operand 0, single buffered']
    %25 = vsyncpa [#allocation3], 0
    %26 = vsyncpa [#allocation6], 0
    %27 = vsyncpa [#allocation9], 0
    %28 = vsyncpa [#allocation12], 0
    %29 = vsyncpa [#allocation15], 0
    %30 = vsyncpa [#allocation18], 0
    %31 = vsyncpa [#allocation21], 0
    %32 = vsyncpa [#allocation24], 0
    %33 = vsyncpa [#allocation27], 0
    %34 = vsyncpa [#allocation4], 0
    // Predicated region
    $region2: #{tpu_custom_call.1} parent=1 // pred_check
      _
    $region3: #{tpu_custom_call.1} parent=1 // pred_check_branch
      %36 = sbr.rel (0) target = $region5
    $region4: #{tpu_custom_call.1} parent=1 // pred_region
      %s38 = ssub.s32 256, 256
      %39 = vsyncadd [#allocation3], %s38
      %s40 = sshll.u32 [#allocation2], 4
      %s41 = int_to_ptr.vmem [resolvable:$true] %s40
      %46 = dma.hbm_to_vmem [thread:$0]  %s0, 256, %s41, [#allocation3], 128, 128, 8
    $region5: #{tpu_custom_call.1} parent=1 // pred_fallthru
      _
    // Predicated region
    $region6: #{tpu_custom_call.1} parent=1 // pred_check
      _
    $region7: #{tpu_custom_call.1} parent=1 // pred_check_branch
      %48 = sbr.rel (0) target = $region9
    $region8: #{tpu_custom_call.1} parent=1 // pred_region
      %s50 = ssub.s32 32, 32
      %51 = vsyncadd [#allocation6], %s50
      %s53 = sshll.u32 [#allocation5], 4
      %s54 = int_to_ptr.vmem [resolvable:$true] %s53
      %56 = dma.hbm_to_vmem [thread:$0]  %s1, 32, %s54, [#allocation6]
    $region9: #{tpu_custom_call.1} parent=1 // pred_fallthru
      _
    // Predicated region
    $region10: #{tpu_custom_call.1} parent=1 // pred_check
      _
    $region11: #{tpu_custom_call.1} parent=1 // pred_check_branch
      %58 = sbr.rel (0) target = $region13
    $region12: #{tpu_custom_call.1} parent=1 // pred_region
      %s60 = ssub.s32 512, 512
      %61 = vsyncadd [#allocation6], %s60
      %s62 = sshll.u32 [#allocation7], 4
      %s63 = int_to_ptr.vmem [resolvable:$true] %s62
      %68 = dma.hbm_to_vmem [thread:$0]  %s2, 512, %s63, [#allocation6], 128, 128, 8
    $region13: #{tpu_custom_call.1} parent=1 // pred_fallthru
      _
    // Predicated region
    $region14: #{tpu_custom_call.1} parent=1 // pred_check
      _
    $region15: #{tpu_custom_call.1} parent=1 // pred_check_branch
      %70 = sbr.rel (0) target = $region17
    $region16: #{tpu_custom_call.1} parent=1 // pred_region
      %s72 = ssub.s32 512, 512
      %73 = vsyncadd [#allocation9], %s72
      %s74 = sshll.u32 [#allocation8], 4
      %s75 = int_to_ptr.vmem [resolvable:$true] %s74
      %80 = dma.hbm_to_vmem [thread:$0]  %s3, 512, %s75, [#allocation9], 128, 128, 8
    $region17: #{tpu_custom_call.1} parent=1 // pred_fallthru
      _
    // Predicated region
    $region18: #{tpu_custom_call.1} parent=1 // pred_check
      _
    $region19: #{tpu_custom_call.1} parent=1 // pred_check_branch
      %82 = sbr.rel (0) target = $region21
    $region20: #{tpu_custom_call.1} parent=1 // pred_region
      %s84 = ssub.s32 16, 16
      %85 = vsyncadd [#allocation9], %s84
      %s87 = sshll.u32 [#allocation10], 4
      %s88 = int_to_ptr.vmem [resolvable:$true] %s87
      %90 = dma.hbm_to_vmem [thread:$0]  %s4, 16, %s88, [#allocation9]
    $region21: #{tpu_custom_call.1} parent=1 // pred_fallthru
      _
    // Predicated region
    $region22: #{tpu_custom_call.1} parent=1 // pred_check
      _
    $region23: #{tpu_custom_call.1} parent=1 // pred_check_branch
      %92 = sbr.rel (0) target = $region25
    $region24: #{tpu_custom_call.1} parent=1 // pred_region
      %s94 = ssub.s32 16, 16
      %95 = vsyncadd [#allocation12], %s94
      %s97 = sshll.u32 [#allocation11], 4
      %s98 = int_to_ptr.vmem [resolvable:$true] %s97
      %100 = dma.hbm_to_vmem [thread:$0]  %s5, 16, %s98, [#allocation12]
    $region25: #{tpu_custom_call.1} parent=1 // pred_fallthru
      _
    // Predicated region
    $region26: #{tpu_custom_call.1} parent=1 // pred_check
      _
    $region27: #{tpu_custom_call.1} parent=1 // pred_check_branch
      %102 = sbr.rel (0) target = $region29
    $region28: #{tpu_custom_call.1} parent=1 // pred_region
      %s104 = ssub.s32 512, 512
      %105 = vsyncadd [#allocation12], %s104
      %s106 = sshll.u32 [#allocation13], 4
      %s107 = int_to_ptr.vmem [resolvable:$true] %s106
      %112 = dma.hbm_to_vmem [thread:$0]  %s6, 512, %s107, [#allocation12], 128, 128, 8
    $region29: #{tpu_custom_call.1} parent=1 // pred_fallthru
      _
    // Predicated region
    $region30: #{tpu_custom_call.1} parent=1 // pred_check
      _
    $region31: #{tpu_custom_call.1} parent=1 // pred_check_branch
      %114 = sbr.rel (0) target = $region33
    $region32: #{tpu_custom_call.1} parent=1 // pred_region
      %s116 = ssub.s32 512, 512
      %117 = vsyncadd [#allocation15], %s116
      %s118 = sshll.u32 [#allocation14], 4
      %s119 = int_to_ptr.vmem [resolvable:$true] %s118
      %124 = dma.hbm_to_vmem [thread:$0]  %s7, 512, %s119, [#allocation15], 128, 128, 8
    $region33: #{tpu_custom_call.1} parent=1 // pred_fallthru
      _
    // Predicated region
    $region34: #{tpu_custom_call.1} parent=1 // pred_check
      _
    $region35: #{tpu_custom_call.1} parent=1 // pred_check_branch
      %126 = sbr.rel (0) target = $region37
    $region36: #{tpu_custom_call.1} parent=1 // pred_region
      %s128 = ssub.s32 16, 16
      %129 = vsyncadd [#allocation15], %s128
      %s131 = sshll.u32 [#allocation16], 4
      %s132 = int_to_ptr.vmem [resolvable:$true] %s131
      %134 = dma.hbm_to_vmem [thread:$0]  %s8, 16, %s132, [#allocation15]
    $region37: #{tpu_custom_call.1} parent=1 // pred_fallthru
      _
    // Predicated region
    $region38: #{tpu_custom_call.1} parent=1 // pred_check
      _
    $region39: #{tpu_custom_call.1} parent=1 // pred_check_branch
      %136 = sbr.rel (0) target = $region41
    $region40: #{tpu_custom_call.1} parent=1 // pred_region
      %s138 = ssub.s32 16, 16
      %139 = vsyncadd [#allocation18], %s138
      %s141 = sshll.u32 [#allocation17], 4
      %s142 = int_to_ptr.vmem [resolvable:$true] %s141
      %144 = dma.hbm_to_vmem [thread:$0]  %s9, 16, %s142, [#allocation18]
    $region41: #{tpu_custom_call.1} parent=1 // pred_fallthru
      _
    // Predicated region
    $region42: #{tpu_custom_call.1} parent=1 // pred_check
      _
    $region43: #{tpu_custom_call.1} parent=1 // pred_check_branch
      %146 = sbr.rel (0) target = $region45
    $region44: #{tpu_custom_call.1} parent=1 // pred_region
      _
    $region45: #{tpu_custom_call.1} parent=1 // pred_fallthru
      _
    // Predicated region
    $region46: #{tpu_custom_call.1} parent=1 // pred_check
      _
    $region47: #{tpu_custom_call.1} parent=1 // pred_check_branch
      %148 = sbr.rel (0) target = $region49
    $region48: #{tpu_custom_call.1} parent=1 // pred_region
      %s150 = ssub.s32 512, 512
      %151 = vsyncadd [#allocation18], %s150
      %s152 = sshll.u32 [#allocation19], 4
      %s153 = int_to_ptr.vmem [resolvable:$true] %s152
      %158 = dma.hbm_to_vmem [thread:$0]  %s11, 512, %s153, [#allocation18], 128, 128, 8
    $region49: #{tpu_custom_call.1} parent=1 // pred_fallthru
      _
    // Predicated region
    $region50: #{tpu_custom_call.1} parent=1 // pred_check
      _
    $region51: #{tpu_custom_call.1} parent=1 // pred_check_branch
      %160 = sbr.rel (0) target = $region53
    $region52: #{tpu_custom_call.1} parent=1 // pred_region
      %s162 = ssub.s32 512, 512
      %163 = vsyncadd [#allocation21], %s162
      %s164 = sshll.u32 [#allocation20], 4
      %s165 = int_to_ptr.vmem [resolvable:$true] %s164
      %170 = dma.hbm_to_vmem [thread:$0]  %s12, 512, %s165, [#allocation21], 128, 128, 8
    $region53: #{tpu_custom_call.1} parent=1 // pred_fallthru
      _
    // Predicated region
    $region54: #{tpu_custom_call.1} parent=1 // pred_check
      _
    $region55: #{tpu_custom_call.1} parent=1 // pred_check_branch
      %172 = sbr.rel (0) target = $region57
    $region56: #{tpu_custom_call.1} parent=1 // pred_region
      %s174 = ssub.s32 16, 16
      %175 = vsyncadd [#allocation21], %s174
      %s177 = sshll.u32 [#allocation22], 4
      %s178 = int_to_ptr.vmem [resolvable:$true] %s177
      %180 = dma.hbm_to_vmem [thread:$0]  %s13, 16, %s178, [#allocation21]
    $region57: #{tpu_custom_call.1} parent=1 // pred_fallthru
      _
    // Predicated region
    $region58: #{tpu_custom_call.1} parent=1 // pred_check
      _
    $region59: #{tpu_custom_call.1} parent=1 // pred_check_branch
      %182 = sbr.rel (0) target = $region61
    $region60: #{tpu_custom_call.1} parent=1 // pred_region
      %s184 = ssub.s32 16, 16
      %185 = vsyncadd [#allocation24], %s184
      %s187 = sshll.u32 [#allocation23], 4
      %s188 = int_to_ptr.vmem [resolvable:$true] %s187
      %190 = dma.hbm_to_vmem [thread:$0]  %s14, 16, %s188, [#allocation24]
    $region61: #{tpu_custom_call.1} parent=1 // pred_fallthru
      _
    // Predicated region
    $region62: #{tpu_custom_call.1} parent=1 // pred_check
      _
    $region63: #{tpu_custom_call.1} parent=1 // pred_check_branch
      %192 = sbr.rel (0) target = $region65
    $region64: #{tpu_custom_call.1} parent=1 // pred_region
      %s194 = ssub.s32 512, 512
      %195 = vsyncadd [#allocation24], %s194
      %s196 = sshll.u32 [#allocation25], 4
      %s197 = int_to_ptr.vmem [resolvable:$true] %s196
      %202 = dma.hbm_to_vmem [thread:$0]  %s15, 512, %s197, [#allocation24], 128, 128, 8
    $region65: #{tpu_custom_call.1} parent=1 // pred_fallthru
      _
    // Predicated region
    $region66: #{tpu_custom_call.1} parent=1 // pred_check
      _
    $region67: #{tpu_custom_call.1} parent=1 // pred_check_branch
      %204 = sbr.rel (0) target = $region69
    $region68: #{tpu_custom_call.1} parent=1 // pred_region
      %s206 = ssub.s32 512, 512
      %207 = vsyncadd [#allocation27], %s206
      %s208 = sshll.u32 [#allocation26], 4
      %s209 = int_to_ptr.vmem [resolvable:$true] %s208
      %214 = dma.hbm_to_vmem [thread:$0]  %s16, 512, %s209, [#allocation27], 128, 128, 8
    $region69: #{tpu_custom_call.1} parent=1 // pred_fallthru
      _
    // Predicated region
    $region70: #{tpu_custom_call.1} parent=1 // pred_check
      _
    $region71: #{tpu_custom_call.1} parent=1 // pred_check_branch
      %216 = sbr.rel (0) target = $region73
    $region72: #{tpu_custom_call.1} parent=1 // pred_region
      _
    $region73: #{tpu_custom_call.1} parent=1 // pred_fallthru
      _
    // Predicated region
    $region74: #{tpu_custom_call.1} parent=1 // pred_check
      _
    $region75: #{tpu_custom_call.1} parent=1 // pred_check_branch
      %218 = sbr.rel (0) target = $region77
    $region76: #{tpu_custom_call.1} parent=1 // pred_region
      _
    $region77: #{tpu_custom_call.1} parent=1 // pred_fallthru
      _
    // Predicated region
    $region78: #{tpu_custom_call.1} parent=1 // pred_check
      _
    $region79: #{tpu_custom_call.1} parent=1 // pred_check_branch
      %220 = sbr.rel (0) target = $region81
    $region80: #{tpu_custom_call.1} parent=1 // pred_region
      _
    $region81: #{tpu_custom_call.1} parent=1 // pred_fallthru
      _
    // Predicated region
    $region82: #{tpu_custom_call.1} parent=1 // pred_check
      _
    $region83: #{tpu_custom_call.1} parent=1 // pred_check_branch
      %222 = sbr.rel (0) target = $region85
    $region84: #{tpu_custom_call.1} parent=1 // pred_region
      %223 = dma.done [#allocation3], 256
    $region85: #{tpu_custom_call.1} parent=1 // pred_fallthru
      _
    // Predicated region
    $region86: #{tpu_custom_call.1} parent=1 // pred_check
      _
    $region87: #{tpu_custom_call.1} parent=1 // pred_check_branch
      %225 = sbr.rel (0) target = $region89
    $region88: #{tpu_custom_call.1} parent=1 // pred_region
      %226 = dma.done [#allocation6], 32
    $region89: #{tpu_custom_call.1} parent=1 // pred_fallthru
      _
    // Predicated region
    $region90: #{tpu_custom_call.1} parent=1 // pred_check
      _
    $region91: #{tpu_custom_call.1} parent=1 // pred_check_branch
      %228 = sbr.rel (0) target = $region93
    $region92: #{tpu_custom_call.1} parent=1 // pred_region
      %229 = dma.done [#allocation6], 512
    $region93: #{tpu_custom_call.1} parent=1 // pred_fallthru
      _
    // Predicated region
    $region94: #{tpu_custom_call.1} parent=1 // pred_check
      _
    $region95: #{tpu_custom_call.1} parent=1 // pred_check_branch
      %231 = sbr.rel (0) target = $region97
    $region96: #{tpu_custom_call.1} parent=1 // pred_region
      %232 = dma.done [#allocation9], 512
    $region97: #{tpu_custom_call.1} parent=1 // pred_fallthru
      _
    // Predicated region
    $region98: #{tpu_custom_call.1} parent=1 // pred_check
      _
    $region99: #{tpu_custom_call.1} parent=1 // pred_check_branch
      %234 = sbr.rel (0) target = $region101
    $region100: #{tpu_custom_call.1} parent=1 // pred_region
      %235 = dma.done [#allocation9], 16
    $region101: #{tpu_custom_call.1} parent=1 // pred_fallthru
      _
    // Predicated region
    $region102: #{tpu_custom_call.1} parent=1 // pred_check
      _
    $region103: #{tpu_custom_call.1} parent=1 // pred_check_branch
      %237 = sbr.rel (0) target = $region105
    $region104: #{tpu_custom_call.1} parent=1 // pred_region
      %238 = dma.done [#allocation12], 16
    $region105: #{tpu_custom_call.1} parent=1 // pred_fallthru
      _
    // Predicated region
    $region106: #{tpu_custom_call.1} parent=1 // pred_check
      _
    $region107: #{tpu_custom_call.1} parent=1 // pred_check_branch
      %240 = sbr.rel (0) target = $region109
    $region108: #{tpu_custom_call.1} parent=1 // pred_region
      %241 = dma.done [#allocation12], 512
    $region109: #{tpu_custom_call.1} parent=1 // pred_fallthru
      _
    // Predicated region
    $region110: #{tpu_custom_call.1} parent=1 // pred_check
      _
    $region111: #{tpu_custom_call.1} parent=1 // pred_check_branch
      %243 = sbr.rel (0) target = $region113
    $region112: #{tpu_custom_call.1} parent=1 // pred_region
      %244 = dma.done [#allocation15], 512
    $region113: #{tpu_custom_call.1} parent=1 // pred_fallthru
      _
    // Predicated region
    $region114: #{tpu_custom_call.1} parent=1 // pred_check
      _
    $region115: #{tpu_custom_call.1} parent=1 // pred_check_branch
      %246 = sbr.rel (0) target = $region117
    $region116: #{tpu_custom_call.1} parent=1 // pred_region
      %247 = dma.done [#allocation15], 16
    $region117: #{tpu_custom_call.1} parent=1 // pred_fallthru
      _
    // Predicated region
    $region118: #{tpu_custom_call.1} parent=1 // pred_check
      _
    $region119: #{tpu_custom_call.1} parent=1 // pred_check_branch
      %249 = sbr.rel (0) target = $region121
    $region120: #{tpu_custom_call.1} parent=1 // pred_region
      %250 = dma.done [#allocation18], 16
    $region121: #{tpu_custom_call.1} parent=1 // pred_fallthru
      _
    // Predicated region
    $region122: #{tpu_custom_call.1} parent=1 // pred_check
      _
    $region123: #{tpu_custom_call.1} parent=1 // pred_check_branch
      %252 = sbr.rel (0) target = $region125
    $region124: #{tpu_custom_call.1} parent=1 // pred_region
      %253 = dma.done [#allocation18], 512
    $region125: #{tpu_custom_call.1} parent=1 // pred_fallthru
      _
    // Predicated region
    $region126: #{tpu_custom_call.1} parent=1 // pred_check
      _
    $region127: #{tpu_custom_call.1} parent=1 // pred_check_branch
      %255 = sbr.rel (0) target = $region129
    $region128: #{tpu_custom_call.1} parent=1 // pred_region
      %256 = dma.done [#allocation21], 512
    $region129: #{tpu_custom_call.1} parent=1 // pred_fallthru
      _
    // Predicated region
    $region130: #{tpu_custom_call.1} parent=1 // pred_check
      _
    $region131: #{tpu_custom_call.1} parent=1 // pred_check_branch
      %258 = sbr.rel (0) target = $region133
    $region132: #{tpu_custom_call.1} parent=1 // pred_region
      %259 = dma.done [#allocation21], 16
    $region133: #{tpu_custom_call.1} parent=1 // pred_fallthru
      _
    // Predicated region
    $region134: #{tpu_custom_call.1} parent=1 // pred_check
      _
    $region135: #{tpu_custom_call.1} parent=1 // pred_check_branch
      %261 = sbr.rel (0) target = $region137
    $region136: #{tpu_custom_call.1} parent=1 // pred_region
      %262 = dma.done [#allocation24], 16
    $region137: #{tpu_custom_call.1} parent=1 // pred_fallthru
      _
    // Predicated region
    $region138: #{tpu_custom_call.1} parent=1 // pred_check
      _
    $region139: #{tpu_custom_call.1} parent=1 // pred_check_branch
      %264 = sbr.rel (0) target = $region141
    $region140: #{tpu_custom_call.1} parent=1 // pred_region
      %265 = dma.done [#allocation24], 512
    $region141: #{tpu_custom_call.1} parent=1 // pred_fallthru
      _
    // Predicated region
    $region142: #{tpu_custom_call.1} parent=1 // pred_check
      _
    $region143: #{tpu_custom_call.1} parent=1 // pred_check_branch
      %267 = sbr.rel (0) target = $region145
    $region144: #{tpu_custom_call.1} parent=1 // pred_region
      %268 = dma.done [#allocation27], 512
    $region145: #{tpu_custom_call.1} parent=1 // pred_fallthru
      _
    %v269 = vld [vmem:[#allocation5] sm:$0x3]
    %271 = vset.pattern.permute.xlu0 0
    %272 = vperm.xlu0 %271, %v269
    %v273 = vpop.permute.xlu0 %272
    %275 = vset.pattern.permute.xlu0 1
    %276 = vperm.xlu0 %275, %v269
    %v277 = vpop.permute.xlu0 %276
    %279 = vset.pattern.permute.xlu0 2
    %280 = vperm.xlu0 %279, %v269
    %v281 = vpop.permute.xlu0 %280
    %283 = vset.pattern.permute.xlu0 3
    %284 = vperm.xlu0 %283, %v269
    %v285 = vpop.permute.xlu0 %284
    %287 = vset.pattern.permute.xlu0 4
    %288 = vperm.xlu0 %287, %v269
    %v289 = vpop.permute.xlu0 %288
    %291 = vset.pattern.permute.xlu0 5
    %292 = vperm.xlu0 %291, %v269
    %v293 = vpop.permute.xlu0 %292
    %295 = vset.pattern.permute.xlu0 6
    %296 = vperm.xlu0 %295, %v269
    %v297 = vpop.permute.xlu0 %296
    %299 = vset.pattern.permute.xlu0 7
    %300 = vperm.xlu0 %299, %v269
    %v301 = vpop.permute.xlu0 %300
    %v303 = vld [vmem:[#allocation2] sm:$0xff]
    %v304 = vld [vmem:[#allocation2 + $0x8] sm:$0xff]
    %v305 = vld [vmem:[#allocation7] sm:$0xff]
    %v306 = vld [vmem:[#allocation7 + $0x8] sm:$0xff]
    %v307 = vld [vmem:[#allocation7 + $0x10] sm:$0xff]
    %v308 = vld [vmem:[#allocation7 + $0x18] sm:$0xff]
    %v309 = vld [vmem:[#allocation10] sm:$0x1]
    %v311 = vlaneseq
    %v312 = vshrl.u32 %v311, 7
    %v313 = vsub.s32 0, %v312
    %v314 = vrot.slane %v309, %v313
    %vm316 = vcmask 261120
    %v318 = vsel %vm316, %v303, 0
    %v321 = vsel %vm316, %v304, 0
    %323 = vmatprep.subr.mxu0 0.0
    %324 = vmatpush1.msra.mxu0 %v305
    %325 = vmatprep.subr.mxu0 0.0
    %326 = vmatpush1.msra.mxu0 %v306
    %327 = vmatprep.subr.mxu0 0.0
    %328 = vmatpush1.msra.mxu0 %v307
    %329 = vmatprep.subr.mxu0 0.0
    %330 = vmatpush1.msra.mxu0 %v308
    %331 = vmatprep.subr.mxu0 0.0
    %332 = vmatpush1.msra.mxu0 0.0
    %333 = vmatprep.subr.mxu0 0.0
    %334 = vmatpush1.msra.mxu0 0.0
    %335 = vmatprep.subr.mxu0 0.0
    %336 = vmatpush1.msra.mxu0 0.0
    %337 = vmatprep.subr.mxu0 0.0
    %338 = vmatpush1.msra.mxu0 0.0
    %339 = vmatprep.subr.mxu0 0.0
    %340 = vmatpush1.msra.mxu0 0.0
    %341 = vmatprep.subr.mxu0 0.0
    %342 = vmatpush1.msra.mxu0 0.0
    %343 = vmatprep.subr.mxu0 0.0
    %344 = vmatpush1.msra.mxu0 0.0
    %345 = vmatprep.subr.mxu0 0.0
    %346 = vmatpush1.msra.mxu0 0.0
    %347 = vmatprep.subr.mxu0 0.0
    %348 = vmatpush1.msra.mxu0 0.0
    %349 = vmatprep.subr.mxu0 0.0
    %350 = vmatpush1.msra.mxu0 0.0
    %351 = vmatprep.subr.mxu0 0.0
    %352 = vmatpush1.msra.mxu0 0.0
    %353 = vmatprep.subr.mxu0 0.0
    %354 = vmatpush1.msra.mxu0 0.0
    %355 = vmatprep.subr.mxu0 0.0
    %356 = vmatpush1.msra.mxu0 0.0
    %357 = vmatprep.subr.mxu0 0.0
    %358 = vmatpush1.msra.mxu0 0.0
    %359 = vmatprep.subr.mxu0 0.0
    %360 = vmatpush1.msra.mxu0 0.0
    %361 = vmatprep.subr.mxu0 0.0
    %362 = vmatpush1.msra.mxu0 0.0
    %363 = vmatprep.subr.mxu0 0.0
    %364 = vmatpush1.msra.mxu0 0.0
    %365 = vmatprep.subr.mxu0 0.0
    %366 = vmatpush1.msra.mxu0 0.0
    %367 = vmatprep.subr.mxu0 0.0
    %368 = vmatpush1.msra.mxu0 0.0
    %369 = vmatprep.subr.mxu0 0.0
    %370 = vmatpush1.msra.mxu0 0.0
    %371 = vmatprep.subr.mxu0 0.0
    %372 = vmatpush1.msra.mxu0 0.0
    %373 = vmatprep.subr.mxu0 0.0
    %374 = vmatpush1.msra.mxu0 0.0
    %375 = vmatprep.subr.mxu0 0.0
    %376 = vmatpush1.msra.mxu0 0.0
    %377 = vmatprep.subr.mxu0 0.0
    %378 = vmatpush1.msra.mxu0 0.0
    %379 = vmatprep.subr.mxu0 0.0
    %380 = vmatpush1.msra.mxu0 0.0
    %381 = vmatprep.subr.mxu0 0.0
    %382 = vmatpush1.msra.mxu0 0.0
    %383 = vmatprep.subr.mxu0 0.0
    %384 = vmatpush1.msra.mxu0 0.0
    %385 = vmatprep.subr.mxu0 0.0
    %386 = vmatpush1.msra.mxu0 0.0
    %387 = vmatprep.mubr.f32.mxu0 0.0
    %388 = vmatmul.mubr.f32.gmra.mrb[0].mxu0 %v318
    %v389 = vpop.f32.mrb[0].mxu0
    %v390 = vadd.f32 %v314, %v389
    %v391 = vpop.f32.mrb[0].mxu0
    %392 = vmatprep.mubr.f32.mxu0 0.0
    %393 = vmatmul.mubr.f32.gmra.mrb[0].mxu0 %v321
    %v394 = vpop.f32.mrb[0].mxu0
    %v395 = vadd.f32 %v314, %v394
    %v396 = vpop.f32.mrb[0].mxu0
    %397 = vdwg.mxu0
    %v398 = vld [vmem:[#allocation13] sm:$0xff]
    %v399 = vld [vmem:[#allocation13 + $0x8] sm:$0xff]
    %v400 = vld [vmem:[#allocation13 + $0x10] sm:$0xff]
    %v401 = vld [vmem:[#allocation13 + $0x18] sm:$0xff]
    %v402 = vld [vmem:[#allocation16] sm:$0x1]
    %v404 = vlaneseq
    %v405 = vshrl.u32 %v404, 7
    %v406 = vsub.s32 0, %v405
    %v407 = vrot.slane %v402, %v406
    %409 = vmatprep.subr.mxu0 0.0
    %410 = vmatpush1.msra.mxu0 %v398
    %411 = vmatprep.subr.mxu0 0.0
    %412 = vmatpush1.msra.mxu0 %v399
    %413 = vmatprep.subr.mxu0 0.0
    %414 = vmatpush1.msra.mxu0 %v400
    %415 = vmatprep.subr.mxu0 0.0
    %416 = vmatpush1.msra.mxu0 %v401
    %417 = vmatprep.subr.mxu0 0.0
    %418 = vmatpush1.msra.mxu0 0.0
    %419 = vmatprep.subr.mxu0 0.0
    %420 = vmatpush1.msra.mxu0 0.0
    %421 = vmatprep.subr.mxu0 0.0
    %422 = vmatpush1.msra.mxu0 0.0
    %423 = vmatprep.subr.mxu0 0.0
    %424 = vmatpush1.msra.mxu0 0.0
    %425 = vmatprep.subr.mxu0 0.0
    %426 = vmatpush1.msra.mxu0 0.0
    %427 = vmatprep.subr.mxu0 0.0
    %428 = vmatpush1.msra.mxu0 0.0
    %429 = vmatprep.subr.mxu0 0.0
    %430 = vmatpush1.msra.mxu0 0.0
    %431 = vmatprep.subr.mxu0 0.0
    %432 = vmatpush1.msra.mxu0 0.0
    %433 = vmatprep.subr.mxu0 0.0
    %434 = vmatpush1.msra.mxu0 0.0
    %435 = vmatprep.subr.mxu0 0.0
    %436 = vmatpush1.msra.mxu0 0.0
    %437 = vmatprep.subr.mxu0 0.0
    %438 = vmatpush1.msra.mxu0 0.0
    %439 = vmatprep.subr.mxu0 0.0
    %440 = vmatpush1.msra.mxu0 0.0
    %441 = vmatprep.subr.mxu0 0.0
    %442 = vmatpush1.msra.mxu0 0.0
    %443 = vmatprep.subr.mxu0 0.0
    %444 = vmatpush1.msra.mxu0 0.0
    %445 = vmatprep.subr.mxu0 0.0
    %446 = vmatpush1.msra.mxu0 0.0
    %447 = vmatprep.subr.mxu0 0.0
    %448 = vmatpush1.msra.mxu0 0.0
    %449 = vmatprep.subr.mxu0 0.0
    %450 = vmatpush1.msra.mxu0 0.0
    %451 = vmatprep.subr.mxu0 0.0
    %452 = vmatpush1.msra.mxu0 0.0
    %453 = vmatprep.subr.mxu0 0.0
    %454 = vmatpush1.msra.mxu0 0.0
    %455 = vmatprep.subr.mxu0 0.0
    %456 = vmatpush1.msra.mxu0 0.0
    %457 = vmatprep.subr.mxu0 0.0
    %458 = vmatpush1.msra.mxu0 0.0
    %459 = vmatprep.subr.mxu0 0.0
    %460 = vmatpush1.msra.mxu0 0.0
    %461 = vmatprep.subr.mxu0 0.0
    %462 = vmatpush1.msra.mxu0 0.0
    %463 = vmatprep.subr.mxu0 0.0
    %464 = vmatpush1.msra.mxu0 0.0
    %465 = vmatprep.subr.mxu0 0.0
    %466 = vmatpush1.msra.mxu0 0.0
    %467 = vmatprep.subr.mxu0 0.0
    %468 = vmatpush1.msra.mxu0 0.0
    %469 = vmatprep.subr.mxu0 0.0
    %470 = vmatpush1.msra.mxu0 0.0
    %471 = vmatprep.subr.mxu0 0.0
    %472 = vmatpush1.msra.mxu0 0.0
    %473 = vmatprep.mubr.f32.mxu0 0.0
    %474 = vmatmul.mubr.f32.gmra.mrb[0].mxu0 %v318
    %v475 = vpop.f32.mrb[0].mxu0
    %v476 = vadd.f32 %v407, %v475
    %v477 = vpop.f32.mrb[0].mxu0
    %478 = vmatprep.mubr.f32.mxu0 0.0
    %479 = vmatmul.mubr.f32.gmra.mrb[0].mxu0 %v321
    %v480 = vpop.f32.mrb[0].mxu0
    %v481 = vadd.f32 %v407, %v480
    %v482 = vpop.f32.mrb[0].mxu0
    %483 = vdwg.mxu0
    %v484 = vld [vmem:[#allocation8] sm:$0xff]
    %v485 = vld [vmem:[#allocation8 + $0x8] sm:$0xff]
    %v486 = vld [vmem:[#allocation8 + $0x10] sm:$0xff]
    %v487 = vld [vmem:[#allocation8 + $0x18] sm:$0xff]
    %v488 = vld [vmem:[#allocation14] sm:$0xff]
    %v489 = vld [vmem:[#allocation14 + $0x8] sm:$0xff]
    %v490 = vld [vmem:[#allocation14 + $0x10] sm:$0xff]
    %v491 = vld [vmem:[#allocation14 + $0x18] sm:$0xff]
    %v492 = vld [vmem:[#allocation11] sm:$0x1]
    %v494 = vlaneseq
    %v495 = vshrl.u32 %v494, 7
    %v496 = vsub.s32 0, %v495
    %v497 = vrot.slane %v492, %v496
    %v498 = vld [vmem:[#allocation17] sm:$0x1]
    %v500 = vlaneseq
    %v501 = vshrl.u32 %v500, 7
    %v502 = vsub.s32 0, %v501
    %v503 = vrot.slane %v498, %v502
    %v505 = vsel %vm316, 0.0, 0
    %507 = vmatprep.subr.mxu0 0.0
    %508 = vmatpush1.msra.mxu0 %v484
    %509 = vmatprep.subr.mxu0 0.0
    %510 = vmatpush1.msra.mxu0 %v485
    %511 = vmatprep.subr.mxu0 0.0
    %512 = vmatpush1.msra.mxu0 %v486
    %513 = vmatprep.subr.mxu0 0.0
    %514 = vmatpush1.msra.mxu0 %v487
    %515 = vmatprep.subr.mxu0 0.0
    %516 = vmatpush1.msra.mxu0 0.0
    %517 = vmatprep.subr.mxu0 0.0
    %518 = vmatpush1.msra.mxu0 0.0
    %519 = vmatprep.subr.mxu0 0.0
    %520 = vmatpush1.msra.mxu0 0.0
    %521 = vmatprep.subr.mxu0 0.0
    %522 = vmatpush1.msra.mxu0 0.0
    %523 = vmatprep.subr.mxu0 0.0
    %524 = vmatpush1.msra.mxu0 0.0
    %525 = vmatprep.subr.mxu0 0.0
    %526 = vmatpush1.msra.mxu0 0.0
    %527 = vmatprep.subr.mxu0 0.0
    %528 = vmatpush1.msra.mxu0 0.0
    %529 = vmatprep.subr.mxu0 0.0
    %530 = vmatpush1.msra.mxu0 0.0
    %531 = vmatprep.subr.mxu0 0.0
    %532 = vmatpush1.msra.mxu0 0.0
    %533 = vmatprep.subr.mxu0 0.0
    %534 = vmatpush1.msra.mxu0 0.0
    %535 = vmatprep.subr.mxu0 0.0
    %536 = vmatpush1.msra.mxu0 0.0
    %537 = vmatprep.subr.mxu0 0.0
    %538 = vmatpush1.msra.mxu0 0.0
    %539 = vmatprep.subr.mxu0 0.0
    %540 = vmatpush1.msra.mxu0 0.0
    %541 = vmatprep.subr.mxu0 0.0
    %542 = vmatpush1.msra.mxu0 0.0
    %543 = vmatprep.subr.mxu0 0.0
    %544 = vmatpush1.msra.mxu0 0.0
    %545 = vmatprep.subr.mxu0 0.0
    %546 = vmatpush1.msra.mxu0 0.0
    %547 = vmatprep.subr.mxu0 0.0
    %548 = vmatpush1.msra.mxu0 0.0
    %549 = vmatprep.subr.mxu0 0.0
    %550 = vmatpush1.msra.mxu0 0.0
    %551 = vmatprep.subr.mxu0 0.0
    %552 = vmatpush1.msra.mxu0 0.0
    %553 = vmatprep.subr.mxu0 0.0
    %554 = vmatpush1.msra.mxu0 0.0
    %555 = vmatprep.subr.mxu0 0.0
    %556 = vmatpush1.msra.mxu0 0.0
    %557 = vmatprep.subr.mxu0 0.0
    %558 = vmatpush1.msra.mxu0 0.0
    %559 = vmatprep.subr.mxu0 0.0
    %560 = vmatpush1.msra.mxu0 0.0
    %561 = vmatprep.subr.mxu0 0.0
    %562 = vmatpush1.msra.mxu0 0.0
    %563 = vmatprep.subr.mxu0 0.0
    %564 = vmatpush1.msra.mxu0 0.0
    %565 = vmatprep.subr.mxu0 0.0
    %566 = vmatpush1.msra.mxu0 0.0
    %567 = vmatprep.subr.mxu0 0.0
    %568 = vmatpush1.msra.mxu0 0.0
    %569 = vmatprep.subr.mxu0 0.0
    %570 = vmatpush1.msra.mxu0 0.0
    %571 = vmatprep.mubr.f32.mxu0 0.0
    %572 = vmatmul.mubr.f32.gmra.mrb[0].mxu0 %v505
    %v573 = vpop.f32.mrb[0].mxu0
    %v574 = vadd.f32 0.0, %v573
    %v575 = vpop.f32.mrb[0].mxu0
    %576 = vdwg.mxu0
    %v578 = vrot.slane %v574, 1
    %v581 = vadd.f32 %v390, %v574
    %v582 = vadd.f32 %v395, %v578
    %v583 = vxor.u32 %v581, 2147483648
    %v584 = vxor.u32 %v582, 2147483648
    %v585 = vmul.f32 %v583, 1.442695
    %v586 = vpow.pop %v585
    %v587 = vmul.f32 %v584, 1.442695
    %v588 = vpow.pop %v587
    %v589 = vadd.f32 %v586, 1.0
    %v590 = vadd.f32 %v588, 1.0
    %v591 = vrcp.pop %v589
    %v592 = vmul.f32 1.0, %v591
    %v593 = vrcp.pop %v590
    %v594 = vmul.f32 1.0, %v593
    %595 = vrot.lane.b32.xlu0 %v497, 64
    %v596 = vpop.permute.xlu0 %595
    %v598 = vadd.f32 %v574, %v596
    %v600 = vrot.slane %v598, 1
    %601 = vrot.lane.b32.xlu0 %v598, 64
    %v602 = vpop.permute.xlu0 %601
    %603 = vrot.lane.b32.xlu0 %v600, 64
    %v604 = vpop.permute.xlu0 %603
    %v607 = vmul.f32 %v592, %v602
    %v608 = vmul.f32 %v594, %v604
    %611 = vrot.lane.b32.xlu0 %v607, 64
    %v612 = vpop.permute.xlu0 %611
    %613 = vrot.lane.b32.xlu0 %v608, 64
    %v614 = vpop.permute.xlu0 %613
    %v617 = vadd.f32 %v390, %v612
    %v618 = vadd.f32 %v395, %v614
    %v619 = vtanh.pop %v617
    %v620 = vtanh.pop %v618
    %v621 = vsub.f32 1.0, %v592
    %v622 = vsub.f32 1.0, %v594
    %625 = vrot.lane.b32.xlu0 %v619, 96
    %v626 = vpop.permute.xlu0 %625
    %627 = vrot.lane.b32.xlu0 %v620, 96
    %v628 = vpop.permute.xlu0 %627
    %v631 = vmul.f32 %v621, %v626
    %v632 = vmul.f32 %v622, %v628
    %v633 = vmul.f32 %v592, 0.0
    %v634 = vmul.f32 %v594, 0.0
    %v635 = vadd.f32 %v631, %v633
    %v636 = vadd.f32 %v632, %v634
    %v639 = vrot.slane %v636, 7
    %vm640 = vcmask 1041409
    %v641 = vsel %vm640, %v639, %v635
    %642 = vrot.lane.b32.xlu0 %v641, 96
    %v643 = vpop.permute.xlu0 %642
    %v645 = vmul.f32 %v273, %v643
    %v646 = vadd.f32 %v645, 0.0
    %v647 = vmul.f32 %v273, %v646
    %648 = vmatprep.subr.mxu0 0.0
    %649 = vmatpush1.msra.mxu0 %v488
    %650 = vmatprep.subr.mxu0 0.0
    %651 = vmatpush1.msra.mxu0 %v489
    %652 = vmatprep.subr.mxu0 0.0
    %653 = vmatpush1.msra.mxu0 %v490
    %654 = vmatprep.subr.mxu0 0.0
    %655 = vmatpush1.msra.mxu0 %v491
    %656 = vmatprep.subr.mxu0 0.0
    %657 = vmatpush1.msra.mxu0 0.0
    %658 = vmatprep.subr.mxu0 0.0
    %659 = vmatpush1.msra.mxu0 0.0
    %660 = vmatprep.subr.mxu0 0.0
    %661 = vmatpush1.msra.mxu0 0.0
    %662 = vmatprep.subr.mxu0 0.0
    %663 = vmatpush1.msra.mxu0 0.0
    %664 = vmatprep.subr.mxu0 0.0
    %665 = vmatpush1.msra.mxu0 0.0
    %666 = vmatprep.subr.mxu0 0.0
    %667 = vmatpush1.msra.mxu0 0.0
    %668 = vmatprep.subr.mxu0 0.0
    %669 = vmatpush1.msra.mxu0 0.0
    %670 = vmatprep.subr.mxu0 0.0
    %671 = vmatpush1.msra.mxu0 0.0
    %672 = vmatprep.subr.mxu0 0.0
    %673 = vmatpush1.msra.mxu0 0.0
    %674 = vmatprep.subr.mxu0 0.0
    %675 = vmatpush1.msra.mxu0 0.0
    %676 = vmatprep.subr.mxu0 0.0
    %677 = vmatpush1.msra.mxu0 0.0
    %678 = vmatprep.subr.mxu0 0.0
    %679 = vmatpush1.msra.mxu0 0.0
    %680 = vmatprep.subr.mxu0 0.0
    %681 = vmatpush1.msra.mxu0 0.0
    %682 = vmatprep.subr.mxu0 0.0
    %683 = vmatpush1.msra.mxu0 0.0
    %684 = vmatprep.subr.mxu0 0.0
    %685 = vmatpush1.msra.mxu0 0.0
    %686 = vmatprep.subr.mxu0 0.0
    %687 = vmatpush1.msra.mxu0 0.0
    %688 = vmatprep.subr.mxu0 0.0
    %689 = vmatpush1.msra.mxu0 0.0
    %690 = vmatprep.subr.mxu0 0.0
    %691 = vmatpush1.msra.mxu0 0.0
    %692 = vmatprep.subr.mxu0 0.0
    %693 = vmatpush1.msra.mxu0 0.0
    %694 = vmatprep.subr.mxu0 0.0
    %695 = vmatpush1.msra.mxu0 0.0
    %696 = vmatprep.subr.mxu0 0.0
    %697 = vmatpush1.msra.mxu0 0.0
    %698 = vmatprep.subr.mxu0 0.0
    %699 = vmatpush1.msra.mxu0 0.0
    %700 = vmatprep.subr.mxu0 0.0
    %701 = vmatpush1.msra.mxu0 0.0
    %702 = vmatprep.subr.mxu0 0.0
    %703 = vmatpush1.msra.mxu0 0.0
    %704 = vmatprep.subr.mxu0 0.0
    %705 = vmatpush1.msra.mxu0 0.0
    %706 = vmatprep.subr.mxu0 0.0
    %707 = vmatpush1.msra.mxu0 0.0
    %708 = vmatprep.subr.mxu0 0.0
    %709 = vmatpush1.msra.mxu0 0.0
    %710 = vmatprep.subr.mxu0 0.0
    %711 = vmatpush1.msra.mxu0 0.0
    %712 = vmatprep.mubr.f32.mxu0 0.0
    %713 = vmatmul.mubr.f32.gmra.mrb[0].mxu0 %v505
    %v714 = vpop.f32.mrb[0].mxu0
    %v715 = vadd.f32 0.0, %v714
    %v716 = vpop.f32.mrb[0].mxu0
    %717 = vdwg.mxu0
    %v719 = vrot.slane %v715, 1
    %v720 = vrot.slane %v715, 2
    %v723 = vadd.f32 %v476, %v719
    %v724 = vadd.f32 %v481, %v720
    %v725 = vxor.u32 %v723, 2147483648
    %v726 = vxor.u32 %v724, 2147483648
    %v727 = vmul.f32 %v725, 1.442695
    %v728 = vpow.pop %v727
    %v729 = vmul.f32 %v726, 1.442695
    %v730 = vpow.pop %v729
    %v731 = vadd.f32 %v728, 1.0
    %v732 = vadd.f32 %v730, 1.0
    %v733 = vrcp.pop %v731
    %v734 = vmul.f32 1.0, %v733
    %v735 = vrcp.pop %v732
    %v736 = vmul.f32 1.0, %v735
    %737 = vrot.lane.b32.xlu0 %v503, 64
    %v738 = vpop.permute.xlu0 %737
    %v740 = vadd.f32 %v715, %v738
    %v742 = vrot.slane %v740, 1
    %v743 = vrot.slane %v740, 2
    %744 = vrot.lane.b32.xlu0 %v742, 64
    %v745 = vpop.permute.xlu0 %744
    %746 = vrot.lane.b32.xlu0 %v743, 64
    %v747 = vpop.permute.xlu0 %746
    %v750 = vmul.f32 %v734, %v745
    %v751 = vmul.f32 %v736, %v747
    %754 = vrot.lane.b32.xlu0 %v750, 64
    %v755 = vpop.permute.xlu0 %754
    %756 = vrot.lane.b32.xlu0 %v751, 64
    %v757 = vpop.permute.xlu0 %756
    %v760 = vadd.f32 %v476, %v755
    %v761 = vadd.f32 %v481, %v757
    %v762 = vtanh.pop %v760
    %v763 = vtanh.pop %v761
    %v764 = vsub.f32 1.0, %v734
    %v765 = vsub.f32 1.0, %v736
    %768 = vrot.lane.b32.xlu0 %v762, 96
    %v769 = vpop.permute.xlu0 %768
    %770 = vrot.lane.b32.xlu0 %v763, 96
    %v771 = vpop.permute.xlu0 %770
    %v774 = vmul.f32 %v764, %v769
    %v775 = vmul.f32 %v765, %v771
    %v776 = vmul.f32 %v734, 0.0
    %v777 = vmul.f32 %v736, 0.0
    %v778 = vadd.f32 %v774, %v776
    %v779 = vadd.f32 %v775, %v777
    %v782 = vrot.slane %v778, 7
    %v783 = vrot.slane %v779, 6
    %v784 = vsel %vm640, %v783, %v782
    %785 = vrot.lane.b32.xlu0 %v784, 96
    %v786 = vpop.permute.xlu0 %785
    %v788 = vmul.f32 %v301, %v786
    %v789 = vadd.f32 %v788, 0.0
    %v790 = vmul.f32 %v301, %v789
    %v792 = vsel %vm316, %v646, 0
    %794 = vmatprep.subr.mxu0 0.0
    %795 = vmatpush1.msra.mxu0 %v484
    %796 = vmatprep.subr.mxu0 0.0
    %797 = vmatpush1.msra.mxu0 %v485
    %798 = vmatprep.subr.mxu0 0.0
    %799 = vmatpush1.msra.mxu0 %v486
    %800 = vmatprep.subr.mxu0 0.0
    %801 = vmatpush1.msra.mxu0 %v487
    %802 = vmatprep.subr.mxu0 0.0
    %803 = vmatpush1.msra.mxu0 0.0
    %804 = vmatprep.subr.mxu0 0.0
    %805 = vmatpush1.msra.mxu0 0.0
    %806 = vmatprep.subr.mxu0 0.0
    %807 = vmatpush1.msra.mxu0 0.0
    %808 = vmatprep.subr.mxu0 0.0
    %809 = vmatpush1.msra.mxu0 0.0
    %810 = vmatprep.subr.mxu0 0.0
    %811 = vmatpush1.msra.mxu0 0.0
    %812 = vmatprep.subr.mxu0 0.0
    %813 = vmatpush1.msra.mxu0 0.0
    %814 = vmatprep.subr.mxu0 0.0
    %815 = vmatpush1.msra.mxu0 0.0
    %816 = vmatprep.subr.mxu0 0.0
    %817 = vmatpush1.msra.mxu0 0.0
    %818 = vmatprep.subr.mxu0 0.0
    %819 = vmatpush1.msra.mxu0 0.0
    %820 = vmatprep.subr.mxu0 0.0
    %821 = vmatpush1.msra.mxu0 0.0
    %822 = vmatprep.subr.mxu0 0.0
    %823 = vmatpush1.msra.mxu0 0.0
    %824 = vmatprep.subr.mxu0 0.0
    %825 = vmatpush1.msra.mxu0 0.0
    %826 = vmatprep.subr.mxu0 0.0
    %827 = vmatpush1.msra.mxu0 0.0
    %828 = vmatprep.subr.mxu0 0.0
    %829 = vmatpush1.msra.mxu0 0.0
    %830 = vmatprep.subr.mxu0 0.0
    %831 = vmatpush1.msra.mxu0 0.0
    %832 = vmatprep.subr.mxu0 0.0
    %833 = vmatpush1.msra.mxu0 0.0
    %834 = vmatprep.subr.mxu0 0.0
    %835 = vmatpush1.msra.mxu0 0.0
    %836 = vmatprep.subr.mxu0 0.0
    %837 = vmatpush1.msra.mxu0 0.0
    %838 = vmatprep.subr.mxu0 0.0
    %839 = vmatpush1.msra.mxu0 0.0
    %840 = vmatprep.subr.mxu0 0.0
    %841 = vmatpush1.msra.mxu0 0.0
    %842 = vmatprep.subr.mxu0 0.0
    %843 = vmatpush1.msra.mxu0 0.0
    %844 = vmatprep.subr.mxu0 0.0
    %845 = vmatpush1.msra.mxu0 0.0
    %846 = vmatprep.subr.mxu0 0.0
    %847 = vmatpush1.msra.mxu0 0.0
    %848 = vmatprep.subr.mxu0 0.0
    %849 = vmatpush1.msra.mxu0 0.0
    %850 = vmatprep.subr.mxu0 0.0
    %851 = vmatpush1.msra.mxu0 0.0
    %852 = vmatprep.subr.mxu0 0.0
    %853 = vmatpush1.msra.mxu0 0.0
    %854 = vmatprep.subr.mxu0 0.0
    %855 = vmatpush1.msra.mxu0 0.0
    %856 = vmatprep.subr.mxu0 0.0
    %857 = vmatpush1.msra.mxu0 0.0
    %858 = vmatprep.mubr.f32.mxu0 0.0
    %859 = vmatmul.mubr.f32.gmra.mrb[0].mxu0 %v792
    %v860 = vpop.f32.mrb[0].mxu0
    %v861 = vadd.f32 0.0, %v860
    %v862 = vpop.f32.mrb[0].mxu0
    %863 = vdwg.mxu0
    %v865 = vrot.slane %v861, 7
    %v868 = vadd.f32 %v390, %v865
    %v869 = vadd.f32 %v395, %v861
    %v870 = vxor.u32 %v868, 2147483648
    %v871 = vxor.u32 %v869, 2147483648
    %v872 = vmul.f32 %v870, 1.442695
    %v873 = vpow.pop %v872
    %v874 = vmul.f32 %v871, 1.442695
    %v875 = vpow.pop %v874
    %v876 = vadd.f32 %v873, 1.0
    %v877 = vadd.f32 %v875, 1.0
    %v878 = vrcp.pop %v876
    %v879 = vmul.f32 1.0, %v878
    %v880 = vrcp.pop %v877
    %v881 = vmul.f32 1.0, %v880
    %v882 = vadd.f32 %v861, %v596
    %v884 = vrot.slane %v882, 7
    %885 = vrot.lane.b32.xlu0 %v884, 64
    %v886 = vpop.permute.xlu0 %885
    %887 = vrot.lane.b32.xlu0 %v882, 64
    %v888 = vpop.permute.xlu0 %887
    %v891 = vmul.f32 %v879, %v886
    %v892 = vmul.f32 %v881, %v888
    %895 = vrot.lane.b32.xlu0 %v891, 64
    %v896 = vpop.permute.xlu0 %895
    %897 = vrot.lane.b32.xlu0 %v892, 64
    %v898 = vpop.permute.xlu0 %897
    %v901 = vadd.f32 %v390, %v896
    %v902 = vadd.f32 %v395, %v898
    %v903 = vtanh.pop %v901
    %v904 = vtanh.pop %v902
    %v905 = vsub.f32 1.0, %v879
    %v906 = vsub.f32 1.0, %v881
    %909 = vrot.lane.b32.xlu0 %v903, 96
    %v910 = vpop.permute.xlu0 %909
    %911 = vrot.lane.b32.xlu0 %v904, 96
    %v912 = vpop.permute.xlu0 %911
    %v915 = vmul.f32 %v905, %v910
    %v916 = vmul.f32 %v906, %v912
    %v917 = vrot.slane %v646, 7
    %918 = vrot.lane.b32.xlu0 %v917, 32
    %v919 = vpop.permute.xlu0 %918
    %920 = vrot.lane.b32.xlu0 %v646, 32
    %v921 = vpop.permute.xlu0 %920
    %v924 = vmul.f32 %v879, %v919
    %v925 = vmul.f32 %v881, %v921
    %v926 = vadd.f32 %v915, %v924
    %v927 = vadd.f32 %v916, %v925
    %v928 = vsub.f32 %v926, %v919
    %v929 = vsub.f32 %v927, %v921
    %v932 = vrot.slane %v928, 1
    %v933 = vsel %vm640, %v929, %v932
    %934 = vrot.lane.b32.xlu0 %v933, 96
    %v935 = vpop.permute.xlu0 %934
    %v937 = vmul.f32 %v277, %v935
    %v938 = vadd.f32 %v646, %v937
    %v939 = vmul.f32 %v277, %v938
    %v941 = vsel %vm316, %v789, 0
    %943 = vmatprep.subr.mxu0 0.0
    %944 = vmatpush1.msra.mxu0 %v488
    %945 = vmatprep.subr.mxu0 0.0
    %946 = vmatpush1.msra.mxu0 %v489
    %947 = vmatprep.subr.mxu0 0.0
    %948 = vmatpush1.msra.mxu0 %v490
    %949 = vmatprep.subr.mxu0 0.0
    %950 = vmatpush1.msra.mxu0 %v491
    %951 = vmatprep.subr.mxu0 0.0
    %952 = vmatpush1.msra.mxu0 0.0
    %953 = vmatprep.subr.mxu0 0.0
    %954 = vmatpush1.msra.mxu0 0.0
    %955 = vmatprep.subr.mxu0 0.0
    %956 = vmatpush1.msra.mxu0 0.0
    %957 = vmatprep.subr.mxu0 0.0
    %958 = vmatpush1.msra.mxu0 0.0
    %959 = vmatprep.subr.mxu0 0.0
    %960 = vmatpush1.msra.mxu0 0.0
    %961 = vmatprep.subr.mxu0 0.0
    %962 = vmatpush1.msra.mxu0 0.0
    %963 = vmatprep.subr.mxu0 0.0
    %964 = vmatpush1.msra.mxu0 0.0
    %965 = vmatprep.subr.mxu0 0.0
    %966 = vmatpush1.msra.mxu0 0.0
    %967 = vmatprep.subr.mxu0 0.0
    %968 = vmatpush1.msra.mxu0 0.0
    %969 = vmatprep.subr.mxu0 0.0
    %970 = vmatpush1.msra.mxu0 0.0
    %971 = vmatprep.subr.mxu0 0.0
    %972 = vmatpush1.msra.mxu0 0.0
    %973 = vmatprep.subr.mxu0 0.0
    %974 = vmatpush1.msra.mxu0 0.0
    %975 = vmatprep.subr.mxu0 0.0
    %976 = vmatpush1.msra.mxu0 0.0
    %977 = vmatprep.subr.mxu0 0.0
    %978 = vmatpush1.msra.mxu0 0.0
    %979 = vmatprep.subr.mxu0 0.0
    %980 = vmatpush1.msra.mxu0 0.0
    %981 = vmatprep.subr.mxu0 0.0
    %982 = vmatpush1.msra.mxu0 0.0
    %983 = vmatprep.subr.mxu0 0.0
    %984 = vmatpush1.msra.mxu0 0.0
    %985 = vmatprep.subr.mxu0 0.0
    %986 = vmatpush1.msra.mxu0 0.0
    %987 = vmatprep.subr.mxu0 0.0
    %988 = vmatpush1.msra.mxu0 0.0
    %989 = vmatprep.subr.mxu0 0.0
    %990 = vmatpush1.msra.mxu0 0.0
    %991 = vmatprep.subr.mxu0 0.0
    %992 = vmatpush1.msra.mxu0 0.0
    %993 = vmatprep.subr.mxu0 0.0
    %994 = vmatpush1.msra.mxu0 0.0
    %995 = vmatprep.subr.mxu0 0.0
    %996 = vmatpush1.msra.mxu0 0.0
    %997 = vmatprep.subr.mxu0 0.0
    %998 = vmatpush1.msra.mxu0 0.0
    %999 = vmatprep.subr.mxu0 0.0
    %1000 = vmatpush1.msra.mxu0 0.0
    %1001 = vmatprep.subr.mxu0 0.0
    %1002 = vmatpush1.msra.mxu0 0.0
    %1003 = vmatprep.subr.mxu0 0.0
    %1004 = vmatpush1.msra.mxu0 0.0
    %1005 = vmatprep.subr.mxu0 0.0
    %1006 = vmatpush1.msra.mxu0 0.0
    %1007 = vmatprep.mubr.f32.mxu0 0.0
    %1008 = vmatmul.mubr.f32.gmra.mrb[0].mxu0 %v941
    %v1009 = vpop.f32.mrb[0].mxu0
    %v1010 = vadd.f32 0.0, %v1009
    %v1011 = vpop.f32.mrb[0].mxu0
    %1012 = vdwg.mxu0
    %v1014 = vrot.slane %v1010, 2
    %v1015 = vrot.slane %v1010, 3
    %v1018 = vadd.f32 %v476, %v1014
    %v1019 = vadd.f32 %v481, %v1015
    %v1020 = vxor.u32 %v1018, 2147483648
    %v1021 = vxor.u32 %v1019, 2147483648
    %v1022 = vmul.f32 %v1020, 1.442695
    %v1023 = vpow.pop %v1022
    %v1024 = vmul.f32 %v1021, 1.442695
    %v1025 = vpow.pop %v1024
    %v1026 = vadd.f32 %v1023, 1.0
    %v1027 = vadd.f32 %v1025, 1.0
    %v1028 = vrcp.pop %v1026
    %v1029 = vmul.f32 1.0, %v1028
    %v1030 = vrcp.pop %v1027
    %v1031 = vmul.f32 1.0, %v1030
    %v1032 = vadd.f32 %v1010, %v738
    %v1034 = vrot.slane %v1032, 2
    %v1035 = vrot.slane %v1032, 3
    %1036 = vrot.lane.b32.xlu0 %v1034, 64
    %v1037 = vpop.permute.xlu0 %1036
    %1038 = vrot.lane.b32.xlu0 %v1035, 64
    %v1039 = vpop.permute.xlu0 %1038
    %v1042 = vmul.f32 %v1029, %v1037
    %v1043 = vmul.f32 %v1031, %v1039
    %1046 = vrot.lane.b32.xlu0 %v1042, 64
    %v1047 = vpop.permute.xlu0 %1046
    %1048 = vrot.lane.b32.xlu0 %v1043, 64
    %v1049 = vpop.permute.xlu0 %1048
    %v1052 = vadd.f32 %v476, %v1047
    %v1053 = vadd.f32 %v481, %v1049
    %v1054 = vtanh.pop %v1052
    %v1055 = vtanh.pop %v1053
    %v1056 = vsub.f32 1.0, %v1029
    %v1057 = vsub.f32 1.0, %v1031
    %1060 = vrot.lane.b32.xlu0 %v1054, 96
    %v1061 = vpop.permute.xlu0 %1060
    %1062 = vrot.lane.b32.xlu0 %v1055, 96
    %v1063 = vpop.permute.xlu0 %1062
    %v1066 = vmul.f32 %v1056, %v1061
    %v1067 = vmul.f32 %v1057, %v1063
    %v1068 = vrot.slane %v789, 2
    %v1069 = vrot.slane %v789, 3
    %1070 = vrot.lane.b32.xlu0 %v1068, 32
    %v1071 = vpop.permute.xlu0 %1070
    %1072 = vrot.lane.b32.xlu0 %v1069, 32
    %v1073 = vpop.permute.xlu0 %1072
    %v1076 = vmul.f32 %v1029, %v1071
    %v1077 = vmul.f32 %v1031, %v1073
    %v1078 = vadd.f32 %v1066, %v1076
    %v1079 = vadd.f32 %v1067, %v1077
    %v1080 = vsub.f32 %v1078, %v1071
    %v1081 = vsub.f32 %v1079, %v1073
    %v1084 = vrot.slane %v1080, 6
    %v1085 = vrot.slane %v1081, 5
    %v1086 = vsel %vm640, %v1085, %v1084
    %1087 = vrot.lane.b32.xlu0 %v1086, 96
    %v1088 = vpop.permute.xlu0 %1087
    %v1090 = vmul.f32 %v297, %v1088
    %v1091 = vadd.f32 %v789, %v1090
    %v1092 = vmul.f32 %v297, %v1091
    %v1094 = vsel %vm316, %v938, 0
    %1096 = vmatprep.subr.mxu0 0.0
    %1097 = vmatpush1.msra.mxu0 %v484
    %1098 = vmatprep.subr.mxu0 0.0
    %1099 = vmatpush1.msra.mxu0 %v485
    %1100 = vmatprep.subr.mxu0 0.0
    %1101 = vmatpush1.msra.mxu0 %v486
    %1102 = vmatprep.subr.mxu0 0.0
    %1103 = vmatpush1.msra.mxu0 %v487
    %1104 = vmatprep.subr.mxu0 0.0
    %1105 = vmatpush1.msra.mxu0 0.0
    %1106 = vmatprep.subr.mxu0 0.0
    %1107 = vmatpush1.msra.mxu0 0.0
    %1108 = vmatprep.subr.mxu0 0.0
    %1109 = vmatpush1.msra.mxu0 0.0
    %1110 = vmatprep.subr.mxu0 0.0
    %1111 = vmatpush1.msra.mxu0 0.0
    %1112 = vmatprep.subr.mxu0 0.0
    %1113 = vmatpush1.msra.mxu0 0.0
    %1114 = vmatprep.subr.mxu0 0.0
    %1115 = vmatpush1.msra.mxu0 0.0
    %1116 = vmatprep.subr.mxu0 0.0
    %1117 = vmatpush1.msra.mxu0 0.0
    %1118 = vmatprep.subr.mxu0 0.0
    %1119 = vmatpush1.msra.mxu0 0.0
    %1120 = vmatprep.subr.mxu0 0.0
    %1121 = vmatpush1.msra.mxu0 0.0
    %1122 = vmatprep.subr.mxu0 0.0
    %1123 = vmatpush1.msra.mxu0 0.0
    %1124 = vmatprep.subr.mxu0 0.0
    %1125 = vmatpush1.msra.mxu0 0.0
    %1126 = vmatprep.subr.mxu0 0.0
    %1127 = vmatpush1.msra.mxu0 0.0
    %1128 = vmatprep.subr.mxu0 0.0
    %1129 = vmatpush1.msra.mxu0 0.0
    %1130 = vmatprep.subr.mxu0 0.0
    %1131 = vmatpush1.msra.mxu0 0.0
    %1132 = vmatprep.subr.mxu0 0.0
    %1133 = vmatpush1.msra.mxu0 0.0
    %1134 = vmatprep.subr.mxu0 0.0
    %1135 = vmatpush1.msra.mxu0 0.0
    %1136 = vmatprep.subr.mxu0 0.0
    %1137 = vmatpush1.msra.mxu0 0.0
    %1138 = vmatprep.subr.mxu0 0.0
    %1139 = vmatpush1.msra.mxu0 0.0
    %1140 = vmatprep.subr.mxu0 0.0
    %1141 = vmatpush1.msra.mxu0 0.0
    %1142 = vmatprep.subr.mxu0 0.0
    %1143 = vmatpush1.msra.mxu0 0.0
    %1144 = vmatprep.subr.mxu0 0.0
    %1145 = vmatpush1.msra.mxu0 0.0
    %1146 = vmatprep.subr.mxu0 0.0
    %1147 = vmatpush1.msra.mxu0 0.0
    %1148 = vmatprep.subr.mxu0 0.0
    %1149 = vmatpush1.msra.mxu0 0.0
    %1150 = vmatprep.subr.mxu0 0.0
    %1151 = vmatpush1.msra.mxu0 0.0
    %1152 = vmatprep.subr.mxu0 0.0
    %1153 = vmatpush1.msra.mxu0 0.0
    %1154 = vmatprep.subr.mxu0 0.0
    %1155 = vmatpush1.msra.mxu0 0.0
    %1156 = vmatprep.subr.mxu0 0.0
    %1157 = vmatpush1.msra.mxu0 0.0
    %1158 = vmatprep.subr.mxu0 0.0
    %1159 = vmatpush1.msra.mxu0 0.0
    %1160 = vmatprep.mubr.f32.mxu0 0.0
    %1161 = vmatmul.mubr.f32.gmra.mrb[0].mxu0 %v1094
    %v1162 = vpop.f32.mrb[0].mxu0
    %v1163 = vadd.f32 0.0, %v1162
    %v1164 = vpop.f32.mrb[0].mxu0
    %1165 = vdwg.mxu0
    %v1167 = vrot.slane %v1163, 6
    %v1168 = vrot.slane %v1163, 7
    %v1171 = vadd.f32 %v390, %v1167
    %v1172 = vadd.f32 %v395, %v1168
    %v1173 = vxor.u32 %v1171, 2147483648
    %v1174 = vxor.u32 %v1172, 2147483648
    %v1175 = vmul.f32 %v1173, 1.442695
    %v1176 = vpow.pop %v1175
    %v1177 = vmul.f32 %v1174, 1.442695
    %v1178 = vpow.pop %v1177
    %v1179 = vadd.f32 %v1176, 1.0
    %v1180 = vadd.f32 %v1178, 1.0
    %v1181 = vrcp.pop %v1179
    %v1182 = vmul.f32 1.0, %v1181
    %v1183 = vrcp.pop %v1180
    %v1184 = vmul.f32 1.0, %v1183
    %v1185 = vadd.f32 %v1163, %v596
    %v1187 = vrot.slane %v1185, 6
    %v1188 = vrot.slane %v1185, 7
    %1189 = vrot.lane.b32.xlu0 %v1187, 64
    %v1190 = vpop.permute.xlu0 %1189
    %1191 = vrot.lane.b32.xlu0 %v1188, 64
    %v1192 = vpop.permute.xlu0 %1191
    %v1195 = vmul.f32 %v1182, %v1190
    %v1196 = vmul.f32 %v1184, %v1192
    %1199 = vrot.lane.b32.xlu0 %v1195, 64
    %v1200 = vpop.permute.xlu0 %1199
    %1201 = vrot.lane.b32.xlu0 %v1196, 64
    %v1202 = vpop.permute.xlu0 %1201
    %v1205 = vadd.f32 %v390, %v1200
    %v1206 = vadd.f32 %v395, %v1202
    %v1207 = vtanh.pop %v1205
    %v1208 = vtanh.pop %v1206
    %v1209 = vsub.f32 1.0, %v1182
    %v1210 = vsub.f32 1.0, %v1184
    %1213 = vrot.lane.b32.xlu0 %v1207, 96
    %v1214 = vpop.permute.xlu0 %1213
    %1215 = vrot.lane.b32.xlu0 %v1208, 96
    %v1216 = vpop.permute.xlu0 %1215
    %v1219 = vmul.f32 %v1209, %v1214
    %v1220 = vmul.f32 %v1210, %v1216
    %v1221 = vrot.slane %v938, 6
    %v1222 = vrot.slane %v938, 7
    %1223 = vrot.lane.b32.xlu0 %v1221, 32
    %v1224 = vpop.permute.xlu0 %1223
    %1225 = vrot.lane.b32.xlu0 %v1222, 32
    %v1226 = vpop.permute.xlu0 %1225
    %v1229 = vmul.f32 %v1182, %v1224
    %v1230 = vmul.f32 %v1184, %v1226
    %v1231 = vadd.f32 %v1219, %v1229
    %v1232 = vadd.f32 %v1220, %v1230
    %v1233 = vsub.f32 %v1231, %v1224
    %v1234 = vsub.f32 %v1232, %v1226
    %v1237 = vrot.slane %v1233, 2
    %v1238 = vrot.slane %v1234, 1
    %v1239 = vsel %vm640, %v1238, %v1237
    %1240 = vrot.lane.b32.xlu0 %v1239, 96
    %v1241 = vpop.permute.xlu0 %1240
    %v1243 = vmul.f32 %v281, %v1241
    %v1244 = vadd.f32 %v938, %v1243
    %v1245 = vmul.f32 %v281, %v1244
    %v1247 = vsel %vm316, %v1091, 0
    %1249 = vmatprep.subr.mxu0 0.0
    %1250 = vmatpush1.msra.mxu0 %v488
    %1251 = vmatprep.subr.mxu0 0.0
    %1252 = vmatpush1.msra.mxu0 %v489
    %1253 = vmatprep.subr.mxu0 0.0
    %1254 = vmatpush1.msra.mxu0 %v490
    %1255 = vmatprep.subr.mxu0 0.0
    %1256 = vmatpush1.msra.mxu0 %v491
    %1257 = vmatprep.subr.mxu0 0.0
    %1258 = vmatpush1.msra.mxu0 0.0
    %1259 = vmatprep.subr.mxu0 0.0
    %1260 = vmatpush1.msra.mxu0 0.0
    %1261 = vmatprep.subr.mxu0 0.0
    %1262 = vmatpush1.msra.mxu0 0.0
    %1263 = vmatprep.subr.mxu0 0.0
    %1264 = vmatpush1.msra.mxu0 0.0
    %1265 = vmatprep.subr.mxu0 0.0
    %1266 = vmatpush1.msra.mxu0 0.0
    %1267 = vmatprep.subr.mxu0 0.0
    %1268 = vmatpush1.msra.mxu0 0.0
    %1269 = vmatprep.subr.mxu0 0.0
    %1270 = vmatpush1.msra.mxu0 0.0
    %1271 = vmatprep.subr.mxu0 0.0
    %1272 = vmatpush1.msra.mxu0 0.0
    %1273 = vmatprep.subr.mxu0 0.0
    %1274 = vmatpush1.msra.mxu0 0.0
    %1275 = vmatprep.subr.mxu0 0.0
    %1276 = vmatpush1.msra.mxu0 0.0
    %1277 = vmatprep.subr.mxu0 0.0
    %1278 = vmatpush1.msra.mxu0 0.0
    %1279 = vmatprep.subr.mxu0 0.0
    %1280 = vmatpush1.msra.mxu0 0.0
    %1281 = vmatprep.subr.mxu0 0.0
    %1282 = vmatpush1.msra.mxu0 0.0
    %1283 = vmatprep.subr.mxu0 0.0
    %1284 = vmatpush1.msra.mxu0 0.0
    %1285 = vmatprep.subr.mxu0 0.0
    %1286 = vmatpush1.msra.mxu0 0.0
    %1287 = vmatprep.subr.mxu0 0.0
    %1288 = vmatpush1.msra.mxu0 0.0
    %1289 = vmatprep.subr.mxu0 0.0
    %1290 = vmatpush1.msra.mxu0 0.0
    %1291 = vmatprep.subr.mxu0 0.0
    %1292 = vmatpush1.msra.mxu0 0.0
    %1293 = vmatprep.subr.mxu0 0.0
    %1294 = vmatpush1.msra.mxu0 0.0
    %1295 = vmatprep.subr.mxu0 0.0
    %1296 = vmatpush1.msra.mxu0 0.0
    %1297 = vmatprep.subr.mxu0 0.0
    %1298 = vmatpush1.msra.mxu0 0.0
    %1299 = vmatprep.subr.mxu0 0.0
    %1300 = vmatpush1.msra.mxu0 0.0
    %1301 = vmatprep.subr.mxu0 0.0
    %1302 = vmatpush1.msra.mxu0 0.0
    %1303 = vmatprep.subr.mxu0 0.0
    %1304 = vmatpush1.msra.mxu0 0.0
    %1305 = vmatprep.subr.mxu0 0.0
    %1306 = vmatpush1.msra.mxu0 0.0
    %1307 = vmatprep.subr.mxu0 0.0
    %1308 = vmatpush1.msra.mxu0 0.0
    %1309 = vmatprep.subr.mxu0 0.0
    %1310 = vmatpush1.msra.mxu0 0.0
    %1311 = vmatprep.subr.mxu0 0.0
    %1312 = vmatpush1.msra.mxu0 0.0
    %1313 = vmatprep.mubr.f32.mxu0 0.0
    %1314 = vmatmul.mubr.f32.gmra.mrb[0].mxu0 %v1247
    %v1315 = vpop.f32.mrb[0].mxu0
    %v1316 = vadd.f32 0.0, %v1315
    %v1317 = vpop.f32.mrb[0].mxu0
    %1318 = vdwg.mxu0
    %v1320 = vrot.slane %v1316, 3
    %v1321 = vrot.slane %v1316, 4
    %v1324 = vadd.f32 %v476, %v1320
    %v1325 = vadd.f32 %v481, %v1321
    %v1326 = vxor.u32 %v1324, 2147483648
    %v1327 = vxor.u32 %v1325, 2147483648
    %v1328 = vmul.f32 %v1326, 1.442695
    %v1329 = vpow.pop %v1328
    %v1330 = vmul.f32 %v1327, 1.442695
    %v1331 = vpow.pop %v1330
    %v1332 = vadd.f32 %v1329, 1.0
    %v1333 = vadd.f32 %v1331, 1.0
    %v1334 = vrcp.pop %v1332
    %v1335 = vmul.f32 1.0, %v1334
    %v1336 = vrcp.pop %v1333
    %v1337 = vmul.f32 1.0, %v1336
    %v1338 = vadd.f32 %v1316, %v738
    %v1340 = vrot.slane %v1338, 3
    %v1341 = vrot.slane %v1338, 4
    %1342 = vrot.lane.b32.xlu0 %v1340, 64
    %v1343 = vpop.permute.xlu0 %1342
    %1344 = vrot.lane.b32.xlu0 %v1341, 64
    %v1345 = vpop.permute.xlu0 %1344
    %v1348 = vmul.f32 %v1335, %v1343
    %v1349 = vmul.f32 %v1337, %v1345
    %1352 = vrot.lane.b32.xlu0 %v1348, 64
    %v1353 = vpop.permute.xlu0 %1352
    %1354 = vrot.lane.b32.xlu0 %v1349, 64
    %v1355 = vpop.permute.xlu0 %1354
    %v1358 = vadd.f32 %v476, %v1353
    %v1359 = vadd.f32 %v481, %v1355
    %v1360 = vtanh.pop %v1358
    %v1361 = vtanh.pop %v1359
    %v1362 = vsub.f32 1.0, %v1335
    %v1363 = vsub.f32 1.0, %v1337
    %1366 = vrot.lane.b32.xlu0 %v1360, 96
    %v1367 = vpop.permute.xlu0 %1366
    %1368 = vrot.lane.b32.xlu0 %v1361, 96
    %v1369 = vpop.permute.xlu0 %1368
    %v1372 = vmul.f32 %v1362, %v1367
    %v1373 = vmul.f32 %v1363, %v1369
    %v1374 = vrot.slane %v1091, 3
    %v1375 = vrot.slane %v1091, 4
    %1376 = vrot.lane.b32.xlu0 %v1374, 32
    %v1377 = vpop.permute.xlu0 %1376
    %1378 = vrot.lane.b32.xlu0 %v1375, 32
    %v1379 = vpop.permute.xlu0 %1378
    %v1382 = vmul.f32 %v1335, %v1377
    %v1383 = vmul.f32 %v1337, %v1379
    %v1384 = vadd.f32 %v1372, %v1382
    %v1385 = vadd.f32 %v1373, %v1383
    %v1386 = vsub.f32 %v1384, %v1377
    %v1387 = vsub.f32 %v1385, %v1379
    %v1390 = vrot.slane %v1386, 5
    %v1391 = vrot.slane %v1387, 4
    %v1392 = vsel %vm640, %v1391, %v1390
    %1393 = vrot.lane.b32.xlu0 %v1392, 96
    %v1394 = vpop.permute.xlu0 %1393
    %v1396 = vmul.f32 %v293, %v1394
    %v1397 = vadd.f32 %v1091, %v1396
    %v1398 = vmul.f32 %v293, %v1397
    %v1400 = vsel %vm316, %v1244, 0
    %1402 = vmatprep.subr.mxu0 0.0
    %1403 = vmatpush1.msra.mxu0 %v484
    %1404 = vmatprep.subr.mxu0 0.0
    %1405 = vmatpush1.msra.mxu0 %v485
    %1406 = vmatprep.subr.mxu0 0.0
    %1407 = vmatpush1.msra.mxu0 %v486
    %1408 = vmatprep.subr.mxu0 0.0
    %1409 = vmatpush1.msra.mxu0 %v487
    %1410 = vmatprep.subr.mxu0 0.0
    %1411 = vmatpush1.msra.mxu0 0.0
    %1412 = vmatprep.subr.mxu0 0.0
    %1413 = vmatpush1.msra.mxu0 0.0
    %1414 = vmatprep.subr.mxu0 0.0
    %1415 = vmatpush1.msra.mxu0 0.0
    %1416 = vmatprep.subr.mxu0 0.0
    %1417 = vmatpush1.msra.mxu0 0.0
    %1418 = vmatprep.subr.mxu0 0.0
    %1419 = vmatpush1.msra.mxu0 0.0
    %1420 = vmatprep.subr.mxu0 0.0
    %1421 = vmatpush1.msra.mxu0 0.0
    %1422 = vmatprep.subr.mxu0 0.0
    %1423 = vmatpush1.msra.mxu0 0.0
    %1424 = vmatprep.subr.mxu0 0.0
    %1425 = vmatpush1.msra.mxu0 0.0
    %1426 = vmatprep.subr.mxu0 0.0
    %1427 = vmatpush1.msra.mxu0 0.0
    %1428 = vmatprep.subr.mxu0 0.0
    %1429 = vmatpush1.msra.mxu0 0.0
    %1430 = vmatprep.subr.mxu0 0.0
    %1431 = vmatpush1.msra.mxu0 0.0
    %1432 = vmatprep.subr.mxu0 0.0
    %1433 = vmatpush1.msra.mxu0 0.0
    %1434 = vmatprep.subr.mxu0 0.0
    %1435 = vmatpush1.msra.mxu0 0.0
    %1436 = vmatprep.subr.mxu0 0.0
    %1437 = vmatpush1.msra.mxu0 0.0
    %1438 = vmatprep.subr.mxu0 0.0
    %1439 = vmatpush1.msra.mxu0 0.0
    %1440 = vmatprep.subr.mxu0 0.0
    %1441 = vmatpush1.msra.mxu0 0.0
    %1442 = vmatprep.subr.mxu0 0.0
    %1443 = vmatpush1.msra.mxu0 0.0
    %1444 = vmatprep.subr.mxu0 0.0
    %1445 = vmatpush1.msra.mxu0 0.0
    %1446 = vmatprep.subr.mxu0 0.0
    %1447 = vmatpush1.msra.mxu0 0.0
    %1448 = vmatprep.subr.mxu0 0.0
    %1449 = vmatpush1.msra.mxu0 0.0
    %1450 = vmatprep.subr.mxu0 0.0
    %1451 = vmatpush1.msra.mxu0 0.0
    %1452 = vmatprep.subr.mxu0 0.0
    %1453 = vmatpush1.msra.mxu0 0.0
    %1454 = vmatprep.subr.mxu0 0.0
    %1455 = vmatpush1.msra.mxu0 0.0
    %1456 = vmatprep.subr.mxu0 0.0
    %1457 = vmatpush1.msra.mxu0 0.0
    %1458 = vmatprep.subr.mxu0 0.0
    %1459 = vmatpush1.msra.mxu0 0.0
    %1460 = vmatprep.subr.mxu0 0.0
    %1461 = vmatpush1.msra.mxu0 0.0
    %1462 = vmatprep.subr.mxu0 0.0
    %1463 = vmatpush1.msra.mxu0 0.0
    %1464 = vmatprep.subr.mxu0 0.0
    %1465 = vmatpush1.msra.mxu0 0.0
    %1466 = vmatprep.mubr.f32.mxu0 0.0
    %1467 = vmatmul.mubr.f32.gmra.mrb[0].mxu0 %v1400
    %v1468 = vpop.f32.mrb[0].mxu0
    %v1469 = vadd.f32 0.0, %v1468
    %v1470 = vpop.f32.mrb[0].mxu0
    %1471 = vdwg.mxu0
    %v1473 = vrot.slane %v1469, 5
    %v1474 = vrot.slane %v1469, 6
    %v1477 = vadd.f32 %v390, %v1473
    %v1478 = vadd.f32 %v395, %v1474
    %v1479 = vxor.u32 %v1477, 2147483648
    %v1480 = vxor.u32 %v1478, 2147483648
    %v1481 = vmul.f32 %v1479, 1.442695
    %v1482 = vpow.pop %v1481
    %v1483 = vmul.f32 %v1480, 1.442695
    %v1484 = vpow.pop %v1483
    %v1485 = vadd.f32 %v1482, 1.0
    %v1486 = vadd.f32 %v1484, 1.0
    %v1487 = vrcp.pop %v1485
    %v1488 = vmul.f32 1.0, %v1487
    %v1489 = vrcp.pop %v1486
    %v1490 = vmul.f32 1.0, %v1489
    %v1491 = vadd.f32 %v1469, %v596
    %v1493 = vrot.slane %v1491, 5
    %v1494 = vrot.slane %v1491, 6
    %1495 = vrot.lane.b32.xlu0 %v1493, 64
    %v1496 = vpop.permute.xlu0 %1495
    %1497 = vrot.lane.b32.xlu0 %v1494, 64
    %v1498 = vpop.permute.xlu0 %1497
    %v1501 = vmul.f32 %v1488, %v1496
    %v1502 = vmul.f32 %v1490, %v1498
    %1505 = vrot.lane.b32.xlu0 %v1501, 64
    %v1506 = vpop.permute.xlu0 %1505
    %1507 = vrot.lane.b32.xlu0 %v1502, 64
    %v1508 = vpop.permute.xlu0 %1507
    %v1511 = vadd.f32 %v390, %v1506
    %v1512 = vadd.f32 %v395, %v1508
    %v1513 = vtanh.pop %v1511
    %v1514 = vtanh.pop %v1512
    %v1515 = vsub.f32 1.0, %v1488
    %v1516 = vsub.f32 1.0, %v1490
    %1519 = vrot.lane.b32.xlu0 %v1513, 96
    %v1520 = vpop.permute.xlu0 %1519
    %1521 = vrot.lane.b32.xlu0 %v1514, 96
    %v1522 = vpop.permute.xlu0 %1521
    %v1525 = vmul.f32 %v1515, %v1520
    %v1526 = vmul.f32 %v1516, %v1522
    %v1527 = vrot.slane %v1244, 5
    %v1528 = vrot.slane %v1244, 6
    %1529 = vrot.lane.b32.xlu0 %v1527, 32
    %v1530 = vpop.permute.xlu0 %1529
    %1531 = vrot.lane.b32.xlu0 %v1528, 32
    %v1532 = vpop.permute.xlu0 %1531
    %v1535 = vmul.f32 %v1488, %v1530
    %v1536 = vmul.f32 %v1490, %v1532
    %v1537 = vadd.f32 %v1525, %v1535
    %v1538 = vadd.f32 %v1526, %v1536
    %v1539 = vsub.f32 %v1537, %v1530
    %v1540 = vsub.f32 %v1538, %v1532
    %v1543 = vrot.slane %v1539, 3
    %v1544 = vrot.slane %v1540, 2
    %v1545 = vsel %vm640, %v1544, %v1543
    %1546 = vrot.lane.b32.xlu0 %v1545, 96
    %v1547 = vpop.permute.xlu0 %1546
    %v1549 = vmul.f32 %v285, %v1547
    %v1550 = vadd.f32 %v1244, %v1549
    %v1551 = vmul.f32 %v285, %v1550
    %v1553 = vsel %vm316, %v1397, 0
    %1555 = vmatprep.subr.mxu0 0.0
    %1556 = vmatpush1.msra.mxu0 %v488
    %1557 = vmatprep.subr.mxu0 0.0
    %1558 = vmatpush1.msra.mxu0 %v489
    %1559 = vmatprep.subr.mxu0 0.0
    %1560 = vmatpush1.msra.mxu0 %v490
    %1561 = vmatprep.subr.mxu0 0.0
    %1562 = vmatpush1.msra.mxu0 %v491
    %1563 = vmatprep.subr.mxu0 0.0
    %1564 = vmatpush1.msra.mxu0 0.0
    %1565 = vmatprep.subr.mxu0 0.0
    %1566 = vmatpush1.msra.mxu0 0.0
    %1567 = vmatprep.subr.mxu0 0.0
    %1568 = vmatpush1.msra.mxu0 0.0
    %1569 = vmatprep.subr.mxu0 0.0
    %1570 = vmatpush1.msra.mxu0 0.0
    %1571 = vmatprep.subr.mxu0 0.0
    %1572 = vmatpush1.msra.mxu0 0.0
    %1573 = vmatprep.subr.mxu0 0.0
    %1574 = vmatpush1.msra.mxu0 0.0
    %1575 = vmatprep.subr.mxu0 0.0
    %1576 = vmatpush1.msra.mxu0 0.0
    %1577 = vmatprep.subr.mxu0 0.0
    %1578 = vmatpush1.msra.mxu0 0.0
    %1579 = vmatprep.subr.mxu0 0.0
    %1580 = vmatpush1.msra.mxu0 0.0
    %1581 = vmatprep.subr.mxu0 0.0
    %1582 = vmatpush1.msra.mxu0 0.0
    %1583 = vmatprep.subr.mxu0 0.0
    %1584 = vmatpush1.msra.mxu0 0.0
    %1585 = vmatprep.subr.mxu0 0.0
    %1586 = vmatpush1.msra.mxu0 0.0
    %1587 = vmatprep.subr.mxu0 0.0
    %1588 = vmatpush1.msra.mxu0 0.0
    %1589 = vmatprep.subr.mxu0 0.0
    %1590 = vmatpush1.msra.mxu0 0.0
    %1591 = vmatprep.subr.mxu0 0.0
    %1592 = vmatpush1.msra.mxu0 0.0
    %1593 = vmatprep.subr.mxu0 0.0
    %1594 = vmatpush1.msra.mxu0 0.0
    %1595 = vmatprep.subr.mxu0 0.0
    %1596 = vmatpush1.msra.mxu0 0.0
    %1597 = vmatprep.subr.mxu0 0.0
    %1598 = vmatpush1.msra.mxu0 0.0
    %1599 = vmatprep.subr.mxu0 0.0
    %1600 = vmatpush1.msra.mxu0 0.0
    %1601 = vmatprep.subr.mxu0 0.0
    %1602 = vmatpush1.msra.mxu0 0.0
    %1603 = vmatprep.subr.mxu0 0.0
    %1604 = vmatpush1.msra.mxu0 0.0
    %1605 = vmatprep.subr.mxu0 0.0
    %1606 = vmatpush1.msra.mxu0 0.0
    %1607 = vmatprep.subr.mxu0 0.0
    %1608 = vmatpush1.msra.mxu0 0.0
    %1609 = vmatprep.subr.mxu0 0.0
    %1610 = vmatpush1.msra.mxu0 0.0
    %1611 = vmatprep.subr.mxu0 0.0
    %1612 = vmatpush1.msra.mxu0 0.0
    %1613 = vmatprep.subr.mxu0 0.0
    %1614 = vmatpush1.msra.mxu0 0.0
    %1615 = vmatprep.subr.mxu0 0.0
    %1616 = vmatpush1.msra.mxu0 0.0
    %1617 = vmatprep.subr.mxu0 0.0
    %1618 = vmatpush1.msra.mxu0 0.0
    %1619 = vmatprep.mubr.f32.mxu0 0.0
    %1620 = vmatmul.mubr.f32.gmra.mrb[0].mxu0 %v1553
    %v1621 = vpop.f32.mrb[0].mxu0
    %v1622 = vadd.f32 0.0, %v1621
    %v1623 = vpop.f32.mrb[0].mxu0
    %1624 = vdwg.mxu0
    %v1626 = vrot.slane %v1622, 4
    %v1627 = vrot.slane %v1622, 5
    %v1630 = vadd.f32 %v476, %v1626
    %v1631 = vadd.f32 %v481, %v1627
    %v1632 = vxor.u32 %v1630, 2147483648
    %v1633 = vxor.u32 %v1631, 2147483648
    %v1634 = vmul.f32 %v1632, 1.442695
    %v1635 = vpow.pop %v1634
    %v1636 = vmul.f32 %v1633, 1.442695
    %v1637 = vpow.pop %v1636
    %v1638 = vadd.f32 %v1635, 1.0
    %v1639 = vadd.f32 %v1637, 1.0
    %v1640 = vrcp.pop %v1638
    %v1641 = vmul.f32 1.0, %v1640
    %v1642 = vrcp.pop %v1639
    %v1643 = vmul.f32 1.0, %v1642
    %v1644 = vadd.f32 %v1622, %v738
    %v1646 = vrot.slane %v1644, 4
    %v1647 = vrot.slane %v1644, 5
    %1648 = vrot.lane.b32.xlu0 %v1646, 64
    %v1649 = vpop.permute.xlu0 %1648
    %1650 = vrot.lane.b32.xlu0 %v1647, 64
    %v1651 = vpop.permute.xlu0 %1650
    %v1654 = vmul.f32 %v1641, %v1649
    %v1655 = vmul.f32 %v1643, %v1651
    %1658 = vrot.lane.b32.xlu0 %v1654, 64
    %v1659 = vpop.permute.xlu0 %1658
    %1660 = vrot.lane.b32.xlu0 %v1655, 64
    %v1661 = vpop.permute.xlu0 %1660
    %v1664 = vadd.f32 %v476, %v1659
    %v1665 = vadd.f32 %v481, %v1661
    %v1666 = vtanh.pop %v1664
    %v1667 = vtanh.pop %v1665
    %v1668 = vsub.f32 1.0, %v1641
    %v1669 = vsub.f32 1.0, %v1643
    %1672 = vrot.lane.b32.xlu0 %v1666, 96
    %v1673 = vpop.permute.xlu0 %1672
    %1674 = vrot.lane.b32.xlu0 %v1667, 96
    %v1675 = vpop.permute.xlu0 %1674
    %v1678 = vmul.f32 %v1668, %v1673
    %v1679 = vmul.f32 %v1669, %v1675
    %v1680 = vrot.slane %v1397, 4
    %v1681 = vrot.slane %v1397, 5
    %1682 = vrot.lane.b32.xlu0 %v1680, 32
    %v1683 = vpop.permute.xlu0 %1682
    %1684 = vrot.lane.b32.xlu0 %v1681, 32
    %v1685 = vpop.permute.xlu0 %1684
    %v1688 = vmul.f32 %v1641, %v1683
    %v1689 = vmul.f32 %v1643, %v1685
    %v1690 = vadd.f32 %v1678, %v1688
    %v1691 = vadd.f32 %v1679, %v1689
    %v1692 = vsub.f32 %v1690, %v1683
    %v1693 = vsub.f32 %v1691, %v1685
    %v1696 = vrot.slane %v1692, 4
    %v1697 = vrot.slane %v1693, 3
    %v1698 = vsel %vm640, %v1697, %v1696
    %1699 = vrot.lane.b32.xlu0 %v1698, 96
    %v1700 = vpop.permute.xlu0 %1699
    %v1702 = vmul.f32 %v289, %v1700
    %v1703 = vadd.f32 %v1397, %v1702
    %v1704 = vmul.f32 %v289, %v1703
    %v1706 = vsel %vm316, %v1550, 0
    %1708 = vmatprep.subr.mxu0 0.0
    %1709 = vmatpush1.msra.mxu0 %v484
    %1710 = vmatprep.subr.mxu0 0.0
    %1711 = vmatpush1.msra.mxu0 %v485
    %1712 = vmatprep.subr.mxu0 0.0
    %1713 = vmatpush1.msra.mxu0 %v486
    %1714 = vmatprep.subr.mxu0 0.0
    %1715 = vmatpush1.msra.mxu0 %v487
    %1716 = vmatprep.subr.mxu0 0.0
    %1717 = vmatpush1.msra.mxu0 0.0
    %1718 = vmatprep.subr.mxu0 0.0
    %1719 = vmatpush1.msra.mxu0 0.0
    %1720 = vmatprep.subr.mxu0 0.0
    %1721 = vmatpush1.msra.mxu0 0.0
    %1722 = vmatprep.subr.mxu0 0.0
    %1723 = vmatpush1.msra.mxu0 0.0
    %1724 = vmatprep.subr.mxu0 0.0
    %1725 = vmatpush1.msra.mxu0 0.0
    %1726 = vmatprep.subr.mxu0 0.0
    %1727 = vmatpush1.msra.mxu0 0.0
    %1728 = vmatprep.subr.mxu0 0.0
    %1729 = vmatpush1.msra.mxu0 0.0
    %1730 = vmatprep.subr.mxu0 0.0
    %1731 = vmatpush1.msra.mxu0 0.0
    %1732 = vmatprep.subr.mxu0 0.0
    %1733 = vmatpush1.msra.mxu0 0.0
    %1734 = vmatprep.subr.mxu0 0.0
    %1735 = vmatpush1.msra.mxu0 0.0
    %1736 = vmatprep.subr.mxu0 0.0
    %1737 = vmatpush1.msra.mxu0 0.0
    %1738 = vmatprep.subr.mxu0 0.0
    %1739 = vmatpush1.msra.mxu0 0.0
    %1740 = vmatprep.subr.mxu0 0.0
    %1741 = vmatpush1.msra.mxu0 0.0
    %1742 = vmatprep.subr.mxu0 0.0
    %1743 = vmatpush1.msra.mxu0 0.0
    %1744 = vmatprep.subr.mxu0 0.0
    %1745 = vmatpush1.msra.mxu0 0.0
    %1746 = vmatprep.subr.mxu0 0.0
    %1747 = vmatpush1.msra.mxu0 0.0
    %1748 = vmatprep.subr.mxu0 0.0
    %1749 = vmatpush1.msra.mxu0 0.0
    %1750 = vmatprep.subr.mxu0 0.0
    %1751 = vmatpush1.msra.mxu0 0.0
    %1752 = vmatprep.subr.mxu0 0.0
    %1753 = vmatpush1.msra.mxu0 0.0
    %1754 = vmatprep.subr.mxu0 0.0
    %1755 = vmatpush1.msra.mxu0 0.0
    %1756 = vmatprep.subr.mxu0 0.0
    %1757 = vmatpush1.msra.mxu0 0.0
    %1758 = vmatprep.subr.mxu0 0.0
    %1759 = vmatpush1.msra.mxu0 0.0
    %1760 = vmatprep.subr.mxu0 0.0
    %1761 = vmatpush1.msra.mxu0 0.0
    %1762 = vmatprep.subr.mxu0 0.0
    %1763 = vmatpush1.msra.mxu0 0.0
    %1764 = vmatprep.subr.mxu0 0.0
    %1765 = vmatpush1.msra.mxu0 0.0
    %1766 = vmatprep.subr.mxu0 0.0
    %1767 = vmatpush1.msra.mxu0 0.0
    %1768 = vmatprep.subr.mxu0 0.0
    %1769 = vmatpush1.msra.mxu0 0.0
    %1770 = vmatprep.subr.mxu0 0.0
    %1771 = vmatpush1.msra.mxu0 0.0
    %1772 = vmatprep.mubr.f32.mxu0 0.0
    %1773 = vmatmul.mubr.f32.gmra.mrb[0].mxu0 %v1706
    %v1774 = vpop.f32.mrb[0].mxu0
    %v1775 = vadd.f32 0.0, %v1774
    %v1776 = vpop.f32.mrb[0].mxu0
    %1777 = vdwg.mxu0
    %v1779 = vrot.slane %v1775, 4
    %v1780 = vrot.slane %v1775, 5
    %v1783 = vadd.f32 %v390, %v1779
    %v1784 = vadd.f32 %v395, %v1780
    %v1785 = vxor.u32 %v1783, 2147483648
    %v1786 = vxor.u32 %v1784, 2147483648
    %v1787 = vmul.f32 %v1785, 1.442695
    %v1788 = vpow.pop %v1787
    %v1789 = vmul.f32 %v1786, 1.442695
    %v1790 = vpow.pop %v1789
    %v1791 = vadd.f32 %v1788, 1.0
    %v1792 = vadd.f32 %v1790, 1.0
    %v1793 = vrcp.pop %v1791
    %v1794 = vmul.f32 1.0, %v1793
    %v1795 = vrcp.pop %v1792
    %v1796 = vmul.f32 1.0, %v1795
    %v1797 = vadd.f32 %v1775, %v596
    %v1799 = vrot.slane %v1797, 4
    %v1800 = vrot.slane %v1797, 5
    %1801 = vrot.lane.b32.xlu0 %v1799, 64
    %v1802 = vpop.permute.xlu0 %1801
    %1803 = vrot.lane.b32.xlu0 %v1800, 64
    %v1804 = vpop.permute.xlu0 %1803
    %v1807 = vmul.f32 %v1794, %v1802
    %v1808 = vmul.f32 %v1796, %v1804
    %1811 = vrot.lane.b32.xlu0 %v1807, 64
    %v1812 = vpop.permute.xlu0 %1811
    %1813 = vrot.lane.b32.xlu0 %v1808, 64
    %v1814 = vpop.permute.xlu0 %1813
    %v1817 = vadd.f32 %v390, %v1812
    %v1818 = vadd.f32 %v395, %v1814
    %v1819 = vtanh.pop %v1817
    %v1820 = vtanh.pop %v1818
    %v1821 = vsub.f32 1.0, %v1794
    %v1822 = vsub.f32 1.0, %v1796
    %1825 = vrot.lane.b32.xlu0 %v1819, 96
    %v1826 = vpop.permute.xlu0 %1825
    %1827 = vrot.lane.b32.xlu0 %v1820, 96
    %v1828 = vpop.permute.xlu0 %1827
    %v1831 = vmul.f32 %v1821, %v1826
    %v1832 = vmul.f32 %v1822, %v1828
    %v1833 = vrot.slane %v1550, 4
    %v1834 = vrot.slane %v1550, 5
    %1835 = vrot.lane.b32.xlu0 %v1833, 32
    %v1836 = vpop.permute.xlu0 %1835
    %1837 = vrot.lane.b32.xlu0 %v1834, 32
    %v1838 = vpop.permute.xlu0 %1837
    %v1841 = vmul.f32 %v1794, %v1836
    %v1842 = vmul.f32 %v1796, %v1838
    %v1843 = vadd.f32 %v1831, %v1841
    %v1844 = vadd.f32 %v1832, %v1842
    %v1845 = vsub.f32 %v1843, %v1836
    %v1846 = vsub.f32 %v1844, %v1838
    %v1849 = vrot.slane %v1845, 4
    %v1850 = vrot.slane %v1846, 3
    %v1851 = vsel %vm640, %v1850, %v1849
    %1852 = vrot.lane.b32.xlu0 %v1851, 96
    %v1853 = vpop.permute.xlu0 %1852
    %v1855 = vmul.f32 %v289, %v1853
    %v1856 = vadd.f32 %v1550, %v1855
    %v1857 = vmul.f32 %v289, %v1856
    %v1859 = vsel %vm316, %v1703, 0
    %1861 = vmatprep.subr.mxu0 0.0
    %1862 = vmatpush1.msra.mxu0 %v488
    %1863 = vmatprep.subr.mxu0 0.0
    %1864 = vmatpush1.msra.mxu0 %v489
    %1865 = vmatprep.subr.mxu0 0.0
    %1866 = vmatpush1.msra.mxu0 %v490
    %1867 = vmatprep.subr.mxu0 0.0
    %1868 = vmatpush1.msra.mxu0 %v491
    %1869 = vmatprep.subr.mxu0 0.0
    %1870 = vmatpush1.msra.mxu0 0.0
    %1871 = vmatprep.subr.mxu0 0.0
    %1872 = vmatpush1.msra.mxu0 0.0
    %1873 = vmatprep.subr.mxu0 0.0
    %1874 = vmatpush1.msra.mxu0 0.0
    %1875 = vmatprep.subr.mxu0 0.0
    %1876 = vmatpush1.msra.mxu0 0.0
    %1877 = vmatprep.subr.mxu0 0.0
    %1878 = vmatpush1.msra.mxu0 0.0
    %1879 = vmatprep.subr.mxu0 0.0
    %1880 = vmatpush1.msra.mxu0 0.0
    %1881 = vmatprep.subr.mxu0 0.0
    %1882 = vmatpush1.msra.mxu0 0.0
    %1883 = vmatprep.subr.mxu0 0.0
    %1884 = vmatpush1.msra.mxu0 0.0
    %1885 = vmatprep.subr.mxu0 0.0
    %1886 = vmatpush1.msra.mxu0 0.0
    %1887 = vmatprep.subr.mxu0 0.0
    %1888 = vmatpush1.msra.mxu0 0.0
    %1889 = vmatprep.subr.mxu0 0.0
    %1890 = vmatpush1.msra.mxu0 0.0
    %1891 = vmatprep.subr.mxu0 0.0
    %1892 = vmatpush1.msra.mxu0 0.0
    %1893 = vmatprep.subr.mxu0 0.0
    %1894 = vmatpush1.msra.mxu0 0.0
    %1895 = vmatprep.subr.mxu0 0.0
    %1896 = vmatpush1.msra.mxu0 0.0
    %1897 = vmatprep.subr.mxu0 0.0
    %1898 = vmatpush1.msra.mxu0 0.0
    %1899 = vmatprep.subr.mxu0 0.0
    %1900 = vmatpush1.msra.mxu0 0.0
    %1901 = vmatprep.subr.mxu0 0.0
    %1902 = vmatpush1.msra.mxu0 0.0
    %1903 = vmatprep.subr.mxu0 0.0
    %1904 = vmatpush1.msra.mxu0 0.0
    %1905 = vmatprep.subr.mxu0 0.0
    %1906 = vmatpush1.msra.mxu0 0.0
    %1907 = vmatprep.subr.mxu0 0.0
    %1908 = vmatpush1.msra.mxu0 0.0
    %1909 = vmatprep.subr.mxu0 0.0
    %1910 = vmatpush1.msra.mxu0 0.0
    %1911 = vmatprep.subr.mxu0 0.0
    %1912 = vmatpush1.msra.mxu0 0.0
    %1913 = vmatprep.subr.mxu0 0.0
    %1914 = vmatpush1.msra.mxu0 0.0
    %1915 = vmatprep.subr.mxu0 0.0
    %1916 = vmatpush1.msra.mxu0 0.0
    %1917 = vmatprep.subr.mxu0 0.0
    %1918 = vmatpush1.msra.mxu0 0.0
    %1919 = vmatprep.subr.mxu0 0.0
    %1920 = vmatpush1.msra.mxu0 0.0
    %1921 = vmatprep.subr.mxu0 0.0
    %1922 = vmatpush1.msra.mxu0 0.0
    %1923 = vmatprep.subr.mxu0 0.0
    %1924 = vmatpush1.msra.mxu0 0.0
    %1925 = vmatprep.mubr.f32.mxu0 0.0
    %1926 = vmatmul.mubr.f32.gmra.mrb[0].mxu0 %v1859
    %v1927 = vpop.f32.mrb[0].mxu0
    %v1928 = vadd.f32 0.0, %v1927
    %v1929 = vpop.f32.mrb[0].mxu0
    %1930 = vdwg.mxu0
    %v1932 = vrot.slane %v1928, 5
    %v1933 = vrot.slane %v1928, 6
    %v1936 = vadd.f32 %v476, %v1932
    %v1937 = vadd.f32 %v481, %v1933
    %v1938 = vxor.u32 %v1936, 2147483648
    %v1939 = vxor.u32 %v1937, 2147483648
    %v1940 = vmul.f32 %v1938, 1.442695
    %v1941 = vpow.pop %v1940
    %v1942 = vmul.f32 %v1939, 1.442695
    %v1943 = vpow.pop %v1942
    %v1944 = vadd.f32 %v1941, 1.0
    %v1945 = vadd.f32 %v1943, 1.0
    %v1946 = vrcp.pop %v1944
    %v1947 = vmul.f32 1.0, %v1946
    %v1948 = vrcp.pop %v1945
    %v1949 = vmul.f32 1.0, %v1948
    %v1950 = vadd.f32 %v1928, %v738
    %v1952 = vrot.slane %v1950, 5
    %v1953 = vrot.slane %v1950, 6
    %1954 = vrot.lane.b32.xlu0 %v1952, 64
    %v1955 = vpop.permute.xlu0 %1954
    %1956 = vrot.lane.b32.xlu0 %v1953, 64
    %v1957 = vpop.permute.xlu0 %1956
    %v1960 = vmul.f32 %v1947, %v1955
    %v1961 = vmul.f32 %v1949, %v1957
    %1964 = vrot.lane.b32.xlu0 %v1960, 64
    %v1965 = vpop.permute.xlu0 %1964
    %1966 = vrot.lane.b32.xlu0 %v1961, 64
    %v1967 = vpop.permute.xlu0 %1966
    %v1970 = vadd.f32 %v476, %v1965
    %v1971 = vadd.f32 %v481, %v1967
    %v1972 = vtanh.pop %v1970
    %v1973 = vtanh.pop %v1971
    %v1974 = vsub.f32 1.0, %v1947
    %v1975 = vsub.f32 1.0, %v1949
    %1978 = vrot.lane.b32.xlu0 %v1972, 96
    %v1979 = vpop.permute.xlu0 %1978
    %1980 = vrot.lane.b32.xlu0 %v1973, 96
    %v1981 = vpop.permute.xlu0 %1980
    %v1984 = vmul.f32 %v1974, %v1979
    %v1985 = vmul.f32 %v1975, %v1981
    %v1986 = vrot.slane %v1703, 5
    %v1987 = vrot.slane %v1703, 6
    %1988 = vrot.lane.b32.xlu0 %v1986, 32
    %v1989 = vpop.permute.xlu0 %1988
    %1990 = vrot.lane.b32.xlu0 %v1987, 32
    %v1991 = vpop.permute.xlu0 %1990
    %v1994 = vmul.f32 %v1947, %v1989
    %v1995 = vmul.f32 %v1949, %v1991
    %v1996 = vadd.f32 %v1984, %v1994
    %v1997 = vadd.f32 %v1985, %v1995
    %v1998 = vsub.f32 %v1996, %v1989
    %v1999 = vsub.f32 %v1997, %v1991
    %v2002 = vrot.slane %v1998, 3
    %v2003 = vrot.slane %v1999, 2
    %v2004 = vsel %vm640, %v2003, %v2002
    %2005 = vrot.lane.b32.xlu0 %v2004, 96
    %v2006 = vpop.permute.xlu0 %2005
    %v2008 = vmul.f32 %v285, %v2006
    %v2009 = vadd.f32 %v1703, %v2008
    %v2010 = vmul.f32 %v285, %v2009
    %v2012 = vsel %vm316, %v1856, 0
    %2014 = vmatprep.subr.mxu0 0.0
    %2015 = vmatpush1.msra.mxu0 %v484
    %2016 = vmatprep.subr.mxu0 0.0
    %2017 = vmatpush1.msra.mxu0 %v485
    %2018 = vmatprep.subr.mxu0 0.0
    %2019 = vmatpush1.msra.mxu0 %v486
    %2020 = vmatprep.subr.mxu0 0.0
    %2021 = vmatpush1.msra.mxu0 %v487
    %2022 = vmatprep.subr.mxu0 0.0
    %2023 = vmatpush1.msra.mxu0 0.0
    %2024 = vmatprep.subr.mxu0 0.0
    %2025 = vmatpush1.msra.mxu0 0.0
    %2026 = vmatprep.subr.mxu0 0.0
    %2027 = vmatpush1.msra.mxu0 0.0
    %2028 = vmatprep.subr.mxu0 0.0
    %2029 = vmatpush1.msra.mxu0 0.0
    %2030 = vmatprep.subr.mxu0 0.0
    %2031 = vmatpush1.msra.mxu0 0.0
    %2032 = vmatprep.subr.mxu0 0.0
    %2033 = vmatpush1.msra.mxu0 0.0
    %2034 = vmatprep.subr.mxu0 0.0
    %2035 = vmatpush1.msra.mxu0 0.0
    %2036 = vmatprep.subr.mxu0 0.0
    %2037 = vmatpush1.msra.mxu0 0.0
    %2038 = vmatprep.subr.mxu0 0.0
    %2039 = vmatpush1.msra.mxu0 0.0
    %2040 = vmatprep.subr.mxu0 0.0
    %2041 = vmatpush1.msra.mxu0 0.0
    %2042 = vmatprep.subr.mxu0 0.0
    %2043 = vmatpush1.msra.mxu0 0.0
    %2044 = vmatprep.subr.mxu0 0.0
    %2045 = vmatpush1.msra.mxu0 0.0
    %2046 = vmatprep.subr.mxu0 0.0
    %2047 = vmatpush1.msra.mxu0 0.0
    %2048 = vmatprep.subr.mxu0 0.0
    %2049 = vmatpush1.msra.mxu0 0.0
    %2050 = vmatprep.subr.mxu0 0.0
    %2051 = vmatpush1.msra.mxu0 0.0
    %2052 = vmatprep.subr.mxu0 0.0
    %2053 = vmatpush1.msra.mxu0 0.0
    %2054 = vmatprep.subr.mxu0 0.0
    %2055 = vmatpush1.msra.mxu0 0.0
    %2056 = vmatprep.subr.mxu0 0.0
    %2057 = vmatpush1.msra.mxu0 0.0
    %2058 = vmatprep.subr.mxu0 0.0
    %2059 = vmatpush1.msra.mxu0 0.0
    %2060 = vmatprep.subr.mxu0 0.0
    %2061 = vmatpush1.msra.mxu0 0.0
    %2062 = vmatprep.subr.mxu0 0.0
    %2063 = vmatpush1.msra.mxu0 0.0
    %2064 = vmatprep.subr.mxu0 0.0
    %2065 = vmatpush1.msra.mxu0 0.0
    %2066 = vmatprep.subr.mxu0 0.0
    %2067 = vmatpush1.msra.mxu0 0.0
    %2068 = vmatprep.subr.mxu0 0.0
    %2069 = vmatpush1.msra.mxu0 0.0
    %2070 = vmatprep.subr.mxu0 0.0
    %2071 = vmatpush1.msra.mxu0 0.0
    %2072 = vmatprep.subr.mxu0 0.0
    %2073 = vmatpush1.msra.mxu0 0.0
    %2074 = vmatprep.subr.mxu0 0.0
    %2075 = vmatpush1.msra.mxu0 0.0
    %2076 = vmatprep.subr.mxu0 0.0
    %2077 = vmatpush1.msra.mxu0 0.0
    %2078 = vmatprep.mubr.f32.mxu0 0.0
    %2079 = vmatmul.mubr.f32.gmra.mrb[0].mxu0 %v2012
    %v2080 = vpop.f32.mrb[0].mxu0
    %v2081 = vadd.f32 0.0, %v2080
    %v2082 = vpop.f32.mrb[0].mxu0
    %2083 = vdwg.mxu0
    %v2085 = vrot.slane %v2081, 3
    %v2086 = vrot.slane %v2081, 4
    %v2089 = vadd.f32 %v390, %v2085
    %v2090 = vadd.f32 %v395, %v2086
    %v2091 = vxor.u32 %v2089, 2147483648
    %v2092 = vxor.u32 %v2090, 2147483648
    %v2093 = vmul.f32 %v2091, 1.442695
    %v2094 = vpow.pop %v2093
    %v2095 = vmul.f32 %v2092, 1.442695
    %v2096 = vpow.pop %v2095
    %v2097 = vadd.f32 %v2094, 1.0
    %v2098 = vadd.f32 %v2096, 1.0
    %v2099 = vrcp.pop %v2097
    %v2100 = vmul.f32 1.0, %v2099
    %v2101 = vrcp.pop %v2098
    %v2102 = vmul.f32 1.0, %v2101
    %v2103 = vadd.f32 %v2081, %v596
    %v2105 = vrot.slane %v2103, 3
    %v2106 = vrot.slane %v2103, 4
    %2107 = vrot.lane.b32.xlu0 %v2105, 64
    %v2108 = vpop.permute.xlu0 %2107
    %2109 = vrot.lane.b32.xlu0 %v2106, 64
    %v2110 = vpop.permute.xlu0 %2109
    %v2113 = vmul.f32 %v2100, %v2108
    %v2114 = vmul.f32 %v2102, %v2110
    %2117 = vrot.lane.b32.xlu0 %v2113, 64
    %v2118 = vpop.permute.xlu0 %2117
    %2119 = vrot.lane.b32.xlu0 %v2114, 64
    %v2120 = vpop.permute.xlu0 %2119
    %v2123 = vadd.f32 %v390, %v2118
    %v2124 = vadd.f32 %v395, %v2120
    %v2125 = vtanh.pop %v2123
    %v2126 = vtanh.pop %v2124
    %v2127 = vsub.f32 1.0, %v2100
    %v2128 = vsub.f32 1.0, %v2102
    %2131 = vrot.lane.b32.xlu0 %v2125, 96
    %v2132 = vpop.permute.xlu0 %2131
    %2133 = vrot.lane.b32.xlu0 %v2126, 96
    %v2134 = vpop.permute.xlu0 %2133
    %v2137 = vmul.f32 %v2127, %v2132
    %v2138 = vmul.f32 %v2128, %v2134
    %v2139 = vrot.slane %v1856, 3
    %v2140 = vrot.slane %v1856, 4
    %2141 = vrot.lane.b32.xlu0 %v2139, 32
    %v2142 = vpop.permute.xlu0 %2141
    %2143 = vrot.lane.b32.xlu0 %v2140, 32
    %v2144 = vpop.permute.xlu0 %2143
    %v2147 = vmul.f32 %v2100, %v2142
    %v2148 = vmul.f32 %v2102, %v2144
    %v2149 = vadd.f32 %v2137, %v2147
    %v2150 = vadd.f32 %v2138, %v2148
    %v2151 = vsub.f32 %v2149, %v2142
    %v2152 = vsub.f32 %v2150, %v2144
    %v2155 = vrot.slane %v2151, 5
    %v2156 = vrot.slane %v2152, 4
    %v2157 = vsel %vm640, %v2156, %v2155
    %2158 = vrot.lane.b32.xlu0 %v2157, 96
    %v2159 = vpop.permute.xlu0 %2158
    %v2161 = vmul.f32 %v293, %v2159
    %v2162 = vadd.f32 %v1856, %v2161
    %v2163 = vmul.f32 %v293, %v2162
    %v2165 = vsel %vm316, %v2009, 0
    %2167 = vmatprep.subr.mxu0 0.0
    %2168 = vmatpush1.msra.mxu0 %v488
    %2169 = vmatprep.subr.mxu0 0.0
    %2170 = vmatpush1.msra.mxu0 %v489
    %2171 = vmatprep.subr.mxu0 0.0
    %2172 = vmatpush1.msra.mxu0 %v490
    %2173 = vmatprep.subr.mxu0 0.0
    %2174 = vmatpush1.msra.mxu0 %v491
    %2175 = vmatprep.subr.mxu0 0.0
    %2176 = vmatpush1.msra.mxu0 0.0
    %2177 = vmatprep.subr.mxu0 0.0
    %2178 = vmatpush1.msra.mxu0 0.0
    %2179 = vmatprep.subr.mxu0 0.0
    %2180 = vmatpush1.msra.mxu0 0.0
    %2181 = vmatprep.subr.mxu0 0.0
    %2182 = vmatpush1.msra.mxu0 0.0
    %2183 = vmatprep.subr.mxu0 0.0
    %2184 = vmatpush1.msra.mxu0 0.0
    %2185 = vmatprep.subr.mxu0 0.0
    %2186 = vmatpush1.msra.mxu0 0.0
    %2187 = vmatprep.subr.mxu0 0.0
    %2188 = vmatpush1.msra.mxu0 0.0
    %2189 = vmatprep.subr.mxu0 0.0
    %2190 = vmatpush1.msra.mxu0 0.0
    %2191 = vmatprep.subr.mxu0 0.0
    %2192 = vmatpush1.msra.mxu0 0.0
    %2193 = vmatprep.subr.mxu0 0.0
    %2194 = vmatpush1.msra.mxu0 0.0
    %2195 = vmatprep.subr.mxu0 0.0
    %2196 = vmatpush1.msra.mxu0 0.0
    %2197 = vmatprep.subr.mxu0 0.0
    %2198 = vmatpush1.msra.mxu0 0.0
    %2199 = vmatprep.subr.mxu0 0.0
    %2200 = vmatpush1.msra.mxu0 0.0
    %2201 = vmatprep.subr.mxu0 0.0
    %2202 = vmatpush1.msra.mxu0 0.0
    %2203 = vmatprep.subr.mxu0 0.0
    %2204 = vmatpush1.msra.mxu0 0.0
    %2205 = vmatprep.subr.mxu0 0.0
    %2206 = vmatpush1.msra.mxu0 0.0
    %2207 = vmatprep.subr.mxu0 0.0
    %2208 = vmatpush1.msra.mxu0 0.0
    %2209 = vmatprep.subr.mxu0 0.0
    %2210 = vmatpush1.msra.mxu0 0.0
    %2211 = vmatprep.subr.mxu0 0.0
    %2212 = vmatpush1.msra.mxu0 0.0
    %2213 = vmatprep.subr.mxu0 0.0
    %2214 = vmatpush1.msra.mxu0 0.0
    %2215 = vmatprep.subr.mxu0 0.0
    %2216 = vmatpush1.msra.mxu0 0.0
    %2217 = vmatprep.subr.mxu0 0.0
    %2218 = vmatpush1.msra.mxu0 0.0
    %2219 = vmatprep.subr.mxu0 0.0
    %2220 = vmatpush1.msra.mxu0 0.0
    %2221 = vmatprep.subr.mxu0 0.0
    %2222 = vmatpush1.msra.mxu0 0.0
    %2223 = vmatprep.subr.mxu0 0.0
    %2224 = vmatpush1.msra.mxu0 0.0
    %2225 = vmatprep.subr.mxu0 0.0
    %2226 = vmatpush1.msra.mxu0 0.0
    %2227 = vmatprep.subr.mxu0 0.0
    %2228 = vmatpush1.msra.mxu0 0.0
    %2229 = vmatprep.subr.mxu0 0.0
    %2230 = vmatpush1.msra.mxu0 0.0
    %2231 = vmatprep.mubr.f32.mxu0 0.0
    %2232 = vmatmul.mubr.f32.gmra.mrb[0].mxu0 %v2165
    %v2233 = vpop.f32.mrb[0].mxu0
    %v2234 = vadd.f32 0.0, %v2233
    %v2235 = vpop.f32.mrb[0].mxu0
    %2236 = vdwg.mxu0
    %v2238 = vrot.slane %v2234, 6
    %v2239 = vrot.slane %v2234, 7
    %v2242 = vadd.f32 %v476, %v2238
    %v2243 = vadd.f32 %v481, %v2239
    %v2244 = vxor.u32 %v2242, 2147483648
    %v2245 = vxor.u32 %v2243, 2147483648
    %v2246 = vmul.f32 %v2244, 1.442695
    %v2247 = vpow.pop %v2246
    %v2248 = vmul.f32 %v2245, 1.442695
    %v2249 = vpow.pop %v2248
    %v2250 = vadd.f32 %v2247, 1.0
    %v2251 = vadd.f32 %v2249, 1.0
    %v2252 = vrcp.pop %v2250
    %v2253 = vmul.f32 1.0, %v2252
    %v2254 = vrcp.pop %v2251
    %v2255 = vmul.f32 1.0, %v2254
    %v2256 = vadd.f32 %v2234, %v738
    %v2258 = vrot.slane %v2256, 6
    %v2259 = vrot.slane %v2256, 7
    %2260 = vrot.lane.b32.xlu0 %v2258, 64
    %v2261 = vpop.permute.xlu0 %2260
    %2262 = vrot.lane.b32.xlu0 %v2259, 64
    %v2263 = vpop.permute.xlu0 %2262
    %v2266 = vmul.f32 %v2253, %v2261
    %v2267 = vmul.f32 %v2255, %v2263
    %2270 = vrot.lane.b32.xlu0 %v2266, 64
    %v2271 = vpop.permute.xlu0 %2270
    %2272 = vrot.lane.b32.xlu0 %v2267, 64
    %v2273 = vpop.permute.xlu0 %2272
    %v2276 = vadd.f32 %v476, %v2271
    %v2277 = vadd.f32 %v481, %v2273
    %v2278 = vtanh.pop %v2276
    %v2279 = vtanh.pop %v2277
    %v2280 = vsub.f32 1.0, %v2253
    %v2281 = vsub.f32 1.0, %v2255
    %2284 = vrot.lane.b32.xlu0 %v2278, 96
    %v2285 = vpop.permute.xlu0 %2284
    %2286 = vrot.lane.b32.xlu0 %v2279, 96
    %v2287 = vpop.permute.xlu0 %2286
    %v2290 = vmul.f32 %v2280, %v2285
    %v2291 = vmul.f32 %v2281, %v2287
    %v2292 = vrot.slane %v2009, 6
    %v2293 = vrot.slane %v2009, 7
    %2294 = vrot.lane.b32.xlu0 %v2292, 32
    %v2295 = vpop.permute.xlu0 %2294
    %2296 = vrot.lane.b32.xlu0 %v2293, 32
    %v2297 = vpop.permute.xlu0 %2296
    %v2300 = vmul.f32 %v2253, %v2295
    %v2301 = vmul.f32 %v2255, %v2297
    %v2302 = vadd.f32 %v2290, %v2300
    %v2303 = vadd.f32 %v2291, %v2301
    %v2304 = vsub.f32 %v2302, %v2295
    %v2305 = vsub.f32 %v2303, %v2297
    %v2308 = vrot.slane %v2304, 2
    %v2309 = vrot.slane %v2305, 1
    %v2310 = vsel %vm640, %v2309, %v2308
    %2311 = vrot.lane.b32.xlu0 %v2310, 96
    %v2312 = vpop.permute.xlu0 %2311
    %v2314 = vmul.f32 %v281, %v2312
    %v2315 = vadd.f32 %v2009, %v2314
    %v2316 = vmul.f32 %v281, %v2315
    %v2318 = vsel %vm316, %v2162, 0
    %2320 = vmatprep.subr.mxu0 0.0
    %2321 = vmatpush1.msra.mxu0 %v484
    %2322 = vmatprep.subr.mxu0 0.0
    %2323 = vmatpush1.msra.mxu0 %v485
    %2324 = vmatprep.subr.mxu0 0.0
    %2325 = vmatpush1.msra.mxu0 %v486
    %2326 = vmatprep.subr.mxu0 0.0
    %2327 = vmatpush1.msra.mxu0 %v487
    %2328 = vmatprep.subr.mxu0 0.0
    %2329 = vmatpush1.msra.mxu0 0.0
    %2330 = vmatprep.subr.mxu0 0.0
    %2331 = vmatpush1.msra.mxu0 0.0
    %2332 = vmatprep.subr.mxu0 0.0
    %2333 = vmatpush1.msra.mxu0 0.0
    %2334 = vmatprep.subr.mxu0 0.0
    %2335 = vmatpush1.msra.mxu0 0.0
    %2336 = vmatprep.subr.mxu0 0.0
    %2337 = vmatpush1.msra.mxu0 0.0
    %2338 = vmatprep.subr.mxu0 0.0
    %2339 = vmatpush1.msra.mxu0 0.0
    %2340 = vmatprep.subr.mxu0 0.0
    %2341 = vmatpush1.msra.mxu0 0.0
    %2342 = vmatprep.subr.mxu0 0.0
    %2343 = vmatpush1.msra.mxu0 0.0
    %2344 = vmatprep.subr.mxu0 0.0
    %2345 = vmatpush1.msra.mxu0 0.0
    %2346 = vmatprep.subr.mxu0 0.0
    %2347 = vmatpush1.msra.mxu0 0.0
    %2348 = vmatprep.subr.mxu0 0.0
    %2349 = vmatpush1.msra.mxu0 0.0
    %2350 = vmatprep.subr.mxu0 0.0
    %2351 = vmatpush1.msra.mxu0 0.0
    %2352 = vmatprep.subr.mxu0 0.0
    %2353 = vmatpush1.msra.mxu0 0.0
    %2354 = vmatprep.subr.mxu0 0.0
    %2355 = vmatpush1.msra.mxu0 0.0
    %2356 = vmatprep.subr.mxu0 0.0
    %2357 = vmatpush1.msra.mxu0 0.0
    %2358 = vmatprep.subr.mxu0 0.0
    %2359 = vmatpush1.msra.mxu0 0.0
    %2360 = vmatprep.subr.mxu0 0.0
    %2361 = vmatpush1.msra.mxu0 0.0
    %2362 = vmatprep.subr.mxu0 0.0
    %2363 = vmatpush1.msra.mxu0 0.0
    %2364 = vmatprep.subr.mxu0 0.0
    %2365 = vmatpush1.msra.mxu0 0.0
    %2366 = vmatprep.subr.mxu0 0.0
    %2367 = vmatpush1.msra.mxu0 0.0
    %2368 = vmatprep.subr.mxu0 0.0
    %2369 = vmatpush1.msra.mxu0 0.0
    %2370 = vmatprep.subr.mxu0 0.0
    %2371 = vmatpush1.msra.mxu0 0.0
    %2372 = vmatprep.subr.mxu0 0.0
    %2373 = vmatpush1.msra.mxu0 0.0
    %2374 = vmatprep.subr.mxu0 0.0
    %2375 = vmatpush1.msra.mxu0 0.0
    %2376 = vmatprep.subr.mxu0 0.0
    %2377 = vmatpush1.msra.mxu0 0.0
    %2378 = vmatprep.subr.mxu0 0.0
    %2379 = vmatpush1.msra.mxu0 0.0
    %2380 = vmatprep.subr.mxu0 0.0
    %2381 = vmatpush1.msra.mxu0 0.0
    %2382 = vmatprep.subr.mxu0 0.0
    %2383 = vmatpush1.msra.mxu0 0.0
    %2384 = vmatprep.mubr.f32.mxu0 0.0
    %2385 = vmatmul.mubr.f32.gmra.mrb[0].mxu0 %v2318
    %v2386 = vpop.f32.mrb[0].mxu0
    %v2387 = vadd.f32 0.0, %v2386
    %v2388 = vpop.f32.mrb[0].mxu0
    %2389 = vdwg.mxu0
    %v2391 = vrot.slane %v2387, 2
    %v2392 = vrot.slane %v2387, 3
    %v2395 = vadd.f32 %v390, %v2391
    %v2396 = vadd.f32 %v395, %v2392
    %v2397 = vxor.u32 %v2395, 2147483648
    %v2398 = vxor.u32 %v2396, 2147483648
    %v2399 = vmul.f32 %v2397, 1.442695
    %v2400 = vpow.pop %v2399
    %v2401 = vmul.f32 %v2398, 1.442695
    %v2402 = vpow.pop %v2401
    %v2403 = vadd.f32 %v2400, 1.0
    %v2404 = vadd.f32 %v2402, 1.0
    %v2405 = vrcp.pop %v2403
    %v2406 = vmul.f32 1.0, %v2405
    %v2407 = vrcp.pop %v2404
    %v2408 = vmul.f32 1.0, %v2407
    %v2409 = vadd.f32 %v2387, %v596
    %v2411 = vrot.slane %v2409, 2
    %v2412 = vrot.slane %v2409, 3
    %2413 = vrot.lane.b32.xlu0 %v2411, 64
    %v2414 = vpop.permute.xlu0 %2413
    %2415 = vrot.lane.b32.xlu0 %v2412, 64
    %v2416 = vpop.permute.xlu0 %2415
    %v2419 = vmul.f32 %v2406, %v2414
    %v2420 = vmul.f32 %v2408, %v2416
    %2423 = vrot.lane.b32.xlu0 %v2419, 64
    %v2424 = vpop.permute.xlu0 %2423
    %2425 = vrot.lane.b32.xlu0 %v2420, 64
    %v2426 = vpop.permute.xlu0 %2425
    %v2429 = vadd.f32 %v390, %v2424
    %v2430 = vadd.f32 %v395, %v2426
    %v2431 = vtanh.pop %v2429
    %v2432 = vtanh.pop %v2430
    %v2433 = vsub.f32 1.0, %v2406
    %v2434 = vsub.f32 1.0, %v2408
    %2437 = vrot.lane.b32.xlu0 %v2431, 96
    %v2438 = vpop.permute.xlu0 %2437
    %2439 = vrot.lane.b32.xlu0 %v2432, 96
    %v2440 = vpop.permute.xlu0 %2439
    %v2443 = vmul.f32 %v2433, %v2438
    %v2444 = vmul.f32 %v2434, %v2440
    %v2445 = vrot.slane %v2162, 2
    %v2446 = vrot.slane %v2162, 3
    %2447 = vrot.lane.b32.xlu0 %v2445, 32
    %v2448 = vpop.permute.xlu0 %2447
    %2449 = vrot.lane.b32.xlu0 %v2446, 32
    %v2450 = vpop.permute.xlu0 %2449
    %v2453 = vmul.f32 %v2406, %v2448
    %v2454 = vmul.f32 %v2408, %v2450
    %v2455 = vadd.f32 %v2443, %v2453
    %v2456 = vadd.f32 %v2444, %v2454
    %v2457 = vsub.f32 %v2455, %v2448
    %v2458 = vsub.f32 %v2456, %v2450
    %v2461 = vrot.slane %v2457, 6
    %v2462 = vrot.slane %v2458, 5
    %v2463 = vsel %vm640, %v2462, %v2461
    %2464 = vrot.lane.b32.xlu0 %v2463, 96
    %v2465 = vpop.permute.xlu0 %2464
    %v2467 = vmul.f32 %v297, %v2465
    %v2468 = vadd.f32 %v2162, %v2467
    %v2469 = vmul.f32 %v297, %v2468
    %v2471 = vsel %vm316, %v2315, 0
    %2473 = vmatprep.subr.mxu0 0.0
    %2474 = vmatpush1.msra.mxu0 %v488
    %2475 = vmatprep.subr.mxu0 0.0
    %2476 = vmatpush1.msra.mxu0 %v489
    %2477 = vmatprep.subr.mxu0 0.0
    %2478 = vmatpush1.msra.mxu0 %v490
    %2479 = vmatprep.subr.mxu0 0.0
    %2480 = vmatpush1.msra.mxu0 %v491
    %2481 = vmatprep.subr.mxu0 0.0
    %2482 = vmatpush1.msra.mxu0 0.0
    %2483 = vmatprep.subr.mxu0 0.0
    %2484 = vmatpush1.msra.mxu0 0.0
    %2485 = vmatprep.subr.mxu0 0.0
    %2486 = vmatpush1.msra.mxu0 0.0
    %2487 = vmatprep.subr.mxu0 0.0
    %2488 = vmatpush1.msra.mxu0 0.0
    %2489 = vmatprep.subr.mxu0 0.0
    %2490 = vmatpush1.msra.mxu0 0.0
    %2491 = vmatprep.subr.mxu0 0.0
    %2492 = vmatpush1.msra.mxu0 0.0
    %2493 = vmatprep.subr.mxu0 0.0
    %2494 = vmatpush1.msra.mxu0 0.0
    %2495 = vmatprep.subr.mxu0 0.0
    %2496 = vmatpush1.msra.mxu0 0.0
    %2497 = vmatprep.subr.mxu0 0.0
    %2498 = vmatpush1.msra.mxu0 0.0
    %2499 = vmatprep.subr.mxu0 0.0
    %2500 = vmatpush1.msra.mxu0 0.0
    %2501 = vmatprep.subr.mxu0 0.0
    %2502 = vmatpush1.msra.mxu0 0.0
    %2503 = vmatprep.subr.mxu0 0.0
    %2504 = vmatpush1.msra.mxu0 0.0
    %2505 = vmatprep.subr.mxu0 0.0
    %2506 = vmatpush1.msra.mxu0 0.0
    %2507 = vmatprep.subr.mxu0 0.0
    %2508 = vmatpush1.msra.mxu0 0.0
    %2509 = vmatprep.subr.mxu0 0.0
    %2510 = vmatpush1.msra.mxu0 0.0
    %2511 = vmatprep.subr.mxu0 0.0
    %2512 = vmatpush1.msra.mxu0 0.0
    %2513 = vmatprep.subr.mxu0 0.0
    %2514 = vmatpush1.msra.mxu0 0.0
    %2515 = vmatprep.subr.mxu0 0.0
    %2516 = vmatpush1.msra.mxu0 0.0
    %2517 = vmatprep.subr.mxu0 0.0
    %2518 = vmatpush1.msra.mxu0 0.0
    %2519 = vmatprep.subr.mxu0 0.0
    %2520 = vmatpush1.msra.mxu0 0.0
    %2521 = vmatprep.subr.mxu0 0.0
    %2522 = vmatpush1.msra.mxu0 0.0
    %2523 = vmatprep.subr.mxu0 0.0
    %2524 = vmatpush1.msra.mxu0 0.0
    %2525 = vmatprep.subr.mxu0 0.0
    %2526 = vmatpush1.msra.mxu0 0.0
    %2527 = vmatprep.subr.mxu0 0.0
    %2528 = vmatpush1.msra.mxu0 0.0
    %2529 = vmatprep.subr.mxu0 0.0
    %2530 = vmatpush1.msra.mxu0 0.0
    %2531 = vmatprep.subr.mxu0 0.0
    %2532 = vmatpush1.msra.mxu0 0.0
    %2533 = vmatprep.subr.mxu0 0.0
    %2534 = vmatpush1.msra.mxu0 0.0
    %2535 = vmatprep.subr.mxu0 0.0
    %2536 = vmatpush1.msra.mxu0 0.0
    %2537 = vmatprep.mubr.f32.mxu0 0.0
    %2538 = vmatmul.mubr.f32.gmra.mrb[0].mxu0 %v2471
    %v2539 = vpop.f32.mrb[0].mxu0
    %v2540 = vadd.f32 0.0, %v2539
    %v2541 = vpop.f32.mrb[0].mxu0
    %2542 = vdwg.mxu0
    %v2544 = vrot.slane %v2540, 7
    %v2547 = vadd.f32 %v476, %v2544
    %v2548 = vadd.f32 %v481, %v2540
    %v2549 = vxor.u32 %v2547, 2147483648
    %v2550 = vxor.u32 %v2548, 2147483648
    %v2551 = vmul.f32 %v2549, 1.442695
    %v2552 = vpow.pop %v2551
    %v2553 = vmul.f32 %v2550, 1.442695
    %v2554 = vpow.pop %v2553
    %v2555 = vadd.f32 %v2552, 1.0
    %v2556 = vadd.f32 %v2554, 1.0
    %v2557 = vrcp.pop %v2555
    %v2558 = vmul.f32 1.0, %v2557
    %v2559 = vrcp.pop %v2556
    %v2560 = vmul.f32 1.0, %v2559
    %v2561 = vadd.f32 %v2540, %v738
    %v2563 = vrot.slane %v2561, 7
    %2564 = vrot.lane.b32.xlu0 %v2563, 64
    %v2565 = vpop.permute.xlu0 %2564
    %2566 = vrot.lane.b32.xlu0 %v2561, 64
    %v2567 = vpop.permute.xlu0 %2566
    %v2570 = vmul.f32 %v2558, %v2565
    %v2571 = vmul.f32 %v2560, %v2567
    %2574 = vrot.lane.b32.xlu0 %v2570, 64
    %v2575 = vpop.permute.xlu0 %2574
    %2576 = vrot.lane.b32.xlu0 %v2571, 64
    %v2577 = vpop.permute.xlu0 %2576
    %v2580 = vadd.f32 %v476, %v2575
    %v2581 = vadd.f32 %v481, %v2577
    %v2582 = vtanh.pop %v2580
    %v2583 = vtanh.pop %v2581
    %v2584 = vsub.f32 1.0, %v2558
    %v2585 = vsub.f32 1.0, %v2560
    %2588 = vrot.lane.b32.xlu0 %v2582, 96
    %v2589 = vpop.permute.xlu0 %2588
    %2590 = vrot.lane.b32.xlu0 %v2583, 96
    %v2591 = vpop.permute.xlu0 %2590
    %v2594 = vmul.f32 %v2584, %v2589
    %v2595 = vmul.f32 %v2585, %v2591
    %v2596 = vrot.slane %v2315, 7
    %2597 = vrot.lane.b32.xlu0 %v2596, 32
    %v2598 = vpop.permute.xlu0 %2597
    %2599 = vrot.lane.b32.xlu0 %v2315, 32
    %v2600 = vpop.permute.xlu0 %2599
    %v2603 = vmul.f32 %v2558, %v2598
    %v2604 = vmul.f32 %v2560, %v2600
    %v2605 = vadd.f32 %v2594, %v2603
    %v2606 = vadd.f32 %v2595, %v2604
    %v2607 = vsub.f32 %v2605, %v2598
    %v2608 = vsub.f32 %v2606, %v2600
    %v2611 = vrot.slane %v2607, 1
    %v2612 = vsel %vm640, %v2608, %v2611
    %2613 = vrot.lane.b32.xlu0 %v2612, 96
    %v2614 = vpop.permute.xlu0 %2613
    %v2616 = vmul.f32 %v277, %v2614
    %v2617 = vadd.f32 %v2315, %v2616
    %v2618 = vmul.f32 %v277, %v2617
    %v2620 = vsel %vm316, %v2468, 0
    %2622 = vmatprep.subr.mxu0 0.0
    %2623 = vmatpush1.msra.mxu0 %v484
    %2624 = vmatprep.subr.mxu0 0.0
    %2625 = vmatpush1.msra.mxu0 %v485
    %2626 = vmatprep.subr.mxu0 0.0
    %2627 = vmatpush1.msra.mxu0 %v486
    %2628 = vmatprep.subr.mxu0 0.0
    %2629 = vmatpush1.msra.mxu0 %v487
    %2630 = vmatprep.subr.mxu0 0.0
    %2631 = vmatpush1.msra.mxu0 0.0
    %2632 = vmatprep.subr.mxu0 0.0
    %2633 = vmatpush1.msra.mxu0 0.0
    %2634 = vmatprep.subr.mxu0 0.0
    %2635 = vmatpush1.msra.mxu0 0.0
    %2636 = vmatprep.subr.mxu0 0.0
    %2637 = vmatpush1.msra.mxu0 0.0
    %2638 = vmatprep.subr.mxu0 0.0
    %2639 = vmatpush1.msra.mxu0 0.0
    %2640 = vmatprep.subr.mxu0 0.0
    %2641 = vmatpush1.msra.mxu0 0.0
    %2642 = vmatprep.subr.mxu0 0.0
    %2643 = vmatpush1.msra.mxu0 0.0
    %2644 = vmatprep.subr.mxu0 0.0
    %2645 = vmatpush1.msra.mxu0 0.0
    %2646 = vmatprep.subr.mxu0 0.0
    %2647 = vmatpush1.msra.mxu0 0.0
    %2648 = vmatprep.subr.mxu0 0.0
    %2649 = vmatpush1.msra.mxu0 0.0
    %2650 = vmatprep.subr.mxu0 0.0
    %2651 = vmatpush1.msra.mxu0 0.0
    %2652 = vmatprep.subr.mxu0 0.0
    %2653 = vmatpush1.msra.mxu0 0.0
    %2654 = vmatprep.subr.mxu0 0.0
    %2655 = vmatpush1.msra.mxu0 0.0
    %2656 = vmatprep.subr.mxu0 0.0
    %2657 = vmatpush1.msra.mxu0 0.0
    %2658 = vmatprep.subr.mxu0 0.0
    %2659 = vmatpush1.msra.mxu0 0.0
    %2660 = vmatprep.subr.mxu0 0.0
    %2661 = vmatpush1.msra.mxu0 0.0
    %2662 = vmatprep.subr.mxu0 0.0
    %2663 = vmatpush1.msra.mxu0 0.0
    %2664 = vmatprep.subr.mxu0 0.0
    %2665 = vmatpush1.msra.mxu0 0.0
    %2666 = vmatprep.subr.mxu0 0.0
    %2667 = vmatpush1.msra.mxu0 0.0
    %2668 = vmatprep.subr.mxu0 0.0
    %2669 = vmatpush1.msra.mxu0 0.0
    %2670 = vmatprep.subr.mxu0 0.0
    %2671 = vmatpush1.msra.mxu0 0.0
    %2672 = vmatprep.subr.mxu0 0.0
    %2673 = vmatpush1.msra.mxu0 0.0
    %2674 = vmatprep.subr.mxu0 0.0
    %2675 = vmatpush1.msra.mxu0 0.0
    %2676 = vmatprep.subr.mxu0 0.0
    %2677 = vmatpush1.msra.mxu0 0.0
    %2678 = vmatprep.subr.mxu0 0.0
    %2679 = vmatpush1.msra.mxu0 0.0
    %2680 = vmatprep.subr.mxu0 0.0
    %2681 = vmatpush1.msra.mxu0 0.0
    %2682 = vmatprep.subr.mxu0 0.0
    %2683 = vmatpush1.msra.mxu0 0.0
    %2684 = vmatprep.subr.mxu0 0.0
    %2685 = vmatpush1.msra.mxu0 0.0
    %2686 = vmatprep.mubr.f32.mxu0 0.0
    %2687 = vmatmul.mubr.f32.gmra.mrb[0].mxu0 %v2620
    %v2688 = vpop.f32.mrb[0].mxu0
    %v2689 = vadd.f32 0.0, %v2688
    %v2690 = vpop.f32.mrb[0].mxu0
    %2691 = vdwg.mxu0
    %v2693 = vrot.slane %v2689, 1
    %v2694 = vrot.slane %v2689, 2
    %v2697 = vadd.f32 %v390, %v2693
    %v2698 = vadd.f32 %v395, %v2694
    %v2699 = vxor.u32 %v2697, 2147483648
    %v2700 = vxor.u32 %v2698, 2147483648
    %v2701 = vmul.f32 %v2699, 1.442695
    %v2702 = vpow.pop %v2701
    %v2703 = vmul.f32 %v2700, 1.442695
    %v2704 = vpow.pop %v2703
    %v2705 = vadd.f32 %v2702, 1.0
    %v2706 = vadd.f32 %v2704, 1.0
    %v2707 = vrcp.pop %v2705
    %v2708 = vmul.f32 1.0, %v2707
    %v2709 = vrcp.pop %v2706
    %v2710 = vmul.f32 1.0, %v2709
    %v2711 = vadd.f32 %v2689, %v596
    %v2713 = vrot.slane %v2711, 1
    %v2714 = vrot.slane %v2711, 2
    %2715 = vrot.lane.b32.xlu0 %v2713, 64
    %v2716 = vpop.permute.xlu0 %2715
    %2717 = vrot.lane.b32.xlu0 %v2714, 64
    %v2718 = vpop.permute.xlu0 %2717
    %v2721 = vmul.f32 %v2708, %v2716
    %v2722 = vmul.f32 %v2710, %v2718
    %2725 = vrot.lane.b32.xlu0 %v2721, 64
    %v2726 = vpop.permute.xlu0 %2725
    %2727 = vrot.lane.b32.xlu0 %v2722, 64
    %v2728 = vpop.permute.xlu0 %2727
    %v2731 = vadd.f32 %v390, %v2726
    %v2732 = vadd.f32 %v395, %v2728
    %v2733 = vtanh.pop %v2731
    %v2734 = vtanh.pop %v2732
    %v2735 = vsub.f32 1.0, %v2708
    %v2736 = vsub.f32 1.0, %v2710
    %2739 = vrot.lane.b32.xlu0 %v2733, 96
    %v2740 = vpop.permute.xlu0 %2739
    %2741 = vrot.lane.b32.xlu0 %v2734, 96
    %v2742 = vpop.permute.xlu0 %2741
    %v2745 = vmul.f32 %v2735, %v2740
    %v2746 = vmul.f32 %v2736, %v2742
    %v2747 = vrot.slane %v2468, 1
    %v2748 = vrot.slane %v2468, 2
    %2749 = vrot.lane.b32.xlu0 %v2747, 32
    %v2750 = vpop.permute.xlu0 %2749
    %2751 = vrot.lane.b32.xlu0 %v2748, 32
    %v2752 = vpop.permute.xlu0 %2751
    %v2755 = vmul.f32 %v2708, %v2750
    %v2756 = vmul.f32 %v2710, %v2752
    %v2757 = vadd.f32 %v2745, %v2755
    %v2758 = vadd.f32 %v2746, %v2756
    %v2759 = vsub.f32 %v2757, %v2750
    %v2760 = vsub.f32 %v2758, %v2752
    %v2763 = vrot.slane %v2759, 7
    %v2764 = vrot.slane %v2760, 6
    %v2765 = vsel %vm640, %v2764, %v2763
    %2766 = vrot.lane.b32.xlu0 %v2765, 96
    %v2767 = vpop.permute.xlu0 %2766
    %v2769 = vmul.f32 %v301, %v2767
    %v2770 = vadd.f32 %v2468, %v2769
    %v2771 = vmul.f32 %v301, %v2770
    %v2773 = vsel %vm316, %v2617, 0
    %2775 = vmatprep.subr.mxu0 0.0
    %2776 = vmatpush1.msra.mxu0 %v488
    %2777 = vmatprep.subr.mxu0 0.0
    %2778 = vmatpush1.msra.mxu0 %v489
    %2779 = vmatprep.subr.mxu0 0.0
    %2780 = vmatpush1.msra.mxu0 %v490
    %2781 = vmatprep.subr.mxu0 0.0
    %2782 = vmatpush1.msra.mxu0 %v491
    %2783 = vmatprep.subr.mxu0 0.0
    %2784 = vmatpush1.msra.mxu0 0.0
    %2785 = vmatprep.subr.mxu0 0.0
    %2786 = vmatpush1.msra.mxu0 0.0
    %2787 = vmatprep.subr.mxu0 0.0
    %2788 = vmatpush1.msra.mxu0 0.0
    %2789 = vmatprep.subr.mxu0 0.0
    %2790 = vmatpush1.msra.mxu0 0.0
    %2791 = vmatprep.subr.mxu0 0.0
    %2792 = vmatpush1.msra.mxu0 0.0
    %2793 = vmatprep.subr.mxu0 0.0
    %2794 = vmatpush1.msra.mxu0 0.0
    %2795 = vmatprep.subr.mxu0 0.0
    %2796 = vmatpush1.msra.mxu0 0.0
    %2797 = vmatprep.subr.mxu0 0.0
    %2798 = vmatpush1.msra.mxu0 0.0
    %2799 = vmatprep.subr.mxu0 0.0
    %2800 = vmatpush1.msra.mxu0 0.0
    %2801 = vmatprep.subr.mxu0 0.0
    %2802 = vmatpush1.msra.mxu0 0.0
    %2803 = vmatprep.subr.mxu0 0.0
    %2804 = vmatpush1.msra.mxu0 0.0
    %2805 = vmatprep.subr.mxu0 0.0
    %2806 = vmatpush1.msra.mxu0 0.0
    %2807 = vmatprep.subr.mxu0 0.0
    %2808 = vmatpush1.msra.mxu0 0.0
    %2809 = vmatprep.subr.mxu0 0.0
    %2810 = vmatpush1.msra.mxu0 0.0
    %2811 = vmatprep.subr.mxu0 0.0
    %2812 = vmatpush1.msra.mxu0 0.0
    %2813 = vmatprep.subr.mxu0 0.0
    %2814 = vmatpush1.msra.mxu0 0.0
    %2815 = vmatprep.subr.mxu0 0.0
    %2816 = vmatpush1.msra.mxu0 0.0
    %2817 = vmatprep.subr.mxu0 0.0
    %2818 = vmatpush1.msra.mxu0 0.0
    %2819 = vmatprep.subr.mxu0 0.0
    %2820 = vmatpush1.msra.mxu0 0.0
    %2821 = vmatprep.subr.mxu0 0.0
    %2822 = vmatpush1.msra.mxu0 0.0
    %2823 = vmatprep.subr.mxu0 0.0
    %2824 = vmatpush1.msra.mxu0 0.0
    %2825 = vmatprep.subr.mxu0 0.0
    %2826 = vmatpush1.msra.mxu0 0.0
    %2827 = vmatprep.subr.mxu0 0.0
    %2828 = vmatpush1.msra.mxu0 0.0
    %2829 = vmatprep.subr.mxu0 0.0
    %2830 = vmatpush1.msra.mxu0 0.0
    %2831 = vmatprep.subr.mxu0 0.0
    %2832 = vmatpush1.msra.mxu0 0.0
    %2833 = vmatprep.subr.mxu0 0.0
    %2834 = vmatpush1.msra.mxu0 0.0
    %2835 = vmatprep.subr.mxu0 0.0
    %2836 = vmatpush1.msra.mxu0 0.0
    %2837 = vmatprep.subr.mxu0 0.0
    %2838 = vmatpush1.msra.mxu0 0.0
    %2839 = vmatprep.mubr.f32.mxu0 0.0
    %2840 = vmatmul.mubr.f32.gmra.mrb[0].mxu0 %v2773
    %v2841 = vpop.f32.mrb[0].mxu0
    %v2842 = vadd.f32 0.0, %v2841
    %v2843 = vpop.f32.mrb[0].mxu0
    %2844 = vdwg.mxu0
    %v2846 = vrot.slane %v2842, 1
    %v2849 = vadd.f32 %v476, %v2842
    %v2850 = vadd.f32 %v481, %v2846
    %v2851 = vxor.u32 %v2849, 2147483648
    %v2852 = vxor.u32 %v2850, 2147483648
    %v2853 = vmul.f32 %v2851, 1.442695
    %v2854 = vpow.pop %v2853
    %v2855 = vmul.f32 %v2852, 1.442695
    %v2856 = vpow.pop %v2855
    %v2857 = vadd.f32 %v2854, 1.0
    %v2858 = vadd.f32 %v2856, 1.0
    %v2859 = vrcp.pop %v2857
    %v2860 = vmul.f32 1.0, %v2859
    %v2861 = vrcp.pop %v2858
    %v2862 = vmul.f32 1.0, %v2861
    %v2863 = vadd.f32 %v2842, %v738
    %v2865 = vrot.slane %v2863, 1
    %2866 = vrot.lane.b32.xlu0 %v2863, 64
    %v2867 = vpop.permute.xlu0 %2866
    %2868 = vrot.lane.b32.xlu0 %v2865, 64
    %v2869 = vpop.permute.xlu0 %2868
    %v2872 = vmul.f32 %v2860, %v2867
    %v2873 = vmul.f32 %v2862, %v2869
    %2876 = vrot.lane.b32.xlu0 %v2872, 64
    %v2877 = vpop.permute.xlu0 %2876
    %2878 = vrot.lane.b32.xlu0 %v2873, 64
    %v2879 = vpop.permute.xlu0 %2878
    %v2882 = vadd.f32 %v476, %v2877
    %v2883 = vadd.f32 %v481, %v2879
    %v2884 = vtanh.pop %v2882
    %v2885 = vtanh.pop %v2883
    %v2886 = vsub.f32 1.0, %v2860
    %v2887 = vsub.f32 1.0, %v2862
    %2890 = vrot.lane.b32.xlu0 %v2884, 96
    %v2891 = vpop.permute.xlu0 %2890
    %2892 = vrot.lane.b32.xlu0 %v2885, 96
    %v2893 = vpop.permute.xlu0 %2892
    %v2896 = vmul.f32 %v2886, %v2891
    %v2897 = vmul.f32 %v2887, %v2893
    %v2898 = vrot.slane %v2617, 1
    %2899 = vrot.lane.b32.xlu0 %v2617, 32
    %v2900 = vpop.permute.xlu0 %2899
    %2901 = vrot.lane.b32.xlu0 %v2898, 32
    %v2902 = vpop.permute.xlu0 %2901
    %v2905 = vmul.f32 %v2860, %v2900
    %v2906 = vmul.f32 %v2862, %v2902
    %v2907 = vadd.f32 %v2896, %v2905
    %v2908 = vadd.f32 %v2897, %v2906
    %v2909 = vsub.f32 %v2907, %v2900
    %v2910 = vsub.f32 %v2908, %v2902
    %v2913 = vrot.slane %v2910, 7
    %v2914 = vsel %vm640, %v2913, %v2909
    %2915 = vrot.lane.b32.xlu0 %v2914, 96
    %v2916 = vpop.permute.xlu0 %2915
    %v2918 = vmul.f32 %v273, %v2916
    %v2919 = vadd.f32 %v2617, %v2918
    %v2920 = vmul.f32 %v273, %v2919
    %v2923 = vunpack.c.l.s4 1966171168
    %v2924 = vunpack.c.0.s8 %v2923
    %v2925 = vlaneseq
    %v2926 = vshrl.u32 %v2925, 7
    %v2927 = vsub.s32 %v2924, %v2926
    %v2928 = vrot.slane %v647, %v2927
    %v2929 = vcombine.high %v2928, %v2928
    %v2931 = vunpack.c.l.s4 1966171168
    %v2932 = vunpack.c.0.s8 %v2931
    %v2933 = vlaneseq
    %v2934 = vshrl.u32 %v2933, 7
    %v2935 = vsub.s32 %v2932, %v2934
    %v2936 = vrot.slane %v2928, %v2935
    %v2938 = vunpack.c.l.s4 1966171168
    %v2939 = vunpack.c.0.s8 %v2938
    %v2940 = vlaneseq
    %v2941 = vshrl.u32 %v2940, 7
    %v2942 = vsub.s32 %v2939, %v2941
    %v2943 = vrot.slane %v2929, %v2942
    %v2948 = vunpack.c.l.s4 1966171168
    %v2949 = vunpack.c.0.s8 %v2948
    %v2950 = vlaneseq
    %v2951 = vshrl.u32 %v2950, 7
    %v2952 = vsub.s32 %v2949, %v2951
    %v2953 = vrot.slane %v939, %v2952
    %v2954 = vcombine.high %v2953, %v2953
    %v2956 = vunpack.c.l.s4 1966171168
    %v2957 = vunpack.c.0.s8 %v2956
    %v2958 = vlaneseq
    %v2959 = vshrl.u32 %v2958, 7
    %v2960 = vsub.s32 %v2957, %v2959
    %v2961 = vrot.slane %v2953, %v2960
    %v2963 = vunpack.c.l.s4 1966171168
    %v2964 = vunpack.c.0.s8 %v2963
    %v2965 = vlaneseq
    %v2966 = vshrl.u32 %v2965, 7
    %v2967 = vsub.s32 %v2964, %v2966
    %v2968 = vrot.slane %v2954, %v2967
    %v2971 = vunpack.c.l.s4 1966171168
    %v2972 = vunpack.c.0.s8 %v2971
    %v2973 = vlaneseq
    %v2974 = vshrl.u32 %v2973, 7
    %v2975 = vsub.s32 %v2972, %v2974
    %v2976 = vrot.slane %v1245, %v2975
    %v2977 = vcombine.high %v2976, %v2976
    %v2979 = vunpack.c.l.s4 1966171168
    %v2980 = vunpack.c.0.s8 %v2979
    %v2981 = vlaneseq
    %v2982 = vshrl.u32 %v2981, 7
    %v2983 = vsub.s32 %v2980, %v2982
    %v2984 = vrot.slane %v2976, %v2983
    %v2986 = vunpack.c.l.s4 1966171168
    %v2987 = vunpack.c.0.s8 %v2986
    %v2988 = vlaneseq
    %v2989 = vshrl.u32 %v2988, 7
    %v2990 = vsub.s32 %v2987, %v2989
    %v2991 = vrot.slane %v2977, %v2990
    %v2994 = vunpack.c.l.s4 1966171168
    %v2995 = vunpack.c.0.s8 %v2994
    %v2996 = vlaneseq
    %v2997 = vshrl.u32 %v2996, 7
    %v2998 = vsub.s32 %v2995, %v2997
    %v2999 = vrot.slane %v1551, %v2998
    %v3000 = vcombine.high %v2999, %v2999
    %v3002 = vunpack.c.l.s4 1966171168
    %v3003 = vunpack.c.0.s8 %v3002
    %v3004 = vlaneseq
    %v3005 = vshrl.u32 %v3004, 7
    %v3006 = vsub.s32 %v3003, %v3005
    %v3007 = vrot.slane %v2999, %v3006
    %v3009 = vunpack.c.l.s4 1966171168
    %v3010 = vunpack.c.0.s8 %v3009
    %v3011 = vlaneseq
    %v3012 = vshrl.u32 %v3011, 7
    %v3013 = vsub.s32 %v3010, %v3012
    %v3014 = vrot.slane %v3000, %v3013
    %v3017 = vunpack.c.l.s4 1966171168
    %v3018 = vunpack.c.0.s8 %v3017
    %v3019 = vlaneseq
    %v3020 = vshrl.u32 %v3019, 7
    %v3021 = vsub.s32 %v3018, %v3020
    %v3022 = vrot.slane %v1857, %v3021
    %v3023 = vcombine.high %v3022, %v3022
    %v3025 = vunpack.c.l.s4 1966171168
    %v3026 = vunpack.c.0.s8 %v3025
    %v3027 = vlaneseq
    %v3028 = vshrl.u32 %v3027, 7
    %v3029 = vsub.s32 %v3026, %v3028
    %v3030 = vrot.slane %v3022, %v3029
    %v3032 = vunpack.c.l.s4 1966171168
    %v3033 = vunpack.c.0.s8 %v3032
    %v3034 = vlaneseq
    %v3035 = vshrl.u32 %v3034, 7
    %v3036 = vsub.s32 %v3033, %v3035
    %v3037 = vrot.slane %v3023, %v3036
    %v3040 = vunpack.c.l.s4 1966171168
    %v3041 = vunpack.c.0.s8 %v3040
    %v3042 = vlaneseq
    %v3043 = vshrl.u32 %v3042, 7
    %v3044 = vsub.s32 %v3041, %v3043
    %v3045 = vrot.slane %v2163, %v3044
    %v3046 = vcombine.high %v3045, %v3045
    %v3048 = vunpack.c.l.s4 1966171168
    %v3049 = vunpack.c.0.s8 %v3048
    %v3050 = vlaneseq
    %v3051 = vshrl.u32 %v3050, 7
    %v3052 = vsub.s32 %v3049, %v3051
    %v3053 = vrot.slane %v3045, %v3052
    %v3055 = vunpack.c.l.s4 1966171168
    %v3056 = vunpack.c.0.s8 %v3055
    %v3057 = vlaneseq
    %v3058 = vshrl.u32 %v3057, 7
    %v3059 = vsub.s32 %v3056, %v3058
    %v3060 = vrot.slane %v3046, %v3059
    %v3063 = vunpack.c.l.s4 1966171168
    %v3064 = vunpack.c.0.s8 %v3063
    %v3065 = vlaneseq
    %v3066 = vshrl.u32 %v3065, 7
    %v3067 = vsub.s32 %v3064, %v3066
    %v3068 = vrot.slane %v2469, %v3067
    %v3069 = vcombine.high %v3068, %v3068
    %v3071 = vunpack.c.l.s4 1966171168
    %v3072 = vunpack.c.0.s8 %v3071
    %v3073 = vlaneseq
    %v3074 = vshrl.u32 %v3073, 7
    %v3075 = vsub.s32 %v3072, %v3074
    %v3076 = vrot.slane %v3068, %v3075
    %v3078 = vunpack.c.l.s4 1966171168
    %v3079 = vunpack.c.0.s8 %v3078
    %v3080 = vlaneseq
    %v3081 = vshrl.u32 %v3080, 7
    %v3082 = vsub.s32 %v3079, %v3081
    %v3083 = vrot.slane %v3069, %v3082
    %v3086 = vunpack.c.l.s4 1966171168
    %v3087 = vunpack.c.0.s8 %v3086
    %v3088 = vlaneseq
    %v3089 = vshrl.u32 %v3088, 7
    %v3090 = vsub.s32 %v3087, %v3089
    %v3091 = vrot.slane %v2771, %v3090
    %v3092 = vcombine.high %v3091, %v3091
    %v3094 = vunpack.c.l.s4 1966171168
    %v3095 = vunpack.c.0.s8 %v3094
    %v3096 = vlaneseq
    %v3097 = vshrl.u32 %v3096, 7
    %v3098 = vsub.s32 %v3095, %v3097
    %v3099 = vrot.slane %v3091, %v3098
    %v3101 = vunpack.c.l.s4 1966171168
    %v3102 = vunpack.c.0.s8 %v3101
    %v3103 = vlaneseq
    %v3104 = vshrl.u32 %v3103, 7
    %v3105 = vsub.s32 %v3102, %v3104
    %v3106 = vrot.slane %v3092, %v3105
    %v3107 = vlaneseq
    %v3108 = vshrl.u32 %v3107, 7
    %v3109 = vsub.s32 0, %v3108
    %v3110 = vrot.slane %v2961, %v3109
    %v3111 = vlaneseq
    %v3112 = vshrl.u32 %v3111, 7
    %v3113 = vsub.s32 0, %v3112
    %v3114 = vrot.slane %v2968, %v3113
    %v3117 = vlaneseq
    %v3118 = vshrl.u32 %v3117, 7
    %v3119 = vsub.s32 0, %v3118
    %v3120 = vrot.slane %v2984, %v3119
    %v3121 = vlaneseq
    %v3122 = vshrl.u32 %v3121, 7
    %v3123 = vsub.s32 0, %v3122
    %v3124 = vrot.slane %v2991, %v3123
    %v3127 = vlaneseq
    %v3128 = vshrl.u32 %v3127, 7
    %v3129 = vsub.s32 0, %v3128
    %v3130 = vrot.slane %v3007, %v3129
    %v3131 = vlaneseq
    %v3132 = vshrl.u32 %v3131, 7
    %v3133 = vsub.s32 0, %v3132
    %v3134 = vrot.slane %v3014, %v3133
    %v3137 = vlaneseq
    %v3138 = vshrl.u32 %v3137, 7
    %v3139 = vsub.s32 0, %v3138
    %v3140 = vrot.slane %v3030, %v3139
    %v3141 = vlaneseq
    %v3142 = vshrl.u32 %v3141, 7
    %v3143 = vsub.s32 0, %v3142
    %v3144 = vrot.slane %v3037, %v3143
    %v3147 = vlaneseq
    %v3148 = vshrl.u32 %v3147, 7
    %v3149 = vsub.s32 0, %v3148
    %v3150 = vrot.slane %v3053, %v3149
    %v3151 = vlaneseq
    %v3152 = vshrl.u32 %v3151, 7
    %v3153 = vsub.s32 0, %v3152
    %v3154 = vrot.slane %v3060, %v3153
    %v3157 = vlaneseq
    %v3158 = vshrl.u32 %v3157, 7
    %v3159 = vsub.s32 0, %v3158
    %v3160 = vrot.slane %v3076, %v3159
    %v3161 = vlaneseq
    %v3162 = vshrl.u32 %v3161, 7
    %v3163 = vsub.s32 0, %v3162
    %v3164 = vrot.slane %v3083, %v3163
    %v3167 = vlaneseq
    %v3168 = vshrl.u32 %v3167, 7
    %v3169 = vsub.s32 0, %v3168
    %v3170 = vrot.slane %v3099, %v3169
    %v3171 = vlaneseq
    %v3172 = vshrl.u32 %v3171, 7
    %v3173 = vsub.s32 0, %v3172
    %v3174 = vrot.slane %v3106, %v3173
    %vm3177 = vcmask 1040384
    %v3178 = vsel %vm3177, %v2936, %v3110
    %v3179 = vsel %vm3177, %v2943, %v3114
    %vm3180 = vcmask 1041408
    %v3181 = vsel %vm3180, %v3178, %v3120
    %v3182 = vsel %vm3180, %v3179, %v3124
    %vm3183 = vcmask 1042432
    %v3184 = vsel %vm3183, %v3181, %v3130
    %v3185 = vsel %vm3183, %v3182, %v3134
    %vm3186 = vcmask 1043456
    %v3187 = vsel %vm3186, %v3184, %v3140
    %v3188 = vsel %vm3186, %v3185, %v3144
    %vm3189 = vcmask 1044480
    %v3190 = vsel %vm3189, %v3187, %v3150
    %v3191 = vsel %vm3189, %v3188, %v3154
    %vm3192 = vcmask 1045504
    %v3193 = vsel %vm3192, %v3190, %v3160
    %v3194 = vsel %vm3192, %v3191, %v3164
    %vm3195 = vcmask 1046528
    %v3196 = vsel %vm3195, %v3193, %v3170
    %v3197 = vsel %vm3195, %v3194, %v3174
    %v3200 = vunpack.c.l.s4 1966171168
    %v3201 = vunpack.c.0.s8 %v3200
    %v3202 = vlaneseq
    %v3203 = vshrl.u32 %v3202, 7
    %v3204 = vsub.s32 %v3201, %v3203
    %v3205 = vrot.slane %v2920, %v3204
    %v3206 = vcombine.high %v3205, %v3205
    %v3208 = vunpack.c.l.s4 1966171168
    %v3209 = vunpack.c.0.s8 %v3208
    %v3210 = vlaneseq
    %v3211 = vshrl.u32 %v3210, 7
    %v3212 = vsub.s32 %v3209, %v3211
    %v3213 = vrot.slane %v3205, %v3212
    %v3215 = vunpack.c.l.s4 1966171168
    %v3216 = vunpack.c.0.s8 %v3215
    %v3217 = vlaneseq
    %v3218 = vshrl.u32 %v3217, 7
    %v3219 = vsub.s32 %v3216, %v3218
    %v3220 = vrot.slane %v3206, %v3219
    %v3225 = vunpack.c.l.s4 1966171168
    %v3226 = vunpack.c.0.s8 %v3225
    %v3227 = vlaneseq
    %v3228 = vshrl.u32 %v3227, 7
    %v3229 = vsub.s32 %v3226, %v3228
    %v3230 = vrot.slane %v2618, %v3229
    %v3231 = vcombine.high %v3230, %v3230
    %v3233 = vunpack.c.l.s4 1966171168
    %v3234 = vunpack.c.0.s8 %v3233
    %v3235 = vlaneseq
    %v3236 = vshrl.u32 %v3235, 7
    %v3237 = vsub.s32 %v3234, %v3236
    %v3238 = vrot.slane %v3230, %v3237
    %v3240 = vunpack.c.l.s4 1966171168
    %v3241 = vunpack.c.0.s8 %v3240
    %v3242 = vlaneseq
    %v3243 = vshrl.u32 %v3242, 7
    %v3244 = vsub.s32 %v3241, %v3243
    %v3245 = vrot.slane %v3231, %v3244
    %v3248 = vunpack.c.l.s4 1966171168
    %v3249 = vunpack.c.0.s8 %v3248
    %v3250 = vlaneseq
    %v3251 = vshrl.u32 %v3250, 7
    %v3252 = vsub.s32 %v3249, %v3251
    %v3253 = vrot.slane %v2316, %v3252
    %v3254 = vcombine.high %v3253, %v3253
    %v3256 = vunpack.c.l.s4 1966171168
    %v3257 = vunpack.c.0.s8 %v3256
    %v3258 = vlaneseq
    %v3259 = vshrl.u32 %v3258, 7
    %v3260 = vsub.s32 %v3257, %v3259
    %v3261 = vrot.slane %v3253, %v3260
    %v3263 = vunpack.c.l.s4 1966171168
    %v3264 = vunpack.c.0.s8 %v3263
    %v3265 = vlaneseq
    %v3266 = vshrl.u32 %v3265, 7
    %v3267 = vsub.s32 %v3264, %v3266
    %v3268 = vrot.slane %v3254, %v3267
    %v3271 = vunpack.c.l.s4 1966171168
    %v3272 = vunpack.c.0.s8 %v3271
    %v3273 = vlaneseq
    %v3274 = vshrl.u32 %v3273, 7
    %v3275 = vsub.s32 %v3272, %v3274
    %v3276 = vrot.slane %v2010, %v3275
    %v3277 = vcombine.high %v3276, %v3276
    %v3279 = vunpack.c.l.s4 1966171168
    %v3280 = vunpack.c.0.s8 %v3279
    %v3281 = vlaneseq
    %v3282 = vshrl.u32 %v3281, 7
    %v3283 = vsub.s32 %v3280, %v3282
    %v3284 = vrot.slane %v3276, %v3283
    %v3286 = vunpack.c.l.s4 1966171168
    %v3287 = vunpack.c.0.s8 %v3286
    %v3288 = vlaneseq
    %v3289 = vshrl.u32 %v3288, 7
    %v3290 = vsub.s32 %v3287, %v3289
    %v3291 = vrot.slane %v3277, %v3290
    %v3294 = vunpack.c.l.s4 1966171168
    %v3295 = vunpack.c.0.s8 %v3294
    %v3296 = vlaneseq
    %v3297 = vshrl.u32 %v3296, 7
    %v3298 = vsub.s32 %v3295, %v3297
    %v3299 = vrot.slane %v1704, %v3298
    %v3300 = vcombine.high %v3299, %v3299
    %v3302 = vunpack.c.l.s4 1966171168
    %v3303 = vunpack.c.0.s8 %v3302
    %v3304 = vlaneseq
    %v3305 = vshrl.u32 %v3304, 7
    %v3306 = vsub.s32 %v3303, %v3305
    %v3307 = vrot.slane %v3299, %v3306
    %v3309 = vunpack.c.l.s4 1966171168
    %v3310 = vunpack.c.0.s8 %v3309
    %v3311 = vlaneseq
    %v3312 = vshrl.u32 %v3311, 7
    %v3313 = vsub.s32 %v3310, %v3312
    %v3314 = vrot.slane %v3300, %v3313
    %v3317 = vunpack.c.l.s4 1966171168
    %v3318 = vunpack.c.0.s8 %v3317
    %v3319 = vlaneseq
    %v3320 = vshrl.u32 %v3319, 7
    %v3321 = vsub.s32 %v3318, %v3320
    %v3322 = vrot.slane %v1398, %v3321
    %v3323 = vcombine.high %v3322, %v3322
    %v3325 = vunpack.c.l.s4 1966171168
    %v3326 = vunpack.c.0.s8 %v3325
    %v3327 = vlaneseq
    %v3328 = vshrl.u32 %v3327, 7
    %v3329 = vsub.s32 %v3326, %v3328
    %v3330 = vrot.slane %v3322, %v3329
    %v3332 = vunpack.c.l.s4 1966171168
    %v3333 = vunpack.c.0.s8 %v3332
    %v3334 = vlaneseq
    %v3335 = vshrl.u32 %v3334, 7
    %v3336 = vsub.s32 %v3333, %v3335
    %v3337 = vrot.slane %v3323, %v3336
    %v3340 = vunpack.c.l.s4 1966171168
    %v3341 = vunpack.c.0.s8 %v3340
    %v3342 = vlaneseq
    %v3343 = vshrl.u32 %v3342, 7
    %v3344 = vsub.s32 %v3341, %v3343
    %v3345 = vrot.slane %v1092, %v3344
    %v3346 = vcombine.high %v3345, %v3345
    %v3348 = vunpack.c.l.s4 1966171168
    %v3349 = vunpack.c.0.s8 %v3348
    %v3350 = vlaneseq
    %v3351 = vshrl.u32 %v3350, 7
    %v3352 = vsub.s32 %v3349, %v3351
    %v3353 = vrot.slane %v3345, %v3352
    %v3355 = vunpack.c.l.s4 1966171168
    %v3356 = vunpack.c.0.s8 %v3355
    %v3357 = vlaneseq
    %v3358 = vshrl.u32 %v3357, 7
    %v3359 = vsub.s32 %v3356, %v3358
    %v3360 = vrot.slane %v3346, %v3359
    %v3363 = vunpack.c.l.s4 1966171168
    %v3364 = vunpack.c.0.s8 %v3363
    %v3365 = vlaneseq
    %v3366 = vshrl.u32 %v3365, 7
    %v3367 = vsub.s32 %v3364, %v3366
    %v3368 = vrot.slane %v790, %v3367
    %v3369 = vcombine.high %v3368, %v3368
    %v3371 = vunpack.c.l.s4 1966171168
    %v3372 = vunpack.c.0.s8 %v3371
    %v3373 = vlaneseq
    %v3374 = vshrl.u32 %v3373, 7
    %v3375 = vsub.s32 %v3372, %v3374
    %v3376 = vrot.slane %v3368, %v3375
    %v3378 = vunpack.c.l.s4 1966171168
    %v3379 = vunpack.c.0.s8 %v3378
    %v3380 = vlaneseq
    %v3381 = vshrl.u32 %v3380, 7
    %v3382 = vsub.s32 %v3379, %v3381
    %v3383 = vrot.slane %v3369, %v3382
    %v3384 = vlaneseq
    %v3385 = vshrl.u32 %v3384, 7
    %v3386 = vsub.s32 0, %v3385
    %v3387 = vrot.slane %v3238, %v3386
    %v3388 = vlaneseq
    %v3389 = vshrl.u32 %v3388, 7
    %v3390 = vsub.s32 0, %v3389
    %v3391 = vrot.slane %v3245, %v3390
    %v3394 = vlaneseq
    %v3395 = vshrl.u32 %v3394, 7
    %v3396 = vsub.s32 0, %v3395
    %v3397 = vrot.slane %v3261, %v3396
    %v3398 = vlaneseq
    %v3399 = vshrl.u32 %v3398, 7
    %v3400 = vsub.s32 0, %v3399
    %v3401 = vrot.slane %v3268, %v3400
    %v3404 = vlaneseq
    %v3405 = vshrl.u32 %v3404, 7
    %v3406 = vsub.s32 0, %v3405
    %v3407 = vrot.slane %v3284, %v3406
    %v3408 = vlaneseq
    %v3409 = vshrl.u32 %v3408, 7
    %v3410 = vsub.s32 0, %v3409
    %v3411 = vrot.slane %v3291, %v3410
    %v3414 = vlaneseq
    %v3415 = vshrl.u32 %v3414, 7
    %v3416 = vsub.s32 0, %v3415
    %v3417 = vrot.slane %v3307, %v3416
    %v3418 = vlaneseq
    %v3419 = vshrl.u32 %v3418, 7
    %v3420 = vsub.s32 0, %v3419
    %v3421 = vrot.slane %v3314, %v3420
    %v3424 = vlaneseq
    %v3425 = vshrl.u32 %v3424, 7
    %v3426 = vsub.s32 0, %v3425
    %v3427 = vrot.slane %v3330, %v3426
    %v3428 = vlaneseq
    %v3429 = vshrl.u32 %v3428, 7
    %v3430 = vsub.s32 0, %v3429
    %v3431 = vrot.slane %v3337, %v3430
    %v3434 = vlaneseq
    %v3435 = vshrl.u32 %v3434, 7
    %v3436 = vsub.s32 0, %v3435
    %v3437 = vrot.slane %v3353, %v3436
    %v3438 = vlaneseq
    %v3439 = vshrl.u32 %v3438, 7
    %v3440 = vsub.s32 0, %v3439
    %v3441 = vrot.slane %v3360, %v3440
    %v3444 = vlaneseq
    %v3445 = vshrl.u32 %v3444, 7
    %v3446 = vsub.s32 0, %v3445
    %v3447 = vrot.slane %v3376, %v3446
    %v3448 = vlaneseq
    %v3449 = vshrl.u32 %v3448, 7
    %v3450 = vsub.s32 0, %v3449
    %v3451 = vrot.slane %v3383, %v3450
    %v3454 = vsel %vm3177, %v3213, %v3387
    %v3455 = vsel %vm3177, %v3220, %v3391
    %v3456 = vsel %vm3180, %v3454, %v3397
    %v3457 = vsel %vm3180, %v3455, %v3401
    %v3458 = vsel %vm3183, %v3456, %v3407
    %v3459 = vsel %vm3183, %v3457, %v3411
    %v3460 = vsel %vm3186, %v3458, %v3417
    %v3461 = vsel %vm3186, %v3459, %v3421
    %v3462 = vsel %vm3189, %v3460, %v3427
    %v3463 = vsel %vm3189, %v3461, %v3431
    %v3464 = vsel %vm3192, %v3462, %v3437
    %v3465 = vsel %vm3192, %v3463, %v3441
    %v3466 = vsel %vm3195, %v3464, %v3447
    %v3467 = vsel %vm3195, %v3465, %v3451
    %3468 = vst.msk [vmem:[#allocation28] sm:$0xff] %vm316, %v3196
    %3469 = vst.msk [vmem:[#allocation28 + $0x8] sm:$0xff] %vm316, %v3197
    %3472 = vrot.lane.b32.xlu0 %v3466, 32
    %v3473 = vpop.permute.xlu0 %3472
    %3474 = vrot.lane.b32.xlu0 %v3467, 32
    %v3475 = vpop.permute.xlu0 %3474
    %vm3478 = vcmask 523520
    %3479 = vst.msk [vmem:[#allocation28] sm:$0xff] %vm3478, %v3473
    %3480 = vst.msk [vmem:[#allocation28 + $0x8] sm:$0xff] %vm3478, %v3475
    %v3481 = vld [vmem:[%s10] sm:$0xff]
    %v3482 = vld [vmem:[%s10 + $0x8] sm:$0xff]
    %v3483 = vld [vmem:[%s10 + $0x10] sm:$0xff]
    %v3484 = vld [vmem:[%s10 + $0x18] sm:$0xff]
    %v3485 = vld [vmem:[#allocation19] sm:$0xff]
    %v3486 = vld [vmem:[#allocation19 + $0x8] sm:$0xff]
    %v3487 = vld [vmem:[#allocation19 + $0x10] sm:$0xff]
    %v3488 = vld [vmem:[#allocation19 + $0x18] sm:$0xff]
    %v3489 = vsel %vm316, %v3466, 0
    %v3491 = vsel %vm316, %v3467, 0
    %3493 = vmatprep.subr.mxu0 0.0
    %3494 = vmatpush1.msra.mxu0 %v3485
    %3495 = vmatprep.subr.mxu0 0.0
    %3496 = vmatpush1.msra.mxu0 %v3486
    %3497 = vmatprep.subr.mxu0 0.0
    %3498 = vmatpush1.msra.mxu0 %v3487
    %3499 = vmatprep.subr.mxu0 0.0
    %3500 = vmatpush1.msra.mxu0 %v3488
    %3501 = vmatprep.subr.mxu0 0.0
    %3502 = vmatpush1.msra.mxu0 0.0
    %3503 = vmatprep.subr.mxu0 0.0
    %3504 = vmatpush1.msra.mxu0 0.0
    %3505 = vmatprep.subr.mxu0 0.0
    %3506 = vmatpush1.msra.mxu0 0.0
    %3507 = vmatprep.subr.mxu0 0.0
    %3508 = vmatpush1.msra.mxu0 0.0
    %3509 = vmatprep.subr.mxu0 0.0
    %3510 = vmatpush1.msra.mxu0 0.0
    %3511 = vmatprep.subr.mxu0 0.0
    %3512 = vmatpush1.msra.mxu0 0.0
    %3513 = vmatprep.subr.mxu0 0.0
    %3514 = vmatpush1.msra.mxu0 0.0
    %3515 = vmatprep.subr.mxu0 0.0
    %3516 = vmatpush1.msra.mxu0 0.0
    %3517 = vmatprep.subr.mxu0 0.0
    %3518 = vmatpush1.msra.mxu0 0.0
    %3519 = vmatprep.subr.mxu0 0.0
    %3520 = vmatpush1.msra.mxu0 0.0
    %3521 = vmatprep.subr.mxu0 0.0
    %3522 = vmatpush1.msra.mxu0 0.0
    %3523 = vmatprep.subr.mxu0 0.0
    %3524 = vmatpush1.msra.mxu0 0.0
    %3525 = vmatprep.subr.mxu0 0.0
    %3526 = vmatpush1.msra.mxu0 0.0
    %3527 = vmatprep.subr.mxu0 0.0
    %3528 = vmatpush1.msra.mxu0 0.0
    %3529 = vmatprep.subr.mxu0 0.0
    %3530 = vmatpush1.msra.mxu0 0.0
    %3531 = vmatprep.subr.mxu0 0.0
    %3532 = vmatpush1.msra.mxu0 0.0
    %3533 = vmatprep.subr.mxu0 0.0
    %3534 = vmatpush1.msra.mxu0 0.0
    %3535 = vmatprep.subr.mxu0 0.0
    %3536 = vmatpush1.msra.mxu0 0.0
    %3537 = vmatprep.subr.mxu0 0.0
    %3538 = vmatpush1.msra.mxu0 0.0
    %3539 = vmatprep.subr.mxu0 0.0
    %3540 = vmatpush1.msra.mxu0 0.0
    %3541 = vmatprep.subr.mxu0 0.0
    %3542 = vmatpush1.msra.mxu0 0.0
    %3543 = vmatprep.subr.mxu0 0.0
    %3544 = vmatpush1.msra.mxu0 0.0
    %3545 = vmatprep.subr.mxu0 0.0
    %3546 = vmatpush1.msra.mxu0 0.0
    %3547 = vmatprep.subr.mxu0 0.0
    %3548 = vmatpush1.msra.mxu0 0.0
    %3549 = vmatprep.subr.mxu0 0.0
    %3550 = vmatpush1.msra.mxu0 0.0
    %3551 = vmatprep.subr.mxu0 0.0
    %3552 = vmatpush1.msra.mxu0 0.0
    %3553 = vmatprep.subr.mxu0 0.0
    %3554 = vmatpush1.msra.mxu0 0.0
    %3555 = vmatprep.subr.mxu0 0.0
    %3556 = vmatpush1.msra.mxu0 0.0
    %3557 = vmatprep.mubr.f32.mxu0 0.0
    %3558 = vmatmul.mubr.f32.gmra.mrb[0].mxu0 %v3489
    %v3559 = vpop.f32.mrb[0].mxu0
    %v3560 = vadd.f32 0.0, %v3559
    %v3561 = vpop.f32.mrb[0].mxu0
    %3562 = vmatprep.mubr.f32.mxu0 0.0
    %3563 = vmatmul.mubr.f32.gmra.mrb[0].mxu0 %v3491
    %v3564 = vpop.f32.mrb[0].mxu0
    %v3565 = vadd.f32 0.0, %v3564
    %v3566 = vpop.f32.mrb[0].mxu0
    %3567 = vdwg.mxu0
    %v3569 = vsel %vm316, %v3196, 0
    %v3572 = vsel %vm316, %v3197, 0
    %3574 = vmatprep.subr.mxu0 0.0
    %3575 = vmatpush1.msra.mxu0 %v3481
    %3576 = vmatprep.subr.mxu0 0.0
    %3577 = vmatpush1.msra.mxu0 %v3482
    %3578 = vmatprep.subr.mxu0 0.0
    %3579 = vmatpush1.msra.mxu0 %v3483
    %3580 = vmatprep.subr.mxu0 0.0
    %3581 = vmatpush1.msra.mxu0 %v3484
    %3582 = vmatprep.subr.mxu0 0.0
    %3583 = vmatpush1.msra.mxu0 0.0
    %3584 = vmatprep.subr.mxu0 0.0
    %3585 = vmatpush1.msra.mxu0 0.0
    %3586 = vmatprep.subr.mxu0 0.0
    %3587 = vmatpush1.msra.mxu0 0.0
    %3588 = vmatprep.subr.mxu0 0.0
    %3589 = vmatpush1.msra.mxu0 0.0
    %3590 = vmatprep.subr.mxu0 0.0
    %3591 = vmatpush1.msra.mxu0 0.0
    %3592 = vmatprep.subr.mxu0 0.0
    %3593 = vmatpush1.msra.mxu0 0.0
    %3594 = vmatprep.subr.mxu0 0.0
    %3595 = vmatpush1.msra.mxu0 0.0
    %3596 = vmatprep.subr.mxu0 0.0
    %3597 = vmatpush1.msra.mxu0 0.0
    %3598 = vmatprep.subr.mxu0 0.0
    %3599 = vmatpush1.msra.mxu0 0.0
    %3600 = vmatprep.subr.mxu0 0.0
    %3601 = vmatpush1.msra.mxu0 0.0
    %3602 = vmatprep.subr.mxu0 0.0
    %3603 = vmatpush1.msra.mxu0 0.0
    %3604 = vmatprep.subr.mxu0 0.0
    %3605 = vmatpush1.msra.mxu0 0.0
    %3606 = vmatprep.subr.mxu0 0.0
    %3607 = vmatpush1.msra.mxu0 0.0
    %3608 = vmatprep.subr.mxu0 0.0
    %3609 = vmatpush1.msra.mxu0 0.0
    %3610 = vmatprep.subr.mxu0 0.0
    %3611 = vmatpush1.msra.mxu0 0.0
    %3612 = vmatprep.subr.mxu0 0.0
    %3613 = vmatpush1.msra.mxu0 0.0
    %3614 = vmatprep.subr.mxu0 0.0
    %3615 = vmatpush1.msra.mxu0 0.0
    %3616 = vmatprep.subr.mxu0 0.0
    %3617 = vmatpush1.msra.mxu0 0.0
    %3618 = vmatprep.subr.mxu0 0.0
    %3619 = vmatpush1.msra.mxu0 0.0
    %3620 = vmatprep.subr.mxu0 0.0
    %3621 = vmatpush1.msra.mxu0 0.0
    %3622 = vmatprep.subr.mxu0 0.0
    %3623 = vmatpush1.msra.mxu0 0.0
    %3624 = vmatprep.subr.mxu0 0.0
    %3625 = vmatpush1.msra.mxu0 0.0
    %3626 = vmatprep.subr.mxu0 0.0
    %3627 = vmatpush1.msra.mxu0 0.0
    %3628 = vmatprep.subr.mxu0 0.0
    %3629 = vmatpush1.msra.mxu0 0.0
    %3630 = vmatprep.subr.mxu0 0.0
    %3631 = vmatpush1.msra.mxu0 0.0
    %3632 = vmatprep.subr.mxu0 0.0
    %3633 = vmatpush1.msra.mxu0 0.0
    %3634 = vmatprep.subr.mxu0 0.0
    %3635 = vmatpush1.msra.mxu0 0.0
    %3636 = vmatprep.subr.mxu0 0.0
    %3637 = vmatpush1.msra.mxu0 0.0
    %3638 = vmatprep.mubr.f32.mxu0 0.0
    %3639 = vmatmul.mubr.f32.gmra.mrb[0].mxu0 %v3569
    %v3640 = vpop.f32.mrb[0].mxu0
    %v3641 = vadd.f32 %v3560, %v3640
    %v3642 = vpop.f32.mrb[0].mxu0
    %3643 = vmatprep.mubr.f32.mxu0 0.0
    %3644 = vmatmul.mubr.f32.gmra.mrb[0].mxu0 %v3572
    %v3645 = vpop.f32.mrb[0].mxu0
    %v3646 = vadd.f32 %v3565, %v3645
    %v3647 = vpop.f32.mrb[0].mxu0
    %3648 = vdwg.mxu0
    %v3649 = vld [vmem:[#allocation22] sm:$0x1]
    %v3651 = vlaneseq
    %v3652 = vshrl.u32 %v3651, 7
    %v3653 = vsub.s32 0, %v3652
    %v3654 = vrot.slane %v3649, %v3653
    %v3656 = vadd.f32 %v3641, %v3654
    %v3657 = vadd.f32 %v3646, %v3654
    %v3658 = vld [vmem:[#allocation25] sm:$0xff]
    %v3659 = vld [vmem:[#allocation25 + $0x8] sm:$0xff]
    %v3660 = vld [vmem:[#allocation25 + $0x10] sm:$0xff]
    %v3661 = vld [vmem:[#allocation25 + $0x18] sm:$0xff]
    %v3662 = vld [vmem:[#allocation26] sm:$0xff]
    %v3663 = vld [vmem:[#allocation26 + $0x8] sm:$0xff]
    %v3664 = vld [vmem:[#allocation26 + $0x10] sm:$0xff]
    %v3665 = vld [vmem:[#allocation26 + $0x18] sm:$0xff]
    %3666 = vmatprep.subr.mxu0 0.0
    %3667 = vmatpush1.msra.mxu0 %v3662
    %3668 = vmatprep.subr.mxu0 0.0
    %3669 = vmatpush1.msra.mxu0 %v3663
    %3670 = vmatprep.subr.mxu0 0.0
    %3671 = vmatpush1.msra.mxu0 %v3664
    %3672 = vmatprep.subr.mxu0 0.0
    %3673 = vmatpush1.msra.mxu0 %v3665
    %3674 = vmatprep.subr.mxu0 0.0
    %3675 = vmatpush1.msra.mxu0 0.0
    %3676 = vmatprep.subr.mxu0 0.0
    %3677 = vmatpush1.msra.mxu0 0.0
    %3678 = vmatprep.subr.mxu0 0.0
    %3679 = vmatpush1.msra.mxu0 0.0
    %3680 = vmatprep.subr.mxu0 0.0
    %3681 = vmatpush1.msra.mxu0 0.0
    %3682 = vmatprep.subr.mxu0 0.0
    %3683 = vmatpush1.msra.mxu0 0.0
    %3684 = vmatprep.subr.mxu0 0.0
    %3685 = vmatpush1.msra.mxu0 0.0
    %3686 = vmatprep.subr.mxu0 0.0
    %3687 = vmatpush1.msra.mxu0 0.0
    %3688 = vmatprep.subr.mxu0 0.0
    %3689 = vmatpush1.msra.mxu0 0.0
    %3690 = vmatprep.subr.mxu0 0.0
    %3691 = vmatpush1.msra.mxu0 0.0
    %3692 = vmatprep.subr.mxu0 0.0
    %3693 = vmatpush1.msra.mxu0 0.0
    %3694 = vmatprep.subr.mxu0 0.0
    %3695 = vmatpush1.msra.mxu0 0.0
    %3696 = vmatprep.subr.mxu0 0.0
    %3697 = vmatpush1.msra.mxu0 0.0
    %3698 = vmatprep.subr.mxu0 0.0
    %3699 = vmatpush1.msra.mxu0 0.0
    %3700 = vmatprep.subr.mxu0 0.0
    %3701 = vmatpush1.msra.mxu0 0.0
    %3702 = vmatprep.subr.mxu0 0.0
    %3703 = vmatpush1.msra.mxu0 0.0
    %3704 = vmatprep.subr.mxu0 0.0
    %3705 = vmatpush1.msra.mxu0 0.0
    %3706 = vmatprep.subr.mxu0 0.0
    %3707 = vmatpush1.msra.mxu0 0.0
    %3708 = vmatprep.subr.mxu0 0.0
    %3709 = vmatpush1.msra.mxu0 0.0
    %3710 = vmatprep.subr.mxu0 0.0
    %3711 = vmatpush1.msra.mxu0 0.0
    %3712 = vmatprep.subr.mxu0 0.0
    %3713 = vmatpush1.msra.mxu0 0.0
    %3714 = vmatprep.subr.mxu0 0.0
    %3715 = vmatpush1.msra.mxu0 0.0
    %3716 = vmatprep.subr.mxu0 0.0
    %3717 = vmatpush1.msra.mxu0 0.0
    %3718 = vmatprep.subr.mxu0 0.0
    %3719 = vmatpush1.msra.mxu0 0.0
    %3720 = vmatprep.subr.mxu0 0.0
    %3721 = vmatpush1.msra.mxu0 0.0
    %3722 = vmatprep.subr.mxu0 0.0
    %3723 = vmatpush1.msra.mxu0 0.0
    %3724 = vmatprep.subr.mxu0 0.0
    %3725 = vmatpush1.msra.mxu0 0.0
    %3726 = vmatprep.subr.mxu0 0.0
    %3727 = vmatpush1.msra.mxu0 0.0
    %3728 = vmatprep.subr.mxu0 0.0
    %3729 = vmatpush1.msra.mxu0 0.0
    %3730 = vmatprep.mubr.f32.mxu0 0.0
    %3731 = vmatmul.mubr.f32.gmra.mrb[0].mxu0 %v3489
    %v3732 = vpop.f32.mrb[0].mxu0
    %v3733 = vadd.f32 0.0, %v3732
    %v3734 = vpop.f32.mrb[0].mxu0
    %3735 = vmatprep.mubr.f32.mxu0 0.0
    %3736 = vmatmul.mubr.f32.gmra.mrb[0].mxu0 %v3491
    %v3737 = vpop.f32.mrb[0].mxu0
    %v3738 = vadd.f32 0.0, %v3737
    %v3739 = vpop.f32.mrb[0].mxu0
    %3740 = vdwg.mxu0
    %3741 = vmatprep.subr.mxu0 0.0
    %3742 = vmatpush1.msra.mxu0 %v3658
    %3743 = vmatprep.subr.mxu0 0.0
    %3744 = vmatpush1.msra.mxu0 %v3659
    %3745 = vmatprep.subr.mxu0 0.0
    %3746 = vmatpush1.msra.mxu0 %v3660
    %3747 = vmatprep.subr.mxu0 0.0
    %3748 = vmatpush1.msra.mxu0 %v3661
    %3749 = vmatprep.subr.mxu0 0.0
    %3750 = vmatpush1.msra.mxu0 0.0
    %3751 = vmatprep.subr.mxu0 0.0
    %3752 = vmatpush1.msra.mxu0 0.0
    %3753 = vmatprep.subr.mxu0 0.0
    %3754 = vmatpush1.msra.mxu0 0.0
    %3755 = vmatprep.subr.mxu0 0.0
    %3756 = vmatpush1.msra.mxu0 0.0
    %3757 = vmatprep.subr.mxu0 0.0
    %3758 = vmatpush1.msra.mxu0 0.0
    %3759 = vmatprep.subr.mxu0 0.0
    %3760 = vmatpush1.msra.mxu0 0.0
    %3761 = vmatprep.subr.mxu0 0.0
    %3762 = vmatpush1.msra.mxu0 0.0
    %3763 = vmatprep.subr.mxu0 0.0
    %3764 = vmatpush1.msra.mxu0 0.0
    %3765 = vmatprep.subr.mxu0 0.0
    %3766 = vmatpush1.msra.mxu0 0.0
    %3767 = vmatprep.subr.mxu0 0.0
    %3768 = vmatpush1.msra.mxu0 0.0
    %3769 = vmatprep.subr.mxu0 0.0
    %3770 = vmatpush1.msra.mxu0 0.0
    %3771 = vmatprep.subr.mxu0 0.0
    %3772 = vmatpush1.msra.mxu0 0.0
    %3773 = vmatprep.subr.mxu0 0.0
    %3774 = vmatpush1.msra.mxu0 0.0
    %3775 = vmatprep.subr.mxu0 0.0
    %3776 = vmatpush1.msra.mxu0 0.0
    %3777 = vmatprep.subr.mxu0 0.0
    %3778 = vmatpush1.msra.mxu0 0.0
    %3779 = vmatprep.subr.mxu0 0.0
    %3780 = vmatpush1.msra.mxu0 0.0
    %3781 = vmatprep.subr.mxu0 0.0
    %3782 = vmatpush1.msra.mxu0 0.0
    %3783 = vmatprep.subr.mxu0 0.0
    %3784 = vmatpush1.msra.mxu0 0.0
    %3785 = vmatprep.subr.mxu0 0.0
    %3786 = vmatpush1.msra.mxu0 0.0
    %3787 = vmatprep.subr.mxu0 0.0
    %3788 = vmatpush1.msra.mxu0 0.0
    %3789 = vmatprep.subr.mxu0 0.0
    %3790 = vmatpush1.msra.mxu0 0.0
    %3791 = vmatprep.subr.mxu0 0.0
    %3792 = vmatpush1.msra.mxu0 0.0
    %3793 = vmatprep.subr.mxu0 0.0
    %3794 = vmatpush1.msra.mxu0 0.0
    %3795 = vmatprep.subr.mxu0 0.0
    %3796 = vmatpush1.msra.mxu0 0.0
    %3797 = vmatprep.subr.mxu0 0.0
    %3798 = vmatpush1.msra.mxu0 0.0
    %3799 = vmatprep.subr.mxu0 0.0
    %3800 = vmatpush1.msra.mxu0 0.0
    %3801 = vmatprep.subr.mxu0 0.0
    %3802 = vmatpush1.msra.mxu0 0.0
    %3803 = vmatprep.subr.mxu0 0.0
    %3804 = vmatpush1.msra.mxu0 0.0
    %3805 = vmatprep.mubr.f32.mxu0 0.0
    %3806 = vmatmul.mubr.f32.gmra.mrb[0].mxu0 %v3569
    %v3807 = vpop.f32.mrb[0].mxu0
    %v3808 = vadd.f32 %v3733, %v3807
    %v3809 = vpop.f32.mrb[0].mxu0
    %3810 = vmatprep.mubr.f32.mxu0 0.0
    %3811 = vmatmul.mubr.f32.gmra.mrb[0].mxu0 %v3572
    %v3812 = vpop.f32.mrb[0].mxu0
    %v3813 = vadd.f32 %v3738, %v3812
    %v3814 = vpop.f32.mrb[0].mxu0
    %3815 = vdwg.mxu0
    %v3816 = vld [vmem:[%s18] sm:$0x1]
    %v3818 = vlaneseq
    %v3819 = vshrl.u32 %v3818, 7
    %v3820 = vsub.s32 0, %v3819
    %v3821 = vrot.slane %v3816, %v3820
    %v3823 = vadd.f32 %v3808, %v3821
    %v3824 = vadd.f32 %v3813, %v3821
    %v3825 = vld [vmem:[#allocation20] sm:$0xff]
    %v3826 = vld [vmem:[#allocation20 + $0x8] sm:$0xff]
    %v3827 = vld [vmem:[#allocation20 + $0x10] sm:$0xff]
    %v3828 = vld [vmem:[#allocation20 + $0x18] sm:$0xff]
    %v3829 = vld [vmem:[%s17] sm:$0xff]
    %v3830 = vld [vmem:[%s17 + $0x8] sm:$0xff]
    %v3831 = vld [vmem:[%s17 + $0x10] sm:$0xff]
    %v3832 = vld [vmem:[%s17 + $0x18] sm:$0xff]
    %v3833 = vld [vmem:[#allocation23] sm:$0x1]
    %v3835 = vlaneseq
    %v3836 = vshrl.u32 %v3835, 7
    %v3837 = vsub.s32 0, %v3836
    %v3838 = vrot.slane %v3833, %v3837
    %v3839 = vld [vmem:[%s19] sm:$0x1]
    %v3841 = vlaneseq
    %v3842 = vshrl.u32 %v3841, 7
    %v3843 = vsub.s32 0, %v3842
    %v3844 = vrot.slane %v3839, %v3843
    %3845 = vmatprep.subr.mxu0 0.0
    %3846 = vmatpush1.msra.mxu0 %v3825
    %3847 = vmatprep.subr.mxu0 0.0
    %3848 = vmatpush1.msra.mxu0 %v3826
    %3849 = vmatprep.subr.mxu0 0.0
    %3850 = vmatpush1.msra.mxu0 %v3827
    %3851 = vmatprep.subr.mxu0 0.0
    %3852 = vmatpush1.msra.mxu0 %v3828
    %3853 = vmatprep.subr.mxu0 0.0
    %3854 = vmatpush1.msra.mxu0 0.0
    %3855 = vmatprep.subr.mxu0 0.0
    %3856 = vmatpush1.msra.mxu0 0.0
    %3857 = vmatprep.subr.mxu0 0.0
    %3858 = vmatpush1.msra.mxu0 0.0
    %3859 = vmatprep.subr.mxu0 0.0
    %3860 = vmatpush1.msra.mxu0 0.0
    %3861 = vmatprep.subr.mxu0 0.0
    %3862 = vmatpush1.msra.mxu0 0.0
    %3863 = vmatprep.subr.mxu0 0.0
    %3864 = vmatpush1.msra.mxu0 0.0
    %3865 = vmatprep.subr.mxu0 0.0
    %3866 = vmatpush1.msra.mxu0 0.0
    %3867 = vmatprep.subr.mxu0 0.0
    %3868 = vmatpush1.msra.mxu0 0.0
    %3869 = vmatprep.subr.mxu0 0.0
    %3870 = vmatpush1.msra.mxu0 0.0
    %3871 = vmatprep.subr.mxu0 0.0
    %3872 = vmatpush1.msra.mxu0 0.0
    %3873 = vmatprep.subr.mxu0 0.0
    %3874 = vmatpush1.msra.mxu0 0.0
    %3875 = vmatprep.subr.mxu0 0.0
    %3876 = vmatpush1.msra.mxu0 0.0
    %3877 = vmatprep.subr.mxu0 0.0
    %3878 = vmatpush1.msra.mxu0 0.0
    %3879 = vmatprep.subr.mxu0 0.0
    %3880 = vmatpush1.msra.mxu0 0.0
    %3881 = vmatprep.subr.mxu0 0.0
    %3882 = vmatpush1.msra.mxu0 0.0
    %3883 = vmatprep.subr.mxu0 0.0
    %3884 = vmatpush1.msra.mxu0 0.0
    %3885 = vmatprep.subr.mxu0 0.0
    %3886 = vmatpush1.msra.mxu0 0.0
    %3887 = vmatprep.subr.mxu0 0.0
    %3888 = vmatpush1.msra.mxu0 0.0
    %3889 = vmatprep.subr.mxu0 0.0
    %3890 = vmatpush1.msra.mxu0 0.0
    %3891 = vmatprep.subr.mxu0 0.0
    %3892 = vmatpush1.msra.mxu0 0.0
    %3893 = vmatprep.subr.mxu0 0.0
    %3894 = vmatpush1.msra.mxu0 0.0
    %3895 = vmatprep.subr.mxu0 0.0
    %3896 = vmatpush1.msra.mxu0 0.0
    %3897 = vmatprep.subr.mxu0 0.0
    %3898 = vmatpush1.msra.mxu0 0.0
    %3899 = vmatprep.subr.mxu0 0.0
    %3900 = vmatpush1.msra.mxu0 0.0
    %3901 = vmatprep.subr.mxu0 0.0
    %3902 = vmatpush1.msra.mxu0 0.0
    %3903 = vmatprep.subr.mxu0 0.0
    %3904 = vmatpush1.msra.mxu0 0.0
    %3905 = vmatprep.subr.mxu0 0.0
    %3906 = vmatpush1.msra.mxu0 0.0
    %3907 = vmatprep.subr.mxu0 0.0
    %3908 = vmatpush1.msra.mxu0 0.0
    %3909 = vmatprep.mubr.f32.mxu0 0.0
    %3910 = vmatmul.mubr.f32.gmra.mrb[0].mxu0 %v505
    %v3911 = vpop.f32.mrb[0].mxu0
    %v3912 = vadd.f32 0.0, %v3911
    %v3913 = vpop.f32.mrb[0].mxu0
    %3914 = vdwg.mxu0
    %v3916 = vrot.slane %v3912, 1
    %v3919 = vadd.f32 %v3656, %v3912
    %v3920 = vadd.f32 %v3657, %v3916
    %v3921 = vxor.u32 %v3919, 2147483648
    %v3922 = vxor.u32 %v3920, 2147483648
    %v3923 = vmul.f32 %v3921, 1.442695
    %v3924 = vpow.pop %v3923
    %v3925 = vmul.f32 %v3922, 1.442695
    %v3926 = vpow.pop %v3925
    %v3927 = vadd.f32 %v3924, 1.0
    %v3928 = vadd.f32 %v3926, 1.0
    %v3929 = vrcp.pop %v3927
    %v3930 = vmul.f32 1.0, %v3929
    %v3931 = vrcp.pop %v3928
    %v3932 = vmul.f32 1.0, %v3931
    %3933 = vrot.lane.b32.xlu0 %v3838, 64
    %v3934 = vpop.permute.xlu0 %3933
    %v3936 = vadd.f32 %v3912, %v3934
    %v3938 = vrot.slane %v3936, 1
    %3939 = vrot.lane.b32.xlu0 %v3936, 64
    %v3940 = vpop.permute.xlu0 %3939
    %3941 = vrot.lane.b32.xlu0 %v3938, 64
    %v3942 = vpop.permute.xlu0 %3941
    %v3945 = vmul.f32 %v3930, %v3940
    %v3946 = vmul.f32 %v3932, %v3942
    %3949 = vrot.lane.b32.xlu0 %v3945, 64
    %v3950 = vpop.permute.xlu0 %3949
    %3951 = vrot.lane.b32.xlu0 %v3946, 64
    %v3952 = vpop.permute.xlu0 %3951
    %v3955 = vadd.f32 %v3656, %v3950
    %v3956 = vadd.f32 %v3657, %v3952
    %v3957 = vtanh.pop %v3955
    %v3958 = vtanh.pop %v3956
    %v3959 = vsub.f32 1.0, %v3930
    %v3960 = vsub.f32 1.0, %v3932
    %3963 = vrot.lane.b32.xlu0 %v3957, 96
    %v3964 = vpop.permute.xlu0 %3963
    %3965 = vrot.lane.b32.xlu0 %v3958, 96
    %v3966 = vpop.permute.xlu0 %3965
    %v3969 = vmul.f32 %v3959, %v3964
    %v3970 = vmul.f32 %v3960, %v3966
    %v3971 = vmul.f32 %v3930, 0.0
    %v3972 = vmul.f32 %v3932, 0.0
    %v3973 = vadd.f32 %v3969, %v3971
    %v3974 = vadd.f32 %v3970, %v3972
    %v3977 = vrot.slane %v3974, 7
    %v3978 = vsel %vm640, %v3977, %v3973
    %3979 = vrot.lane.b32.xlu0 %v3978, 96
    %v3980 = vpop.permute.xlu0 %3979
    %v3982 = vmul.f32 %v273, %v3980
    %v3983 = vadd.f32 %v3982, 0.0
    %v3984 = vmul.f32 %v273, %v3983
    %3985 = vmatprep.subr.mxu0 0.0
    %3986 = vmatpush1.msra.mxu0 %v3829
    %3987 = vmatprep.subr.mxu0 0.0
    %3988 = vmatpush1.msra.mxu0 %v3830
    %3989 = vmatprep.subr.mxu0 0.0
    %3990 = vmatpush1.msra.mxu0 %v3831
    %3991 = vmatprep.subr.mxu0 0.0
    %3992 = vmatpush1.msra.mxu0 %v3832
    %3993 = vmatprep.subr.mxu0 0.0
    %3994 = vmatpush1.msra.mxu0 0.0
    %3995 = vmatprep.subr.mxu0 0.0
    %3996 = vmatpush1.msra.mxu0 0.0
    %3997 = vmatprep.subr.mxu0 0.0
    %3998 = vmatpush1.msra.mxu0 0.0
    %3999 = vmatprep.subr.mxu0 0.0
    %4000 = vmatpush1.msra.mxu0 0.0
    %4001 = vmatprep.subr.mxu0 0.0
    %4002 = vmatpush1.msra.mxu0 0.0
    %4003 = vmatprep.subr.mxu0 0.0
    %4004 = vmatpush1.msra.mxu0 0.0
    %4005 = vmatprep.subr.mxu0 0.0
    %4006 = vmatpush1.msra.mxu0 0.0
    %4007 = vmatprep.subr.mxu0 0.0
    %4008 = vmatpush1.msra.mxu0 0.0
    %4009 = vmatprep.subr.mxu0 0.0
    %4010 = vmatpush1.msra.mxu0 0.0
    %4011 = vmatprep.subr.mxu0 0.0
    %4012 = vmatpush1.msra.mxu0 0.0
    %4013 = vmatprep.subr.mxu0 0.0
    %4014 = vmatpush1.msra.mxu0 0.0
    %4015 = vmatprep.subr.mxu0 0.0
    %4016 = vmatpush1.msra.mxu0 0.0
    %4017 = vmatprep.subr.mxu0 0.0
    %4018 = vmatpush1.msra.mxu0 0.0
    %4019 = vmatprep.subr.mxu0 0.0
    %4020 = vmatpush1.msra.mxu0 0.0
    %4021 = vmatprep.subr.mxu0 0.0
    %4022 = vmatpush1.msra.mxu0 0.0
    %4023 = vmatprep.subr.mxu0 0.0
    %4024 = vmatpush1.msra.mxu0 0.0
    %4025 = vmatprep.subr.mxu0 0.0
    %4026 = vmatpush1.msra.mxu0 0.0
    %4027 = vmatprep.subr.mxu0 0.0
    %4028 = vmatpush1.msra.mxu0 0.0
    %4029 = vmatprep.subr.mxu0 0.0
    %4030 = vmatpush1.msra.mxu0 0.0
    %4031 = vmatprep.subr.mxu0 0.0
    %4032 = vmatpush1.msra.mxu0 0.0
    %4033 = vmatprep.subr.mxu0 0.0
    %4034 = vmatpush1.msra.mxu0 0.0
    %4035 = vmatprep.subr.mxu0 0.0
    %4036 = vmatpush1.msra.mxu0 0.0
    %4037 = vmatprep.subr.mxu0 0.0
    %4038 = vmatpush1.msra.mxu0 0.0
    %4039 = vmatprep.subr.mxu0 0.0
    %4040 = vmatpush1.msra.mxu0 0.0
    %4041 = vmatprep.subr.mxu0 0.0
    %4042 = vmatpush1.msra.mxu0 0.0
    %4043 = vmatprep.subr.mxu0 0.0
    %4044 = vmatpush1.msra.mxu0 0.0
    %4045 = vmatprep.subr.mxu0 0.0
    %4046 = vmatpush1.msra.mxu0 0.0
    %4047 = vmatprep.subr.mxu0 0.0
    %4048 = vmatpush1.msra.mxu0 0.0
    %4049 = vmatprep.mubr.f32.mxu0 0.0
    %4050 = vmatmul.mubr.f32.gmra.mrb[0].mxu0 %v505
    %v4051 = vpop.f32.mrb[0].mxu0
    %v4052 = vadd.f32 0.0, %v4051
    %v4053 = vpop.f32.mrb[0].mxu0
    %4054 = vdwg.mxu0
    %v4056 = vrot.slane %v4052, 1
    %v4057 = vrot.slane %v4052, 2
    %v4060 = vadd.f32 %v3823, %v4056
    %v4061 = vadd.f32 %v3824, %v4057
    %v4062 = vxor.u32 %v4060, 2147483648
    %v4063 = vxor.u32 %v4061, 2147483648
    %v4064 = vmul.f32 %v4062, 1.442695
    %v4065 = vpow.pop %v4064
    %v4066 = vmul.f32 %v4063, 1.442695
    %v4067 = vpow.pop %v4066
    %v4068 = vadd.f32 %v4065, 1.0
    %v4069 = vadd.f32 %v4067, 1.0
    %v4070 = vrcp.pop %v4068
    %v4071 = vmul.f32 1.0, %v4070
    %v4072 = vrcp.pop %v4069
    %v4073 = vmul.f32 1.0, %v4072
    %4074 = vrot.lane.b32.xlu0 %v3844, 64
    %v4075 = vpop.permute.xlu0 %4074
    %v4077 = vadd.f32 %v4052, %v4075
    %v4079 = vrot.slane %v4077, 1
    %v4080 = vrot.slane %v4077, 2
    %4081 = vrot.lane.b32.xlu0 %v4079, 64
    %v4082 = vpop.permute.xlu0 %4081
    %4083 = vrot.lane.b32.xlu0 %v4080, 64
    %v4084 = vpop.permute.xlu0 %4083
    %v4087 = vmul.f32 %v4071, %v4082
    %v4088 = vmul.f32 %v4073, %v4084
    %4091 = vrot.lane.b32.xlu0 %v4087, 64
    %v4092 = vpop.permute.xlu0 %4091
    %4093 = vrot.lane.b32.xlu0 %v4088, 64
    %v4094 = vpop.permute.xlu0 %4093
    %v4097 = vadd.f32 %v3823, %v4092
    %v4098 = vadd.f32 %v3824, %v4094
    %v4099 = vtanh.pop %v4097
    %v4100 = vtanh.pop %v4098
    %v4101 = vsub.f32 1.0, %v4071
    %v4102 = vsub.f32 1.0, %v4073
    %4105 = vrot.lane.b32.xlu0 %v4099, 96
    %v4106 = vpop.permute.xlu0 %4105
    %4107 = vrot.lane.b32.xlu0 %v4100, 96
    %v4108 = vpop.permute.xlu0 %4107
    %v4111 = vmul.f32 %v4101, %v4106
    %v4112 = vmul.f32 %v4102, %v4108
    %v4113 = vmul.f32 %v4071, 0.0
    %v4114 = vmul.f32 %v4073, 0.0
    %v4115 = vadd.f32 %v4111, %v4113
    %v4116 = vadd.f32 %v4112, %v4114
    %v4119 = vrot.slane %v4115, 7
    %v4120 = vrot.slane %v4116, 6
    %v4121 = vsel %vm640, %v4120, %v4119
    %4122 = vrot.lane.b32.xlu0 %v4121, 96
    %v4123 = vpop.permute.xlu0 %4122
    %v4125 = vmul.f32 %v301, %v4123
    %v4126 = vadd.f32 %v4125, 0.0
    %v4127 = vmul.f32 %v301, %v4126
    %v4129 = vsel %vm316, %v3983, 0
    %4131 = vmatprep.subr.mxu0 0.0
    %4132 = vmatpush1.msra.mxu0 %v3825
    %4133 = vmatprep.subr.mxu0 0.0
    %4134 = vmatpush1.msra.mxu0 %v3826
    %4135 = vmatprep.subr.mxu0 0.0
    %4136 = vmatpush1.msra.mxu0 %v3827
    %4137 = vmatprep.subr.mxu0 0.0
    %4138 = vmatpush1.msra.mxu0 %v3828
    %4139 = vmatprep.subr.mxu0 0.0
    %4140 = vmatpush1.msra.mxu0 0.0
    %4141 = vmatprep.subr.mxu0 0.0
    %4142 = vmatpush1.msra.mxu0 0.0
    %4143 = vmatprep.subr.mxu0 0.0
    %4144 = vmatpush1.msra.mxu0 0.0
    %4145 = vmatprep.subr.mxu0 0.0
    %4146 = vmatpush1.msra.mxu0 0.0
    %4147 = vmatprep.subr.mxu0 0.0
    %4148 = vmatpush1.msra.mxu0 0.0
    %4149 = vmatprep.subr.mxu0 0.0
    %4150 = vmatpush1.msra.mxu0 0.0
    %4151 = vmatprep.subr.mxu0 0.0
    %4152 = vmatpush1.msra.mxu0 0.0
    %4153 = vmatprep.subr.mxu0 0.0
    %4154 = vmatpush1.msra.mxu0 0.0
    %4155 = vmatprep.subr.mxu0 0.0
    %4156 = vmatpush1.msra.mxu0 0.0
    %4157 = vmatprep.subr.mxu0 0.0
    %4158 = vmatpush1.msra.mxu0 0.0
    %4159 = vmatprep.subr.mxu0 0.0
    %4160 = vmatpush1.msra.mxu0 0.0
    %4161 = vmatprep.subr.mxu0 0.0
    %4162 = vmatpush1.msra.mxu0 0.0
    %4163 = vmatprep.subr.mxu0 0.0
    %4164 = vmatpush1.msra.mxu0 0.0
    %4165 = vmatprep.subr.mxu0 0.0
    %4166 = vmatpush1.msra.mxu0 0.0
    %4167 = vmatprep.subr.mxu0 0.0
    %4168 = vmatpush1.msra.mxu0 0.0
    %4169 = vmatprep.subr.mxu0 0.0
    %4170 = vmatpush1.msra.mxu0 0.0
    %4171 = vmatprep.subr.mxu0 0.0
    %4172 = vmatpush1.msra.mxu0 0.0
    %4173 = vmatprep.subr.mxu0 0.0
    %4174 = vmatpush1.msra.mxu0 0.0
    %4175 = vmatprep.subr.mxu0 0.0
    %4176 = vmatpush1.msra.mxu0 0.0
    %4177 = vmatprep.subr.mxu0 0.0
    %4178 = vmatpush1.msra.mxu0 0.0
    %4179 = vmatprep.subr.mxu0 0.0
    %4180 = vmatpush1.msra.mxu0 0.0
    %4181 = vmatprep.subr.mxu0 0.0
    %4182 = vmatpush1.msra.mxu0 0.0
    %4183 = vmatprep.subr.mxu0 0.0
    %4184 = vmatpush1.msra.mxu0 0.0
    %4185 = vmatprep.subr.mxu0 0.0
    %4186 = vmatpush1.msra.mxu0 0.0
    %4187 = vmatprep.subr.mxu0 0.0
    %4188 = vmatpush1.msra.mxu0 0.0
    %4189 = vmatprep.subr.mxu0 0.0
    %4190 = vmatpush1.msra.mxu0 0.0
    %4191 = vmatprep.subr.mxu0 0.0
    %4192 = vmatpush1.msra.mxu0 0.0
    %4193 = vmatprep.subr.mxu0 0.0
    %4194 = vmatpush1.msra.mxu0 0.0
    %4195 = vmatprep.mubr.f32.mxu0 0.0
    %4196 = vmatmul.mubr.f32.gmra.mrb[0].mxu0 %v4129
    %v4197 = vpop.f32.mrb[0].mxu0
    %v4198 = vadd.f32 0.0, %v4197
    %v4199 = vpop.f32.mrb[0].mxu0
    %4200 = vdwg.mxu0
    %v4202 = vrot.slane %v4198, 7
    %v4205 = vadd.f32 %v3656, %v4202
    %v4206 = vadd.f32 %v3657, %v4198
    %v4207 = vxor.u32 %v4205, 2147483648
    %v4208 = vxor.u32 %v4206, 2147483648
    %v4209 = vmul.f32 %v4207, 1.442695
    %v4210 = vpow.pop %v4209
    %v4211 = vmul.f32 %v4208, 1.442695
    %v4212 = vpow.pop %v4211
    %v4213 = vadd.f32 %v4210, 1.0
    %v4214 = vadd.f32 %v4212, 1.0
    %v4215 = vrcp.pop %v4213
    %v4216 = vmul.f32 1.0, %v4215
    %v4217 = vrcp.pop %v4214
    %v4218 = vmul.f32 1.0, %v4217
    %v4219 = vadd.f32 %v4198, %v3934
    %v4221 = vrot.slane %v4219, 7
    %4222 = vrot.lane.b32.xlu0 %v4221, 64
    %v4223 = vpop.permute.xlu0 %4222
    %4224 = vrot.lane.b32.xlu0 %v4219, 64
    %v4225 = vpop.permute.xlu0 %4224
    %v4228 = vmul.f32 %v4216, %v4223
    %v4229 = vmul.f32 %v4218, %v4225
    %4232 = vrot.lane.b32.xlu0 %v4228, 64
    %v4233 = vpop.permute.xlu0 %4232
    %4234 = vrot.lane.b32.xlu0 %v4229, 64
    %v4235 = vpop.permute.xlu0 %4234
    %v4238 = vadd.f32 %v3656, %v4233
    %v4239 = vadd.f32 %v3657, %v4235
    %v4240 = vtanh.pop %v4238
    %v4241 = vtanh.pop %v4239
    %v4242 = vsub.f32 1.0, %v4216
    %v4243 = vsub.f32 1.0, %v4218
    %4246 = vrot.lane.b32.xlu0 %v4240, 96
    %v4247 = vpop.permute.xlu0 %4246
    %4248 = vrot.lane.b32.xlu0 %v4241, 96
    %v4249 = vpop.permute.xlu0 %4248
    %v4252 = vmul.f32 %v4242, %v4247
    %v4253 = vmul.f32 %v4243, %v4249
    %v4254 = vrot.slane %v3983, 7
    %4255 = vrot.lane.b32.xlu0 %v4254, 32
    %v4256 = vpop.permute.xlu0 %4255
    %4257 = vrot.lane.b32.xlu0 %v3983, 32
    %v4258 = vpop.permute.xlu0 %4257
    %v4261 = vmul.f32 %v4216, %v4256
    %v4262 = vmul.f32 %v4218, %v4258
    %v4263 = vadd.f32 %v4252, %v4261
    %v4264 = vadd.f32 %v4253, %v4262
    %v4265 = vsub.f32 %v4263, %v4256
    %v4266 = vsub.f32 %v4264, %v4258
    %v4269 = vrot.slane %v4265, 1
    %v4270 = vsel %vm640, %v4266, %v4269
    %4271 = vrot.lane.b32.xlu0 %v4270, 96
    %v4272 = vpop.permute.xlu0 %4271
    %v4274 = vmul.f32 %v277, %v4272
    %v4275 = vadd.f32 %v3983, %v4274
    %v4276 = vmul.f32 %v277, %v4275
    %v4278 = vsel %vm316, %v4126, 0
    %4280 = vmatprep.subr.mxu0 0.0
    %4281 = vmatpush1.msra.mxu0 %v3829
    %4282 = vmatprep.subr.mxu0 0.0
    %4283 = vmatpush1.msra.mxu0 %v3830
    %4284 = vmatprep.subr.mxu0 0.0
    %4285 = vmatpush1.msra.mxu0 %v3831
    %4286 = vmatprep.subr.mxu0 0.0
    %4287 = vmatpush1.msra.mxu0 %v3832
    %4288 = vmatprep.subr.mxu0 0.0
    %4289 = vmatpush1.msra.mxu0 0.0
    %4290 = vmatprep.subr.mxu0 0.0
    %4291 = vmatpush1.msra.mxu0 0.0
    %4292 = vmatprep.subr.mxu0 0.0
    %4293 = vmatpush1.msra.mxu0 0.0
    %4294 = vmatprep.subr.mxu0 0.0
    %4295 = vmatpush1.msra.mxu0 0.0
    %4296 = vmatprep.subr.mxu0 0.0
    %4297 = vmatpush1.msra.mxu0 0.0
    %4298 = vmatprep.subr.mxu0 0.0
    %4299 = vmatpush1.msra.mxu0 0.0
    %4300 = vmatprep.subr.mxu0 0.0
    %4301 = vmatpush1.msra.mxu0 0.0
    %4302 = vmatprep.subr.mxu0 0.0
    %4303 = vmatpush1.msra.mxu0 0.0
    %4304 = vmatprep.subr.mxu0 0.0
    %4305 = vmatpush1.msra.mxu0 0.0
    %4306 = vmatprep.subr.mxu0 0.0
    %4307 = vmatpush1.msra.mxu0 0.0
    %4308 = vmatprep.subr.mxu0 0.0
    %4309 = vmatpush1.msra.mxu0 0.0
    %4310 = vmatprep.subr.mxu0 0.0
    %4311 = vmatpush1.msra.mxu0 0.0
    %4312 = vmatprep.subr.mxu0 0.0
    %4313 = vmatpush1.msra.mxu0 0.0
    %4314 = vmatprep.subr.mxu0 0.0
    %4315 = vmatpush1.msra.mxu0 0.0
    %4316 = vmatprep.subr.mxu0 0.0
    %4317 = vmatpush1.msra.mxu0 0.0
    %4318 = vmatprep.subr.mxu0 0.0
    %4319 = vmatpush1.msra.mxu0 0.0
    %4320 = vmatprep.subr.mxu0 0.0
    %4321 = vmatpush1.msra.mxu0 0.0
    %4322 = vmatprep.subr.mxu0 0.0
    %4323 = vmatpush1.msra.mxu0 0.0
    %4324 = vmatprep.subr.mxu0 0.0
    %4325 = vmatpush1.msra.mxu0 0.0
    %4326 = vmatprep.subr.mxu0 0.0
    %4327 = vmatpush1.msra.mxu0 0.0
    %4328 = vmatprep.subr.mxu0 0.0
    %4329 = vmatpush1.msra.mxu0 0.0
    %4330 = vmatprep.subr.mxu0 0.0
    %4331 = vmatpush1.msra.mxu0 0.0
    %4332 = vmatprep.subr.mxu0 0.0
    %4333 = vmatpush1.msra.mxu0 0.0
    %4334 = vmatprep.subr.mxu0 0.0
    %4335 = vmatpush1.msra.mxu0 0.0
    %4336 = vmatprep.subr.mxu0 0.0
    %4337 = vmatpush1.msra.mxu0 0.0
    %4338 = vmatprep.subr.mxu0 0.0
    %4339 = vmatpush1.msra.mxu0 0.0
    %4340 = vmatprep.subr.mxu0 0.0
    %4341 = vmatpush1.msra.mxu0 0.0
    %4342 = vmatprep.subr.mxu0 0.0
    %4343 = vmatpush1.msra.mxu0 0.0
    %4344 = vmatprep.mubr.f32.mxu0 0.0
    %4345 = vmatmul.mubr.f32.gmra.mrb[0].mxu0 %v4278
    %v4346 = vpop.f32.mrb[0].mxu0
    %v4347 = vadd.f32 0.0, %v4346
    %v4348 = vpop.f32.mrb[0].mxu0
    %4349 = vdwg.mxu0
    %v4351 = vrot.slane %v4347, 2
    %v4352 = vrot.slane %v4347, 3
    %v4355 = vadd.f32 %v3823, %v4351
    %v4356 = vadd.f32 %v3824, %v4352
    %v4357 = vxor.u32 %v4355, 2147483648
    %v4358 = vxor.u32 %v4356, 2147483648
    %v4359 = vmul.f32 %v4357, 1.442695
    %v4360 = vpow.pop %v4359
    %v4361 = vmul.f32 %v4358, 1.442695
    %v4362 = vpow.pop %v4361
    %v4363 = vadd.f32 %v4360, 1.0
    %v4364 = vadd.f32 %v4362, 1.0
    %v4365 = vrcp.pop %v4363
    %v4366 = vmul.f32 1.0, %v4365
    %v4367 = vrcp.pop %v4364
    %v4368 = vmul.f32 1.0, %v4367
    %v4369 = vadd.f32 %v4347, %v4075
    %v4371 = vrot.slane %v4369, 2
    %v4372 = vrot.slane %v4369, 3
    %4373 = vrot.lane.b32.xlu0 %v4371, 64
    %v4374 = vpop.permute.xlu0 %4373
    %4375 = vrot.lane.b32.xlu0 %v4372, 64
    %v4376 = vpop.permute.xlu0 %4375
    %v4379 = vmul.f32 %v4366, %v4374
    %v4380 = vmul.f32 %v4368, %v4376
    %4383 = vrot.lane.b32.xlu0 %v4379, 64
    %v4384 = vpop.permute.xlu0 %4383
    %4385 = vrot.lane.b32.xlu0 %v4380, 64
    %v4386 = vpop.permute.xlu0 %4385
    %v4389 = vadd.f32 %v3823, %v4384
    %v4390 = vadd.f32 %v3824, %v4386
    %v4391 = vtanh.pop %v4389
    %v4392 = vtanh.pop %v4390
    %v4393 = vsub.f32 1.0, %v4366
    %v4394 = vsub.f32 1.0, %v4368
    %4397 = vrot.lane.b32.xlu0 %v4391, 96
    %v4398 = vpop.permute.xlu0 %4397
    %4399 = vrot.lane.b32.xlu0 %v4392, 96
    %v4400 = vpop.permute.xlu0 %4399
    %v4403 = vmul.f32 %v4393, %v4398
    %v4404 = vmul.f32 %v4394, %v4400
    %v4405 = vrot.slane %v4126, 2
    %v4406 = vrot.slane %v4126, 3
    %4407 = vrot.lane.b32.xlu0 %v4405, 32
    %v4408 = vpop.permute.xlu0 %4407
    %4409 = vrot.lane.b32.xlu0 %v4406, 32
    %v4410 = vpop.permute.xlu0 %4409
    %v4413 = vmul.f32 %v4366, %v4408
    %v4414 = vmul.f32 %v4368, %v4410
    %v4415 = vadd.f32 %v4403, %v4413
    %v4416 = vadd.f32 %v4404, %v4414
    %v4417 = vsub.f32 %v4415, %v4408
    %v4418 = vsub.f32 %v4416, %v4410
    %v4421 = vrot.slane %v4417, 6
    %v4422 = vrot.slane %v4418, 5
    %v4423 = vsel %vm640, %v4422, %v4421
    %4424 = vrot.lane.b32.xlu0 %v4423, 96
    %v4425 = vpop.permute.xlu0 %4424
    %v4427 = vmul.f32 %v297, %v4425
    %v4428 = vadd.f32 %v4126, %v4427
    %v4429 = vmul.f32 %v297, %v4428
    %v4431 = vsel %vm316, %v4275, 0
    %4433 = vmatprep.subr.mxu0 0.0
    %4434 = vmatpush1.msra.mxu0 %v3825
    %4435 = vmatprep.subr.mxu0 0.0
    %4436 = vmatpush1.msra.mxu0 %v3826
    %4437 = vmatprep.subr.mxu0 0.0
    %4438 = vmatpush1.msra.mxu0 %v3827
    %4439 = vmatprep.subr.mxu0 0.0
    %4440 = vmatpush1.msra.mxu0 %v3828
    %4441 = vmatprep.subr.mxu0 0.0
    %4442 = vmatpush1.msra.mxu0 0.0
    %4443 = vmatprep.subr.mxu0 0.0
    %4444 = vmatpush1.msra.mxu0 0.0
    %4445 = vmatprep.subr.mxu0 0.0
    %4446 = vmatpush1.msra.mxu0 0.0
    %4447 = vmatprep.subr.mxu0 0.0
    %4448 = vmatpush1.msra.mxu0 0.0
    %4449 = vmatprep.subr.mxu0 0.0
    %4450 = vmatpush1.msra.mxu0 0.0
    %4451 = vmatprep.subr.mxu0 0.0
    %4452 = vmatpush1.msra.mxu0 0.0
    %4453 = vmatprep.subr.mxu0 0.0
    %4454 = vmatpush1.msra.mxu0 0.0
    %4455 = vmatprep.subr.mxu0 0.0
    %4456 = vmatpush1.msra.mxu0 0.0
    %4457 = vmatprep.subr.mxu0 0.0
    %4458 = vmatpush1.msra.mxu0 0.0
    %4459 = vmatprep.subr.mxu0 0.0
    %4460 = vmatpush1.msra.mxu0 0.0
    %4461 = vmatprep.subr.mxu0 0.0
    %4462 = vmatpush1.msra.mxu0 0.0
    %4463 = vmatprep.subr.mxu0 0.0
    %4464 = vmatpush1.msra.mxu0 0.0
    %4465 = vmatprep.subr.mxu0 0.0
    %4466 = vmatpush1.msra.mxu0 0.0
    %4467 = vmatprep.subr.mxu0 0.0
    %4468 = vmatpush1.msra.mxu0 0.0
    %4469 = vmatprep.subr.mxu0 0.0
    %4470 = vmatpush1.msra.mxu0 0.0
    %4471 = vmatprep.subr.mxu0 0.0
    %4472 = vmatpush1.msra.mxu0 0.0
    %4473 = vmatprep.subr.mxu0 0.0
    %4474 = vmatpush1.msra.mxu0 0.0
    %4475 = vmatprep.subr.mxu0 0.0
    %4476 = vmatpush1.msra.mxu0 0.0
    %4477 = vmatprep.subr.mxu0 0.0
    %4478 = vmatpush1.msra.mxu0 0.0
    %4479 = vmatprep.subr.mxu0 0.0
    %4480 = vmatpush1.msra.mxu0 0.0
    %4481 = vmatprep.subr.mxu0 0.0
    %4482 = vmatpush1.msra.mxu0 0.0
    %4483 = vmatprep.subr.mxu0 0.0
    %4484 = vmatpush1.msra.mxu0 0.0
    %4485 = vmatprep.subr.mxu0 0.0
    %4486 = vmatpush1.msra.mxu0 0.0
    %4487 = vmatprep.subr.mxu0 0.0
    %4488 = vmatpush1.msra.mxu0 0.0
    %4489 = vmatprep.subr.mxu0 0.0
    %4490 = vmatpush1.msra.mxu0 0.0
    %4491 = vmatprep.subr.mxu0 0.0
    %4492 = vmatpush1.msra.mxu0 0.0
    %4493 = vmatprep.subr.mxu0 0.0
    %4494 = vmatpush1.msra.mxu0 0.0
    %4495 = vmatprep.subr.mxu0 0.0
    %4496 = vmatpush1.msra.mxu0 0.0
    %4497 = vmatprep.mubr.f32.mxu0 0.0
    %4498 = vmatmul.mubr.f32.gmra.mrb[0].mxu0 %v4431
    %v4499 = vpop.f32.mrb[0].mxu0
    %v4500 = vadd.f32 0.0, %v4499
    %v4501 = vpop.f32.mrb[0].mxu0
    %4502 = vdwg.mxu0
    %v4504 = vrot.slane %v4500, 6
    %v4505 = vrot.slane %v4500, 7
    %v4508 = vadd.f32 %v3656, %v4504
    %v4509 = vadd.f32 %v3657, %v4505
    %v4510 = vxor.u32 %v4508, 2147483648
    %v4511 = vxor.u32 %v4509, 2147483648
    %v4512 = vmul.f32 %v4510, 1.442695
    %v4513 = vpow.pop %v4512
    %v4514 = vmul.f32 %v4511, 1.442695
    %v4515 = vpow.pop %v4514
    %v4516 = vadd.f32 %v4513, 1.0
    %v4517 = vadd.f32 %v4515, 1.0
    %v4518 = vrcp.pop %v4516
    %v4519 = vmul.f32 1.0, %v4518
    %v4520 = vrcp.pop %v4517
    %v4521 = vmul.f32 1.0, %v4520
    %v4522 = vadd.f32 %v4500, %v3934
    %v4524 = vrot.slane %v4522, 6
    %v4525 = vrot.slane %v4522, 7
    %4526 = vrot.lane.b32.xlu0 %v4524, 64
    %v4527 = vpop.permute.xlu0 %4526
    %4528 = vrot.lane.b32.xlu0 %v4525, 64
    %v4529 = vpop.permute.xlu0 %4528
    %v4532 = vmul.f32 %v4519, %v4527
    %v4533 = vmul.f32 %v4521, %v4529
    %4536 = vrot.lane.b32.xlu0 %v4532, 64
    %v4537 = vpop.permute.xlu0 %4536
    %4538 = vrot.lane.b32.xlu0 %v4533, 64
    %v4539 = vpop.permute.xlu0 %4538
    %v4542 = vadd.f32 %v3656, %v4537
    %v4543 = vadd.f32 %v3657, %v4539
    %v4544 = vtanh.pop %v4542
    %v4545 = vtanh.pop %v4543
    %v4546 = vsub.f32 1.0, %v4519
    %v4547 = vsub.f32 1.0, %v4521
    %4550 = vrot.lane.b32.xlu0 %v4544, 96
    %v4551 = vpop.permute.xlu0 %4550
    %4552 = vrot.lane.b32.xlu0 %v4545, 96
    %v4553 = vpop.permute.xlu0 %4552
    %v4556 = vmul.f32 %v4546, %v4551
    %v4557 = vmul.f32 %v4547, %v4553
    %v4558 = vrot.slane %v4275, 6
    %v4559 = vrot.slane %v4275, 7
    %4560 = vrot.lane.b32.xlu0 %v4558, 32
    %v4561 = vpop.permute.xlu0 %4560
    %4562 = vrot.lane.b32.xlu0 %v4559, 32
    %v4563 = vpop.permute.xlu0 %4562
    %v4566 = vmul.f32 %v4519, %v4561
    %v4567 = vmul.f32 %v4521, %v4563
    %v4568 = vadd.f32 %v4556, %v4566
    %v4569 = vadd.f32 %v4557, %v4567
    %v4570 = vsub.f32 %v4568, %v4561
    %v4571 = vsub.f32 %v4569, %v4563
    %v4574 = vrot.slane %v4570, 2
    %v4575 = vrot.slane %v4571, 1
    %v4576 = vsel %vm640, %v4575, %v4574
    %4577 = vrot.lane.b32.xlu0 %v4576, 96
    %v4578 = vpop.permute.xlu0 %4577
    %v4580 = vmul.f32 %v281, %v4578
    %v4581 = vadd.f32 %v4275, %v4580
    %v4582 = vmul.f32 %v281, %v4581
    %v4584 = vsel %vm316, %v4428, 0
    %4586 = vmatprep.subr.mxu0 0.0
    %4587 = vmatpush1.msra.mxu0 %v3829
    %4588 = vmatprep.subr.mxu0 0.0
    %4589 = vmatpush1.msra.mxu0 %v3830
    %4590 = vmatprep.subr.mxu0 0.0
    %4591 = vmatpush1.msra.mxu0 %v3831
    %4592 = vmatprep.subr.mxu0 0.0
    %4593 = vmatpush1.msra.mxu0 %v3832
    %4594 = vmatprep.subr.mxu0 0.0
    %4595 = vmatpush1.msra.mxu0 0.0
    %4596 = vmatprep.subr.mxu0 0.0
    %4597 = vmatpush1.msra.mxu0 0.0
    %4598 = vmatprep.subr.mxu0 0.0
    %4599 = vmatpush1.msra.mxu0 0.0
    %4600 = vmatprep.subr.mxu0 0.0
    %4601 = vmatpush1.msra.mxu0 0.0
    %4602 = vmatprep.subr.mxu0 0.0
    %4603 = vmatpush1.msra.mxu0 0.0
    %4604 = vmatprep.subr.mxu0 0.0
    %4605 = vmatpush1.msra.mxu0 0.0
    %4606 = vmatprep.subr.mxu0 0.0
    %4607 = vmatpush1.msra.mxu0 0.0
    %4608 = vmatprep.subr.mxu0 0.0
    %4609 = vmatpush1.msra.mxu0 0.0
    %4610 = vmatprep.subr.mxu0 0.0
    %4611 = vmatpush1.msra.mxu0 0.0
    %4612 = vmatprep.subr.mxu0 0.0
    %4613 = vmatpush1.msra.mxu0 0.0
    %4614 = vmatprep.subr.mxu0 0.0
    %4615 = vmatpush1.msra.mxu0 0.0
    %4616 = vmatprep.subr.mxu0 0.0
    %4617 = vmatpush1.msra.mxu0 0.0
    %4618 = vmatprep.subr.mxu0 0.0
    %4619 = vmatpush1.msra.mxu0 0.0
    %4620 = vmatprep.subr.mxu0 0.0
    %4621 = vmatpush1.msra.mxu0 0.0
    %4622 = vmatprep.subr.mxu0 0.0
    %4623 = vmatpush1.msra.mxu0 0.0
    %4624 = vmatprep.subr.mxu0 0.0
    %4625 = vmatpush1.msra.mxu0 0.0
    %4626 = vmatprep.subr.mxu0 0.0
    %4627 = vmatpush1.msra.mxu0 0.0
    %4628 = vmatprep.subr.mxu0 0.0
    %4629 = vmatpush1.msra.mxu0 0.0
    %4630 = vmatprep.subr.mxu0 0.0
    %4631 = vmatpush1.msra.mxu0 0.0
    %4632 = vmatprep.subr.mxu0 0.0
    %4633 = vmatpush1.msra.mxu0 0.0
    %4634 = vmatprep.subr.mxu0 0.0
    %4635 = vmatpush1.msra.mxu0 0.0
    %4636 = vmatprep.subr.mxu0 0.0
    %4637 = vmatpush1.msra.mxu0 0.0
    %4638 = vmatprep.subr.mxu0 0.0
    %4639 = vmatpush1.msra.mxu0 0.0
    %4640 = vmatprep.subr.mxu0 0.0
    %4641 = vmatpush1.msra.mxu0 0.0
    %4642 = vmatprep.subr.mxu0 0.0
    %4643 = vmatpush1.msra.mxu0 0.0
    %4644 = vmatprep.subr.mxu0 0.0
    %4645 = vmatpush1.msra.mxu0 0.0
    %4646 = vmatprep.subr.mxu0 0.0
    %4647 = vmatpush1.msra.mxu0 0.0
    %4648 = vmatprep.subr.mxu0 0.0
    %4649 = vmatpush1.msra.mxu0 0.0
    %4650 = vmatprep.mubr.f32.mxu0 0.0
    %4651 = vmatmul.mubr.f32.gmra.mrb[0].mxu0 %v4584
    %v4652 = vpop.f32.mrb[0].mxu0
    %v4653 = vadd.f32 0.0, %v4652
    %v4654 = vpop.f32.mrb[0].mxu0
    %4655 = vdwg.mxu0
    %v4657 = vrot.slane %v4653, 3
    %v4658 = vrot.slane %v4653, 4
    %v4661 = vadd.f32 %v3823, %v4657
    %v4662 = vadd.f32 %v3824, %v4658
    %v4663 = vxor.u32 %v4661, 2147483648
    %v4664 = vxor.u32 %v4662, 2147483648
    %v4665 = vmul.f32 %v4663, 1.442695
    %v4666 = vpow.pop %v4665
    %v4667 = vmul.f32 %v4664, 1.442695
    %v4668 = vpow.pop %v4667
    %v4669 = vadd.f32 %v4666, 1.0
    %v4670 = vadd.f32 %v4668, 1.0
    %v4671 = vrcp.pop %v4669
    %v4672 = vmul.f32 1.0, %v4671
    %v4673 = vrcp.pop %v4670
    %v4674 = vmul.f32 1.0, %v4673
    %v4675 = vadd.f32 %v4653, %v4075
    %v4677 = vrot.slane %v4675, 3
    %v4678 = vrot.slane %v4675, 4
    %4679 = vrot.lane.b32.xlu0 %v4677, 64
    %v4680 = vpop.permute.xlu0 %4679
    %4681 = vrot.lane.b32.xlu0 %v4678, 64
    %v4682 = vpop.permute.xlu0 %4681
    %v4685 = vmul.f32 %v4672, %v4680
    %v4686 = vmul.f32 %v4674, %v4682
    %4689 = vrot.lane.b32.xlu0 %v4685, 64
    %v4690 = vpop.permute.xlu0 %4689
    %4691 = vrot.lane.b32.xlu0 %v4686, 64
    %v4692 = vpop.permute.xlu0 %4691
    %v4695 = vadd.f32 %v3823, %v4690
    %v4696 = vadd.f32 %v3824, %v4692
    %v4697 = vtanh.pop %v4695
    %v4698 = vtanh.pop %v4696
    %v4699 = vsub.f32 1.0, %v4672
    %v4700 = vsub.f32 1.0, %v4674
    %4703 = vrot.lane.b32.xlu0 %v4697, 96
    %v4704 = vpop.permute.xlu0 %4703
    %4705 = vrot.lane.b32.xlu0 %v4698, 96
    %v4706 = vpop.permute.xlu0 %4705
    %v4709 = vmul.f32 %v4699, %v4704
    %v4710 = vmul.f32 %v4700, %v4706
    %v4711 = vrot.slane %v4428, 3
    %v4712 = vrot.slane %v4428, 4
    %4713 = vrot.lane.b32.xlu0 %v4711, 32
    %v4714 = vpop.permute.xlu0 %4713
    %4715 = vrot.lane.b32.xlu0 %v4712, 32
    %v4716 = vpop.permute.xlu0 %4715
    %v4719 = vmul.f32 %v4672, %v4714
    %v4720 = vmul.f32 %v4674, %v4716
    %v4721 = vadd.f32 %v4709, %v4719
    %v4722 = vadd.f32 %v4710, %v4720
    %v4723 = vsub.f32 %v4721, %v4714
    %v4724 = vsub.f32 %v4722, %v4716
    %v4727 = vrot.slane %v4723, 5
    %v4728 = vrot.slane %v4724, 4
    %v4729 = vsel %vm640, %v4728, %v4727
    %4730 = vrot.lane.b32.xlu0 %v4729, 96
    %v4731 = vpop.permute.xlu0 %4730
    %v4733 = vmul.f32 %v293, %v4731
    %v4734 = vadd.f32 %v4428, %v4733
    %v4735 = vmul.f32 %v293, %v4734
    %v4737 = vsel %vm316, %v4581, 0
    %4739 = vmatprep.subr.mxu0 0.0
    %4740 = vmatpush1.msra.mxu0 %v3825
    %4741 = vmatprep.subr.mxu0 0.0
    %4742 = vmatpush1.msra.mxu0 %v3826
    %4743 = vmatprep.subr.mxu0 0.0
    %4744 = vmatpush1.msra.mxu0 %v3827
    %4745 = vmatprep.subr.mxu0 0.0
    %4746 = vmatpush1.msra.mxu0 %v3828
    %4747 = vmatprep.subr.mxu0 0.0
    %4748 = vmatpush1.msra.mxu0 0.0
    %4749 = vmatprep.subr.mxu0 0.0
    %4750 = vmatpush1.msra.mxu0 0.0
    %4751 = vmatprep.subr.mxu0 0.0
    %4752 = vmatpush1.msra.mxu0 0.0
    %4753 = vmatprep.subr.mxu0 0.0
    %4754 = vmatpush1.msra.mxu0 0.0
    %4755 = vmatprep.subr.mxu0 0.0
    %4756 = vmatpush1.msra.mxu0 0.0
    %4757 = vmatprep.subr.mxu0 0.0
    %4758 = vmatpush1.msra.mxu0 0.0
    %4759 = vmatprep.subr.mxu0 0.0
    %4760 = vmatpush1.msra.mxu0 0.0
    %4761 = vmatprep.subr.mxu0 0.0
    %4762 = vmatpush1.msra.mxu0 0.0
    %4763 = vmatprep.subr.mxu0 0.0
    %4764 = vmatpush1.msra.mxu0 0.0
    %4765 = vmatprep.subr.mxu0 0.0
    %4766 = vmatpush1.msra.mxu0 0.0
    %4767 = vmatprep.subr.mxu0 0.0
    %4768 = vmatpush1.msra.mxu0 0.0
    %4769 = vmatprep.subr.mxu0 0.0
    %4770 = vmatpush1.msra.mxu0 0.0
    %4771 = vmatprep.subr.mxu0 0.0
    %4772 = vmatpush1.msra.mxu0 0.0
    %4773 = vmatprep.subr.mxu0 0.0
    %4774 = vmatpush1.msra.mxu0 0.0
    %4775 = vmatprep.subr.mxu0 0.0
    %4776 = vmatpush1.msra.mxu0 0.0
    %4777 = vmatprep.subr.mxu0 0.0
    %4778 = vmatpush1.msra.mxu0 0.0
    %4779 = vmatprep.subr.mxu0 0.0
    %4780 = vmatpush1.msra.mxu0 0.0
    %4781 = vmatprep.subr.mxu0 0.0
    %4782 = vmatpush1.msra.mxu0 0.0
    %4783 = vmatprep.subr.mxu0 0.0
    %4784 = vmatpush1.msra.mxu0 0.0
    %4785 = vmatprep.subr.mxu0 0.0
    %4786 = vmatpush1.msra.mxu0 0.0
    %4787 = vmatprep.subr.mxu0 0.0
    %4788 = vmatpush1.msra.mxu0 0.0
    %4789 = vmatprep.subr.mxu0 0.0
    %4790 = vmatpush1.msra.mxu0 0.0
    %4791 = vmatprep.subr.mxu0 0.0
    %4792 = vmatpush1.msra.mxu0 0.0
    %4793 = vmatprep.subr.mxu0 0.0
    %4794 = vmatpush1.msra.mxu0 0.0
    %4795 = vmatprep.subr.mxu0 0.0
    %4796 = vmatpush1.msra.mxu0 0.0
    %4797 = vmatprep.subr.mxu0 0.0
    %4798 = vmatpush1.msra.mxu0 0.0
    %4799 = vmatprep.subr.mxu0 0.0
    %4800 = vmatpush1.msra.mxu0 0.0
    %4801 = vmatprep.subr.mxu0 0.0
    %4802 = vmatpush1.msra.mxu0 0.0
    %4803 = vmatprep.mubr.f32.mxu0 0.0
    %4804 = vmatmul.mubr.f32.gmra.mrb[0].mxu0 %v4737
    %v4805 = vpop.f32.mrb[0].mxu0
    %v4806 = vadd.f32 0.0, %v4805
    %v4807 = vpop.f32.mrb[0].mxu0
    %4808 = vdwg.mxu0
    %v4810 = vrot.slane %v4806, 5
    %v4811 = vrot.slane %v4806, 6
    %v4814 = vadd.f32 %v3656, %v4810
    %v4815 = vadd.f32 %v3657, %v4811
    %v4816 = vxor.u32 %v4814, 2147483648
    %v4817 = vxor.u32 %v4815, 2147483648
    %v4818 = vmul.f32 %v4816, 1.442695
    %v4819 = vpow.pop %v4818
    %v4820 = vmul.f32 %v4817, 1.442695
    %v4821 = vpow.pop %v4820
    %v4822 = vadd.f32 %v4819, 1.0
    %v4823 = vadd.f32 %v4821, 1.0
    %v4824 = vrcp.pop %v4822
    %v4825 = vmul.f32 1.0, %v4824
    %v4826 = vrcp.pop %v4823
    %v4827 = vmul.f32 1.0, %v4826
    %v4828 = vadd.f32 %v4806, %v3934
    %v4830 = vrot.slane %v4828, 5
    %v4831 = vrot.slane %v4828, 6
    %4832 = vrot.lane.b32.xlu0 %v4830, 64
    %v4833 = vpop.permute.xlu0 %4832
    %4834 = vrot.lane.b32.xlu0 %v4831, 64
    %v4835 = vpop.permute.xlu0 %4834
    %v4838 = vmul.f32 %v4825, %v4833
    %v4839 = vmul.f32 %v4827, %v4835
    %4842 = vrot.lane.b32.xlu0 %v4838, 64
    %v4843 = vpop.permute.xlu0 %4842
    %4844 = vrot.lane.b32.xlu0 %v4839, 64
    %v4845 = vpop.permute.xlu0 %4844
    %v4848 = vadd.f32 %v3656, %v4843
    %v4849 = vadd.f32 %v3657, %v4845
    %v4850 = vtanh.pop %v4848
    %v4851 = vtanh.pop %v4849
    %v4852 = vsub.f32 1.0, %v4825
    %v4853 = vsub.f32 1.0, %v4827
    %4856 = vrot.lane.b32.xlu0 %v4850, 96
    %v4857 = vpop.permute.xlu0 %4856
    %4858 = vrot.lane.b32.xlu0 %v4851, 96
    %v4859 = vpop.permute.xlu0 %4858
    %v4862 = vmul.f32 %v4852, %v4857
    %v4863 = vmul.f32 %v4853, %v4859
    %v4864 = vrot.slane %v4581, 5
    %v4865 = vrot.slane %v4581, 6
    %4866 = vrot.lane.b32.xlu0 %v4864, 32
    %v4867 = vpop.permute.xlu0 %4866
    %4868 = vrot.lane.b32.xlu0 %v4865, 32
    %v4869 = vpop.permute.xlu0 %4868
    %v4872 = vmul.f32 %v4825, %v4867
    %v4873 = vmul.f32 %v4827, %v4869
    %v4874 = vadd.f32 %v4862, %v4872
    %v4875 = vadd.f32 %v4863, %v4873
    %v4876 = vsub.f32 %v4874, %v4867
    %v4877 = vsub.f32 %v4875, %v4869
    %v4880 = vrot.slane %v4876, 3
    %v4881 = vrot.slane %v4877, 2
    %v4882 = vsel %vm640, %v4881, %v4880
    %4883 = vrot.lane.b32.xlu0 %v4882, 96
    %v4884 = vpop.permute.xlu0 %4883
    %v4886 = vmul.f32 %v285, %v4884
    %v4887 = vadd.f32 %v4581, %v4886
    %v4888 = vmul.f32 %v285, %v4887
    %v4890 = vsel %vm316, %v4734, 0
    %4892 = vmatprep.subr.mxu0 0.0
    %4893 = vmatpush1.msra.mxu0 %v3829
    %4894 = vmatprep.subr.mxu0 0.0
    %4895 = vmatpush1.msra.mxu0 %v3830
    %4896 = vmatprep.subr.mxu0 0.0
    %4897 = vmatpush1.msra.mxu0 %v3831
    %4898 = vmatprep.subr.mxu0 0.0
    %4899 = vmatpush1.msra.mxu0 %v3832
    %4900 = vmatprep.subr.mxu0 0.0
    %4901 = vmatpush1.msra.mxu0 0.0
    %4902 = vmatprep.subr.mxu0 0.0
    %4903 = vmatpush1.msra.mxu0 0.0
    %4904 = vmatprep.subr.mxu0 0.0
    %4905 = vmatpush1.msra.mxu0 0.0
    %4906 = vmatprep.subr.mxu0 0.0
    %4907 = vmatpush1.msra.mxu0 0.0
    %4908 = vmatprep.subr.mxu0 0.0
    %4909 = vmatpush1.msra.mxu0 0.0
    %4910 = vmatprep.subr.mxu0 0.0
    %4911 = vmatpush1.msra.mxu0 0.0
    %4912 = vmatprep.subr.mxu0 0.0
    %4913 = vmatpush1.msra.mxu0 0.0
    %4914 = vmatprep.subr.mxu0 0.0
    %4915 = vmatpush1.msra.mxu0 0.0
    %4916 = vmatprep.subr.mxu0 0.0
    %4917 = vmatpush1.msra.mxu0 0.0
    %4918 = vmatprep.subr.mxu0 0.0
    %4919 = vmatpush1.msra.mxu0 0.0
    %4920 = vmatprep.subr.mxu0 0.0
    %4921 = vmatpush1.msra.mxu0 0.0
    %4922 = vmatprep.subr.mxu0 0.0
    %4923 = vmatpush1.msra.mxu0 0.0
    %4924 = vmatprep.subr.mxu0 0.0
    %4925 = vmatpush1.msra.mxu0 0.0
    %4926 = vmatprep.subr.mxu0 0.0
    %4927 = vmatpush1.msra.mxu0 0.0
    %4928 = vmatprep.subr.mxu0 0.0
    %4929 = vmatpush1.msra.mxu0 0.0
    %4930 = vmatprep.subr.mxu0 0.0
    %4931 = vmatpush1.msra.mxu0 0.0
    %4932 = vmatprep.subr.mxu0 0.0
    %4933 = vmatpush1.msra.mxu0 0.0
    %4934 = vmatprep.subr.mxu0 0.0
    %4935 = vmatpush1.msra.mxu0 0.0
    %4936 = vmatprep.subr.mxu0 0.0
    %4937 = vmatpush1.msra.mxu0 0.0
    %4938 = vmatprep.subr.mxu0 0.0
    %4939 = vmatpush1.msra.mxu0 0.0
    %4940 = vmatprep.subr.mxu0 0.0
    %4941 = vmatpush1.msra.mxu0 0.0
    %4942 = vmatprep.subr.mxu0 0.0
    %4943 = vmatpush1.msra.mxu0 0.0
    %4944 = vmatprep.subr.mxu0 0.0
    %4945 = vmatpush1.msra.mxu0 0.0
    %4946 = vmatprep.subr.mxu0 0.0
    %4947 = vmatpush1.msra.mxu0 0.0
    %4948 = vmatprep.subr.mxu0 0.0
    %4949 = vmatpush1.msra.mxu0 0.0
    %4950 = vmatprep.subr.mxu0 0.0
    %4951 = vmatpush1.msra.mxu0 0.0
    %4952 = vmatprep.subr.mxu0 0.0
    %4953 = vmatpush1.msra.mxu0 0.0
    %4954 = vmatprep.subr.mxu0 0.0
    %4955 = vmatpush1.msra.mxu0 0.0
    %4956 = vmatprep.mubr.f32.mxu0 0.0
    %4957 = vmatmul.mubr.f32.gmra.mrb[0].mxu0 %v4890
    %v4958 = vpop.f32.mrb[0].mxu0
    %v4959 = vadd.f32 0.0, %v4958
    %v4960 = vpop.f32.mrb[0].mxu0
    %4961 = vdwg.mxu0
    %v4963 = vrot.slane %v4959, 4
    %v4964 = vrot.slane %v4959, 5
    %v4967 = vadd.f32 %v3823, %v4963
    %v4968 = vadd.f32 %v3824, %v4964
    %v4969 = vxor.u32 %v4967, 2147483648
    %v4970 = vxor.u32 %v4968, 2147483648
    %v4971 = vmul.f32 %v4969, 1.442695
    %v4972 = vpow.pop %v4971
    %v4973 = vmul.f32 %v4970, 1.442695
    %v4974 = vpow.pop %v4973
    %v4975 = vadd.f32 %v4972, 1.0
    %v4976 = vadd.f32 %v4974, 1.0
    %v4977 = vrcp.pop %v4975
    %v4978 = vmul.f32 1.0, %v4977
    %v4979 = vrcp.pop %v4976
    %v4980 = vmul.f32 1.0, %v4979
    %v4981 = vadd.f32 %v4959, %v4075
    %v4983 = vrot.slane %v4981, 4
    %v4984 = vrot.slane %v4981, 5
    %4985 = vrot.lane.b32.xlu0 %v4983, 64
    %v4986 = vpop.permute.xlu0 %4985
    %4987 = vrot.lane.b32.xlu0 %v4984, 64
    %v4988 = vpop.permute.xlu0 %4987
    %v4991 = vmul.f32 %v4978, %v4986
    %v4992 = vmul.f32 %v4980, %v4988
    %4995 = vrot.lane.b32.xlu0 %v4991, 64
    %v4996 = vpop.permute.xlu0 %4995
    %4997 = vrot.lane.b32.xlu0 %v4992, 64
    %v4998 = vpop.permute.xlu0 %4997
    %v5001 = vadd.f32 %v3823, %v4996
    %v5002 = vadd.f32 %v3824, %v4998
    %v5003 = vtanh.pop %v5001
    %v5004 = vtanh.pop %v5002
    %v5005 = vsub.f32 1.0, %v4978
    %v5006 = vsub.f32 1.0, %v4980
    %5009 = vrot.lane.b32.xlu0 %v5003, 96
    %v5010 = vpop.permute.xlu0 %5009
    %5011 = vrot.lane.b32.xlu0 %v5004, 96
    %v5012 = vpop.permute.xlu0 %5011
    %v5015 = vmul.f32 %v5005, %v5010
    %v5016 = vmul.f32 %v5006, %v5012
    %v5017 = vrot.slane %v4734, 4
    %v5018 = vrot.slane %v4734, 5
    %5019 = vrot.lane.b32.xlu0 %v5017, 32
    %v5020 = vpop.permute.xlu0 %5019
    %5021 = vrot.lane.b32.xlu0 %v5018, 32
    %v5022 = vpop.permute.xlu0 %5021
    %v5025 = vmul.f32 %v4978, %v5020
    %v5026 = vmul.f32 %v4980, %v5022
    %v5027 = vadd.f32 %v5015, %v5025
    %v5028 = vadd.f32 %v5016, %v5026
    %v5029 = vsub.f32 %v5027, %v5020
    %v5030 = vsub.f32 %v5028, %v5022
    %v5033 = vrot.slane %v5029, 4
    %v5034 = vrot.slane %v5030, 3
    %v5035 = vsel %vm640, %v5034, %v5033
    %5036 = vrot.lane.b32.xlu0 %v5035, 96
    %v5037 = vpop.permute.xlu0 %5036
    %v5039 = vmul.f32 %v289, %v5037
    %v5040 = vadd.f32 %v4734, %v5039
    %v5041 = vmul.f32 %v289, %v5040
    %v5043 = vsel %vm316, %v4887, 0
    %5045 = vmatprep.subr.mxu0 0.0
    %5046 = vmatpush1.msra.mxu0 %v3825
    %5047 = vmatprep.subr.mxu0 0.0
    %5048 = vmatpush1.msra.mxu0 %v3826
    %5049 = vmatprep.subr.mxu0 0.0
    %5050 = vmatpush1.msra.mxu0 %v3827
    %5051 = vmatprep.subr.mxu0 0.0
    %5052 = vmatpush1.msra.mxu0 %v3828
    %5053 = vmatprep.subr.mxu0 0.0
    %5054 = vmatpush1.msra.mxu0 0.0
    %5055 = vmatprep.subr.mxu0 0.0
    %5056 = vmatpush1.msra.mxu0 0.0
    %5057 = vmatprep.subr.mxu0 0.0
    %5058 = vmatpush1.msra.mxu0 0.0
    %5059 = vmatprep.subr.mxu0 0.0
    %5060 = vmatpush1.msra.mxu0 0.0
    %5061 = vmatprep.subr.mxu0 0.0
    %5062 = vmatpush1.msra.mxu0 0.0
    %5063 = vmatprep.subr.mxu0 0.0
    %5064 = vmatpush1.msra.mxu0 0.0
    %5065 = vmatprep.subr.mxu0 0.0
    %5066 = vmatpush1.msra.mxu0 0.0
    %5067 = vmatprep.subr.mxu0 0.0
    %5068 = vmatpush1.msra.mxu0 0.0
    %5069 = vmatprep.subr.mxu0 0.0
    %5070 = vmatpush1.msra.mxu0 0.0
    %5071 = vmatprep.subr.mxu0 0.0
    %5072 = vmatpush1.msra.mxu0 0.0
    %5073 = vmatprep.subr.mxu0 0.0
    %5074 = vmatpush1.msra.mxu0 0.0
    %5075 = vmatprep.subr.mxu0 0.0
    %5076 = vmatpush1.msra.mxu0 0.0
    %5077 = vmatprep.subr.mxu0 0.0
    %5078 = vmatpush1.msra.mxu0 0.0
    %5079 = vmatprep.subr.mxu0 0.0
    %5080 = vmatpush1.msra.mxu0 0.0
    %5081 = vmatprep.subr.mxu0 0.0
    %5082 = vmatpush1.msra.mxu0 0.0
    %5083 = vmatprep.subr.mxu0 0.0
    %5084 = vmatpush1.msra.mxu0 0.0
    %5085 = vmatprep.subr.mxu0 0.0
    %5086 = vmatpush1.msra.mxu0 0.0
    %5087 = vmatprep.subr.mxu0 0.0
    %5088 = vmatpush1.msra.mxu0 0.0
    %5089 = vmatprep.subr.mxu0 0.0
    %5090 = vmatpush1.msra.mxu0 0.0
    %5091 = vmatprep.subr.mxu0 0.0
    %5092 = vmatpush1.msra.mxu0 0.0
    %5093 = vmatprep.subr.mxu0 0.0
    %5094 = vmatpush1.msra.mxu0 0.0
    %5095 = vmatprep.subr.mxu0 0.0
    %5096 = vmatpush1.msra.mxu0 0.0
    %5097 = vmatprep.subr.mxu0 0.0
    %5098 = vmatpush1.msra.mxu0 0.0
    %5099 = vmatprep.subr.mxu0 0.0
    %5100 = vmatpush1.msra.mxu0 0.0
    %5101 = vmatprep.subr.mxu0 0.0
    %5102 = vmatpush1.msra.mxu0 0.0
    %5103 = vmatprep.subr.mxu0 0.0
    %5104 = vmatpush1.msra.mxu0 0.0
    %5105 = vmatprep.subr.mxu0 0.0
    %5106 = vmatpush1.msra.mxu0 0.0
    %5107 = vmatprep.subr.mxu0 0.0
    %5108 = vmatpush1.msra.mxu0 0.0
    %5109 = vmatprep.mubr.f32.mxu0 0.0
    %5110 = vmatmul.mubr.f32.gmra.mrb[0].mxu0 %v5043
    %v5111 = vpop.f32.mrb[0].mxu0
    %v5112 = vadd.f32 0.0, %v5111
    %v5113 = vpop.f32.mrb[0].mxu0
    %5114 = vdwg.mxu0
    %v5116 = vrot.slane %v5112, 4
    %v5117 = vrot.slane %v5112, 5
    %v5120 = vadd.f32 %v3656, %v5116
    %v5121 = vadd.f32 %v3657, %v5117
    %v5122 = vxor.u32 %v5120, 2147483648
    %v5123 = vxor.u32 %v5121, 2147483648
    %v5124 = vmul.f32 %v5122, 1.442695
    %v5125 = vpow.pop %v5124
    %v5126 = vmul.f32 %v5123, 1.442695
    %v5127 = vpow.pop %v5126
    %v5128 = vadd.f32 %v5125, 1.0
    %v5129 = vadd.f32 %v5127, 1.0
    %v5130 = vrcp.pop %v5128
    %v5131 = vmul.f32 1.0, %v5130
    %v5132 = vrcp.pop %v5129
    %v5133 = vmul.f32 1.0, %v5132
    %v5134 = vadd.f32 %v5112, %v3934
    %v5136 = vrot.slane %v5134, 4
    %v5137 = vrot.slane %v5134, 5
    %5138 = vrot.lane.b32.xlu0 %v5136, 64
    %v5139 = vpop.permute.xlu0 %5138
    %5140 = vrot.lane.b32.xlu0 %v5137, 64
    %v5141 = vpop.permute.xlu0 %5140
    %v5144 = vmul.f32 %v5131, %v5139
    %v5145 = vmul.f32 %v5133, %v5141
    %5148 = vrot.lane.b32.xlu0 %v5144, 64
    %v5149 = vpop.permute.xlu0 %5148
    %5150 = vrot.lane.b32.xlu0 %v5145, 64
    %v5151 = vpop.permute.xlu0 %5150
    %v5154 = vadd.f32 %v3656, %v5149
    %v5155 = vadd.f32 %v3657, %v5151
    %v5156 = vtanh.pop %v5154
    %v5157 = vtanh.pop %v5155
    %v5158 = vsub.f32 1.0, %v5131
    %v5159 = vsub.f32 1.0, %v5133
    %5162 = vrot.lane.b32.xlu0 %v5156, 96
    %v5163 = vpop.permute.xlu0 %5162
    %5164 = vrot.lane.b32.xlu0 %v5157, 96
    %v5165 = vpop.permute.xlu0 %5164
    %v5168 = vmul.f32 %v5158, %v5163
    %v5169 = vmul.f32 %v5159, %v5165
    %v5170 = vrot.slane %v4887, 4
    %v5171 = vrot.slane %v4887, 5
    %5172 = vrot.lane.b32.xlu0 %v5170, 32
    %v5173 = vpop.permute.xlu0 %5172
    %5174 = vrot.lane.b32.xlu0 %v5171, 32
    %v5175 = vpop.permute.xlu0 %5174
    %v5178 = vmul.f32 %v5131, %v5173
    %v5179 = vmul.f32 %v5133, %v5175
    %v5180 = vadd.f32 %v5168, %v5178
    %v5181 = vadd.f32 %v5169, %v5179
    %v5182 = vsub.f32 %v5180, %v5173
    %v5183 = vsub.f32 %v5181, %v5175
    %v5186 = vrot.slane %v5182, 4
    %v5187 = vrot.slane %v5183, 3
    %v5188 = vsel %vm640, %v5187, %v5186
    %5189 = vrot.lane.b32.xlu0 %v5188, 96
    %v5190 = vpop.permute.xlu0 %5189
    %v5192 = vmul.f32 %v289, %v5190
    %v5193 = vadd.f32 %v4887, %v5192
    %v5194 = vmul.f32 %v289, %v5193
    %v5196 = vsel %vm316, %v5040, 0
    %5198 = vmatprep.subr.mxu0 0.0
    %5199 = vmatpush1.msra.mxu0 %v3829
    %5200 = vmatprep.subr.mxu0 0.0
    %5201 = vmatpush1.msra.mxu0 %v3830
    %5202 = vmatprep.subr.mxu0 0.0
    %5203 = vmatpush1.msra.mxu0 %v3831
    %5204 = vmatprep.subr.mxu0 0.0
    %5205 = vmatpush1.msra.mxu0 %v3832
    %5206 = vmatprep.subr.mxu0 0.0
    %5207 = vmatpush1.msra.mxu0 0.0
    %5208 = vmatprep.subr.mxu0 0.0
    %5209 = vmatpush1.msra.mxu0 0.0
    %5210 = vmatprep.subr.mxu0 0.0
    %5211 = vmatpush1.msra.mxu0 0.0
    %5212 = vmatprep.subr.mxu0 0.0
    %5213 = vmatpush1.msra.mxu0 0.0
    %5214 = vmatprep.subr.mxu0 0.0
    %5215 = vmatpush1.msra.mxu0 0.0
    %5216 = vmatprep.subr.mxu0 0.0
    %5217 = vmatpush1.msra.mxu0 0.0
    %5218 = vmatprep.subr.mxu0 0.0
    %5219 = vmatpush1.msra.mxu0 0.0
    %5220 = vmatprep.subr.mxu0 0.0
    %5221 = vmatpush1.msra.mxu0 0.0
    %5222 = vmatprep.subr.mxu0 0.0
    %5223 = vmatpush1.msra.mxu0 0.0
    %5224 = vmatprep.subr.mxu0 0.0
    %5225 = vmatpush1.msra.mxu0 0.0
    %5226 = vmatprep.subr.mxu0 0.0
    %5227 = vmatpush1.msra.mxu0 0.0
    %5228 = vmatprep.subr.mxu0 0.0
    %5229 = vmatpush1.msra.mxu0 0.0
    %5230 = vmatprep.subr.mxu0 0.0
    %5231 = vmatpush1.msra.mxu0 0.0
    %5232 = vmatprep.subr.mxu0 0.0
    %5233 = vmatpush1.msra.mxu0 0.0
    %5234 = vmatprep.subr.mxu0 0.0
    %5235 = vmatpush1.msra.mxu0 0.0
    %5236 = vmatprep.subr.mxu0 0.0
    %5237 = vmatpush1.msra.mxu0 0.0
    %5238 = vmatprep.subr.mxu0 0.0
    %5239 = vmatpush1.msra.mxu0 0.0
    %5240 = vmatprep.subr.mxu0 0.0
    %5241 = vmatpush1.msra.mxu0 0.0
    %5242 = vmatprep.subr.mxu0 0.0
    %5243 = vmatpush1.msra.mxu0 0.0
    %5244 = vmatprep.subr.mxu0 0.0
    %5245 = vmatpush1.msra.mxu0 0.0
    %5246 = vmatprep.subr.mxu0 0.0
    %5247 = vmatpush1.msra.mxu0 0.0
    %5248 = vmatprep.subr.mxu0 0.0
    %5249 = vmatpush1.msra.mxu0 0.0
    %5250 = vmatprep.subr.mxu0 0.0
    %5251 = vmatpush1.msra.mxu0 0.0
    %5252 = vmatprep.subr.mxu0 0.0
    %5253 = vmatpush1.msra.mxu0 0.0
    %5254 = vmatprep.subr.mxu0 0.0
    %5255 = vmatpush1.msra.mxu0 0.0
    %5256 = vmatprep.subr.mxu0 0.0
    %5257 = vmatpush1.msra.mxu0 0.0
    %5258 = vmatprep.subr.mxu0 0.0
    %5259 = vmatpush1.msra.mxu0 0.0
    %5260 = vmatprep.subr.mxu0 0.0
    %5261 = vmatpush1.msra.mxu0 0.0
    %5262 = vmatprep.mubr.f32.mxu0 0.0
    %5263 = vmatmul.mubr.f32.gmra.mrb[0].mxu0 %v5196
    %v5264 = vpop.f32.mrb[0].mxu0
    %v5265 = vadd.f32 0.0, %v5264
    %v5266 = vpop.f32.mrb[0].mxu0
    %5267 = vdwg.mxu0
    %v5269 = vrot.slane %v5265, 5
    %v5270 = vrot.slane %v5265, 6
    %v5273 = vadd.f32 %v3823, %v5269
    %v5274 = vadd.f32 %v3824, %v5270
    %v5275 = vxor.u32 %v5273, 2147483648
    %v5276 = vxor.u32 %v5274, 2147483648
    %v5277 = vmul.f32 %v5275, 1.442695
    %v5278 = vpow.pop %v5277
    %v5279 = vmul.f32 %v5276, 1.442695
    %v5280 = vpow.pop %v5279
    %v5281 = vadd.f32 %v5278, 1.0
    %v5282 = vadd.f32 %v5280, 1.0
    %v5283 = vrcp.pop %v5281
    %v5284 = vmul.f32 1.0, %v5283
    %v5285 = vrcp.pop %v5282
    %v5286 = vmul.f32 1.0, %v5285
    %v5287 = vadd.f32 %v5265, %v4075
    %v5289 = vrot.slane %v5287, 5
    %v5290 = vrot.slane %v5287, 6
    %5291 = vrot.lane.b32.xlu0 %v5289, 64
    %v5292 = vpop.permute.xlu0 %5291
    %5293 = vrot.lane.b32.xlu0 %v5290, 64
    %v5294 = vpop.permute.xlu0 %5293
    %v5297 = vmul.f32 %v5284, %v5292
    %v5298 = vmul.f32 %v5286, %v5294
    %5301 = vrot.lane.b32.xlu0 %v5297, 64
    %v5302 = vpop.permute.xlu0 %5301
    %5303 = vrot.lane.b32.xlu0 %v5298, 64
    %v5304 = vpop.permute.xlu0 %5303
    %v5307 = vadd.f32 %v3823, %v5302
    %v5308 = vadd.f32 %v3824, %v5304
    %v5309 = vtanh.pop %v5307
    %v5310 = vtanh.pop %v5308
    %v5311 = vsub.f32 1.0, %v5284
    %v5312 = vsub.f32 1.0, %v5286
    %5315 = vrot.lane.b32.xlu0 %v5309, 96
    %v5316 = vpop.permute.xlu0 %5315
    %5317 = vrot.lane.b32.xlu0 %v5310, 96
    %v5318 = vpop.permute.xlu0 %5317
    %v5321 = vmul.f32 %v5311, %v5316
    %v5322 = vmul.f32 %v5312, %v5318
    %v5323 = vrot.slane %v5040, 5
    %v5324 = vrot.slane %v5040, 6
    %5325 = vrot.lane.b32.xlu0 %v5323, 32
    %v5326 = vpop.permute.xlu0 %5325
    %5327 = vrot.lane.b32.xlu0 %v5324, 32
    %v5328 = vpop.permute.xlu0 %5327
    %v5331 = vmul.f32 %v5284, %v5326
    %v5332 = vmul.f32 %v5286, %v5328
    %v5333 = vadd.f32 %v5321, %v5331
    %v5334 = vadd.f32 %v5322, %v5332
    %v5335 = vsub.f32 %v5333, %v5326
    %v5336 = vsub.f32 %v5334, %v5328
    %v5339 = vrot.slane %v5335, 3
    %v5340 = vrot.slane %v5336, 2
    %v5341 = vsel %vm640, %v5340, %v5339
    %5342 = vrot.lane.b32.xlu0 %v5341, 96
    %v5343 = vpop.permute.xlu0 %5342
    %v5345 = vmul.f32 %v285, %v5343
    %v5346 = vadd.f32 %v5040, %v5345
    %v5347 = vmul.f32 %v285, %v5346
    %v5349 = vsel %vm316, %v5193, 0
    %5351 = vmatprep.subr.mxu0 0.0
    %5352 = vmatpush1.msra.mxu0 %v3825
    %5353 = vmatprep.subr.mxu0 0.0
    %5354 = vmatpush1.msra.mxu0 %v3826
    %5355 = vmatprep.subr.mxu0 0.0
    %5356 = vmatpush1.msra.mxu0 %v3827
    %5357 = vmatprep.subr.mxu0 0.0
    %5358 = vmatpush1.msra.mxu0 %v3828
    %5359 = vmatprep.subr.mxu0 0.0
    %5360 = vmatpush1.msra.mxu0 0.0
    %5361 = vmatprep.subr.mxu0 0.0
    %5362 = vmatpush1.msra.mxu0 0.0
    %5363 = vmatprep.subr.mxu0 0.0
    %5364 = vmatpush1.msra.mxu0 0.0
    %5365 = vmatprep.subr.mxu0 0.0
    %5366 = vmatpush1.msra.mxu0 0.0
    %5367 = vmatprep.subr.mxu0 0.0
    %5368 = vmatpush1.msra.mxu0 0.0
    %5369 = vmatprep.subr.mxu0 0.0
    %5370 = vmatpush1.msra.mxu0 0.0
    %5371 = vmatprep.subr.mxu0 0.0
    %5372 = vmatpush1.msra.mxu0 0.0
    %5373 = vmatprep.subr.mxu0 0.0
    %5374 = vmatpush1.msra.mxu0 0.0
    %5375 = vmatprep.subr.mxu0 0.0
    %5376 = vmatpush1.msra.mxu0 0.0
    %5377 = vmatprep.subr.mxu0 0.0
    %5378 = vmatpush1.msra.mxu0 0.0
    %5379 = vmatprep.subr.mxu0 0.0
    %5380 = vmatpush1.msra.mxu0 0.0
    %5381 = vmatprep.subr.mxu0 0.0
    %5382 = vmatpush1.msra.mxu0 0.0
    %5383 = vmatprep.subr.mxu0 0.0
    %5384 = vmatpush1.msra.mxu0 0.0
    %5385 = vmatprep.subr.mxu0 0.0
    %5386 = vmatpush1.msra.mxu0 0.0
    %5387 = vmatprep.subr.mxu0 0.0
    %5388 = vmatpush1.msra.mxu0 0.0
    %5389 = vmatprep.subr.mxu0 0.0
    %5390 = vmatpush1.msra.mxu0 0.0
    %5391 = vmatprep.subr.mxu0 0.0
    %5392 = vmatpush1.msra.mxu0 0.0
    %5393 = vmatprep.subr.mxu0 0.0
    %5394 = vmatpush1.msra.mxu0 0.0
    %5395 = vmatprep.subr.mxu0 0.0
    %5396 = vmatpush1.msra.mxu0 0.0
    %5397 = vmatprep.subr.mxu0 0.0
    %5398 = vmatpush1.msra.mxu0 0.0
    %5399 = vmatprep.subr.mxu0 0.0
    %5400 = vmatpush1.msra.mxu0 0.0
    %5401 = vmatprep.subr.mxu0 0.0
    %5402 = vmatpush1.msra.mxu0 0.0
    %5403 = vmatprep.subr.mxu0 0.0
    %5404 = vmatpush1.msra.mxu0 0.0
    %5405 = vmatprep.subr.mxu0 0.0
    %5406 = vmatpush1.msra.mxu0 0.0
    %5407 = vmatprep.subr.mxu0 0.0
    %5408 = vmatpush1.msra.mxu0 0.0
    %5409 = vmatprep.subr.mxu0 0.0
    %5410 = vmatpush1.msra.mxu0 0.0
    %5411 = vmatprep.subr.mxu0 0.0
    %5412 = vmatpush1.msra.mxu0 0.0
    %5413 = vmatprep.subr.mxu0 0.0
    %5414 = vmatpush1.msra.mxu0 0.0
    %5415 = vmatprep.mubr.f32.mxu0 0.0
    %5416 = vmatmul.mubr.f32.gmra.mrb[0].mxu0 %v5349
    %v5417 = vpop.f32.mrb[0].mxu0
    %v5418 = vadd.f32 0.0, %v5417
    %v5419 = vpop.f32.mrb[0].mxu0
    %5420 = vdwg.mxu0
    %v5422 = vrot.slane %v5418, 3
    %v5423 = vrot.slane %v5418, 4
    %v5426 = vadd.f32 %v3656, %v5422
    %v5427 = vadd.f32 %v3657, %v5423
    %v5428 = vxor.u32 %v5426, 2147483648
    %v5429 = vxor.u32 %v5427, 2147483648
    %v5430 = vmul.f32 %v5428, 1.442695
    %v5431 = vpow.pop %v5430
    %v5432 = vmul.f32 %v5429, 1.442695
    %v5433 = vpow.pop %v5432
    %v5434 = vadd.f32 %v5431, 1.0
    %v5435 = vadd.f32 %v5433, 1.0
    %v5436 = vrcp.pop %v5434
    %v5437 = vmul.f32 1.0, %v5436
    %v5438 = vrcp.pop %v5435
    %v5439 = vmul.f32 1.0, %v5438
    %v5440 = vadd.f32 %v5418, %v3934
    %v5442 = vrot.slane %v5440, 3
    %v5443 = vrot.slane %v5440, 4
    %5444 = vrot.lane.b32.xlu0 %v5442, 64
    %v5445 = vpop.permute.xlu0 %5444
    %5446 = vrot.lane.b32.xlu0 %v5443, 64
    %v5447 = vpop.permute.xlu0 %5446
    %v5450 = vmul.f32 %v5437, %v5445
    %v5451 = vmul.f32 %v5439, %v5447
    %5454 = vrot.lane.b32.xlu0 %v5450, 64
    %v5455 = vpop.permute.xlu0 %5454
    %5456 = vrot.lane.b32.xlu0 %v5451, 64
    %v5457 = vpop.permute.xlu0 %5456
    %v5460 = vadd.f32 %v3656, %v5455
    %v5461 = vadd.f32 %v3657, %v5457
    %v5462 = vtanh.pop %v5460
    %v5463 = vtanh.pop %v5461
    %v5464 = vsub.f32 1.0, %v5437
    %v5465 = vsub.f32 1.0, %v5439
    %5468 = vrot.lane.b32.xlu0 %v5462, 96
    %v5469 = vpop.permute.xlu0 %5468
    %5470 = vrot.lane.b32.xlu0 %v5463, 96
    %v5471 = vpop.permute.xlu0 %5470
    %v5474 = vmul.f32 %v5464, %v5469
    %v5475 = vmul.f32 %v5465, %v5471
    %v5476 = vrot.slane %v5193, 3
    %v5477 = vrot.slane %v5193, 4
    %5478 = vrot.lane.b32.xlu0 %v5476, 32
    %v5479 = vpop.permute.xlu0 %5478
    %5480 = vrot.lane.b32.xlu0 %v5477, 32
    %v5481 = vpop.permute.xlu0 %5480
    %v5484 = vmul.f32 %v5437, %v5479
    %v5485 = vmul.f32 %v5439, %v5481
    %v5486 = vadd.f32 %v5474, %v5484
    %v5487 = vadd.f32 %v5475, %v5485
    %v5488 = vsub.f32 %v5486, %v5479
    %v5489 = vsub.f32 %v5487, %v5481
    %v5492 = vrot.slane %v5488, 5
    %v5493 = vrot.slane %v5489, 4
    %v5494 = vsel %vm640, %v5493, %v5492
    %5495 = vrot.lane.b32.xlu0 %v5494, 96
    %v5496 = vpop.permute.xlu0 %5495
    %v5498 = vmul.f32 %v293, %v5496
    %v5499 = vadd.f32 %v5193, %v5498
    %v5500 = vmul.f32 %v293, %v5499
    %v5502 = vsel %vm316, %v5346, 0
    %5504 = vmatprep.subr.mxu0 0.0
    %5505 = vmatpush1.msra.mxu0 %v3829
    %5506 = vmatprep.subr.mxu0 0.0
    %5507 = vmatpush1.msra.mxu0 %v3830
    %5508 = vmatprep.subr.mxu0 0.0
    %5509 = vmatpush1.msra.mxu0 %v3831
    %5510 = vmatprep.subr.mxu0 0.0
    %5511 = vmatpush1.msra.mxu0 %v3832
    %5512 = vmatprep.subr.mxu0 0.0
    %5513 = vmatpush1.msra.mxu0 0.0
    %5514 = vmatprep.subr.mxu0 0.0
    %5515 = vmatpush1.msra.mxu0 0.0
    %5516 = vmatprep.subr.mxu0 0.0
    %5517 = vmatpush1.msra.mxu0 0.0
    %5518 = vmatprep.subr.mxu0 0.0
    %5519 = vmatpush1.msra.mxu0 0.0
    %5520 = vmatprep.subr.mxu0 0.0
    %5521 = vmatpush1.msra.mxu0 0.0
    %5522 = vmatprep.subr.mxu0 0.0
    %5523 = vmatpush1.msra.mxu0 0.0
    %5524 = vmatprep.subr.mxu0 0.0
    %5525 = vmatpush1.msra.mxu0 0.0
    %5526 = vmatprep.subr.mxu0 0.0
    %5527 = vmatpush1.msra.mxu0 0.0
    %5528 = vmatprep.subr.mxu0 0.0
    %5529 = vmatpush1.msra.mxu0 0.0
    %5530 = vmatprep.subr.mxu0 0.0
    %5531 = vmatpush1.msra.mxu0 0.0
    %5532 = vmatprep.subr.mxu0 0.0
    %5533 = vmatpush1.msra.mxu0 0.0
    %5534 = vmatprep.subr.mxu0 0.0
    %5535 = vmatpush1.msra.mxu0 0.0
    %5536 = vmatprep.subr.mxu0 0.0
    %5537 = vmatpush1.msra.mxu0 0.0
    %5538 = vmatprep.subr.mxu0 0.0
    %5539 = vmatpush1.msra.mxu0 0.0
    %5540 = vmatprep.subr.mxu0 0.0
    %5541 = vmatpush1.msra.mxu0 0.0
    %5542 = vmatprep.subr.mxu0 0.0
    %5543 = vmatpush1.msra.mxu0 0.0
    %5544 = vmatprep.subr.mxu0 0.0
    %5545 = vmatpush1.msra.mxu0 0.0
    %5546 = vmatprep.subr.mxu0 0.0
    %5547 = vmatpush1.msra.mxu0 0.0
    %5548 = vmatprep.subr.mxu0 0.0
    %5549 = vmatpush1.msra.mxu0 0.0
    %5550 = vmatprep.subr.mxu0 0.0
    %5551 = vmatpush1.msra.mxu0 0.0
    %5552 = vmatprep.subr.mxu0 0.0
    %5553 = vmatpush1.msra.mxu0 0.0
    %5554 = vmatprep.subr.mxu0 0.0
    %5555 = vmatpush1.msra.mxu0 0.0
    %5556 = vmatprep.subr.mxu0 0.0
    %5557 = vmatpush1.msra.mxu0 0.0
    %5558 = vmatprep.subr.mxu0 0.0
    %5559 = vmatpush1.msra.mxu0 0.0
    %5560 = vmatprep.subr.mxu0 0.0
    %5561 = vmatpush1.msra.mxu0 0.0
    %5562 = vmatprep.subr.mxu0 0.0
    %5563 = vmatpush1.msra.mxu0 0.0
    %5564 = vmatprep.subr.mxu0 0.0
    %5565 = vmatpush1.msra.mxu0 0.0
    %5566 = vmatprep.subr.mxu0 0.0
    %5567 = vmatpush1.msra.mxu0 0.0
    %5568 = vmatprep.mubr.f32.mxu0 0.0
    %5569 = vmatmul.mubr.f32.gmra.mrb[0].mxu0 %v5502
    %v5570 = vpop.f32.mrb[0].mxu0
    %v5571 = vadd.f32 0.0, %v5570
    %v5572 = vpop.f32.mrb[0].mxu0
    %5573 = vdwg.mxu0
    %v5575 = vrot.slane %v5571, 6
    %v5576 = vrot.slane %v5571, 7
    %v5579 = vadd.f32 %v3823, %v5575
    %v5580 = vadd.f32 %v3824, %v5576
    %v5581 = vxor.u32 %v5579, 2147483648
    %v5582 = vxor.u32 %v5580, 2147483648
    %v5583 = vmul.f32 %v5581, 1.442695
    %v5584 = vpow.pop %v5583
    %v5585 = vmul.f32 %v5582, 1.442695
    %v5586 = vpow.pop %v5585
    %v5587 = vadd.f32 %v5584, 1.0
    %v5588 = vadd.f32 %v5586, 1.0
    %v5589 = vrcp.pop %v5587
    %v5590 = vmul.f32 1.0, %v5589
    %v5591 = vrcp.pop %v5588
    %v5592 = vmul.f32 1.0, %v5591
    %v5593 = vadd.f32 %v5571, %v4075
    %v5595 = vrot.slane %v5593, 6
    %v5596 = vrot.slane %v5593, 7
    %5597 = vrot.lane.b32.xlu0 %v5595, 64
    %v5598 = vpop.permute.xlu0 %5597
    %5599 = vrot.lane.b32.xlu0 %v5596, 64
    %v5600 = vpop.permute.xlu0 %5599
    %v5603 = vmul.f32 %v5590, %v5598
    %v5604 = vmul.f32 %v5592, %v5600
    %5607 = vrot.lane.b32.xlu0 %v5603, 64
    %v5608 = vpop.permute.xlu0 %5607
    %5609 = vrot.lane.b32.xlu0 %v5604, 64
    %v5610 = vpop.permute.xlu0 %5609
    %v5613 = vadd.f32 %v3823, %v5608
    %v5614 = vadd.f32 %v3824, %v5610
    %v5615 = vtanh.pop %v5613
    %v5616 = vtanh.pop %v5614
    %v5617 = vsub.f32 1.0, %v5590
    %v5618 = vsub.f32 1.0, %v5592
    %5621 = vrot.lane.b32.xlu0 %v5615, 96
    %v5622 = vpop.permute.xlu0 %5621
    %5623 = vrot.lane.b32.xlu0 %v5616, 96
    %v5624 = vpop.permute.xlu0 %5623
    %v5627 = vmul.f32 %v5617, %v5622
    %v5628 = vmul.f32 %v5618, %v5624
    %v5629 = vrot.slane %v5346, 6
    %v5630 = vrot.slane %v5346, 7
    %5631 = vrot.lane.b32.xlu0 %v5629, 32
    %v5632 = vpop.permute.xlu0 %5631
    %5633 = vrot.lane.b32.xlu0 %v5630, 32
    %v5634 = vpop.permute.xlu0 %5633
    %v5637 = vmul.f32 %v5590, %v5632
    %v5638 = vmul.f32 %v5592, %v5634
    %v5639 = vadd.f32 %v5627, %v5637
    %v5640 = vadd.f32 %v5628, %v5638
    %v5641 = vsub.f32 %v5639, %v5632
    %v5642 = vsub.f32 %v5640, %v5634
    %v5645 = vrot.slane %v5641, 2
    %v5646 = vrot.slane %v5642, 1
    %v5647 = vsel %vm640, %v5646, %v5645
    %5648 = vrot.lane.b32.xlu0 %v5647, 96
    %v5649 = vpop.permute.xlu0 %5648
    %v5651 = vmul.f32 %v281, %v5649
    %v5652 = vadd.f32 %v5346, %v5651
    %v5653 = vmul.f32 %v281, %v5652
    %v5655 = vsel %vm316, %v5499, 0
    %5657 = vmatprep.subr.mxu0 0.0
    %5658 = vmatpush1.msra.mxu0 %v3825
    %5659 = vmatprep.subr.mxu0 0.0
    %5660 = vmatpush1.msra.mxu0 %v3826
    %5661 = vmatprep.subr.mxu0 0.0
    %5662 = vmatpush1.msra.mxu0 %v3827
    %5663 = vmatprep.subr.mxu0 0.0
    %5664 = vmatpush1.msra.mxu0 %v3828
    %5665 = vmatprep.subr.mxu0 0.0
    %5666 = vmatpush1.msra.mxu0 0.0
    %5667 = vmatprep.subr.mxu0 0.0
    %5668 = vmatpush1.msra.mxu0 0.0
    %5669 = vmatprep.subr.mxu0 0.0
    %5670 = vmatpush1.msra.mxu0 0.0
    %5671 = vmatprep.subr.mxu0 0.0
    %5672 = vmatpush1.msra.mxu0 0.0
    %5673 = vmatprep.subr.mxu0 0.0
    %5674 = vmatpush1.msra.mxu0 0.0
    %5675 = vmatprep.subr.mxu0 0.0
    %5676 = vmatpush1.msra.mxu0 0.0
    %5677 = vmatprep.subr.mxu0 0.0
    %5678 = vmatpush1.msra.mxu0 0.0
    %5679 = vmatprep.subr.mxu0 0.0
    %5680 = vmatpush1.msra.mxu0 0.0
    %5681 = vmatprep.subr.mxu0 0.0
    %5682 = vmatpush1.msra.mxu0 0.0
    %5683 = vmatprep.subr.mxu0 0.0
    %5684 = vmatpush1.msra.mxu0 0.0
    %5685 = vmatprep.subr.mxu0 0.0
    %5686 = vmatpush1.msra.mxu0 0.0
    %5687 = vmatprep.subr.mxu0 0.0
    %5688 = vmatpush1.msra.mxu0 0.0
    %5689 = vmatprep.subr.mxu0 0.0
    %5690 = vmatpush1.msra.mxu0 0.0
    %5691 = vmatprep.subr.mxu0 0.0
    %5692 = vmatpush1.msra.mxu0 0.0
    %5693 = vmatprep.subr.mxu0 0.0
    %5694 = vmatpush1.msra.mxu0 0.0
    %5695 = vmatprep.subr.mxu0 0.0
    %5696 = vmatpush1.msra.mxu0 0.0
    %5697 = vmatprep.subr.mxu0 0.0
    %5698 = vmatpush1.msra.mxu0 0.0
    %5699 = vmatprep.subr.mxu0 0.0
    %5700 = vmatpush1.msra.mxu0 0.0
    %5701 = vmatprep.subr.mxu0 0.0
    %5702 = vmatpush1.msra.mxu0 0.0
    %5703 = vmatprep.subr.mxu0 0.0
    %5704 = vmatpush1.msra.mxu0 0.0
    %5705 = vmatprep.subr.mxu0 0.0
    %5706 = vmatpush1.msra.mxu0 0.0
    %5707 = vmatprep.subr.mxu0 0.0
    %5708 = vmatpush1.msra.mxu0 0.0
    %5709 = vmatprep.subr.mxu0 0.0
    %5710 = vmatpush1.msra.mxu0 0.0
    %5711 = vmatprep.subr.mxu0 0.0
    %5712 = vmatpush1.msra.mxu0 0.0
    %5713 = vmatprep.subr.mxu0 0.0
    %5714 = vmatpush1.msra.mxu0 0.0
    %5715 = vmatprep.subr.mxu0 0.0
    %5716 = vmatpush1.msra.mxu0 0.0
    %5717 = vmatprep.subr.mxu0 0.0
    %5718 = vmatpush1.msra.mxu0 0.0
    %5719 = vmatprep.subr.mxu0 0.0
    %5720 = vmatpush1.msra.mxu0 0.0
    %5721 = vmatprep.mubr.f32.mxu0 0.0
    %5722 = vmatmul.mubr.f32.gmra.mrb[0].mxu0 %v5655
    %v5723 = vpop.f32.mrb[0].mxu0
    %v5724 = vadd.f32 0.0, %v5723
    %v5725 = vpop.f32.mrb[0].mxu0
    %5726 = vdwg.mxu0
    %v5728 = vrot.slane %v5724, 2
    %v5729 = vrot.slane %v5724, 3
    %v5732 = vadd.f32 %v3656, %v5728
    %v5733 = vadd.f32 %v3657, %v5729
    %v5734 = vxor.u32 %v5732, 2147483648
    %v5735 = vxor.u32 %v5733, 2147483648
    %v5736 = vmul.f32 %v5734, 1.442695
    %v5737 = vpow.pop %v5736
    %v5738 = vmul.f32 %v5735, 1.442695
    %v5739 = vpow.pop %v5738
    %v5740 = vadd.f32 %v5737, 1.0
    %v5741 = vadd.f32 %v5739, 1.0
    %v5742 = vrcp.pop %v5740
    %v5743 = vmul.f32 1.0, %v5742
    %v5744 = vrcp.pop %v5741
    %v5745 = vmul.f32 1.0, %v5744
    %v5746 = vadd.f32 %v5724, %v3934
    %v5748 = vrot.slane %v5746, 2
    %v5749 = vrot.slane %v5746, 3
    %5750 = vrot.lane.b32.xlu0 %v5748, 64
    %v5751 = vpop.permute.xlu0 %5750
    %5752 = vrot.lane.b32.xlu0 %v5749, 64
    %v5753 = vpop.permute.xlu0 %5752
    %v5756 = vmul.f32 %v5743, %v5751
    %v5757 = vmul.f32 %v5745, %v5753
    %5760 = vrot.lane.b32.xlu0 %v5756, 64
    %v5761 = vpop.permute.xlu0 %5760
    %5762 = vrot.lane.b32.xlu0 %v5757, 64
    %v5763 = vpop.permute.xlu0 %5762
    %v5766 = vadd.f32 %v3656, %v5761
    %v5767 = vadd.f32 %v3657, %v5763
    %v5768 = vtanh.pop %v5766
    %v5769 = vtanh.pop %v5767
    %v5770 = vsub.f32 1.0, %v5743
    %v5771 = vsub.f32 1.0, %v5745
    %5774 = vrot.lane.b32.xlu0 %v5768, 96
    %v5775 = vpop.permute.xlu0 %5774
    %5776 = vrot.lane.b32.xlu0 %v5769, 96
    %v5777 = vpop.permute.xlu0 %5776
    %v5780 = vmul.f32 %v5770, %v5775
    %v5781 = vmul.f32 %v5771, %v5777
    %v5782 = vrot.slane %v5499, 2
    %v5783 = vrot.slane %v5499, 3
    %5784 = vrot.lane.b32.xlu0 %v5782, 32
    %v5785 = vpop.permute.xlu0 %5784
    %5786 = vrot.lane.b32.xlu0 %v5783, 32
    %v5787 = vpop.permute.xlu0 %5786
    %v5790 = vmul.f32 %v5743, %v5785
    %v5791 = vmul.f32 %v5745, %v5787
    %v5792 = vadd.f32 %v5780, %v5790
    %v5793 = vadd.f32 %v5781, %v5791
    %v5794 = vsub.f32 %v5792, %v5785
    %v5795 = vsub.f32 %v5793, %v5787
    %v5798 = vrot.slane %v5794, 6
    %v5799 = vrot.slane %v5795, 5
    %v5800 = vsel %vm640, %v5799, %v5798
    %5801 = vrot.lane.b32.xlu0 %v5800, 96
    %v5802 = vpop.permute.xlu0 %5801
    %v5804 = vmul.f32 %v297, %v5802
    %v5805 = vadd.f32 %v5499, %v5804
    %v5806 = vmul.f32 %v297, %v5805
    %v5808 = vsel %vm316, %v5652, 0
    %5810 = vmatprep.subr.mxu0 0.0
    %5811 = vmatpush1.msra.mxu0 %v3829
    %5812 = vmatprep.subr.mxu0 0.0
    %5813 = vmatpush1.msra.mxu0 %v3830
    %5814 = vmatprep.subr.mxu0 0.0
    %5815 = vmatpush1.msra.mxu0 %v3831
    %5816 = vmatprep.subr.mxu0 0.0
    %5817 = vmatpush1.msra.mxu0 %v3832
    %5818 = vmatprep.subr.mxu0 0.0
    %5819 = vmatpush1.msra.mxu0 0.0
    %5820 = vmatprep.subr.mxu0 0.0
    %5821 = vmatpush1.msra.mxu0 0.0
    %5822 = vmatprep.subr.mxu0 0.0
    %5823 = vmatpush1.msra.mxu0 0.0
    %5824 = vmatprep.subr.mxu0 0.0
    %5825 = vmatpush1.msra.mxu0 0.0
    %5826 = vmatprep.subr.mxu0 0.0
    %5827 = vmatpush1.msra.mxu0 0.0
    %5828 = vmatprep.subr.mxu0 0.0
    %5829 = vmatpush1.msra.mxu0 0.0
    %5830 = vmatprep.subr.mxu0 0.0
    %5831 = vmatpush1.msra.mxu0 0.0
    %5832 = vmatprep.subr.mxu0 0.0
    %5833 = vmatpush1.msra.mxu0 0.0
    %5834 = vmatprep.subr.mxu0 0.0
    %5835 = vmatpush1.msra.mxu0 0.0
    %5836 = vmatprep.subr.mxu0 0.0
    %5837 = vmatpush1.msra.mxu0 0.0
    %5838 = vmatprep.subr.mxu0 0.0
    %5839 = vmatpush1.msra.mxu0 0.0
    %5840 = vmatprep.subr.mxu0 0.0
    %5841 = vmatpush1.msra.mxu0 0.0
    %5842 = vmatprep.subr.mxu0 0.0
    %5843 = vmatpush1.msra.mxu0 0.0
    %5844 = vmatprep.subr.mxu0 0.0
    %5845 = vmatpush1.msra.mxu0 0.0
    %5846 = vmatprep.subr.mxu0 0.0
    %5847 = vmatpush1.msra.mxu0 0.0
    %5848 = vmatprep.subr.mxu0 0.0
    %5849 = vmatpush1.msra.mxu0 0.0
    %5850 = vmatprep.subr.mxu0 0.0
    %5851 = vmatpush1.msra.mxu0 0.0
    %5852 = vmatprep.subr.mxu0 0.0
    %5853 = vmatpush1.msra.mxu0 0.0
    %5854 = vmatprep.subr.mxu0 0.0
    %5855 = vmatpush1.msra.mxu0 0.0
    %5856 = vmatprep.subr.mxu0 0.0
    %5857 = vmatpush1.msra.mxu0 0.0
    %5858 = vmatprep.subr.mxu0 0.0
    %5859 = vmatpush1.msra.mxu0 0.0
    %5860 = vmatprep.subr.mxu0 0.0
    %5861 = vmatpush1.msra.mxu0 0.0
    %5862 = vmatprep.subr.mxu0 0.0
    %5863 = vmatpush1.msra.mxu0 0.0
    %5864 = vmatprep.subr.mxu0 0.0
    %5865 = vmatpush1.msra.mxu0 0.0
    %5866 = vmatprep.subr.mxu0 0.0
    %5867 = vmatpush1.msra.mxu0 0.0
    %5868 = vmatprep.subr.mxu0 0.0
    %5869 = vmatpush1.msra.mxu0 0.0
    %5870 = vmatprep.subr.mxu0 0.0
    %5871 = vmatpush1.msra.mxu0 0.0
    %5872 = vmatprep.subr.mxu0 0.0
    %5873 = vmatpush1.msra.mxu0 0.0
    %5874 = vmatprep.mubr.f32.mxu0 0.0
    %5875 = vmatmul.mubr.f32.gmra.mrb[0].mxu0 %v5808
    %v5876 = vpop.f32.mrb[0].mxu0
    %v5877 = vadd.f32 0.0, %v5876
    %v5878 = vpop.f32.mrb[0].mxu0
    %5879 = vdwg.mxu0
    %v5881 = vrot.slane %v5877, 7
    %v5884 = vadd.f32 %v3823, %v5881
    %v5885 = vadd.f32 %v3824, %v5877
    %v5886 = vxor.u32 %v5884, 2147483648
    %v5887 = vxor.u32 %v5885, 2147483648
    %v5888 = vmul.f32 %v5886, 1.442695
    %v5889 = vpow.pop %v5888
    %v5890 = vmul.f32 %v5887, 1.442695
    %v5891 = vpow.pop %v5890
    %v5892 = vadd.f32 %v5889, 1.0
    %v5893 = vadd.f32 %v5891, 1.0
    %v5894 = vrcp.pop %v5892
    %v5895 = vmul.f32 1.0, %v5894
    %v5896 = vrcp.pop %v5893
    %v5897 = vmul.f32 1.0, %v5896
    %v5898 = vadd.f32 %v5877, %v4075
    %v5900 = vrot.slane %v5898, 7
    %5901 = vrot.lane.b32.xlu0 %v5900, 64
    %v5902 = vpop.permute.xlu0 %5901
    %5903 = vrot.lane.b32.xlu0 %v5898, 64
    %v5904 = vpop.permute.xlu0 %5903
    %v5907 = vmul.f32 %v5895, %v5902
    %v5908 = vmul.f32 %v5897, %v5904
    %5911 = vrot.lane.b32.xlu0 %v5907, 64
    %v5912 = vpop.permute.xlu0 %5911
    %5913 = vrot.lane.b32.xlu0 %v5908, 64
    %v5914 = vpop.permute.xlu0 %5913
    %v5917 = vadd.f32 %v3823, %v5912
    %v5918 = vadd.f32 %v3824, %v5914
    %v5919 = vtanh.pop %v5917
    %v5920 = vtanh.pop %v5918
    %v5921 = vsub.f32 1.0, %v5895
    %v5922 = vsub.f32 1.0, %v5897
    %5925 = vrot.lane.b32.xlu0 %v5919, 96
    %v5926 = vpop.permute.xlu0 %5925
    %5927 = vrot.lane.b32.xlu0 %v5920, 96
    %v5928 = vpop.permute.xlu0 %5927
    %v5931 = vmul.f32 %v5921, %v5926
    %v5932 = vmul.f32 %v5922, %v5928
    %v5933 = vrot.slane %v5652, 7
    %5934 = vrot.lane.b32.xlu0 %v5933, 32
    %v5935 = vpop.permute.xlu0 %5934
    %5936 = vrot.lane.b32.xlu0 %v5652, 32
    %v5937 = vpop.permute.xlu0 %5936
    %v5940 = vmul.f32 %v5895, %v5935
    %v5941 = vmul.f32 %v5897, %v5937
    %v5942 = vadd.f32 %v5931, %v5940
    %v5943 = vadd.f32 %v5932, %v5941
    %v5944 = vsub.f32 %v5942, %v5935
    %v5945 = vsub.f32 %v5943, %v5937
    %v5948 = vrot.slane %v5944, 1
    %v5949 = vsel %vm640, %v5945, %v5948
    %5950 = vrot.lane.b32.xlu0 %v5949, 96
    %v5951 = vpop.permute.xlu0 %5950
    %v5953 = vmul.f32 %v277, %v5951
    %v5954 = vadd.f32 %v5652, %v5953
    %v5955 = vmul.f32 %v277, %v5954
    %v5957 = vsel %vm316, %v5805, 0
    %5959 = vmatprep.subr.mxu0 0.0
    %5960 = vmatpush1.msra.mxu0 %v3825
    %5961 = vmatprep.subr.mxu0 0.0
    %5962 = vmatpush1.msra.mxu0 %v3826
    %5963 = vmatprep.subr.mxu0 0.0
    %5964 = vmatpush1.msra.mxu0 %v3827
    %5965 = vmatprep.subr.mxu0 0.0
    %5966 = vmatpush1.msra.mxu0 %v3828
    %5967 = vmatprep.subr.mxu0 0.0
    %5968 = vmatpush1.msra.mxu0 0.0
    %5969 = vmatprep.subr.mxu0 0.0
    %5970 = vmatpush1.msra.mxu0 0.0
    %5971 = vmatprep.subr.mxu0 0.0
    %5972 = vmatpush1.msra.mxu0 0.0
    %5973 = vmatprep.subr.mxu0 0.0
    %5974 = vmatpush1.msra.mxu0 0.0
    %5975 = vmatprep.subr.mxu0 0.0
    %5976 = vmatpush1.msra.mxu0 0.0
    %5977 = vmatprep.subr.mxu0 0.0
    %5978 = vmatpush1.msra.mxu0 0.0
    %5979 = vmatprep.subr.mxu0 0.0
    %5980 = vmatpush1.msra.mxu0 0.0
    %5981 = vmatprep.subr.mxu0 0.0
    %5982 = vmatpush1.msra.mxu0 0.0
    %5983 = vmatprep.subr.mxu0 0.0
    %5984 = vmatpush1.msra.mxu0 0.0
    %5985 = vmatprep.subr.mxu0 0.0
    %5986 = vmatpush1.msra.mxu0 0.0
    %5987 = vmatprep.subr.mxu0 0.0
    %5988 = vmatpush1.msra.mxu0 0.0
    %5989 = vmatprep.subr.mxu0 0.0
    %5990 = vmatpush1.msra.mxu0 0.0
    %5991 = vmatprep.subr.mxu0 0.0
    %5992 = vmatpush1.msra.mxu0 0.0
    %5993 = vmatprep.subr.mxu0 0.0
    %5994 = vmatpush1.msra.mxu0 0.0
    %5995 = vmatprep.subr.mxu0 0.0
    %5996 = vmatpush1.msra.mxu0 0.0
    %5997 = vmatprep.subr.mxu0 0.0
    %5998 = vmatpush1.msra.mxu0 0.0
    %5999 = vmatprep.subr.mxu0 0.0
    %6000 = vmatpush1.msra.mxu0 0.0
    %6001 = vmatprep.subr.mxu0 0.0
    %6002 = vmatpush1.msra.mxu0 0.0
    %6003 = vmatprep.subr.mxu0 0.0
    %6004 = vmatpush1.msra.mxu0 0.0
    %6005 = vmatprep.subr.mxu0 0.0
    %6006 = vmatpush1.msra.mxu0 0.0
    %6007 = vmatprep.subr.mxu0 0.0
    %6008 = vmatpush1.msra.mxu0 0.0
    %6009 = vmatprep.subr.mxu0 0.0
    %6010 = vmatpush1.msra.mxu0 0.0
    %6011 = vmatprep.subr.mxu0 0.0
    %6012 = vmatpush1.msra.mxu0 0.0
    %6013 = vmatprep.subr.mxu0 0.0
    %6014 = vmatpush1.msra.mxu0 0.0
    %6015 = vmatprep.subr.mxu0 0.0
    %6016 = vmatpush1.msra.mxu0 0.0
    %6017 = vmatprep.subr.mxu0 0.0
    %6018 = vmatpush1.msra.mxu0 0.0
    %6019 = vmatprep.subr.mxu0 0.0
    %6020 = vmatpush1.msra.mxu0 0.0
    %6021 = vmatprep.subr.mxu0 0.0
    %6022 = vmatpush1.msra.mxu0 0.0
    %6023 = vmatprep.mubr.f32.mxu0 0.0
    %6024 = vmatmul.mubr.f32.gmra.mrb[0].mxu0 %v5957
    %v6025 = vpop.f32.mrb[0].mxu0
    %v6026 = vadd.f32 0.0, %v6025
    %v6027 = vpop.f32.mrb[0].mxu0
    %6028 = vdwg.mxu0
    %v6030 = vrot.slane %v6026, 1
    %v6031 = vrot.slane %v6026, 2
    %v6034 = vadd.f32 %v3656, %v6030
    %v6035 = vadd.f32 %v3657, %v6031
    %v6036 = vxor.u32 %v6034, 2147483648
    %v6037 = vxor.u32 %v6035, 2147483648
    %v6038 = vmul.f32 %v6036, 1.442695
    %v6039 = vpow.pop %v6038
    %v6040 = vmul.f32 %v6037, 1.442695
    %v6041 = vpow.pop %v6040
    %v6042 = vadd.f32 %v6039, 1.0
    %v6043 = vadd.f32 %v6041, 1.0
    %v6044 = vrcp.pop %v6042
    %v6045 = vmul.f32 1.0, %v6044
    %v6046 = vrcp.pop %v6043
    %v6047 = vmul.f32 1.0, %v6046
    %v6048 = vadd.f32 %v6026, %v3934
    %v6050 = vrot.slane %v6048, 1
    %v6051 = vrot.slane %v6048, 2
    %6052 = vrot.lane.b32.xlu0 %v6050, 64
    %v6053 = vpop.permute.xlu0 %6052
    %6054 = vrot.lane.b32.xlu0 %v6051, 64
    %v6055 = vpop.permute.xlu0 %6054
    %v6058 = vmul.f32 %v6045, %v6053
    %v6059 = vmul.f32 %v6047, %v6055
    %6062 = vrot.lane.b32.xlu0 %v6058, 64
    %v6063 = vpop.permute.xlu0 %6062
    %6064 = vrot.lane.b32.xlu0 %v6059, 64
    %v6065 = vpop.permute.xlu0 %6064
    %v6068 = vadd.f32 %v3656, %v6063
    %v6069 = vadd.f32 %v3657, %v6065
    %v6070 = vtanh.pop %v6068
    %v6071 = vtanh.pop %v6069
    %v6072 = vsub.f32 1.0, %v6045
    %v6073 = vsub.f32 1.0, %v6047
    %6076 = vrot.lane.b32.xlu0 %v6070, 96
    %v6077 = vpop.permute.xlu0 %6076
    %6078 = vrot.lane.b32.xlu0 %v6071, 96
    %v6079 = vpop.permute.xlu0 %6078
    %v6082 = vmul.f32 %v6072, %v6077
    %v6083 = vmul.f32 %v6073, %v6079
    %v6084 = vrot.slane %v5805, 1
    %v6085 = vrot.slane %v5805, 2
    %6086 = vrot.lane.b32.xlu0 %v6084, 32
    %v6087 = vpop.permute.xlu0 %6086
    %6088 = vrot.lane.b32.xlu0 %v6085, 32
    %v6089 = vpop.permute.xlu0 %6088
    %v6092 = vmul.f32 %v6045, %v6087
    %v6093 = vmul.f32 %v6047, %v6089
    %v6094 = vadd.f32 %v6082, %v6092
    %v6095 = vadd.f32 %v6083, %v6093
    %v6096 = vsub.f32 %v6094, %v6087
    %v6097 = vsub.f32 %v6095, %v6089
    %v6100 = vrot.slane %v6096, 7
    %v6101 = vrot.slane %v6097, 6
    %v6102 = vsel %vm640, %v6101, %v6100
    %6103 = vrot.lane.b32.xlu0 %v6102, 96
    %v6104 = vpop.permute.xlu0 %6103
    %v6106 = vmul.f32 %v301, %v6104
    %v6107 = vadd.f32 %v5805, %v6106
    %v6108 = vmul.f32 %v301, %v6107
    %v6110 = vsel %vm316, %v5954, 0
    %6112 = vmatprep.subr.mxu0 0.0
    %6113 = vmatpush1.msra.mxu0 %v3829
    %6114 = vmatprep.subr.mxu0 0.0
    %6115 = vmatpush1.msra.mxu0 %v3830
    %6116 = vmatprep.subr.mxu0 0.0
    %6117 = vmatpush1.msra.mxu0 %v3831
    %6118 = vmatprep.subr.mxu0 0.0
    %6119 = vmatpush1.msra.mxu0 %v3832
    %6120 = vmatprep.subr.mxu0 0.0
    %6121 = vmatpush1.msra.mxu0 0.0
    %6122 = vmatprep.subr.mxu0 0.0
    %6123 = vmatpush1.msra.mxu0 0.0
    %6124 = vmatprep.subr.mxu0 0.0
    %6125 = vmatpush1.msra.mxu0 0.0
    %6126 = vmatprep.subr.mxu0 0.0
    %6127 = vmatpush1.msra.mxu0 0.0
    %6128 = vmatprep.subr.mxu0 0.0
    %6129 = vmatpush1.msra.mxu0 0.0
    %6130 = vmatprep.subr.mxu0 0.0
    %6131 = vmatpush1.msra.mxu0 0.0
    %6132 = vmatprep.subr.mxu0 0.0
    %6133 = vmatpush1.msra.mxu0 0.0
    %6134 = vmatprep.subr.mxu0 0.0
    %6135 = vmatpush1.msra.mxu0 0.0
    %6136 = vmatprep.subr.mxu0 0.0
    %6137 = vmatpush1.msra.mxu0 0.0
    %6138 = vmatprep.subr.mxu0 0.0
    %6139 = vmatpush1.msra.mxu0 0.0
    %6140 = vmatprep.subr.mxu0 0.0
    %6141 = vmatpush1.msra.mxu0 0.0
    %6142 = vmatprep.subr.mxu0 0.0
    %6143 = vmatpush1.msra.mxu0 0.0
    %6144 = vmatprep.subr.mxu0 0.0
    %6145 = vmatpush1.msra.mxu0 0.0
    %6146 = vmatprep.subr.mxu0 0.0
    %6147 = vmatpush1.msra.mxu0 0.0
    %6148 = vmatprep.subr.mxu0 0.0
    %6149 = vmatpush1.msra.mxu0 0.0
    %6150 = vmatprep.subr.mxu0 0.0
    %6151 = vmatpush1.msra.mxu0 0.0
    %6152 = vmatprep.subr.mxu0 0.0
    %6153 = vmatpush1.msra.mxu0 0.0
    %6154 = vmatprep.subr.mxu0 0.0
    %6155 = vmatpush1.msra.mxu0 0.0
    %6156 = vmatprep.subr.mxu0 0.0
    %6157 = vmatpush1.msra.mxu0 0.0
    %6158 = vmatprep.subr.mxu0 0.0
    %6159 = vmatpush1.msra.mxu0 0.0
    %6160 = vmatprep.subr.mxu0 0.0
    %6161 = vmatpush1.msra.mxu0 0.0
    %6162 = vmatprep.subr.mxu0 0.0
    %6163 = vmatpush1.msra.mxu0 0.0
    %6164 = vmatprep.subr.mxu0 0.0
    %6165 = vmatpush1.msra.mxu0 0.0
    %6166 = vmatprep.subr.mxu0 0.0
    %6167 = vmatpush1.msra.mxu0 0.0
    %6168 = vmatprep.subr.mxu0 0.0
    %6169 = vmatpush1.msra.mxu0 0.0
    %6170 = vmatprep.subr.mxu0 0.0
    %6171 = vmatpush1.msra.mxu0 0.0
    %6172 = vmatprep.subr.mxu0 0.0
    %6173 = vmatpush1.msra.mxu0 0.0
    %6174 = vmatprep.subr.mxu0 0.0
    %6175 = vmatpush1.msra.mxu0 0.0
    %6176 = vmatprep.mubr.f32.mxu0 0.0
    %6177 = vmatmul.mubr.f32.gmra.mrb[0].mxu0 %v6110
    %v6178 = vpop.f32.mrb[0].mxu0
    %v6179 = vadd.f32 0.0, %v6178
    %v6180 = vpop.f32.mrb[0].mxu0
    %6181 = vdwg.mxu0
    %v6183 = vrot.slane %v6179, 1
    %v6186 = vadd.f32 %v3823, %v6179
    %v6187 = vadd.f32 %v3824, %v6183
    %v6188 = vxor.u32 %v6186, 2147483648
    %v6189 = vxor.u32 %v6187, 2147483648
    %v6190 = vmul.f32 %v6188, 1.442695
    %v6191 = vpow.pop %v6190
    %v6192 = vmul.f32 %v6189, 1.442695
    %v6193 = vpow.pop %v6192
    %v6194 = vadd.f32 %v6191, 1.0
    %v6195 = vadd.f32 %v6193, 1.0
    %v6196 = vrcp.pop %v6194
    %v6197 = vmul.f32 1.0, %v6196
    %v6198 = vrcp.pop %v6195
    %v6199 = vmul.f32 1.0, %v6198
    %v6200 = vadd.f32 %v6179, %v4075
    %v6202 = vrot.slane %v6200, 1
    %6203 = vrot.lane.b32.xlu0 %v6200, 64
    %v6204 = vpop.permute.xlu0 %6203
    %6205 = vrot.lane.b32.xlu0 %v6202, 64
    %v6206 = vpop.permute.xlu0 %6205
    %v6209 = vmul.f32 %v6197, %v6204
    %v6210 = vmul.f32 %v6199, %v6206
    %6213 = vrot.lane.b32.xlu0 %v6209, 64
    %v6214 = vpop.permute.xlu0 %6213
    %6215 = vrot.lane.b32.xlu0 %v6210, 64
    %v6216 = vpop.permute.xlu0 %6215
    %v6219 = vadd.f32 %v3823, %v6214
    %v6220 = vadd.f32 %v3824, %v6216
    %v6221 = vtanh.pop %v6219
    %v6222 = vtanh.pop %v6220
    %v6223 = vsub.f32 1.0, %v6197
    %v6224 = vsub.f32 1.0, %v6199
    %6227 = vrot.lane.b32.xlu0 %v6221, 96
    %v6228 = vpop.permute.xlu0 %6227
    %6229 = vrot.lane.b32.xlu0 %v6222, 96
    %v6230 = vpop.permute.xlu0 %6229
    %v6233 = vmul.f32 %v6223, %v6228
    %v6234 = vmul.f32 %v6224, %v6230
    %v6235 = vrot.slane %v5954, 1
    %6236 = vrot.lane.b32.xlu0 %v5954, 32
    %v6237 = vpop.permute.xlu0 %6236
    %6238 = vrot.lane.b32.xlu0 %v6235, 32
    %v6239 = vpop.permute.xlu0 %6238
    %v6242 = vmul.f32 %v6197, %v6237
    %v6243 = vmul.f32 %v6199, %v6239
    %v6244 = vadd.f32 %v6233, %v6242
    %v6245 = vadd.f32 %v6234, %v6243
    %v6246 = vsub.f32 %v6244, %v6237
    %v6247 = vsub.f32 %v6245, %v6239
    %v6250 = vrot.slane %v6247, 7
    %v6251 = vsel %vm640, %v6250, %v6246
    %6252 = vrot.lane.b32.xlu0 %v6251, 96
    %v6253 = vpop.permute.xlu0 %6252
    %v6255 = vmul.f32 %v273, %v6253
    %v6256 = vadd.f32 %v5954, %v6255
    %v6257 = vmul.f32 %v273, %v6256
    %v6260 = vunpack.c.l.s4 1966171168
    %v6261 = vunpack.c.0.s8 %v6260
    %v6262 = vlaneseq
    %v6263 = vshrl.u32 %v6262, 7
    %v6264 = vsub.s32 %v6261, %v6263
    %v6265 = vrot.slane %v3984, %v6264
    %v6266 = vcombine.high %v6265, %v6265
    %v6268 = vunpack.c.l.s4 1966171168
    %v6269 = vunpack.c.0.s8 %v6268
    %v6270 = vlaneseq
    %v6271 = vshrl.u32 %v6270, 7
    %v6272 = vsub.s32 %v6269, %v6271
    %v6273 = vrot.slane %v6265, %v6272
    %v6275 = vunpack.c.l.s4 1966171168
    %v6276 = vunpack.c.0.s8 %v6275
    %v6277 = vlaneseq
    %v6278 = vshrl.u32 %v6277, 7
    %v6279 = vsub.s32 %v6276, %v6278
    %v6280 = vrot.slane %v6266, %v6279
    %v6285 = vunpack.c.l.s4 1966171168
    %v6286 = vunpack.c.0.s8 %v6285
    %v6287 = vlaneseq
    %v6288 = vshrl.u32 %v6287, 7
    %v6289 = vsub.s32 %v6286, %v6288
    %v6290 = vrot.slane %v4276, %v6289
    %v6291 = vcombine.high %v6290, %v6290
    %v6293 = vunpack.c.l.s4 1966171168
    %v6294 = vunpack.c.0.s8 %v6293
    %v6295 = vlaneseq
    %v6296 = vshrl.u32 %v6295, 7
    %v6297 = vsub.s32 %v6294, %v6296
    %v6298 = vrot.slane %v6290, %v6297
    %v6300 = vunpack.c.l.s4 1966171168
    %v6301 = vunpack.c.0.s8 %v6300
    %v6302 = vlaneseq
    %v6303 = vshrl.u32 %v6302, 7
    %v6304 = vsub.s32 %v6301, %v6303
    %v6305 = vrot.slane %v6291, %v6304
    %v6308 = vunpack.c.l.s4 1966171168
    %v6309 = vunpack.c.0.s8 %v6308
    %v6310 = vlaneseq
    %v6311 = vshrl.u32 %v6310, 7
    %v6312 = vsub.s32 %v6309, %v6311
    %v6313 = vrot.slane %v4582, %v6312
    %v6314 = vcombine.high %v6313, %v6313
    %v6316 = vunpack.c.l.s4 1966171168
    %v6317 = vunpack.c.0.s8 %v6316
    %v6318 = vlaneseq
    %v6319 = vshrl.u32 %v6318, 7
    %v6320 = vsub.s32 %v6317, %v6319
    %v6321 = vrot.slane %v6313, %v6320
    %v6323 = vunpack.c.l.s4 1966171168
    %v6324 = vunpack.c.0.s8 %v6323
    %v6325 = vlaneseq
    %v6326 = vshrl.u32 %v6325, 7
    %v6327 = vsub.s32 %v6324, %v6326
    %v6328 = vrot.slane %v6314, %v6327
    %v6331 = vunpack.c.l.s4 1966171168
    %v6332 = vunpack.c.0.s8 %v6331
    %v6333 = vlaneseq
    %v6334 = vshrl.u32 %v6333, 7
    %v6335 = vsub.s32 %v6332, %v6334
    %v6336 = vrot.slane %v4888, %v6335
    %v6337 = vcombine.high %v6336, %v6336
    %v6339 = vunpack.c.l.s4 1966171168
    %v6340 = vunpack.c.0.s8 %v6339
    %v6341 = vlaneseq
    %v6342 = vshrl.u32 %v6341, 7
    %v6343 = vsub.s32 %v6340, %v6342
    %v6344 = vrot.slane %v6336, %v6343
    %v6346 = vunpack.c.l.s4 1966171168
    %v6347 = vunpack.c.0.s8 %v6346
    %v6348 = vlaneseq
    %v6349 = vshrl.u32 %v6348, 7
    %v6350 = vsub.s32 %v6347, %v6349
    %v6351 = vrot.slane %v6337, %v6350
    %v6354 = vunpack.c.l.s4 1966171168
    %v6355 = vunpack.c.0.s8 %v6354
    %v6356 = vlaneseq
    %v6357 = vshrl.u32 %v6356, 7
    %v6358 = vsub.s32 %v6355, %v6357
    %v6359 = vrot.slane %v5194, %v6358
    %v6360 = vcombine.high %v6359, %v6359
    %v6362 = vunpack.c.l.s4 1966171168
    %v6363 = vunpack.c.0.s8 %v6362
    %v6364 = vlaneseq
    %v6365 = vshrl.u32 %v6364, 7
    %v6366 = vsub.s32 %v6363, %v6365
    %v6367 = vrot.slane %v6359, %v6366
    %v6369 = vunpack.c.l.s4 1966171168
    %v6370 = vunpack.c.0.s8 %v6369
    %v6371 = vlaneseq
    %v6372 = vshrl.u32 %v6371, 7
    %v6373 = vsub.s32 %v6370, %v6372
    %v6374 = vrot.slane %v6360, %v6373
    %v6377 = vunpack.c.l.s4 1966171168
    %v6378 = vunpack.c.0.s8 %v6377
    %v6379 = vlaneseq
    %v6380 = vshrl.u32 %v6379, 7
    %v6381 = vsub.s32 %v6378, %v6380
    %v6382 = vrot.slane %v5500, %v6381
    %v6383 = vcombine.high %v6382, %v6382
    %v6385 = vunpack.c.l.s4 1966171168
    %v6386 = vunpack.c.0.s8 %v6385
    %v6387 = vlaneseq
    %v6388 = vshrl.u32 %v6387, 7
    %v6389 = vsub.s32 %v6386, %v6388
    %v6390 = vrot.slane %v6382, %v6389
    %v6392 = vunpack.c.l.s4 1966171168
    %v6393 = vunpack.c.0.s8 %v6392
    %v6394 = vlaneseq
    %v6395 = vshrl.u32 %v6394, 7
    %v6396 = vsub.s32 %v6393, %v6395
    %v6397 = vrot.slane %v6383, %v6396
    %v6400 = vunpack.c.l.s4 1966171168
    %v6401 = vunpack.c.0.s8 %v6400
    %v6402 = vlaneseq
    %v6403 = vshrl.u32 %v6402, 7
    %v6404 = vsub.s32 %v6401, %v6403
    %v6405 = vrot.slane %v5806, %v6404
    %v6406 = vcombine.high %v6405, %v6405
    %v6408 = vunpack.c.l.s4 1966171168
    %v6409 = vunpack.c.0.s8 %v6408
    %v6410 = vlaneseq
    %v6411 = vshrl.u32 %v6410, 7
    %v6412 = vsub.s32 %v6409, %v6411
    %v6413 = vrot.slane %v6405, %v6412
    %v6415 = vunpack.c.l.s4 1966171168
    %v6416 = vunpack.c.0.s8 %v6415
    %v6417 = vlaneseq
    %v6418 = vshrl.u32 %v6417, 7
    %v6419 = vsub.s32 %v6416, %v6418
    %v6420 = vrot.slane %v6406, %v6419
    %v6423 = vunpack.c.l.s4 1966171168
    %v6424 = vunpack.c.0.s8 %v6423
    %v6425 = vlaneseq
    %v6426 = vshrl.u32 %v6425, 7
    %v6427 = vsub.s32 %v6424, %v6426
    %v6428 = vrot.slane %v6108, %v6427
    %v6429 = vcombine.high %v6428, %v6428
    %v6431 = vunpack.c.l.s4 1966171168
    %v6432 = vunpack.c.0.s8 %v6431
    %v6433 = vlaneseq
    %v6434 = vshrl.u32 %v6433, 7
    %v6435 = vsub.s32 %v6432, %v6434
    %v6436 = vrot.slane %v6428, %v6435
    %v6438 = vunpack.c.l.s4 1966171168
    %v6439 = vunpack.c.0.s8 %v6438
    %v6440 = vlaneseq
    %v6441 = vshrl.u32 %v6440, 7
    %v6442 = vsub.s32 %v6439, %v6441
    %v6443 = vrot.slane %v6429, %v6442
    %v6444 = vlaneseq
    %v6445 = vshrl.u32 %v6444, 7
    %v6446 = vsub.s32 0, %v6445
    %v6447 = vrot.slane %v6298, %v6446
    %v6448 = vlaneseq
    %v6449 = vshrl.u32 %v6448, 7
    %v6450 = vsub.s32 0, %v6449
    %v6451 = vrot.slane %v6305, %v6450
    %v6454 = vlaneseq
    %v6455 = vshrl.u32 %v6454, 7
    %v6456 = vsub.s32 0, %v6455
    %v6457 = vrot.slane %v6321, %v6456
    %v6458 = vlaneseq
    %v6459 = vshrl.u32 %v6458, 7
    %v6460 = vsub.s32 0, %v6459
    %v6461 = vrot.slane %v6328, %v6460
    %v6464 = vlaneseq
    %v6465 = vshrl.u32 %v6464, 7
    %v6466 = vsub.s32 0, %v6465
    %v6467 = vrot.slane %v6344, %v6466
    %v6468 = vlaneseq
    %v6469 = vshrl.u32 %v6468, 7
    %v6470 = vsub.s32 0, %v6469
    %v6471 = vrot.slane %v6351, %v6470
    %v6474 = vlaneseq
    %v6475 = vshrl.u32 %v6474, 7
    %v6476 = vsub.s32 0, %v6475
    %v6477 = vrot.slane %v6367, %v6476
    %v6478 = vlaneseq
    %v6479 = vshrl.u32 %v6478, 7
    %v6480 = vsub.s32 0, %v6479
    %v6481 = vrot.slane %v6374, %v6480
    %v6484 = vlaneseq
    %v6485 = vshrl.u32 %v6484, 7
    %v6486 = vsub.s32 0, %v6485
    %v6487 = vrot.slane %v6390, %v6486
    %v6488 = vlaneseq
    %v6489 = vshrl.u32 %v6488, 7
    %v6490 = vsub.s32 0, %v6489
    %v6491 = vrot.slane %v6397, %v6490
    %v6494 = vlaneseq
    %v6495 = vshrl.u32 %v6494, 7
    %v6496 = vsub.s32 0, %v6495
    %v6497 = vrot.slane %v6413, %v6496
    %v6498 = vlaneseq
    %v6499 = vshrl.u32 %v6498, 7
    %v6500 = vsub.s32 0, %v6499
    %v6501 = vrot.slane %v6420, %v6500
    %v6504 = vlaneseq
    %v6505 = vshrl.u32 %v6504, 7
    %v6506 = vsub.s32 0, %v6505
    %v6507 = vrot.slane %v6436, %v6506
    %v6508 = vlaneseq
    %v6509 = vshrl.u32 %v6508, 7
    %v6510 = vsub.s32 0, %v6509
    %v6511 = vrot.slane %v6443, %v6510
    %v6514 = vsel %vm3177, %v6273, %v6447
    %v6515 = vsel %vm3177, %v6280, %v6451
    %v6516 = vsel %vm3180, %v6514, %v6457
    %v6517 = vsel %vm3180, %v6515, %v6461
    %v6518 = vsel %vm3183, %v6516, %v6467
    %v6519 = vsel %vm3183, %v6517, %v6471
    %v6520 = vsel %vm3186, %v6518, %v6477
    %v6521 = vsel %vm3186, %v6519, %v6481
    %v6522 = vsel %vm3189, %v6520, %v6487
    %v6523 = vsel %vm3189, %v6521, %v6491
    %v6524 = vsel %vm3192, %v6522, %v6497
    %v6525 = vsel %vm3192, %v6523, %v6501
    %v6526 = vsel %vm3195, %v6524, %v6507
    %v6527 = vsel %vm3195, %v6525, %v6511
    %v6530 = vunpack.c.l.s4 1966171168
    %v6531 = vunpack.c.0.s8 %v6530
    %v6532 = vlaneseq
    %v6533 = vshrl.u32 %v6532, 7
    %v6534 = vsub.s32 %v6531, %v6533
    %v6535 = vrot.slane %v6257, %v6534
    %v6536 = vcombine.high %v6535, %v6535
    %v6538 = vunpack.c.l.s4 1966171168
    %v6539 = vunpack.c.0.s8 %v6538
    %v6540 = vlaneseq
    %v6541 = vshrl.u32 %v6540, 7
    %v6542 = vsub.s32 %v6539, %v6541
    %v6543 = vrot.slane %v6535, %v6542
    %v6545 = vunpack.c.l.s4 1966171168
    %v6546 = vunpack.c.0.s8 %v6545
    %v6547 = vlaneseq
    %v6548 = vshrl.u32 %v6547, 7
    %v6549 = vsub.s32 %v6546, %v6548
    %v6550 = vrot.slane %v6536, %v6549
    %v6555 = vunpack.c.l.s4 1966171168
    %v6556 = vunpack.c.0.s8 %v6555
    %v6557 = vlaneseq
    %v6558 = vshrl.u32 %v6557, 7
    %v6559 = vsub.s32 %v6556, %v6558
    %v6560 = vrot.slane %v5955, %v6559
    %v6561 = vcombine.high %v6560, %v6560
    %v6563 = vunpack.c.l.s4 1966171168
    %v6564 = vunpack.c.0.s8 %v6563
    %v6565 = vlaneseq
    %v6566 = vshrl.u32 %v6565, 7
    %v6567 = vsub.s32 %v6564, %v6566
    %v6568 = vrot.slane %v6560, %v6567
    %v6570 = vunpack.c.l.s4 1966171168
    %v6571 = vunpack.c.0.s8 %v6570
    %v6572 = vlaneseq
    %v6573 = vshrl.u32 %v6572, 7
    %v6574 = vsub.s32 %v6571, %v6573
    %v6575 = vrot.slane %v6561, %v6574
    %v6578 = vunpack.c.l.s4 1966171168
    %v6579 = vunpack.c.0.s8 %v6578
    %v6580 = vlaneseq
    %v6581 = vshrl.u32 %v6580, 7
    %v6582 = vsub.s32 %v6579, %v6581
    %v6583 = vrot.slane %v5653, %v6582
    %v6584 = vcombine.high %v6583, %v6583
    %v6586 = vunpack.c.l.s4 1966171168
    %v6587 = vunpack.c.0.s8 %v6586
    %v6588 = vlaneseq
    %v6589 = vshrl.u32 %v6588, 7
    %v6590 = vsub.s32 %v6587, %v6589
    %v6591 = vrot.slane %v6583, %v6590
    %v6593 = vunpack.c.l.s4 1966171168
    %v6594 = vunpack.c.0.s8 %v6593
    %v6595 = vlaneseq
    %v6596 = vshrl.u32 %v6595, 7
    %v6597 = vsub.s32 %v6594, %v6596
    %v6598 = vrot.slane %v6584, %v6597
    %v6601 = vunpack.c.l.s4 1966171168
    %v6602 = vunpack.c.0.s8 %v6601
    %v6603 = vlaneseq
    %v6604 = vshrl.u32 %v6603, 7
    %v6605 = vsub.s32 %v6602, %v6604
    %v6606 = vrot.slane %v5347, %v6605
    %v6607 = vcombine.high %v6606, %v6606
    %v6609 = vunpack.c.l.s4 1966171168
    %v6610 = vunpack.c.0.s8 %v6609
    %v6611 = vlaneseq
    %v6612 = vshrl.u32 %v6611, 7
    %v6613 = vsub.s32 %v6610, %v6612
    %v6614 = vrot.slane %v6606, %v6613
    %v6616 = vunpack.c.l.s4 1966171168
    %v6617 = vunpack.c.0.s8 %v6616
    %v6618 = vlaneseq
    %v6619 = vshrl.u32 %v6618, 7
    %v6620 = vsub.s32 %v6617, %v6619
    %v6621 = vrot.slane %v6607, %v6620
    %v6624 = vunpack.c.l.s4 1966171168
    %v6625 = vunpack.c.0.s8 %v6624
    %v6626 = vlaneseq
    %v6627 = vshrl.u32 %v6626, 7
    %v6628 = vsub.s32 %v6625, %v6627
    %v6629 = vrot.slane %v5041, %v6628
    %v6630 = vcombine.high %v6629, %v6629
    %v6632 = vunpack.c.l.s4 1966171168
    %v6633 = vunpack.c.0.s8 %v6632
    %v6634 = vlaneseq
    %v6635 = vshrl.u32 %v6634, 7
    %v6636 = vsub.s32 %v6633, %v6635
    %v6637 = vrot.slane %v6629, %v6636
    %v6639 = vunpack.c.l.s4 1966171168
    %v6640 = vunpack.c.0.s8 %v6639
    %v6641 = vlaneseq
    %v6642 = vshrl.u32 %v6641, 7
    %v6643 = vsub.s32 %v6640, %v6642
    %v6644 = vrot.slane %v6630, %v6643
    %v6647 = vunpack.c.l.s4 1966171168
    %v6648 = vunpack.c.0.s8 %v6647
    %v6649 = vlaneseq
    %v6650 = vshrl.u32 %v6649, 7
    %v6651 = vsub.s32 %v6648, %v6650
    %v6652 = vrot.slane %v4735, %v6651
    %v6653 = vcombine.high %v6652, %v6652
    %v6655 = vunpack.c.l.s4 1966171168
    %v6656 = vunpack.c.0.s8 %v6655
    %v6657 = vlaneseq
    %v6658 = vshrl.u32 %v6657, 7
    %v6659 = vsub.s32 %v6656, %v6658
    %v6660 = vrot.slane %v6652, %v6659
    %v6662 = vunpack.c.l.s4 1966171168
    %v6663 = vunpack.c.0.s8 %v6662
    %v6664 = vlaneseq
    %v6665 = vshrl.u32 %v6664, 7
    %v6666 = vsub.s32 %v6663, %v6665
    %v6667 = vrot.slane %v6653, %v6666
    %v6670 = vunpack.c.l.s4 1966171168
    %v6671 = vunpack.c.0.s8 %v6670
    %v6672 = vlaneseq
    %v6673 = vshrl.u32 %v6672, 7
    %v6674 = vsub.s32 %v6671, %v6673
    %v6675 = vrot.slane %v4429, %v6674
    %v6676 = vcombine.high %v6675, %v6675
    %v6678 = vunpack.c.l.s4 1966171168
    %v6679 = vunpack.c.0.s8 %v6678
    %v6680 = vlaneseq
    %v6681 = vshrl.u32 %v6680, 7
    %v6682 = vsub.s32 %v6679, %v6681
    %v6683 = vrot.slane %v6675, %v6682
    %v6685 = vunpack.c.l.s4 1966171168
    %v6686 = vunpack.c.0.s8 %v6685
    %v6687 = vlaneseq
    %v6688 = vshrl.u32 %v6687, 7
    %v6689 = vsub.s32 %v6686, %v6688
    %v6690 = vrot.slane %v6676, %v6689
    %v6693 = vunpack.c.l.s4 1966171168
    %v6694 = vunpack.c.0.s8 %v6693
    %v6695 = vlaneseq
    %v6696 = vshrl.u32 %v6695, 7
    %v6697 = vsub.s32 %v6694, %v6696
    %v6698 = vrot.slane %v4127, %v6697
    %v6699 = vcombine.high %v6698, %v6698
    %v6701 = vunpack.c.l.s4 1966171168
    %v6702 = vunpack.c.0.s8 %v6701
    %v6703 = vlaneseq
    %v6704 = vshrl.u32 %v6703, 7
    %v6705 = vsub.s32 %v6702, %v6704
    %v6706 = vrot.slane %v6698, %v6705
    %v6708 = vunpack.c.l.s4 1966171168
    %v6709 = vunpack.c.0.s8 %v6708
    %v6710 = vlaneseq
    %v6711 = vshrl.u32 %v6710, 7
    %v6712 = vsub.s32 %v6709, %v6711
    %v6713 = vrot.slane %v6699, %v6712
    %v6714 = vlaneseq
    %v6715 = vshrl.u32 %v6714, 7
    %v6716 = vsub.s32 0, %v6715
    %v6717 = vrot.slane %v6568, %v6716
    %v6718 = vlaneseq
    %v6719 = vshrl.u32 %v6718, 7
    %v6720 = vsub.s32 0, %v6719
    %v6721 = vrot.slane %v6575, %v6720
    %v6724 = vlaneseq
    %v6725 = vshrl.u32 %v6724, 7
    %v6726 = vsub.s32 0, %v6725
    %v6727 = vrot.slane %v6591, %v6726
    %v6728 = vlaneseq
    %v6729 = vshrl.u32 %v6728, 7
    %v6730 = vsub.s32 0, %v6729
    %v6731 = vrot.slane %v6598, %v6730
    %v6734 = vlaneseq
    %v6735 = vshrl.u32 %v6734, 7
    %v6736 = vsub.s32 0, %v6735
    %v6737 = vrot.slane %v6614, %v6736
    %v6738 = vlaneseq
    %v6739 = vshrl.u32 %v6738, 7
    %v6740 = vsub.s32 0, %v6739
    %v6741 = vrot.slane %v6621, %v6740
    %v6744 = vlaneseq
    %v6745 = vshrl.u32 %v6744, 7
    %v6746 = vsub.s32 0, %v6745
    %v6747 = vrot.slane %v6637, %v6746
    %v6748 = vlaneseq
    %v6749 = vshrl.u32 %v6748, 7
    %v6750 = vsub.s32 0, %v6749
    %v6751 = vrot.slane %v6644, %v6750
    %v6754 = vlaneseq
    %v6755 = vshrl.u32 %v6754, 7
    %v6756 = vsub.s32 0, %v6755
    %v6757 = vrot.slane %v6660, %v6756
    %v6758 = vlaneseq
    %v6759 = vshrl.u32 %v6758, 7
    %v6760 = vsub.s32 0, %v6759
    %v6761 = vrot.slane %v6667, %v6760
    %v6764 = vlaneseq
    %v6765 = vshrl.u32 %v6764, 7
    %v6766 = vsub.s32 0, %v6765
    %v6767 = vrot.slane %v6683, %v6766
    %v6768 = vlaneseq
    %v6769 = vshrl.u32 %v6768, 7
    %v6770 = vsub.s32 0, %v6769
    %v6771 = vrot.slane %v6690, %v6770
    %v6774 = vlaneseq
    %v6775 = vshrl.u32 %v6774, 7
    %v6776 = vsub.s32 0, %v6775
    %v6777 = vrot.slane %v6706, %v6776
    %v6778 = vlaneseq
    %v6779 = vshrl.u32 %v6778, 7
    %v6780 = vsub.s32 0, %v6779
    %v6781 = vrot.slane %v6713, %v6780
    %v6784 = vsel %vm3177, %v6543, %v6717
    %v6785 = vsel %vm3177, %v6550, %v6721
    %v6786 = vsel %vm3180, %v6784, %v6727
    %v6787 = vsel %vm3180, %v6785, %v6731
    %v6788 = vsel %vm3183, %v6786, %v6737
    %v6789 = vsel %vm3183, %v6787, %v6741
    %v6790 = vsel %vm3186, %v6788, %v6747
    %v6791 = vsel %vm3186, %v6789, %v6751
    %v6792 = vsel %vm3189, %v6790, %v6757
    %v6793 = vsel %vm3189, %v6791, %v6761
    %v6794 = vsel %vm3192, %v6792, %v6767
    %v6795 = vsel %vm3192, %v6793, %v6771
    %v6796 = vsel %vm3195, %v6794, %v6777
    %v6797 = vsel %vm3195, %v6795, %v6781
    %s6798 = scalar_lea.vmem [#allocation28], 16
    %6799 = vst.msk [vmem:[%s6798] sm:$0xff] %vm316, %v6526
    %6800 = vst.msk [vmem:[%s6798 + $0x8] sm:$0xff] %vm316, %v6527
    %6803 = vrot.lane.b32.xlu0 %v6796, 32
    %v6804 = vpop.permute.xlu0 %6803
    %6805 = vrot.lane.b32.xlu0 %v6797, 32
    %v6806 = vpop.permute.xlu0 %6805
    %6809 = vst.msk [vmem:[%s6798] sm:$0xff] %vm3478, %v6804
    %6810 = vst.msk [vmem:[%s6798 + $0x8] sm:$0xff] %vm3478, %v6806
    // Predicated region
    $region146: #{tpu_custom_call.1} parent=1 // pred_check
      _
    $region147: #{tpu_custom_call.1} parent=1 // pred_check_branch
      %6812 = sbr.rel (0) target = $region149
    $region148: #{tpu_custom_call.1} parent=1 // pred_region
      %s6814 = ssub.s32 512, 512
      %6815 = vsyncadd [#allocation4], %s6814
      %s6816 = sshll.u32 [#allocation28], 4
      %s6817 = int_to_ptr.vmem [resolvable:$true] %s6816
      %6822 = dma.vmem_to_hbm [thread:$0]  %s6817, 512, %s20, [#allocation4], 128, 128, 8
    $region149: #{tpu_custom_call.1} parent=1 // pred_fallthru
      _
    // Predicated region
    $region150: #{tpu_custom_call.1} parent=1 // pred_check
      _
    $region151: #{tpu_custom_call.1} parent=1 // pred_check_branch
      %6824 = sbr.rel (0) target = $region153
    $region152: #{tpu_custom_call.1} parent=1 // pred_region
      %6825 = dma.done [#allocation4], 512
    $region153: #{tpu_custom_call.1} parent=1 // pred_fallthru
      _
    %6826 = vsyncpa [#allocation3], 1
    %6827 = vsyncpa [#allocation6], 1
    %6828 = vsyncpa [#allocation9], 1
    %6829 = vsyncpa [#allocation12], 1
    %6830 = vsyncpa [#allocation15], 1
    %6831 = vsyncpa [#allocation18], 1
    %6832 = vsyncpa [#allocation21], 1
    %6833 = vsyncpa [#allocation24], 1
    %6834 = vsyncpa [#allocation27], 1
    %6835 = vsyncpa [#allocation4], 1

</llo_original>
